<compile_context>
chip_gen: v7x
topology: tpu7x:2x2x1
jax: 0.10.0
libtpu: 0.0.40
codegen_flags: <defaults>
</compile_context>

<pallas_src>
from typing import NamedTuple

import jax
import jax.numpy as jnp
from jax.experimental import pallas as pl
from jax.experimental.pallas import tpu as pltpu

# ---------------------------------------------------------------------------
# Model dimensions (small, consistent with the forward signature)
# ---------------------------------------------------------------------------
B = 2            # batch
C_IN = 4         # unet.in_channels (latent channels)
H = W = 16       # latent spatial
F = 32           # block feature channels
S = 8            # encoder_hidden_states sequence length
D_TEXT = 32      # encoder_hidden_states hidden dim / text_embeds dim
N_TIME_IDS = 6   # SDXL time_ids
TEMB_DIM = 32    # timestep embedding / time_embed dim
C_OUT_PAD = 128  # lane-dense padded output channels (real channels = C_IN)


class UNet2DConditionOutput(NamedTuple):
    sample: jnp.ndarray


# ---------------------------------------------------------------------------
# In-kernel helpers (operate on VMEM values only)
# ---------------------------------------------------------------------------
def _silu(x):
    return x * jax.nn.sigmoid(x)


def _conv3x3_im2col(x_bhwc, w_flat_bf16, bias_row, *, silu_input):
    """3x3 same-padding conv over the whole block as ONE im2col matmul.

    x_bhwc: (Bb,H,W,cin) f32 value; w_flat_bf16: (9*cin,cout) bf16 value
    (ky,kx,cin rows); bias_row: (1,cout) f32.  Patches are materialized in
    bf16.  SiLU is applied before the zero padding (silu(0)=0, so the zero
    halo stays exact).
    """
    Bb, Hh, Ww, cin = x_bhwc.shape
    cout = w_flat_bf16.shape[1]
    xv = _silu(x_bhwc) if silu_input else x_bhwc
    xv = xv.astype(jnp.bfloat16)
    zrow = jnp.zeros((Bb, 1, Ww, cin), jnp.bfloat16)
    zcol = jnp.zeros((Bb, Hh + 2, 1, cin), jnp.bfloat16)
    xp = jnp.concatenate([zrow, xv, zrow], axis=1)          # (Bb,H+2,W,  cin)
    xp = jnp.concatenate([zcol, xp, zcol], axis=2)          # (Bb,H+2,W+2,cin)
    # TODO(synk): if bundle dumps show the nine 32-lane-offset concats are
    # XLU/store bound, stack taps along a leading axis and contract (tap,cin)
    # with one dot_general so every chunk lands 128-lane aligned.
    cols = [xp[:, ky:ky + Hh, kx:kx + Ww, :]
            for ky in range(3) for kx in range(3)]
    patches = jnp.concatenate(cols, axis=-1)                # (Bb,H,W,9*cin) bf16
    patches = patches.reshape(Bb * Hh * Ww, 9 * cin)
    y = jax.lax.dot_general(patches, w_flat_bf16, (((1,), (0,)), ((), ())),
                            preferred_element_type=jnp.float32) + bias_row
    return y.reshape(Bb, Hh, Ww, cout)


# ---------------------------------------------------------------------------
# The single fused Pallas kernel
# ---------------------------------------------------------------------------
def _unet_fused_kernel(
    x_ref, temb_ref, aug_ref, enc_ref,
    tw1_ref, tb1_ref, tw2_ref, tb2_ref,
    aw1_ref, ab1_ref, aw2_ref, ab2_ref,
    ciw_ref, cib_ref,
    r1w_ref, r1b_ref, rtw_ref, rtb_ref, r2w_ref, r2b_ref,
    wq_ref, wkv_ref, wo_ref,
    cow_ref, cob_ref,
    o_ref,
):
    f32 = jnp.float32
    bf16 = jnp.bfloat16
    Bb = x_ref.shape[0]          # per-program batch (1 on v7x grid, B otherwise)

    # ---- time-embedding MLP + SDXL added-cond MLP (tiny; kept f32) ----
    emb = jnp.dot(temb_ref[...], tw1_ref[...],
                  preferred_element_type=f32) + tb1_ref[...]
    emb = _silu(emb)
    emb = jnp.dot(emb, tw2_ref[...],
                  preferred_element_type=f32) + tb2_ref[...]

    aemb = jnp.dot(aug_ref[...], aw1_ref[...],
                   preferred_element_type=f32) + ab1_ref[...]
    aemb = _silu(aemb)
    aemb = jnp.dot(aemb, aw2_ref[...],
                   preferred_element_type=f32) + ab2_ref[...]
    emb = emb + aemb                                         # (Bb, TEMB_DIM)

    # resnet time-embedding projection: silu(emb @ w + b)
    temb_proj = _silu(jnp.dot(emb, rtw_ref[...],
                              preferred_element_type=f32) + rtb_ref[...])

    # ---- conv_in ----
    h = _conv3x3_im2col(x_ref[...], ciw_ref[...], cib_ref[...],
                        silu_input=False)                    # (Bb,H,W,F)

    # ---- resnet block with time-embedding injection ----
    # F=32 fills only 32/128 lanes for these VPU stages; left as-is because
    # the kernel is im2col-store bound at these shapes, not VALU bound.
    h2 = _conv3x3_im2col(h, r1w_ref[...], r1b_ref[...], silu_input=True)
    h2 = h2 + temb_proj[:, None, None, :]
    h2 = _conv3x3_im2col(h2, r2w_ref[...], r2b_ref[...], silu_input=True)
    h = h + h2

    # ---- single-head cross-attention (per-batch; scale folded into Wq) ----
    N = H * W
    tok16 = h.reshape(Bb, N, F).astype(bf16)
    q = jnp.einsum("bnf,fk->bnk", tok16, wq_ref[...],
                   preferred_element_type=f32)               # (Bb,N,F)
    enc16 = enc_ref[...].astype(bf16)                        # (Bb,S,D_TEXT)
    kv = jnp.einsum("bsd,dk->bsk", enc16, wkv_ref[...],
                    preferred_element_type=f32)              # (Bb,S,2F)
    kv16 = kv.astype(bf16)
    k16 = kv16[..., :F]
    v16 = kv16[..., F:]
    s = jnp.einsum("bnf,bsf->bns", q.astype(bf16), k16,
                   preferred_element_type=f32)               # (Bb,N,S) f32
    m = jnp.max(s, axis=-1, keepdims=True)
    p = jnp.exp(s - m)
    inv = pl.reciprocal(jnp.sum(p, axis=-1, keepdims=True), approx=True)
    p = (p * inv).astype(bf16)
    attn = jnp.einsum("bns,bsf->bnf", p, v16,
                      preferred_element_type=f32)            # (Bb,N,F)
    attn = jnp.einsum("bnf,fk->bnk", attn.astype(bf16), wo_ref[...],
                      preferred_element_type=f32)
    h = h + attn.reshape(Bb, H, W, F)

    # ---- conv_out (N zero-padded to 128 -> unmasked lane-dense stores) ----
    out = _conv3x3_im2col(h, cow_ref[...], cob_ref[...], silu_input=True)
    o_ref[...] = out.reshape(Bb * H * W, C_OUT_PAD)


# ---------------------------------------------------------------------------
# pallas_call wrapper
# ---------------------------------------------------------------------------
_WEIGHT_KEYS = (
    "time_w1", "time_b1", "time_w2", "time_b2",
    "add_w1", "add_b1", "add_w2", "add_b2",
    "conv_in_w", "conv_in_b",
    "res_conv1_w", "res_conv1_b", "res_temb_w", "res_temb_b",
    "res_conv2_w", "res_conv2_b",
    "attn_wq", "attn_wkv", "attn_wo",
    "conv_out_w", "conv_out_b",
)


def _num_batch_blocks():
    # v7x has 2 TensorCores per chip: grid over batch so both execute.
    # v5e/v6e have a single TC: keep one grid step (no per-step overhead).
    try:
        kind = jax.devices()[0].device_kind.lower()
    except Exception:
        return 1
    return B if "v7" in kind else 1


def _unet_pallas(x_nhwc, t_emb, aug, enc, p):
    nb = _num_batch_blocks()
    Bb = B // nb

    def batch_spec(shape):
        nd = len(shape)
        return pl.BlockSpec((Bb,) + tuple(shape[1:]),
                            lambda b, _n=nd: (b,) + (0,) * (_n - 1),
                            memory_space=pltpu.MemorySpace.VMEM)

    def full_spec(arr):
        nd = arr.ndim
        return pl.BlockSpec(tuple(arr.shape),
                            lambda b, _n=nd: (0,) * _n,
                            memory_space=pltpu.MemorySpace.VMEM)

    weights = [p[k] for k in _WEIGHT_KEYS]
    in_specs = ([batch_spec(x_nhwc.shape), batch_spec(t_emb.shape),
                 batch_spec(aug.shape), batch_spec(enc.shape)]
                + [full_spec(w) for w in weights])
    out_specs = pl.BlockSpec((Bb * H * W, C_OUT_PAD), lambda b: (b, 0),
                             memory_space=pltpu.MemorySpace.VMEM)

    return pl.pallas_call(
        _unet_fused_kernel,
        out_shape=jax.ShapeDtypeStruct((B * H * W, C_OUT_PAD), jnp.float32),
        grid_spec=pltpu.PrefetchScalarGridSpec(
            num_scalar_prefetch=0, grid=(nb,),
            in_specs=in_specs, out_specs=out_specs),
        compiler_params=pltpu.CompilerParams(
            dimension_semantics=("parallel",),
            vmem_limit_bytes=32 * 1024 * 1024),
        cost_estimate=pl.CostEstimate(flops=65_000_000,
                                      transcendentals=80_000,
                                      bytes_accessed=450_000),
    )(x_nhwc, t_emb, aug, enc, *weights)


# ---------------------------------------------------------------------------
# Glue (plain JAX): timestep embedding, parameter init, forward orchestration
# ---------------------------------------------------------------------------
def timestep_embedding(t, dim):
    half = dim // 2
    freqs = jnp.exp(-jnp.log(10000.0) *
                    jnp.arange(half, dtype=jnp.float32) / half)
    args = t[:, None] * freqs[None, :]
    return jnp.concatenate([jnp.sin(args), jnp.cos(args)], axis=-1)


def init_params(key):
    ks = iter(jax.random.split(key, 24))
    bf16 = jnp.bfloat16

    def w(shape):
        return jax.random.normal(next(ks), shape, jnp.float32) * 0.05

    def b(n):
        return jnp.zeros((1, n), jnp.float32)   # biases as (1, N) rows

    def conv_w(cin, cout, pad_to=None):
        # stored pre-flattened (ky, kx, cin) -> rows, bf16, for im2col matmul
        wf = w((3, 3, cin, cout)).reshape(9 * cin, cout)
        if pad_to is not None and pad_to > cout:
            wf = jnp.pad(wf, ((0, 0), (0, pad_to - cout)))
        return wf.astype(bf16)

    scale = jnp.float32(1.0 / (F ** 0.5))

    return {
        # time_embedding MLP (kept f32: time_ids values up to 1024)
        "time_w1": w((TEMB_DIM, TEMB_DIM)), "time_b1": b(TEMB_DIM),
        "time_w2": w((TEMB_DIM, TEMB_DIM)), "time_b2": b(TEMB_DIM),
        # add_embedding (text_embeds ++ time_ids)
        "add_w1": w((D_TEXT + N_TIME_IDS, TEMB_DIM)), "add_b1": b(TEMB_DIM),
        "add_w2": w((TEMB_DIM, TEMB_DIM)), "add_b2": b(TEMB_DIM),
        # conv_in
        "conv_in_w": conv_w(C_IN, F), "conv_in_b": b(F),
        # resnet block
        "res_conv1_w": conv_w(F, F), "res_conv1_b": b(F),
        "res_temb_w": w((TEMB_DIM, F)), "res_temb_b": b(F),
        "res_conv2_w": conv_w(F, F), "res_conv2_b": b(F),
        # cross-attention: 1/sqrt(F) folded into Wq; K,V fused; stored bf16
        "attn_wq": (w((F, F)) * scale).astype(bf16),
        "attn_wkv": jnp.concatenate([w((D_TEXT, F)), w((D_TEXT, F))],
                                    axis=1).astype(bf16),
        "attn_wo": w((F, F)).astype(bf16),
        # conv_out: output channels zero-padded C_IN -> 128 (lane-dense)
        "conv_out_w": conv_w(F, C_IN, pad_to=C_OUT_PAD),
        "conv_out_b": jnp.zeros((1, C_OUT_PAD), jnp.float32),
    }


def neuron_unet_forward(params, sample, timestep, encoder_hidden_states,
                        added_cond_kwargs=None, return_dict=False,
                        cross_attention_kwargs=None):
    # external layout is PyTorch NCHW; the kernel computes in NHWC.
    assert sample.shape == (B, C_IN, H, W), \
        "kernel is specialized to sample shape (2, 4, 16, 16)"
    Bn = sample.shape[0]
    # timestep.float().expand((sample.shape[0],))
    t = jnp.broadcast_to(jnp.asarray(timestep, jnp.float32), (Bn,))
    text_embeds = added_cond_kwargs["text_embeds"].astype(jnp.float32)
    time_ids = added_cond_kwargs["time_ids"].astype(jnp.float32)

    t_emb = timestep_embedding(t, TEMB_DIM)                      # (B, TEMB_DIM)
    aug = jnp.concatenate([text_embeds, time_ids], axis=-1)      # (B, 38)

    x_nhwc = jnp.transpose(sample, (0, 2, 3, 1)).astype(jnp.float32)

    out_flat = _unet_pallas(x_nhwc, t_emb, aug,
                            encoder_hidden_states.astype(jnp.float32), params)
    out = out_flat[:, :C_IN].reshape(Bn, H, W, C_IN)             # drop pad lanes
    out = jnp.transpose(out, (0, 3, 1, 2))                       # back to NCHW
    return UNet2DConditionOutput(sample=out)


# ---------------------------------------------------------------------------
if __name__ == "__main__":
    key = jax.random.PRNGKey(0)
    k_param, k_sample, k_enc, k_text, k_tid = jax.random.split(key, 5)

    params = init_params(k_param)

    sample = jax.random.normal(k_sample, (B, C_IN, H, W), jnp.float32)
    timestep = jnp.array(10.0, jnp.float32)   # scalar, expanded to (B,) inside
    encoder_hidden_states = jax.random.normal(k_enc, (B, S, D_TEXT),
                                              jnp.float32)
    text_embeds = jax.random.normal(k_text, (B, D_TEXT), jnp.float32)
    time_ids = jax.random.uniform(k_tid, (B, N_TIME_IDS), jnp.float32,
                                  0.0, 1024.0)

    @jax.jit
    def fwd(params, sample, timestep, enc, text_embeds, time_ids):
        return neuron_unet_forward(
            params, sample, timestep, enc,
            added_cond_kwargs={"text_embeds": text_embeds,
                               "time_ids": time_ids})

    out = fwd(params, sample, timestep, encoder_hidden_states,
              text_embeds, time_ids)
    jax.block_until_ready(out.sample)
    assert out.sample.shape == (B, C_IN, H, W)
    assert out.sample.dtype == jnp.float32
    assert bool(jnp.all(jnp.isfinite(out.sample)))
    print("KERNEL_OK")
</pallas_src>

<mosaic_0001>
module attributes {stable_mosaic.version = 11 : i64} {
  func.func @_unet_fused_kernel(%arg0: i32, %arg1: memref<2x16x16x4xf32, #tpu.memory_space<vmem>>, %arg2: memref<2x32xf32, #tpu.memory_space<vmem>>, %arg3: memref<2x38xf32, #tpu.memory_space<vmem>>, %arg4: memref<2x8x32xf32, #tpu.memory_space<vmem>>, %arg5: memref<32x32xf32, #tpu.memory_space<vmem>>, %arg6: memref<1x32xf32, #tpu.memory_space<vmem>>, %arg7: memref<32x32xf32, #tpu.memory_space<vmem>>, %arg8: memref<1x32xf32, #tpu.memory_space<vmem>>, %arg9: memref<38x32xf32, #tpu.memory_space<vmem>>, %arg10: memref<1x32xf32, #tpu.memory_space<vmem>>, %arg11: memref<32x32xf32, #tpu.memory_space<vmem>>, %arg12: memref<1x32xf32, #tpu.memory_space<vmem>>, %arg13: memref<36x32xbf16, #tpu.memory_space<vmem>>, %arg14: memref<1x32xf32, #tpu.memory_space<vmem>>, %arg15: memref<288x32xbf16, #tpu.memory_space<vmem>>, %arg16: memref<1x32xf32, #tpu.memory_space<vmem>>, %arg17: memref<32x32xf32, #tpu.memory_space<vmem>>, %arg18: memref<1x32xf32, #tpu.memory_space<vmem>>, %arg19: memref<288x32xbf16, #tpu.memory_space<vmem>>, %arg20: memref<1x32xf32, #tpu.memory_space<vmem>>, %arg21: memref<32x32xbf16, #tpu.memory_space<vmem>>, %arg22: memref<32x64xbf16, #tpu.memory_space<vmem>>, %arg23: memref<32x32xbf16, #tpu.memory_space<vmem>>, %arg24: memref<288x128xbf16, #tpu.memory_space<vmem>>, %arg25: memref<1x128xf32, #tpu.memory_space<vmem>>, %arg26: memref<512x128xf32, #tpu.memory_space<vmem>>) attributes {dimension_semantics = [#tpu.dimension_semantics<parallel>], iteration_bounds = array<i64: 1>, scalar_prefetch = 0 : i64, scratch_operands = 0 : i64, tpu.core_type = #tpu.core_type<tc>, window_params = [{transform_indices = @transform_0, window_bounds = array<i64: 2, 16, 16, 4>}, {transform_indices = @transform_1, window_bounds = array<i64: 2, 32>}, {transform_indices = @transform_2, window_bounds = array<i64: 2, 38>}, {transform_indices = @transform_3, window_bounds = array<i64: 2, 8, 32>}, {pipeline_mode = #tpu.pipeline_mode<synchronous>, transform_indices = @transform_4, window_bounds = array<i64: 32, 32>}, {pipeline_mode = #tpu.pipeline_mode<synchronous>, transform_indices = @transform_5, window_bounds = array<i64: 1, 32>}, {pipeline_mode = #tpu.pipeline_mode<synchronous>, transform_indices = @transform_6, window_bounds = array<i64: 32, 32>}, {pipeline_mode = #tpu.pipeline_mode<synchronous>, transform_indices = @transform_7, window_bounds = array<i64: 1, 32>}, {pipeline_mode = #tpu.pipeline_mode<synchronous>, transform_indices = @transform_8, window_bounds = array<i64: 38, 32>}, {pipeline_mode = #tpu.pipeline_mode<synchronous>, transform_indices = @transform_9, window_bounds = array<i64: 1, 32>}, {pipeline_mode = #tpu.pipeline_mode<synchronous>, transform_indices = @transform_10, window_bounds = array<i64: 32, 32>}, {pipeline_mode = #tpu.pipeline_mode<synchronous>, transform_indices = @transform_11, window_bounds = array<i64: 1, 32>}, {pipeline_mode = #tpu.pipeline_mode<synchronous>, transform_indices = @transform_12, window_bounds = array<i64: 36, 32>}, {pipeline_mode = #tpu.pipeline_mode<synchronous>, transform_indices = @transform_13, window_bounds = array<i64: 1, 32>}, {pipeline_mode = #tpu.pipeline_mode<synchronous>, transform_indices = @transform_14, window_bounds = array<i64: 288, 32>}, {pipeline_mode = #tpu.pipeline_mode<synchronous>, transform_indices = @transform_15, window_bounds = array<i64: 1, 32>}, {pipeline_mode = #tpu.pipeline_mode<synchronous>, transform_indices = @transform_16, window_bounds = array<i64: 32, 32>}, {pipeline_mode = #tpu.pipeline_mode<synchronous>, transform_indices = @transform_17, window_bounds = array<i64: 1, 32>}, {pipeline_mode = #tpu.pipeline_mode<synchronous>, transform_indices = @transform_18, window_bounds = array<i64: 288, 32>}, {pipeline_mode = #tpu.pipeline_mode<synchronous>, transform_indices = @transform_19, window_bounds = array<i64: 1, 32>}, {pipeline_mode = #tpu.pipeline_mode<synchronous>, transform_indices = @transform_20, window_bounds = array<i64: 32, 32>}, {pipeline_mode = #tpu.pipeline_mode<synchronous>, transform_indices = @transform_21, window_bounds = array<i64: 32, 64>}, {pipeline_mode = #tpu.pipeline_mode<synchronous>, transform_indices = @transform_22, window_bounds = array<i64: 32, 32>}, {pipeline_mode = #tpu.pipeline_mode<synchronous>, transform_indices = @transform_23, window_bounds = array<i64: 288, 128>}, {pipeline_mode = #tpu.pipeline_mode<synchronous>, transform_indices = @transform_24, window_bounds = array<i64: 1, 128>}, {transform_indices = @transform_25, window_bounds = array<i64: 512, 128>}]} {
    %c0 = arith.constant 0 : index
    %c0_0 = arith.constant 0 : index
    %0 = vector.load %arg2[%c0, %c0_0] : memref<2x32xf32, #tpu.memory_space<vmem>>, vector<2x32xf32>
    %c0_1 = arith.constant 0 : index
    %c0_2 = arith.constant 0 : index
    %1 = vector.load %arg5[%c0_1, %c0_2] : memref<32x32xf32, #tpu.memory_space<vmem>>, vector<32x32xf32>
    %cst = arith.constant dense<0.000000e+00> : vector<2x32xf32>
    %2 = tpu.matmul %0, %1, %cst {dimension_numbers = #tpu.dot_dimension_numbers<[1], [0], [0], [1], [0, 0, 1, 1], [], []>} : vector<2x32xf32>, vector<32x32xf32>, vector<2x32xf32> -> vector<2x32xf32>
    %c0_3 = arith.constant 0 : index
    %c0_4 = arith.constant 0 : index
    %3 = vector.load %arg6[%c0_3, %c0_4] : memref<1x32xf32, #tpu.memory_space<vmem>>, vector<1x32xf32>
    %4 = vector.broadcast %3 : vector<1x32xf32> to vector<2x32xf32>
    %5 = arith.addf %2, %4 : vector<2x32xf32>
    %6 = arith.negf %5 : vector<2x32xf32>
    %7 = math.exp %6 : vector<2x32xf32>
    %cst_5 = arith.constant 1.000000e+00 : f32
    %8 = vector.broadcast %cst_5 : f32 to vector<2x32xf32>
    %9 = arith.addf %8, %7 : vector<2x32xf32>
    %10 = arith.divf %8, %9 : vector<2x32xf32>
    %11 = arith.mulf %5, %10 : vector<2x32xf32>
    %c0_6 = arith.constant 0 : index
    %c0_7 = arith.constant 0 : index
    %12 = vector.load %arg7[%c0_6, %c0_7] : memref<32x32xf32, #tpu.memory_space<vmem>>, vector<32x32xf32>
    %cst_8 = arith.constant dense<0.000000e+00> : vector<2x32xf32>
    %13 = tpu.matmul %11, %12, %cst_8 {dimension_numbers = #tpu.dot_dimension_numbers<[1], [0], [0], [1], [0, 0, 1, 1], [], []>} : vector<2x32xf32>, vector<32x32xf32>, vector<2x32xf32> -> vector<2x32xf32>
    %c0_9 = arith.constant 0 : index
    %c0_10 = arith.constant 0 : index
    %14 = vector.load %arg8[%c0_9, %c0_10] : memref<1x32xf32, #tpu.memory_space<vmem>>, vector<1x32xf32>
    %15 = vector.broadcast %14 : vector<1x32xf32> to vector<2x32xf32>
    %16 = arith.addf %13, %15 : vector<2x32xf32>
    %c0_11 = arith.constant 0 : index
    %c0_12 = arith.constant 0 : index
    %17 = vector.load %arg3[%c0_11, %c0_12] : memref<2x38xf32, #tpu.memory_space<vmem>>, vector<2x38xf32>
    %c0_13 = arith.constant 0 : index
    %c0_14 = arith.constant 0 : index
    %18 = vector.load %arg9[%c0_13, %c0_14] : memref<38x32xf32, #tpu.memory_space<vmem>>, vector<38x32xf32>
    %cst_15 = arith.constant dense<0.000000e+00> : vector<2x32xf32>
    %19 = tpu.matmul %17, %18, %cst_15 {dimension_numbers = #tpu.dot_dimension_numbers<[1], [0], [0], [1], [0, 0, 1, 1], [], []>} : vector<2x38xf32>, vector<38x32xf32>, vector<2x32xf32> -> vector<2x32xf32>
    %c0_16 = arith.constant 0 : index
    %c0_17 = arith.constant 0 : index
    %20 = vector.load %arg10[%c0_16, %c0_17] : memref<1x32xf32, #tpu.memory_space<vmem>>, vector<1x32xf32>
    %21 = vector.broadcast %20 : vector<1x32xf32> to vector<2x32xf32>
    %22 = arith.addf %19, %21 : vector<2x32xf32>
    %23 = arith.negf %22 : vector<2x32xf32>
    %24 = math.exp %23 : vector<2x32xf32>
    %cst_18 = arith.constant 1.000000e+00 : f32
    %25 = vector.broadcast %cst_18 : f32 to vector<2x32xf32>
    %26 = arith.addf %25, %24 : vector<2x32xf32>
    %27 = arith.divf %25, %26 : vector<2x32xf32>
    %28 = arith.mulf %22, %27 : vector<2x32xf32>
    %c0_19 = arith.constant 0 : index
    %c0_20 = arith.constant 0 : index
    %29 = vector.load %arg11[%c0_19, %c0_20] : memref<32x32xf32, #tpu.memory_space<vmem>>, vector<32x32xf32>
    %cst_21 = arith.constant dense<0.000000e+00> : vector<2x32xf32>
    %30 = tpu.matmul %28, %29, %cst_21 {dimension_numbers = #tpu.dot_dimension_numbers<[1], [0], [0], [1], [0, 0, 1, 1], [], []>} : vector<2x32xf32>, vector<32x32xf32>, vector<2x32xf32> -> vector<2x32xf32>
    %c0_22 = arith.constant 0 : index
    %c0_23 = arith.constant 0 : index
    %31 = vector.load %arg12[%c0_22, %c0_23] : memref<1x32xf32, #tpu.memory_space<vmem>>, vector<1x32xf32>
    %32 = vector.broadcast %31 : vector<1x32xf32> to vector<2x32xf32>
    %33 = arith.addf %30, %32 : vector<2x32xf32>
    %34 = arith.addf %16, %33 : vector<2x32xf32>
    %c0_24 = arith.constant 0 : index
    %c0_25 = arith.constant 0 : index
    %35 = vector.load %arg17[%c0_24, %c0_25] : memref<32x32xf32, #tpu.memory_space<vmem>>, vector<32x32xf32>
    %cst_26 = arith.constant dense<0.000000e+00> : vector<2x32xf32>
    %36 = tpu.matmul %34, %35, %cst_26 {dimension_numbers = #tpu.dot_dimension_numbers<[1], [0], [0], [1], [0, 0, 1, 1], [], []>} : vector<2x32xf32>, vector<32x32xf32>, vector<2x32xf32> -> vector<2x32xf32>
    %c0_27 = arith.constant 0 : index
    %c0_28 = arith.constant 0 : index
    %37 = vector.load %arg18[%c0_27, %c0_28] : memref<1x32xf32, #tpu.memory_space<vmem>>, vector<1x32xf32>
    %38 = vector.broadcast %37 : vector<1x32xf32> to vector<2x32xf32>
    %39 = arith.addf %36, %38 : vector<2x32xf32>
    %40 = arith.negf %39 : vector<2x32xf32>
    %41 = math.exp %40 : vector<2x32xf32>
    %cst_29 = arith.constant 1.000000e+00 : f32
    %42 = vector.broadcast %cst_29 : f32 to vector<2x32xf32>
    %43 = arith.addf %42, %41 : vector<2x32xf32>
    %44 = arith.divf %42, %43 : vector<2x32xf32>
    %45 = arith.mulf %39, %44 : vector<2x32xf32>
    %c0_30 = arith.constant 0 : index
    %c0_31 = arith.constant 0 : index
    %c0_32 = arith.constant 0 : index
    %c0_33 = arith.constant 0 : index
    %46 = vector.load %arg1[%c0_30, %c0_31, %c0_32, %c0_33] : memref<2x16x16x4xf32, #tpu.memory_space<vmem>>, vector<2x16x16x4xf32>
    %c0_34 = arith.constant 0 : index
    %c0_35 = arith.constant 0 : index
    %47 = vector.load %arg13[%c0_34, %c0_35] : memref<36x32xbf16, #tpu.memory_space<vmem>>, vector<36x32xbf16>
    %c0_36 = arith.constant 0 : index
    %c0_37 = arith.constant 0 : index
    %48 = vector.load %arg14[%c0_36, %c0_37] : memref<1x32xf32, #tpu.memory_space<vmem>>, vector<1x32xf32>
    %49 = arith.truncf %46 : vector<2x16x16x4xf32> to vector<2x16x16x4xbf16>
    %cst_38 = arith.constant 0.000000e+00 : bf16
    %50 = vector.broadcast %cst_38 : bf16 to vector<2x1x16x4xbf16>
    %cst_39 = arith.constant 0.000000e+00 : bf16
    %51 = vector.broadcast %cst_39 : bf16 to vector<2x18x1x4xbf16>
    %52 = tpu.concatenate %50, %49, %50 in 1 : vector<2x1x16x4xbf16>, vector<2x16x16x4xbf16>, vector<2x1x16x4xbf16> -> vector<2x18x16x4xbf16>
    %53 = tpu.concatenate %51, %52, %51 in 2 : vector<2x18x1x4xbf16>, vector<2x18x16x4xbf16>, vector<2x18x1x4xbf16> -> vector<2x18x18x4xbf16>
    %54 = vector.extract_strided_slice %53 {offsets = [0, 0, 0, 0], sizes = [2, 16, 16, 4], strides = [1, 1, 1, 1]} : vector<2x18x18x4xbf16> to vector<2x16x16x4xbf16>
    %55 = vector.extract_strided_slice %53 {offsets = [0, 0, 1, 0], sizes = [2, 16, 16, 4], strides = [1, 1, 1, 1]} : vector<2x18x18x4xbf16> to vector<2x16x16x4xbf16>
    %56 = vector.extract_strided_slice %53 {offsets = [0, 0, 2, 0], sizes = [2, 16, 16, 4], strides = [1, 1, 1, 1]} : vector<2x18x18x4xbf16> to vector<2x16x16x4xbf16>
    %57 = vector.extract_strided_slice %53 {offsets = [0, 1, 0, 0], sizes = [2, 16, 16, 4], strides = [1, 1, 1, 1]} : vector<2x18x18x4xbf16> to vector<2x16x16x4xbf16>
    %58 = vector.extract_strided_slice %53 {offsets = [0, 1, 1, 0], sizes = [2, 16, 16, 4], strides = [1, 1, 1, 1]} : vector<2x18x18x4xbf16> to vector<2x16x16x4xbf16>
    %59 = vector.extract_strided_slice %53 {offsets = [0, 1, 2, 0], sizes = [2, 16, 16, 4], strides = [1, 1, 1, 1]} : vector<2x18x18x4xbf16> to vector<2x16x16x4xbf16>
    %60 = vector.extract_strided_slice %53 {offsets = [0, 2, 0, 0], sizes = [2, 16, 16, 4], strides = [1, 1, 1, 1]} : vector<2x18x18x4xbf16> to vector<2x16x16x4xbf16>
    %61 = vector.extract_strided_slice %53 {offsets = [0, 2, 1, 0], sizes = [2, 16, 16, 4], strides = [1, 1, 1, 1]} : vector<2x18x18x4xbf16> to vector<2x16x16x4xbf16>
    %62 = vector.extract_strided_slice %53 {offsets = [0, 2, 2, 0], sizes = [2, 16, 16, 4], strides = [1, 1, 1, 1]} : vector<2x18x18x4xbf16> to vector<2x16x16x4xbf16>
    %63 = tpu.concatenate %54, %55, %56, %57, %58, %59, %60, %61, %62 in 3 : vector<2x16x16x4xbf16>, vector<2x16x16x4xbf16>, vector<2x16x16x4xbf16>, vector<2x16x16x4xbf16>, vector<2x16x16x4xbf16>, vector<2x16x16x4xbf16>, vector<2x16x16x4xbf16>, vector<2x16x16x4xbf16>, vector<2x16x16x4xbf16> -> vector<2x16x16x36xbf16>
    %64 = vector.shape_cast %63 : vector<2x16x16x36xbf16> to vector<512x36xbf16>
    %cst_40 = arith.constant dense<0.000000e+00> : vector<512x32xf32>
    %65 = tpu.matmul %64, %47, %cst_40 {dimension_numbers = #tpu.dot_dimension_numbers<[1], [0], [0], [1], [0, 0, 1, 1], [], []>} : vector<512x36xbf16>, vector<36x32xbf16>, vector<512x32xf32> -> vector<512x32xf32>
    %66 = vector.broadcast %48 : vector<1x32xf32> to vector<512x32xf32>
    %67 = arith.addf %65, %66 : vector<512x32xf32>
    %68 = vector.shape_cast %67 : vector<512x32xf32> to vector<2x16x16x32xf32>
    %c0_41 = arith.constant 0 : index
    %c0_42 = arith.constant 0 : index
    %69 = vector.load %arg15[%c0_41, %c0_42] : memref<288x32xbf16, #tpu.memory_space<vmem>>, vector<288x32xbf16>
    %c0_43 = arith.constant 0 : index
    %c0_44 = arith.constant 0 : index
    %70 = vector.load %arg16[%c0_43, %c0_44] : memref<1x32xf32, #tpu.memory_space<vmem>>, vector<1x32xf32>
    %71 = arith.negf %68 : vector<2x16x16x32xf32>
    %72 = math.exp %71 : vector<2x16x16x32xf32>
    %cst_45 = arith.constant 1.000000e+00 : f32
    %73 = vector.broadcast %cst_45 : f32 to vector<2x16x16x32xf32>
    %74 = arith.addf %73, %72 : vector<2x16x16x32xf32>
    %75 = arith.divf %73, %74 : vector<2x16x16x32xf32>
    %76 = arith.mulf %68, %75 : vector<2x16x16x32xf32>
    %77 = arith.truncf %76 : vector<2x16x16x32xf32> to vector<2x16x16x32xbf16>
    %cst_46 = arith.constant 0.000000e+00 : bf16
    %78 = vector.broadcast %cst_46 : bf16 to vector<2x1x16x32xbf16>
    %cst_47 = arith.constant 0.000000e+00 : bf16
    %79 = vector.broadcast %cst_47 : bf16 to vector<2x18x1x32xbf16>
    %80 = tpu.concatenate %78, %77, %78 in 1 : vector<2x1x16x32xbf16>, vector<2x16x16x32xbf16>, vector<2x1x16x32xbf16> -> vector<2x18x16x32xbf16>
    %81 = tpu.concatenate %79, %80, %79 in 2 : vector<2x18x1x32xbf16>, vector<2x18x16x32xbf16>, vector<2x18x1x32xbf16> -> vector<2x18x18x32xbf16>
    %82 = vector.extract_strided_slice %81 {offsets = [0, 0, 0, 0], sizes = [2, 16, 16, 32], strides = [1, 1, 1, 1]} : vector<2x18x18x32xbf16> to vector<2x16x16x32xbf16>
    %83 = vector.extract_strided_slice %81 {offsets = [0, 0, 1, 0], sizes = [2, 16, 16, 32], strides = [1, 1, 1, 1]} : vector<2x18x18x32xbf16> to vector<2x16x16x32xbf16>
    %84 = vector.extract_strided_slice %81 {offsets = [0, 0, 2, 0], sizes = [2, 16, 16, 32], strides = [1, 1, 1, 1]} : vector<2x18x18x32xbf16> to vector<2x16x16x32xbf16>
    %85 = vector.extract_strided_slice %81 {offsets = [0, 1, 0, 0], sizes = [2, 16, 16, 32], strides = [1, 1, 1, 1]} : vector<2x18x18x32xbf16> to vector<2x16x16x32xbf16>
    %86 = vector.extract_strided_slice %81 {offsets = [0, 1, 1, 0], sizes = [2, 16, 16, 32], strides = [1, 1, 1, 1]} : vector<2x18x18x32xbf16> to vector<2x16x16x32xbf16>
    %87 = vector.extract_strided_slice %81 {offsets = [0, 1, 2, 0], sizes = [2, 16, 16, 32], strides = [1, 1, 1, 1]} : vector<2x18x18x32xbf16> to vector<2x16x16x32xbf16>
    %88 = vector.extract_strided_slice %81 {offsets = [0, 2, 0, 0], sizes = [2, 16, 16, 32], strides = [1, 1, 1, 1]} : vector<2x18x18x32xbf16> to vector<2x16x16x32xbf16>
    %89 = vector.extract_strided_slice %81 {offsets = [0, 2, 1, 0], sizes = [2, 16, 16, 32], strides = [1, 1, 1, 1]} : vector<2x18x18x32xbf16> to vector<2x16x16x32xbf16>
    %90 = vector.extract_strided_slice %81 {offsets = [0, 2, 2, 0], sizes = [2, 16, 16, 32], strides = [1, 1, 1, 1]} : vector<2x18x18x32xbf16> to vector<2x16x16x32xbf16>
    %91 = tpu.concatenate %82, %83, %84, %85, %86, %87, %88, %89, %90 in 3 : vector<2x16x16x32xbf16>, vector<2x16x16x32xbf16>, vector<2x16x16x32xbf16>, vector<2x16x16x32xbf16>, vector<2x16x16x32xbf16>, vector<2x16x16x32xbf16>, vector<2x16x16x32xbf16>, vector<2x16x16x32xbf16>, vector<2x16x16x32xbf16> -> vector<2x16x16x288xbf16>
    %92 = vector.shape_cast %91 : vector<2x16x16x288xbf16> to vector<512x288xbf16>
    %cst_48 = arith.constant dense<0.000000e+00> : vector<512x32xf32>
    %93 = tpu.matmul %92, %69, %cst_48 {dimension_numbers = #tpu.dot_dimension_numbers<[1], [0], [0], [1], [0, 0, 1, 1], [], []>} : vector<512x288xbf16>, vector<288x32xbf16>, vector<512x32xf32> -> vector<512x32xf32>
    %94 = vector.broadcast %70 : vector<1x32xf32> to vector<512x32xf32>
    %95 = arith.addf %93, %94 : vector<512x32xf32>
    %96 = vector.shape_cast %95 : vector<512x32xf32> to vector<2x16x16x32xf32>
    %97 = vector.shape_cast %45 : vector<2x32xf32> to vector<2x1x1x32xf32>
    %98 = vector.broadcast %97 : vector<2x1x1x32xf32> to vector<2x16x16x32xf32>
    %99 = arith.addf %96, %98 : vector<2x16x16x32xf32>
    %c0_49 = arith.constant 0 : index
    %c0_50 = arith.constant 0 : index
    %100 = vector.load %arg19[%c0_49, %c0_50] : memref<288x32xbf16, #tpu.memory_space<vmem>>, vector<288x32xbf16>
    %c0_51 = arith.constant 0 : index
    %c0_52 = arith.constant 0 : index
    %101 = vector.load %arg20[%c0_51, %c0_52] : memref<1x32xf32, #tpu.memory_space<vmem>>, vector<1x32xf32>
    %102 = arith.negf %99 : vector<2x16x16x32xf32>
    %103 = math.exp %102 : vector<2x16x16x32xf32>
    %cst_53 = arith.constant 1.000000e+00 : f32
    %104 = vector.broadcast %cst_53 : f32 to vector<2x16x16x32xf32>
    %105 = arith.addf %104, %103 : vector<2x16x16x32xf32>
    %106 = arith.divf %104, %105 : vector<2x16x16x32xf32>
    %107 = arith.mulf %99, %106 : vector<2x16x16x32xf32>
    %108 = arith.truncf %107 : vector<2x16x16x32xf32> to vector<2x16x16x32xbf16>
    %cst_54 = arith.constant 0.000000e+00 : bf16
    %109 = vector.broadcast %cst_54 : bf16 to vector<2x1x16x32xbf16>
    %cst_55 = arith.constant 0.000000e+00 : bf16
    %110 = vector.broadcast %cst_55 : bf16 to vector<2x18x1x32xbf16>
    %111 = tpu.concatenate %109, %108, %109 in 1 : vector<2x1x16x32xbf16>, vector<2x16x16x32xbf16>, vector<2x1x16x32xbf16> -> vector<2x18x16x32xbf16>
    %112 = tpu.concatenate %110, %111, %110 in 2 : vector<2x18x1x32xbf16>, vector<2x18x16x32xbf16>, vector<2x18x1x32xbf16> -> vector<2x18x18x32xbf16>
    %113 = vector.extract_strided_slice %112 {offsets = [0, 0, 0, 0], sizes = [2, 16, 16, 32], strides = [1, 1, 1, 1]} : vector<2x18x18x32xbf16> to vector<2x16x16x32xbf16>
    %114 = vector.extract_strided_slice %112 {offsets = [0, 0, 1, 0], sizes = [2, 16, 16, 32], strides = [1, 1, 1, 1]} : vector<2x18x18x32xbf16> to vector<2x16x16x32xbf16>
    %115 = vector.extract_strided_slice %112 {offsets = [0, 0, 2, 0], sizes = [2, 16, 16, 32], strides = [1, 1, 1, 1]} : vector<2x18x18x32xbf16> to vector<2x16x16x32xbf16>
    %116 = vector.extract_strided_slice %112 {offsets = [0, 1, 0, 0], sizes = [2, 16, 16, 32], strides = [1, 1, 1, 1]} : vector<2x18x18x32xbf16> to vector<2x16x16x32xbf16>
    %117 = vector.extract_strided_slice %112 {offsets = [0, 1, 1, 0], sizes = [2, 16, 16, 32], strides = [1, 1, 1, 1]} : vector<2x18x18x32xbf16> to vector<2x16x16x32xbf16>
    %118 = vector.extract_strided_slice %112 {offsets = [0, 1, 2, 0], sizes = [2, 16, 16, 32], strides = [1, 1, 1, 1]} : vector<2x18x18x32xbf16> to vector<2x16x16x32xbf16>
    %119 = vector.extract_strided_slice %112 {offsets = [0, 2, 0, 0], sizes = [2, 16, 16, 32], strides = [1, 1, 1, 1]} : vector<2x18x18x32xbf16> to vector<2x16x16x32xbf16>
    %120 = vector.extract_strided_slice %112 {offsets = [0, 2, 1, 0], sizes = [2, 16, 16, 32], strides = [1, 1, 1, 1]} : vector<2x18x18x32xbf16> to vector<2x16x16x32xbf16>
    %121 = vector.extract_strided_slice %112 {offsets = [0, 2, 2, 0], sizes = [2, 16, 16, 32], strides = [1, 1, 1, 1]} : vector<2x18x18x32xbf16> to vector<2x16x16x32xbf16>
    %122 = tpu.concatenate %113, %114, %115, %116, %117, %118, %119, %120, %121 in 3 : vector<2x16x16x32xbf16>, vector<2x16x16x32xbf16>, vector<2x16x16x32xbf16>, vector<2x16x16x32xbf16>, vector<2x16x16x32xbf16>, vector<2x16x16x32xbf16>, vector<2x16x16x32xbf16>, vector<2x16x16x32xbf16>, vector<2x16x16x32xbf16> -> vector<2x16x16x288xbf16>
    %123 = vector.shape_cast %122 : vector<2x16x16x288xbf16> to vector<512x288xbf16>
    %cst_56 = arith.constant dense<0.000000e+00> : vector<512x32xf32>
    %124 = tpu.matmul %123, %100, %cst_56 {dimension_numbers = #tpu.dot_dimension_numbers<[1], [0], [0], [1], [0, 0, 1, 1], [], []>} : vector<512x288xbf16>, vector<288x32xbf16>, vector<512x32xf32> -> vector<512x32xf32>
    %125 = vector.broadcast %101 : vector<1x32xf32> to vector<512x32xf32>
    %126 = arith.addf %124, %125 : vector<512x32xf32>
    %127 = vector.shape_cast %126 : vector<512x32xf32> to vector<2x16x16x32xf32>
    %128 = arith.addf %68, %127 : vector<2x16x16x32xf32>
    %129 = vector.shape_cast %128 : vector<2x16x16x32xf32> to vector<2x256x32xf32>
    %130 = arith.truncf %129 : vector<2x256x32xf32> to vector<2x256x32xbf16>
    %c0_57 = arith.constant 0 : index
    %c0_58 = arith.constant 0 : index
    %131 = vector.load %arg21[%c0_57, %c0_58] : memref<32x32xbf16, #tpu.memory_space<vmem>>, vector<32x32xbf16>
    "tpu.trace_start"() <{level = 10 : i32, message = "bnf,fk->bnk"}> : () -> ()
    %cst_59 = arith.constant dense<0.000000e+00> : vector<2x256x32xf32>
    %132 = tpu.matmul %130, %131, %cst_59 {dimension_numbers = #tpu.dot_dimension_numbers<[2], [0], [0, 1], [1], [0, 0, 0, 1, 1, 1], [], []>} : vector<2x256x32xbf16>, vector<32x32xbf16>, vector<2x256x32xf32> -> vector<2x256x32xf32>
    "tpu.trace_stop"() : () -> ()
    %c0_60 = arith.constant 0 : index
    %c0_61 = arith.constant 0 : index
    %c0_62 = arith.constant 0 : index
    %133 = vector.load %arg4[%c0_60, %c0_61, %c0_62] : memref<2x8x32xf32, #tpu.memory_space<vmem>>, vector<2x8x32xf32>
    %134 = arith.truncf %133 : vector<2x8x32xf32> to vector<2x8x32xbf16>
    %c0_63 = arith.constant 0 : index
    %c0_64 = arith.constant 0 : index
    %135 = vector.load %arg22[%c0_63, %c0_64] : memref<32x64xbf16, #tpu.memory_space<vmem>>, vector<32x64xbf16>
    "tpu.trace_start"() <{level = 10 : i32, message = "bsd,dk->bsk"}> : () -> ()
    %cst_65 = arith.constant dense<0.000000e+00> : vector<2x8x64xf32>
    %136 = tpu.matmul %134, %135, %cst_65 {dimension_numbers = #tpu.dot_dimension_numbers<[2], [0], [0, 1], [1], [0, 0, 0, 1, 1, 1], [], []>} : vector<2x8x32xbf16>, vector<32x64xbf16>, vector<2x8x64xf32> -> vector<2x8x64xf32>
    "tpu.trace_stop"() : () -> ()
    %137 = arith.truncf %136 : vector<2x8x64xf32> to vector<2x8x64xbf16>
    %138 = vector.extract_strided_slice %137 {offsets = [0, 0, 0], sizes = [2, 8, 32], strides = [1, 1, 1]} : vector<2x8x64xbf16> to vector<2x8x32xbf16>
    %139 = vector.extract_strided_slice %137 {offsets = [0, 0, 32], sizes = [2, 8, 32], strides = [1, 1, 1]} : vector<2x8x64xbf16> to vector<2x8x32xbf16>
    %140 = arith.truncf %132 : vector<2x256x32xf32> to vector<2x256x32xbf16>
    "tpu.trace_start"() <{level = 10 : i32, message = "bnf,bsf->bns"}> : () -> ()
    %cst_66 = arith.constant dense<0.000000e+00> : vector<2x256x8xf32>
    %141 = tpu.matmul %140, %138, %cst_66 {dimension_numbers = #tpu.dot_dimension_numbers<[2], [2], [1], [1], [0, 0, 0, 1, 1, 1], [0], [0]>} : vector<2x256x32xbf16>, vector<2x8x32xbf16>, vector<2x256x8xf32> -> vector<2x256x8xf32>
    "tpu.trace_stop"() : () -> ()
    %cst_67 = arith.constant dense<0xFF800000> : vector<2x256xf32>
    %142 = vector.multi_reduction <maximumf>, %141, %cst_67 [2] : vector<2x256x8xf32> to vector<2x256xf32>
    %143 = vector.shape_cast %142 : vector<2x256xf32> to vector<2x256x1xf32>
    %144 = vector.broadcast %143 : vector<2x256x1xf32> to vector<2x256x8xf32>
    %145 = arith.subf %141, %144 : vector<2x256x8xf32>
    %146 = math.exp %145 : vector<2x256x8xf32>
    %cst_68 = arith.constant dense<0.000000e+00> : vector<2x256xf32>
    %147 = vector.multi_reduction <add>, %146, %cst_68 [2] : vector<2x256x8xf32> to vector<2x256xf32>
    %148 = vector.shape_cast %147 : vector<2x256xf32> to vector<2x256x1xf32>
    %149 = tpu.reciprocal %148 {approx = true} : vector<2x256x1xf32> -> vector<2x256x1xf32>
    %150 = vector.broadcast %149 : vector<2x256x1xf32> to vector<2x256x8xf32>
    %151 = arith.mulf %146, %150 : vector<2x256x8xf32>
    %152 = arith.truncf %151 : vector<2x256x8xf32> to vector<2x256x8xbf16>
    "tpu.trace_start"() <{level = 10 : i32, message = "bns,bsf->bnf"}> : () -> ()
    %cst_69 = arith.constant dense<0.000000e+00> : vector<2x256x32xf32>
    %153 = tpu.matmul %152, %139, %cst_69 {dimension_numbers = #tpu.dot_dimension_numbers<[2], [1], [1], [2], [0, 0, 0, 1, 1, 2], [0], [0]>} : vector<2x256x8xbf16>, vector<2x8x32xbf16>, vector<2x256x32xf32> -> vector<2x256x32xf32>
    "tpu.trace_stop"() : () -> ()
    %154 = arith.truncf %153 : vector<2x256x32xf32> to vector<2x256x32xbf16>
    %c0_70 = arith.constant 0 : index
    %c0_71 = arith.constant 0 : index
    %155 = vector.load %arg23[%c0_70, %c0_71] : memref<32x32xbf16, #tpu.memory_space<vmem>>, vector<32x32xbf16>
    "tpu.trace_start"() <{level = 10 : i32, message = "bnf,fk->bnk"}> : () -> ()
    %cst_72 = arith.constant dense<0.000000e+00> : vector<2x256x32xf32>
    %156 = tpu.matmul %154, %155, %cst_72 {dimension_numbers = #tpu.dot_dimension_numbers<[2], [0], [0, 1], [1], [0, 0, 0, 1, 1, 1], [], []>} : vector<2x256x32xbf16>, vector<32x32xbf16>, vector<2x256x32xf32> -> vector<2x256x32xf32>
    "tpu.trace_stop"() : () -> ()
    %157 = vector.shape_cast %156 : vector<2x256x32xf32> to vector<2x16x16x32xf32>
    %158 = arith.addf %128, %157 : vector<2x16x16x32xf32>
    %c0_73 = arith.constant 0 : index
    %c0_74 = arith.constant 0 : index
    %159 = vector.load %arg24[%c0_73, %c0_74] : memref<288x128xbf16, #tpu.memory_space<vmem>>, vector<288x128xbf16>
    %c0_75 = arith.constant 0 : index
    %c0_76 = arith.constant 0 : index
    %160 = vector.load %arg25[%c0_75, %c0_76] : memref<1x128xf32, #tpu.memory_space<vmem>>, vector<1x128xf32>
    %161 = arith.negf %158 : vector<2x16x16x32xf32>
    %162 = math.exp %161 : vector<2x16x16x32xf32>
    %cst_77 = arith.constant 1.000000e+00 : f32
    %163 = vector.broadcast %cst_77 : f32 to vector<2x16x16x32xf32>
    %164 = arith.addf %163, %162 : vector<2x16x16x32xf32>
    %165 = arith.divf %163, %164 : vector<2x16x16x32xf32>
    %166 = arith.mulf %158, %165 : vector<2x16x16x32xf32>
    %167 = arith.truncf %166 : vector<2x16x16x32xf32> to vector<2x16x16x32xbf16>
    %cst_78 = arith.constant 0.000000e+00 : bf16
    %168 = vector.broadcast %cst_78 : bf16 to vector<2x1x16x32xbf16>
    %cst_79 = arith.constant 0.000000e+00 : bf16
    %169 = vector.broadcast %cst_79 : bf16 to vector<2x18x1x32xbf16>
    %170 = tpu.concatenate %168, %167, %168 in 1 : vector<2x1x16x32xbf16>, vector<2x16x16x32xbf16>, vector<2x1x16x32xbf16> -> vector<2x18x16x32xbf16>
    %171 = tpu.concatenate %169, %170, %169 in 2 : vector<2x18x1x32xbf16>, vector<2x18x16x32xbf16>, vector<2x18x1x32xbf16> -> vector<2x18x18x32xbf16>
    %172 = vector.extract_strided_slice %171 {offsets = [0, 0, 0, 0], sizes = [2, 16, 16, 32], strides = [1, 1, 1, 1]} : vector<2x18x18x32xbf16> to vector<2x16x16x32xbf16>
    %173 = vector.extract_strided_slice %171 {offsets = [0, 0, 1, 0], sizes = [2, 16, 16, 32], strides = [1, 1, 1, 1]} : vector<2x18x18x32xbf16> to vector<2x16x16x32xbf16>
    %174 = vector.extract_strided_slice %171 {offsets = [0, 0, 2, 0], sizes = [2, 16, 16, 32], strides = [1, 1, 1, 1]} : vector<2x18x18x32xbf16> to vector<2x16x16x32xbf16>
    %175 = vector.extract_strided_slice %171 {offsets = [0, 1, 0, 0], sizes = [2, 16, 16, 32], strides = [1, 1, 1, 1]} : vector<2x18x18x32xbf16> to vector<2x16x16x32xbf16>
    %176 = vector.extract_strided_slice %171 {offsets = [0, 1, 1, 0], sizes = [2, 16, 16, 32], strides = [1, 1, 1, 1]} : vector<2x18x18x32xbf16> to vector<2x16x16x32xbf16>
    %177 = vector.extract_strided_slice %171 {offsets = [0, 1, 2, 0], sizes = [2, 16, 16, 32], strides = [1, 1, 1, 1]} : vector<2x18x18x32xbf16> to vector<2x16x16x32xbf16>
    %178 = vector.extract_strided_slice %171 {offsets = [0, 2, 0, 0], sizes = [2, 16, 16, 32], strides = [1, 1, 1, 1]} : vector<2x18x18x32xbf16> to vector<2x16x16x32xbf16>
    %179 = vector.extract_strided_slice %171 {offsets = [0, 2, 1, 0], sizes = [2, 16, 16, 32], strides = [1, 1, 1, 1]} : vector<2x18x18x32xbf16> to vector<2x16x16x32xbf16>
    %180 = vector.extract_strided_slice %171 {offsets = [0, 2, 2, 0], sizes = [2, 16, 16, 32], strides = [1, 1, 1, 1]} : vector<2x18x18x32xbf16> to vector<2x16x16x32xbf16>
    %181 = tpu.concatenate %172, %173, %174, %175, %176, %177, %178, %179, %180 in 3 : vector<2x16x16x32xbf16>, vector<2x16x16x32xbf16>, vector<2x16x16x32xbf16>, vector<2x16x16x32xbf16>, vector<2x16x16x32xbf16>, vector<2x16x16x32xbf16>, vector<2x16x16x32xbf16>, vector<2x16x16x32xbf16>, vector<2x16x16x32xbf16> -> vector<2x16x16x288xbf16>
    %182 = vector.shape_cast %181 : vector<2x16x16x288xbf16> to vector<512x288xbf16>
    %cst_80 = arith.constant dense<0.000000e+00> : vector<512x128xf32>
    %183 = tpu.matmul %182, %159, %cst_80 {dimension_numbers = #tpu.dot_dimension_numbers<[1], [0], [0], [1], [0, 0, 1, 1], [], []>} : vector<512x288xbf16>, vector<288x128xbf16>, vector<512x128xf32> -> vector<512x128xf32>
    %184 = vector.broadcast %160 : vector<1x128xf32> to vector<512x128xf32>
    %185 = arith.addf %183, %184 : vector<512x128xf32>
    %186 = vector.shape_cast %185 : vector<512x128xf32> to vector<2x16x16x128xf32>
    %187 = vector.shape_cast %186 : vector<2x16x16x128xf32> to vector<512x128xf32>
    %c0_81 = arith.constant 0 : index
    %c0_82 = arith.constant 0 : index
    %188 = vector.load %arg26[%c0_81, %c0_82] : memref<512x128xf32, #tpu.memory_space<vmem>>, vector<512x128xf32>
    tpu.vector_store %arg26[%c0_81, %c0_82], %187 {strides = array<i32>} : memref<512x128xf32, #tpu.memory_space<vmem>>, vector<512x128xf32>,
    return
  }
  func.func @transform_0(%arg0: i32) -> (i32, i32, i32, i32) {
    %c0_i32 = arith.constant 0 : i32
    %c0_i32_0 = arith.constant 0 : i32
    %c0_i32_1 = arith.constant 0 : i32
    %c0_i32_2 = arith.constant 0 : i32
    return %arg0, %c0_i32, %c0_i32_0, %c0_i32_1 : i32, i32, i32, i32
  }
  func.func @transform_1(%arg0: i32) -> (i32, i32) {
    %c0_i32 = arith.constant 0 : i32
    %c0_i32_0 = arith.constant 0 : i32
    return %arg0, %c0_i32 : i32, i32
  }
  func.func @transform_2(%arg0: i32) -> (i32, i32) {
    %c0_i32 = arith.constant 0 : i32
    %c0_i32_0 = arith.constant 0 : i32
    return %arg0, %c0_i32 : i32, i32
  }
  func.func @transform_3(%arg0: i32) -> (i32, i32, i32) {
    %c0_i32 = arith.constant 0 : i32
    %c0_i32_0 = arith.constant 0 : i32
    %c0_i32_1 = arith.constant 0 : i32
    return %arg0, %c0_i32, %c0_i32_0 : i32, i32, i32
  }
  func.func @transform_4(%arg0: i32) -> (i32, i32) {
    %c0_i32 = arith.constant 0 : i32
    %c0_i32_0 = arith.constant 0 : i32
    %c0_i32_1 = arith.constant 0 : i32
    return %c0_i32, %c0_i32_0 : i32, i32
  }
  func.func @transform_5(%arg0: i32) -> (i32, i32) {
    %c0_i32 = arith.constant 0 : i32
    %c0_i32_0 = arith.constant 0 : i32
    %c0_i32_1 = arith.constant 0 : i32
    return %c0_i32, %c0_i32_0 : i32, i32
  }
  func.func @transform_6(%arg0: i32) -> (i32, i32) {
    %c0_i32 = arith.constant 0 : i32
    %c0_i32_0 = arith.constant 0 : i32
    %c0_i32_1 = arith.constant 0 : i32
    return %c0_i32, %c0_i32_0 : i32, i32
  }
  func.func @transform_7(%arg0: i32) -> (i32, i32) {
    %c0_i32 = arith.constant 0 : i32
    %c0_i32_0 = arith.constant 0 : i32
    %c0_i32_1 = arith.constant 0 : i32
    return %c0_i32, %c0_i32_0 : i32, i32
  }
  func.func @transform_8(%arg0: i32) -> (i32, i32) {
    %c0_i32 = arith.constant 0 : i32
    %c0_i32_0 = arith.constant 0 : i32
    %c0_i32_1 = arith.constant 0 : i32
    return %c0_i32, %c0_i32_0 : i32, i32
  }
  func.func @transform_9(%arg0: i32) -> (i32, i32) {
    %c0_i32 = arith.constant 0 : i32
    %c0_i32_0 = arith.constant 0 : i32
    %c0_i32_1 = arith.constant 0 : i32
    return %c0_i32, %c0_i32_0 : i32, i32
  }
  func.func @transform_10(%arg0: i32) -> (i32, i32) {
    %c0_i32 = arith.constant 0 : i32
    %c0_i32_0 = arith.constant 0 : i32
    %c0_i32_1 = arith.constant 0 : i32
    return %c0_i32, %c0_i32_0 : i32, i32
  }
  func.func @transform_11(%arg0: i32) -> (i32, i32) {
    %c0_i32 = arith.constant 0 : i32
    %c0_i32_0 = arith.constant 0 : i32
    %c0_i32_1 = arith.constant 0 : i32
    return %c0_i32, %c0_i32_0 : i32, i32
  }
  func.func @transform_12(%arg0: i32) -> (i32, i32) {
    %c0_i32 = arith.constant 0 : i32
    %c0_i32_0 = arith.constant 0 : i32
    %c0_i32_1 = arith.constant 0 : i32
    return %c0_i32, %c0_i32_0 : i32, i32
  }
  func.func @transform_13(%arg0: i32) -> (i32, i32) {
    %c0_i32 = arith.constant 0 : i32
    %c0_i32_0 = arith.constant 0 : i32
    %c0_i32_1 = arith.constant 0 : i32
    return %c0_i32, %c0_i32_0 : i32, i32
  }
  func.func @transform_14(%arg0: i32) -> (i32, i32) {
    %c0_i32 = arith.constant 0 : i32
    %c0_i32_0 = arith.constant 0 : i32
    %c0_i32_1 = arith.constant 0 : i32
    return %c0_i32, %c0_i32_0 : i32, i32
  }
  func.func @transform_15(%arg0: i32) -> (i32, i32) {
    %c0_i32 = arith.constant 0 : i32
    %c0_i32_0 = arith.constant 0 : i32
    %c0_i32_1 = arith.constant 0 : i32
    return %c0_i32, %c0_i32_0 : i32, i32
  }
  func.func @transform_16(%arg0: i32) -> (i32, i32) {
    %c0_i32 = arith.constant 0 : i32
    %c0_i32_0 = arith.constant 0 : i32
    %c0_i32_1 = arith.constant 0 : i32
    return %c0_i32, %c0_i32_0 : i32, i32
  }
  func.func @transform_17(%arg0: i32) -> (i32, i32) {
    %c0_i32 = arith.constant 0 : i32
    %c0_i32_0 = arith.constant 0 : i32
    %c0_i32_1 = arith.constant 0 : i32
    return %c0_i32, %c0_i32_0 : i32, i32
  }
  func.func @transform_18(%arg0: i32) -> (i32, i32) {
    %c0_i32 = arith.constant 0 : i32
    %c0_i32_0 = arith.constant 0 : i32
    %c0_i32_1 = arith.constant 0 : i32
    return %c0_i32, %c0_i32_0 : i32, i32
  }
  func.func @transform_19(%arg0: i32) -> (i32, i32) {
    %c0_i32 = arith.constant 0 : i32
    %c0_i32_0 = arith.constant 0 : i32
    %c0_i32_1 = arith.constant 0 : i32
    return %c0_i32, %c0_i32_0 : i32, i32
  }
  func.func @transform_20(%arg0: i32) -> (i32, i32) {
    %c0_i32 = arith.constant 0 : i32
    %c0_i32_0 = arith.constant 0 : i32
    %c0_i32_1 = arith.constant 0 : i32
    return %c0_i32, %c0_i32_0 : i32, i32
  }
  func.func @transform_21(%arg0: i32) -> (i32, i32) {
    %c0_i32 = arith.constant 0 : i32
    %c0_i32_0 = arith.constant 0 : i32
    %c0_i32_1 = arith.constant 0 : i32
    return %c0_i32, %c0_i32_0 : i32, i32
  }
  func.func @transform_22(%arg0: i32) -> (i32, i32) {
    %c0_i32 = arith.constant 0 : i32
    %c0_i32_0 = arith.constant 0 : i32
    %c0_i32_1 = arith.constant 0 : i32
    return %c0_i32, %c0_i32_0 : i32, i32
  }
  func.func @transform_23(%arg0: i32) -> (i32, i32) {
    %c0_i32 = arith.constant 0 : i32
    %c0_i32_0 = arith.constant 0 : i32
    %c0_i32_1 = arith.constant 0 : i32
    return %c0_i32, %c0_i32_0 : i32, i32
  }
  func.func @transform_24(%arg0: i32) -> (i32, i32) {
    %c0_i32 = arith.constant 0 : i32
    %c0_i32_0 = arith.constant 0 : i32
    %c0_i32_1 = arith.constant 0 : i32
    return %c0_i32, %c0_i32_0 : i32, i32
  }
  func.func @transform_25(%arg0: i32) -> (i32, i32) {
    %c0_i32 = arith.constant 0 : i32
    %c0_i32_0 = arith.constant 0 : i32
    return %arg0, %c0_i32 : i32, i32
  }
}

</mosaic_0001>

<llo_original>
// kernel: fwd.1
$region0: #{fwd.1}
  #allocation0 [shape = 'u32[]', space=smem, size = 0x4, offset = 0x4, fixed_abs, tag = 'smem constant byte address 0x4 - core index']
  #allocation1 [shape = 'u32[144,128]{1,0:T(1,128)}', space=vmem, size = 0x12000, scoped, tag = 'internal scratch']
  %s0 = inlined_call_operand.vmem [shape: f32[2,16,16,4], index: 0, kind: input, shape index: {}]
  %s1 = inlined_call_operand.vmem [shape: f32[2,32], index: 1, kind: input, shape index: {}]
  %s2 = inlined_call_operand.vmem [shape: f32[2,38], index: 2, kind: input, shape index: {}]
  %s3 = inlined_call_operand.vmem [shape: f32[2,8,32], index: 3, kind: input, shape index: {}]
  %s4 = inlined_call_operand.vmem [shape: f32[32,32], index: 4, kind: input, shape index: {}]
  %s5 = inlined_call_operand.vmem [shape: f32[1,32], index: 5, kind: input, shape index: {}]
  %s6 = inlined_call_operand.vmem [shape: f32[32,32], index: 6, kind: input, shape index: {}]
  %s7 = inlined_call_operand.vmem [shape: f32[1,32], index: 7, kind: input, shape index: {}]
  %s8 = inlined_call_operand.vmem [shape: f32[38,32], index: 8, kind: input, shape index: {}]
  %s9 = inlined_call_operand.vmem [shape: f32[1,32], index: 9, kind: input, shape index: {}]
  %s10 = inlined_call_operand.vmem [shape: f32[32,32], index: 10, kind: input, shape index: {}]
  %s11 = inlined_call_operand.vmem [shape: f32[1,32], index: 11, kind: input, shape index: {}]
  %s12 = inlined_call_operand.vmem [shape: bf16[36,32], index: 12, kind: input, shape index: {}]
  %s13 = inlined_call_operand.vmem [shape: f32[1,32], index: 13, kind: input, shape index: {}]
  %s14 = inlined_call_operand.vmem [shape: bf16[288,32], index: 14, kind: input, shape index: {}]
  %s15 = inlined_call_operand.vmem [shape: f32[1,32], index: 15, kind: input, shape index: {}]
  %s16 = inlined_call_operand.vmem [shape: f32[32,32], index: 16, kind: input, shape index: {}]
  %s17 = inlined_call_operand.vmem [shape: f32[1,32], index: 17, kind: input, shape index: {}]
  %s18 = inlined_call_operand.vmem [shape: bf16[288,32], index: 18, kind: input, shape index: {}]
  %s19 = inlined_call_operand.vmem [shape: f32[1,32], index: 19, kind: input, shape index: {}]
  %s20 = inlined_call_operand.vmem [shape: bf16[32,32], index: 20, kind: input, shape index: {}]
  %s21 = inlined_call_operand.vmem [shape: bf16[32,64], index: 21, kind: input, shape index: {}]
  %s22 = inlined_call_operand.vmem [shape: bf16[32,32], index: 22, kind: input, shape index: {}]
  %s23 = inlined_call_operand.vmem [shape: bf16[288,128], index: 23, kind: input, shape index: {}]
  %s24 = inlined_call_operand.vmem [shape: f32[1,128], index: 24, kind: input, shape index: {}]
  %s25 = inlined_call_operand.vmem [shape: f32[512,128], index: 25, kind: output, shape index: {}]
  %s26 = sld [smem:[#allocation0]]
  $region110: #{fwd.1} parent=0
    _
  %s28 = ssub.s32 1, %s26
  %s29 = scalar_select 0, %s28, %s26
  // Predicated region
  $region2: #{fwd.1} parent=0 // pred_check
    _
  $region3: #{fwd.1} parent=0 // pred_check_branch
    %31 = sbr.rel (0) target = $region5
  $region4: #{fwd.1} parent=0 // pred_region
    _
  $region5: #{fwd.1} parent=0 // pred_fallthru
    _
  // Predicated region
  $region6: #{fwd.1} parent=0 // pred_check
    _
  $region7: #{fwd.1} parent=0 // pred_check_branch
    %33 = sbr.rel (0) target = $region9
  $region8: #{fwd.1} parent=0 // pred_region
    _
  $region9: #{fwd.1} parent=0 // pred_fallthru
    _
  // Predicated region
  $region10: #{fwd.1} parent=0 // pred_check
    _
  $region11: #{fwd.1} parent=0 // pred_check_branch
    %35 = sbr.rel (0) target = $region13
  $region12: #{fwd.1} parent=0 // pred_region
    _
  $region13: #{fwd.1} parent=0 // pred_fallthru
    _
  // Predicated region
  $region14: #{fwd.1} parent=0 // pred_check
    _
  $region15: #{fwd.1} parent=0 // pred_check_branch
    %37 = sbr.rel (0) target = $region17
  $region16: #{fwd.1} parent=0 // pred_region
    _
  $region17: #{fwd.1} parent=0 // pred_fallthru
    _
  // Predicated region
  $region18: #{fwd.1} parent=0 // pred_check
    _
  $region19: #{fwd.1} parent=0 // pred_check_branch
    %39 = sbr.rel (0) target = $region21
  $region20: #{fwd.1} parent=0 // pred_region
    _
  $region21: #{fwd.1} parent=0 // pred_fallthru
    _
  // Predicated region
  $region22: #{fwd.1} parent=0 // pred_check
    _
  $region23: #{fwd.1} parent=0 // pred_check_branch
    %41 = sbr.rel (0) target = $region25
  $region24: #{fwd.1} parent=0 // pred_region
    _
  $region25: #{fwd.1} parent=0 // pred_fallthru
    _
  // Predicated region
  $region26: #{fwd.1} parent=0 // pred_check
    _
  $region27: #{fwd.1} parent=0 // pred_check_branch
    %43 = sbr.rel (0) target = $region29
  $region28: #{fwd.1} parent=0 // pred_region
    _
  $region29: #{fwd.1} parent=0 // pred_fallthru
    _
  // Predicated region
  $region30: #{fwd.1} parent=0 // pred_check
    _
  $region31: #{fwd.1} parent=0 // pred_check_branch
    %45 = sbr.rel (0) target = $region33
  $region32: #{fwd.1} parent=0 // pred_region
    _
  $region33: #{fwd.1} parent=0 // pred_fallthru
    _
  // Predicated region
  $region34: #{fwd.1} parent=0 // pred_check
    _
  $region35: #{fwd.1} parent=0 // pred_check_branch
    %47 = sbr.rel (0) target = $region37
  $region36: #{fwd.1} parent=0 // pred_region
    _
  $region37: #{fwd.1} parent=0 // pred_fallthru
    _
  // Predicated region
  $region38: #{fwd.1} parent=0 // pred_check
    _
  $region39: #{fwd.1} parent=0 // pred_check_branch
    %49 = sbr.rel (0) target = $region41
  $region40: #{fwd.1} parent=0 // pred_region
    _
  $region41: #{fwd.1} parent=0 // pred_fallthru
    _
  // Predicated region
  $region42: #{fwd.1} parent=0 // pred_check
    _
  $region43: #{fwd.1} parent=0 // pred_check_branch
    %51 = sbr.rel (0) target = $region45
  $region44: #{fwd.1} parent=0 // pred_region
    _
  $region45: #{fwd.1} parent=0 // pred_fallthru
    _
  // Predicated region
  $region46: #{fwd.1} parent=0 // pred_check
    _
  $region47: #{fwd.1} parent=0 // pred_check_branch
    %53 = sbr.rel (0) target = $region49
  $region48: #{fwd.1} parent=0 // pred_region
    _
  $region49: #{fwd.1} parent=0 // pred_fallthru
    _
  // Predicated region
  $region50: #{fwd.1} parent=0 // pred_check
    _
  $region51: #{fwd.1} parent=0 // pred_check_branch
    %55 = sbr.rel (0) target = $region53
  $region52: #{fwd.1} parent=0 // pred_region
    _
  $region53: #{fwd.1} parent=0 // pred_fallthru
    _
  // Predicated region
  $region54: #{fwd.1} parent=0 // pred_check
    _
  $region55: #{fwd.1} parent=0 // pred_check_branch
    %57 = sbr.rel (0) target = $region57
  $region56: #{fwd.1} parent=0 // pred_region
    _
  $region57: #{fwd.1} parent=0 // pred_fallthru
    _
  // Predicated region
  $region58: #{fwd.1} parent=0 // pred_check
    _
  $region59: #{fwd.1} parent=0 // pred_check_branch
    %59 = sbr.rel (0) target = $region61
  $region60: #{fwd.1} parent=0 // pred_region
    _
  $region61: #{fwd.1} parent=0 // pred_fallthru
    _
  // Predicated region
  $region62: #{fwd.1} parent=0 // pred_check
    _
  $region63: #{fwd.1} parent=0 // pred_check_branch
    %61 = sbr.rel (0) target = $region65
  $region64: #{fwd.1} parent=0 // pred_region
    _
  $region65: #{fwd.1} parent=0 // pred_fallthru
    _
  // Predicated region
  $region66: #{fwd.1} parent=0 // pred_check
    _
  $region67: #{fwd.1} parent=0 // pred_check_branch
    %63 = sbr.rel (0) target = $region69
  $region68: #{fwd.1} parent=0 // pred_region
    _
  $region69: #{fwd.1} parent=0 // pred_fallthru
    _
  // Predicated region
  $region70: #{fwd.1} parent=0 // pred_check
    _
  $region71: #{fwd.1} parent=0 // pred_check_branch
    %65 = sbr.rel (0) target = $region73
  $region72: #{fwd.1} parent=0 // pred_region
    _
  $region73: #{fwd.1} parent=0 // pred_fallthru
    _
  // Predicated region
  $region74: #{fwd.1} parent=0 // pred_check
    _
  $region75: #{fwd.1} parent=0 // pred_check_branch
    %67 = sbr.rel (0) target = $region77
  $region76: #{fwd.1} parent=0 // pred_region
    _
  $region77: #{fwd.1} parent=0 // pred_fallthru
    _
  // Predicated region
  $region78: #{fwd.1} parent=0 // pred_check
    _
  $region79: #{fwd.1} parent=0 // pred_check_branch
    %69 = sbr.rel (0) target = $region81
  $region80: #{fwd.1} parent=0 // pred_region
    _
  $region81: #{fwd.1} parent=0 // pred_fallthru
    _
  // Predicated region
  $region82: #{fwd.1} parent=0 // pred_check
    _
  $region83: #{fwd.1} parent=0 // pred_check_branch
    %71 = sbr.rel (0) target = $region85
  $region84: #{fwd.1} parent=0 // pred_region
    _
  $region85: #{fwd.1} parent=0 // pred_fallthru
    _
  // Predicated region
  $region86: #{fwd.1} parent=0 // pred_check
    _
  $region87: #{fwd.1} parent=0 // pred_check_branch
    %73 = sbr.rel (0) target = $region89
  $region88: #{fwd.1} parent=0 // pred_region
    _
  $region89: #{fwd.1} parent=0 // pred_fallthru
    _
  // Predicated region
  $region90: #{fwd.1} parent=0 // pred_check
    _
  $region91: #{fwd.1} parent=0 // pred_check_branch
    %75 = sbr.rel (0) target = $region93
  $region92: #{fwd.1} parent=0 // pred_region
    _
  $region93: #{fwd.1} parent=0 // pred_fallthru
    _
  // Predicated region
  $region94: #{fwd.1} parent=0 // pred_check
    _
  $region95: #{fwd.1} parent=0 // pred_check_branch
    %77 = sbr.rel (0) target = $region97
  $region96: #{fwd.1} parent=0 // pred_region
    _
  $region97: #{fwd.1} parent=0 // pred_fallthru
    _
  // Predicated region
  $region98: #{fwd.1} parent=0 // pred_check
    _
  $region99: #{fwd.1} parent=0 // pred_check_branch
    %79 = sbr.rel (0) target = $region101
  $region100: #{fwd.1} parent=0 // pred_region
    _
  $region101: #{fwd.1} parent=0 // pred_fallthru
    _
  %v81 = vld [vmem:[%s1] sm:$0x3]
  %v82 = vld [vmem:[%s4] sm:$0xff]
  %v83 = vld [vmem:[%s4 + $0x8] sm:$0xff]
  %v84 = vld [vmem:[%s4 + $0x10] sm:$0xff]
  %v85 = vld [vmem:[%s4 + $0x18] sm:$0xff]
  %v86 = vld [vmem:[%s5] sm:$0x1]
  %v88 = vlaneseq
  %v89 = vshrl.u32 %v88, 7
  %v90 = vsub.s32 0, %v89
  %v91 = vrot.slane %v86, %v90
  %vm93 = vcmask 261120
  %v95 = vsel %vm93, %v81, 0
  %97 = vmatprep.subr.mxu0 0.0
  %98 = vmatpush1.msra.mxu0 %v82
  %99 = vmatprep.subr.mxu0 0.0
  %100 = vmatpush1.msra.mxu0 %v83
  %101 = vmatprep.subr.mxu0 0.0
  %102 = vmatpush1.msra.mxu0 %v84
  %103 = vmatprep.subr.mxu0 0.0
  %104 = vmatpush1.msra.mxu0 %v85
  %105 = vmatprep.subr.mxu0 0.0
  %106 = vmatpush1.msra.mxu0 0.0
  %107 = vmatprep.subr.mxu0 0.0
  %108 = vmatpush1.msra.mxu0 0.0
  %109 = vmatprep.subr.mxu0 0.0
  %110 = vmatpush1.msra.mxu0 0.0
  %111 = vmatprep.subr.mxu0 0.0
  %112 = vmatpush1.msra.mxu0 0.0
  %113 = vmatprep.subr.mxu0 0.0
  %114 = vmatpush1.msra.mxu0 0.0
  %115 = vmatprep.subr.mxu0 0.0
  %116 = vmatpush1.msra.mxu0 0.0
  %117 = vmatprep.subr.mxu0 0.0
  %118 = vmatpush1.msra.mxu0 0.0
  %119 = vmatprep.subr.mxu0 0.0
  %120 = vmatpush1.msra.mxu0 0.0
  %121 = vmatprep.subr.mxu0 0.0
  %122 = vmatpush1.msra.mxu0 0.0
  %123 = vmatprep.subr.mxu0 0.0
  %124 = vmatpush1.msra.mxu0 0.0
  %125 = vmatprep.subr.mxu0 0.0
  %126 = vmatpush1.msra.mxu0 0.0
  %127 = vmatprep.subr.mxu0 0.0
  %128 = vmatpush1.msra.mxu0 0.0
  %129 = vmatprep.subr.mxu0 0.0
  %130 = vmatpush1.msra.mxu0 0.0
  %131 = vmatprep.subr.mxu0 0.0
  %132 = vmatpush1.msra.mxu0 0.0
  %133 = vmatprep.subr.mxu0 0.0
  %134 = vmatpush1.msra.mxu0 0.0
  %135 = vmatprep.subr.mxu0 0.0
  %136 = vmatpush1.msra.mxu0 0.0
  %137 = vmatprep.subr.mxu0 0.0
  %138 = vmatpush1.msra.mxu0 0.0
  %139 = vmatprep.subr.mxu0 0.0
  %140 = vmatpush1.msra.mxu0 0.0
  %141 = vmatprep.subr.mxu0 0.0
  %142 = vmatpush1.msra.mxu0 0.0
  %143 = vmatprep.subr.mxu0 0.0
  %144 = vmatpush1.msra.mxu0 0.0
  %145 = vmatprep.subr.mxu0 0.0
  %146 = vmatpush1.msra.mxu0 0.0
  %147 = vmatprep.subr.mxu0 0.0
  %148 = vmatpush1.msra.mxu0 0.0
  %149 = vmatprep.subr.mxu0 0.0
  %150 = vmatpush1.msra.mxu0 0.0
  %151 = vmatprep.subr.mxu0 0.0
  %152 = vmatpush1.msra.mxu0 0.0
  %153 = vmatprep.subr.mxu0 0.0
  %154 = vmatpush1.msra.mxu0 0.0
  %155 = vmatprep.subr.mxu0 0.0
  %156 = vmatpush1.msra.mxu0 0.0
  %157 = vmatprep.subr.mxu0 0.0
  %158 = vmatpush1.msra.mxu0 0.0
  %159 = vmatprep.subr.mxu0 0.0
  %160 = vmatpush1.msra.mxu0 0.0
  %161 = vmatprep.mubr.f32.mxu0 0.0
  %162 = vmatmul.mubr.f32.gmra.mrb[0].mxu0 %v95
  %v163 = vpop.f32.mrb[0].mxu0
  %v164 = vadd.f32 %v91, %v163
  %v165 = vpop.f32.mrb[0].mxu0
  %166 = vdwg.mxu0
  %v167 = vxor.u32 %v164, 2147483648
  %v168 = vmul.f32 %v167, 1.442695
  %v169 = vpow.pop %v168
  %v170 = vadd.f32 %v169, 1.0
  %v171 = vrcp.pop %v170
  %v172 = vmul.f32 1.0, %v171
  %v173 = vmul.f32 %v164, %v172
  %v174 = vld [vmem:[%s6] sm:$0xff]
  %v175 = vld [vmem:[%s6 + $0x8] sm:$0xff]
  %v176 = vld [vmem:[%s6 + $0x10] sm:$0xff]
  %v177 = vld [vmem:[%s6 + $0x18] sm:$0xff]
  %v178 = vld [vmem:[%s7] sm:$0x1]
  %v180 = vlaneseq
  %v181 = vshrl.u32 %v180, 7
  %v182 = vsub.s32 0, %v181
  %v183 = vrot.slane %v178, %v182
  %v186 = vsel %vm93, %v173, 0
  %188 = vmatprep.subr.mxu0 0.0
  %189 = vmatpush1.msra.mxu0 %v174
  %190 = vmatprep.subr.mxu0 0.0
  %191 = vmatpush1.msra.mxu0 %v175
  %192 = vmatprep.subr.mxu0 0.0
  %193 = vmatpush1.msra.mxu0 %v176
  %194 = vmatprep.subr.mxu0 0.0
  %195 = vmatpush1.msra.mxu0 %v177
  %196 = vmatprep.subr.mxu0 0.0
  %197 = vmatpush1.msra.mxu0 0.0
  %198 = vmatprep.subr.mxu0 0.0
  %199 = vmatpush1.msra.mxu0 0.0
  %200 = vmatprep.subr.mxu0 0.0
  %201 = vmatpush1.msra.mxu0 0.0
  %202 = vmatprep.subr.mxu0 0.0
  %203 = vmatpush1.msra.mxu0 0.0
  %204 = vmatprep.subr.mxu0 0.0
  %205 = vmatpush1.msra.mxu0 0.0
  %206 = vmatprep.subr.mxu0 0.0
  %207 = vmatpush1.msra.mxu0 0.0
  %208 = vmatprep.subr.mxu0 0.0
  %209 = vmatpush1.msra.mxu0 0.0
  %210 = vmatprep.subr.mxu0 0.0
  %211 = vmatpush1.msra.mxu0 0.0
  %212 = vmatprep.subr.mxu0 0.0
  %213 = vmatpush1.msra.mxu0 0.0
  %214 = vmatprep.subr.mxu0 0.0
  %215 = vmatpush1.msra.mxu0 0.0
  %216 = vmatprep.subr.mxu0 0.0
  %217 = vmatpush1.msra.mxu0 0.0
  %218 = vmatprep.subr.mxu0 0.0
  %219 = vmatpush1.msra.mxu0 0.0
  %220 = vmatprep.subr.mxu0 0.0
  %221 = vmatpush1.msra.mxu0 0.0
  %222 = vmatprep.subr.mxu0 0.0
  %223 = vmatpush1.msra.mxu0 0.0
  %224 = vmatprep.subr.mxu0 0.0
  %225 = vmatpush1.msra.mxu0 0.0
  %226 = vmatprep.subr.mxu0 0.0
  %227 = vmatpush1.msra.mxu0 0.0
  %228 = vmatprep.subr.mxu0 0.0
  %229 = vmatpush1.msra.mxu0 0.0
  %230 = vmatprep.subr.mxu0 0.0
  %231 = vmatpush1.msra.mxu0 0.0
  %232 = vmatprep.subr.mxu0 0.0
  %233 = vmatpush1.msra.mxu0 0.0
  %234 = vmatprep.subr.mxu0 0.0
  %235 = vmatpush1.msra.mxu0 0.0
  %236 = vmatprep.subr.mxu0 0.0
  %237 = vmatpush1.msra.mxu0 0.0
  %238 = vmatprep.subr.mxu0 0.0
  %239 = vmatpush1.msra.mxu0 0.0
  %240 = vmatprep.subr.mxu0 0.0
  %241 = vmatpush1.msra.mxu0 0.0
  %242 = vmatprep.subr.mxu0 0.0
  %243 = vmatpush1.msra.mxu0 0.0
  %244 = vmatprep.subr.mxu0 0.0
  %245 = vmatpush1.msra.mxu0 0.0
  %246 = vmatprep.subr.mxu0 0.0
  %247 = vmatpush1.msra.mxu0 0.0
  %248 = vmatprep.subr.mxu0 0.0
  %249 = vmatpush1.msra.mxu0 0.0
  %250 = vmatprep.subr.mxu0 0.0
  %251 = vmatpush1.msra.mxu0 0.0
  %252 = vmatprep.mubr.f32.mxu0 0.0
  %253 = vmatmul.mubr.f32.gmra.mrb[0].mxu0 %v186
  %v254 = vpop.f32.mrb[0].mxu0
  %v255 = vadd.f32 %v183, %v254
  %v256 = vpop.f32.mrb[0].mxu0
  %257 = vdwg.mxu0
  %v258 = vld [vmem:[%s2] sm:$0x3]
  %v259 = vld [vmem:[%s8] sm:$0xff]
  %v260 = vld [vmem:[%s8 + $0x8] sm:$0xff]
  %v261 = vld [vmem:[%s8 + $0x10] sm:$0xff]
  %v262 = vld [vmem:[%s8 + $0x18] sm:$0xff]
  %v263 = vld [vmem:[%s8 + $0x20] sm:$0x3f]
  %v264 = vld [vmem:[%s9] sm:$0x1]
  %v266 = vlaneseq
  %v267 = vshrl.u32 %v266, 7
  %v268 = vsub.s32 0, %v267
  %v269 = vrot.slane %v264, %v268
  %vm271 = vcmask 310272
  %v273 = vsel %vm271, %v258, 0
  %vm275 = vcmask 1045504
  %v277 = vsel %vm275, %v263, 0
  %279 = vmatprep.subr.mxu0 0.0
  %280 = vmatpush1.msra.mxu0 %v259
  %281 = vmatprep.subr.mxu0 0.0
  %282 = vmatpush1.msra.mxu0 %v260
  %283 = vmatprep.subr.mxu0 0.0
  %284 = vmatpush1.msra.mxu0 %v261
  %285 = vmatprep.subr.mxu0 0.0
  %286 = vmatpush1.msra.mxu0 %v262
  %287 = vmatprep.subr.mxu0 0.0
  %288 = vmatpush1.msra.mxu0 %v277
  %289 = vmatprep.subr.mxu0 0.0
  %290 = vmatpush1.msra.mxu0 0.0
  %291 = vmatprep.subr.mxu0 0.0
  %292 = vmatpush1.msra.mxu0 0.0
  %293 = vmatprep.subr.mxu0 0.0
  %294 = vmatpush1.msra.mxu0 0.0
  %295 = vmatprep.subr.mxu0 0.0
  %296 = vmatpush1.msra.mxu0 0.0
  %297 = vmatprep.subr.mxu0 0.0
  %298 = vmatpush1.msra.mxu0 0.0
  %299 = vmatprep.subr.mxu0 0.0
  %300 = vmatpush1.msra.mxu0 0.0
  %301 = vmatprep.subr.mxu0 0.0
  %302 = vmatpush1.msra.mxu0 0.0
  %303 = vmatprep.subr.mxu0 0.0
  %304 = vmatpush1.msra.mxu0 0.0
  %305 = vmatprep.subr.mxu0 0.0
  %306 = vmatpush1.msra.mxu0 0.0
  %307 = vmatprep.subr.mxu0 0.0
  %308 = vmatpush1.msra.mxu0 0.0
  %309 = vmatprep.subr.mxu0 0.0
  %310 = vmatpush1.msra.mxu0 0.0
  %311 = vmatprep.subr.mxu0 0.0
  %312 = vmatpush1.msra.mxu0 0.0
  %313 = vmatprep.subr.mxu0 0.0
  %314 = vmatpush1.msra.mxu0 0.0
  %315 = vmatprep.subr.mxu0 0.0
  %316 = vmatpush1.msra.mxu0 0.0
  %317 = vmatprep.subr.mxu0 0.0
  %318 = vmatpush1.msra.mxu0 0.0
  %319 = vmatprep.subr.mxu0 0.0
  %320 = vmatpush1.msra.mxu0 0.0
  %321 = vmatprep.subr.mxu0 0.0
  %322 = vmatpush1.msra.mxu0 0.0
  %323 = vmatprep.subr.mxu0 0.0
  %324 = vmatpush1.msra.mxu0 0.0
  %325 = vmatprep.subr.mxu0 0.0
  %326 = vmatpush1.msra.mxu0 0.0
  %327 = vmatprep.subr.mxu0 0.0
  %328 = vmatpush1.msra.mxu0 0.0
  %329 = vmatprep.subr.mxu0 0.0
  %330 = vmatpush1.msra.mxu0 0.0
  %331 = vmatprep.subr.mxu0 0.0
  %332 = vmatpush1.msra.mxu0 0.0
  %333 = vmatprep.subr.mxu0 0.0
  %334 = vmatpush1.msra.mxu0 0.0
  %335 = vmatprep.subr.mxu0 0.0
  %336 = vmatpush1.msra.mxu0 0.0
  %337 = vmatprep.subr.mxu0 0.0
  %338 = vmatpush1.msra.mxu0 0.0
  %339 = vmatprep.subr.mxu0 0.0
  %340 = vmatpush1.msra.mxu0 0.0
  %341 = vmatprep.subr.mxu0 0.0
  %342 = vmatpush1.msra.mxu0 0.0
  %343 = vmatprep.mubr.f32.mxu0 0.0
  %344 = vmatmul.mubr.f32.gmra.mrb[0].mxu0 %v273
  %v345 = vpop.f32.mrb[0].mxu0
  %v346 = vadd.f32 %v269, %v345
  %v347 = vpop.f32.mrb[0].mxu0
  %348 = vdwg.mxu0
  %v349 = vxor.u32 %v346, 2147483648
  %v350 = vmul.f32 %v349, 1.442695
  %v351 = vpow.pop %v350
  %v352 = vadd.f32 %v351, 1.0
  %v353 = vrcp.pop %v352
  %v354 = vmul.f32 1.0, %v353
  %v355 = vmul.f32 %v346, %v354
  %v356 = vld [vmem:[%s10] sm:$0xff]
  %v357 = vld [vmem:[%s10 + $0x8] sm:$0xff]
  %v358 = vld [vmem:[%s10 + $0x10] sm:$0xff]
  %v359 = vld [vmem:[%s10 + $0x18] sm:$0xff]
  %v360 = vld [vmem:[%s11] sm:$0x1]
  %v362 = vlaneseq
  %v363 = vshrl.u32 %v362, 7
  %v364 = vsub.s32 0, %v363
  %v365 = vrot.slane %v360, %v364
  %v368 = vsel %vm93, %v355, 0
  %370 = vmatprep.subr.mxu0 0.0
  %371 = vmatpush1.msra.mxu0 %v356
  %372 = vmatprep.subr.mxu0 0.0
  %373 = vmatpush1.msra.mxu0 %v357
  %374 = vmatprep.subr.mxu0 0.0
  %375 = vmatpush1.msra.mxu0 %v358
  %376 = vmatprep.subr.mxu0 0.0
  %377 = vmatpush1.msra.mxu0 %v359
  %378 = vmatprep.subr.mxu0 0.0
  %379 = vmatpush1.msra.mxu0 0.0
  %380 = vmatprep.subr.mxu0 0.0
  %381 = vmatpush1.msra.mxu0 0.0
  %382 = vmatprep.subr.mxu0 0.0
  %383 = vmatpush1.msra.mxu0 0.0
  %384 = vmatprep.subr.mxu0 0.0
  %385 = vmatpush1.msra.mxu0 0.0
  %386 = vmatprep.subr.mxu0 0.0
  %387 = vmatpush1.msra.mxu0 0.0
  %388 = vmatprep.subr.mxu0 0.0
  %389 = vmatpush1.msra.mxu0 0.0
  %390 = vmatprep.subr.mxu0 0.0
  %391 = vmatpush1.msra.mxu0 0.0
  %392 = vmatprep.subr.mxu0 0.0
  %393 = vmatpush1.msra.mxu0 0.0
  %394 = vmatprep.subr.mxu0 0.0
  %395 = vmatpush1.msra.mxu0 0.0
  %396 = vmatprep.subr.mxu0 0.0
  %397 = vmatpush1.msra.mxu0 0.0
  %398 = vmatprep.subr.mxu0 0.0
  %399 = vmatpush1.msra.mxu0 0.0
  %400 = vmatprep.subr.mxu0 0.0
  %401 = vmatpush1.msra.mxu0 0.0
  %402 = vmatprep.subr.mxu0 0.0
  %403 = vmatpush1.msra.mxu0 0.0
  %404 = vmatprep.subr.mxu0 0.0
  %405 = vmatpush1.msra.mxu0 0.0
  %406 = vmatprep.subr.mxu0 0.0
  %407 = vmatpush1.msra.mxu0 0.0
  %408 = vmatprep.subr.mxu0 0.0
  %409 = vmatpush1.msra.mxu0 0.0
  %410 = vmatprep.subr.mxu0 0.0
  %411 = vmatpush1.msra.mxu0 0.0
  %412 = vmatprep.subr.mxu0 0.0
  %413 = vmatpush1.msra.mxu0 0.0
  %414 = vmatprep.subr.mxu0 0.0
  %415 = vmatpush1.msra.mxu0 0.0
  %416 = vmatprep.subr.mxu0 0.0
  %417 = vmatpush1.msra.mxu0 0.0
  %418 = vmatprep.subr.mxu0 0.0
  %419 = vmatpush1.msra.mxu0 0.0
  %420 = vmatprep.subr.mxu0 0.0
  %421 = vmatpush1.msra.mxu0 0.0
  %422 = vmatprep.subr.mxu0 0.0
  %423 = vmatpush1.msra.mxu0 0.0
  %424 = vmatprep.subr.mxu0 0.0
  %425 = vmatpush1.msra.mxu0 0.0
  %426 = vmatprep.subr.mxu0 0.0
  %427 = vmatpush1.msra.mxu0 0.0
  %428 = vmatprep.subr.mxu0 0.0
  %429 = vmatpush1.msra.mxu0 0.0
  %430 = vmatprep.subr.mxu0 0.0
  %431 = vmatpush1.msra.mxu0 0.0
  %432 = vmatprep.subr.mxu0 0.0
  %433 = vmatpush1.msra.mxu0 0.0
  %434 = vmatprep.mubr.f32.mxu0 0.0
  %435 = vmatmul.mubr.f32.gmra.mrb[0].mxu0 %v368
  %v436 = vpop.f32.mrb[0].mxu0
  %v437 = vadd.f32 %v365, %v436
  %v438 = vpop.f32.mrb[0].mxu0
  %439 = vdwg.mxu0
  %v440 = vadd.f32 %v255, %v437
  %v441 = vld [vmem:[%s16] sm:$0xff]
  %v442 = vld [vmem:[%s16 + $0x8] sm:$0xff]
  %v443 = vld [vmem:[%s16 + $0x10] sm:$0xff]
  %v444 = vld [vmem:[%s16 + $0x18] sm:$0xff]
  %v445 = vld [vmem:[%s17] sm:$0x1]
  %v447 = vlaneseq
  %v448 = vshrl.u32 %v447, 7
  %v449 = vsub.s32 0, %v448
  %v450 = vrot.slane %v445, %v449
  %v453 = vsel %vm93, %v440, 0
  %455 = vmatprep.subr.mxu0 0.0
  %456 = vmatpush1.msra.mxu0 %v441
  %457 = vmatprep.subr.mxu0 0.0
  %458 = vmatpush1.msra.mxu0 %v442
  %459 = vmatprep.subr.mxu0 0.0
  %460 = vmatpush1.msra.mxu0 %v443
  %461 = vmatprep.subr.mxu0 0.0
  %462 = vmatpush1.msra.mxu0 %v444
  %463 = vmatprep.subr.mxu0 0.0
  %464 = vmatpush1.msra.mxu0 0.0
  %465 = vmatprep.subr.mxu0 0.0
  %466 = vmatpush1.msra.mxu0 0.0
  %467 = vmatprep.subr.mxu0 0.0
  %468 = vmatpush1.msra.mxu0 0.0
  %469 = vmatprep.subr.mxu0 0.0
  %470 = vmatpush1.msra.mxu0 0.0
  %471 = vmatprep.subr.mxu0 0.0
  %472 = vmatpush1.msra.mxu0 0.0
  %473 = vmatprep.subr.mxu0 0.0
  %474 = vmatpush1.msra.mxu0 0.0
  %475 = vmatprep.subr.mxu0 0.0
  %476 = vmatpush1.msra.mxu0 0.0
  %477 = vmatprep.subr.mxu0 0.0
  %478 = vmatpush1.msra.mxu0 0.0
  %479 = vmatprep.subr.mxu0 0.0
  %480 = vmatpush1.msra.mxu0 0.0
  %481 = vmatprep.subr.mxu0 0.0
  %482 = vmatpush1.msra.mxu0 0.0
  %483 = vmatprep.subr.mxu0 0.0
  %484 = vmatpush1.msra.mxu0 0.0
  %485 = vmatprep.subr.mxu0 0.0
  %486 = vmatpush1.msra.mxu0 0.0
  %487 = vmatprep.subr.mxu0 0.0
  %488 = vmatpush1.msra.mxu0 0.0
  %489 = vmatprep.subr.mxu0 0.0
  %490 = vmatpush1.msra.mxu0 0.0
  %491 = vmatprep.subr.mxu0 0.0
  %492 = vmatpush1.msra.mxu0 0.0
  %493 = vmatprep.subr.mxu0 0.0
  %494 = vmatpush1.msra.mxu0 0.0
  %495 = vmatprep.subr.mxu0 0.0
  %496 = vmatpush1.msra.mxu0 0.0
  %497 = vmatprep.subr.mxu0 0.0
  %498 = vmatpush1.msra.mxu0 0.0
  %499 = vmatprep.subr.mxu0 0.0
  %500 = vmatpush1.msra.mxu0 0.0
  %501 = vmatprep.subr.mxu0 0.0
  %502 = vmatpush1.msra.mxu0 0.0
  %503 = vmatprep.subr.mxu0 0.0
  %504 = vmatpush1.msra.mxu0 0.0
  %505 = vmatprep.subr.mxu0 0.0
  %506 = vmatpush1.msra.mxu0 0.0
  %507 = vmatprep.subr.mxu0 0.0
  %508 = vmatpush1.msra.mxu0 0.0
  %509 = vmatprep.subr.mxu0 0.0
  %510 = vmatpush1.msra.mxu0 0.0
  %511 = vmatprep.subr.mxu0 0.0
  %512 = vmatpush1.msra.mxu0 0.0
  %513 = vmatprep.subr.mxu0 0.0
  %514 = vmatpush1.msra.mxu0 0.0
  %515 = vmatprep.subr.mxu0 0.0
  %516 = vmatpush1.msra.mxu0 0.0
  %517 = vmatprep.subr.mxu0 0.0
  %518 = vmatpush1.msra.mxu0 0.0
  %519 = vmatprep.mubr.f32.mxu0 0.0
  %520 = vmatmul.mubr.f32.gmra.mrb[0].mxu0 %v453
  %v521 = vpop.f32.mrb[0].mxu0
  %v522 = vadd.f32 %v450, %v521
  %v523 = vpop.f32.mrb[0].mxu0
  %524 = vdwg.mxu0
  %v525 = vxor.u32 %v522, 2147483648
  %v526 = vmul.f32 %v525, 1.442695
  %v527 = vpow.pop %v526
  %v528 = vadd.f32 %v527, 1.0
  %v529 = vrcp.pop %v528
  %v530 = vmul.f32 1.0, %v529
  %v531 = vmul.f32 %v522, %v530
  %v532 = vld [vmem:[%s0] sm:$0xff]
  %v533 = vld [vmem:[%s0 + $0x8] sm:$0xff]
  %v534 = vld [vmem:[%s0 + $0x10] sm:$0xff]
  %v535 = vld [vmem:[%s0 + $0x18] sm:$0xff]
  %v536 = vld [vmem:[%s0 + $0x20] sm:$0xff]
  %v537 = vld [vmem:[%s0 + $0x28] sm:$0xff]
  %v538 = vld [vmem:[%s0 + $0x30] sm:$0xff]
  %v539 = vld [vmem:[%s0 + $0x38] sm:$0xff]
  %v540 = vld [vmem:[%s0 + $0x40] sm:$0xff]
  %v541 = vld [vmem:[%s0 + $0x48] sm:$0xff]
  %v542 = vld [vmem:[%s0 + $0x50] sm:$0xff]
  %v543 = vld [vmem:[%s0 + $0x58] sm:$0xff]
  %v544 = vld [vmem:[%s0 + $0x60] sm:$0xff]
  %v545 = vld [vmem:[%s0 + $0x68] sm:$0xff]
  %v546 = vld [vmem:[%s0 + $0x70] sm:$0xff]
  %v547 = vld [vmem:[%s0 + $0x78] sm:$0xff]
  %v548 = vld [vmem:[%s0 + $0x80] sm:$0xff]
  %v549 = vld [vmem:[%s0 + $0x88] sm:$0xff]
  %v550 = vld [vmem:[%s0 + $0x90] sm:$0xff]
  %v551 = vld [vmem:[%s0 + $0x98] sm:$0xff]
  %v552 = vld [vmem:[%s0 + $0xa0] sm:$0xff]
  %v553 = vld [vmem:[%s0 + $0xa8] sm:$0xff]
  %v554 = vld [vmem:[%s0 + $0xb0] sm:$0xff]
  %v555 = vld [vmem:[%s0 + $0xb8] sm:$0xff]
  %v556 = vld [vmem:[%s0 + $0xc0] sm:$0xff]
  %v557 = vld [vmem:[%s0 + $0xc8] sm:$0xff]
  %v558 = vld [vmem:[%s0 + $0xd0] sm:$0xff]
  %v559 = vld [vmem:[%s0 + $0xd8] sm:$0xff]
  %v560 = vld [vmem:[%s0 + $0xe0] sm:$0xff]
  %v561 = vld [vmem:[%s0 + $0xe8] sm:$0xff]
  %v562 = vld [vmem:[%s0 + $0xf0] sm:$0xff]
  %v563 = vld [vmem:[%s0 + $0xf8] sm:$0xff]
  %v564 = vld [vmem:[%s0 + $0x100] sm:$0xff]
  %v565 = vld [vmem:[%s0 + $0x108] sm:$0xff]
  %v566 = vld [vmem:[%s0 + $0x110] sm:$0xff]
  %v567 = vld [vmem:[%s0 + $0x118] sm:$0xff]
  %v568 = vld [vmem:[%s0 + $0x120] sm:$0xff]
  %v569 = vld [vmem:[%s0 + $0x128] sm:$0xff]
  %v570 = vld [vmem:[%s0 + $0x130] sm:$0xff]
  %v571 = vld [vmem:[%s0 + $0x138] sm:$0xff]
  %v572 = vld [vmem:[%s0 + $0x140] sm:$0xff]
  %v573 = vld [vmem:[%s0 + $0x148] sm:$0xff]
  %v574 = vld [vmem:[%s0 + $0x150] sm:$0xff]
  %v575 = vld [vmem:[%s0 + $0x158] sm:$0xff]
  %v576 = vld [vmem:[%s0 + $0x160] sm:$0xff]
  %v577 = vld [vmem:[%s0 + $0x168] sm:$0xff]
  %v578 = vld [vmem:[%s0 + $0x170] sm:$0xff]
  %v579 = vld [vmem:[%s0 + $0x178] sm:$0xff]
  %v580 = vld [vmem:[%s0 + $0x180] sm:$0xff]
  %v581 = vld [vmem:[%s0 + $0x188] sm:$0xff]
  %v582 = vld [vmem:[%s0 + $0x190] sm:$0xff]
  %v583 = vld [vmem:[%s0 + $0x198] sm:$0xff]
  %v584 = vld [vmem:[%s0 + $0x1a0] sm:$0xff]
  %v585 = vld [vmem:[%s0 + $0x1a8] sm:$0xff]
  %v586 = vld [vmem:[%s0 + $0x1b0] sm:$0xff]
  %v587 = vld [vmem:[%s0 + $0x1b8] sm:$0xff]
  %v588 = vld [vmem:[%s0 + $0x1c0] sm:$0xff]
  %v589 = vld [vmem:[%s0 + $0x1c8] sm:$0xff]
  %v590 = vld [vmem:[%s0 + $0x1d0] sm:$0xff]
  %v591 = vld [vmem:[%s0 + $0x1d8] sm:$0xff]
  %v592 = vld [vmem:[%s0 + $0x1e0] sm:$0xff]
  %v593 = vld [vmem:[%s0 + $0x1e8] sm:$0xff]
  %v594 = vld [vmem:[%s0 + $0x1f0] sm:$0xff]
  %v595 = vld [vmem:[%s0 + $0x1f8] sm:$0xff]
  %v596 = vld [vmem:[%s12] sm:$0xf]
  %v597 = vld [vmem:[%s12 + $0x4] sm:$0xf]
  %v598 = vld [vmem:[%s12 + $0x8] sm:$0xf]
  %v599 = vld [vmem:[%s12 + $0xc] sm:$0xf]
  %v600 = vld [vmem:[%s12 + $0x10] sm:$0x3]
  %v601 = vld [vmem:[%s13] sm:$0x1]
  %v602 = vpack.c.bf16 %v533, %v532
  %v603 = vpack.c.bf16 %v535, %v534
  %v604 = vpack.c.bf16 %v537, %v536
  %v605 = vpack.c.bf16 %v539, %v538
  %v606 = vpack.c.bf16 %v541, %v540
  %v607 = vpack.c.bf16 %v543, %v542
  %v608 = vpack.c.bf16 %v545, %v544
  %v609 = vpack.c.bf16 %v547, %v546
  %v610 = vpack.c.bf16 %v549, %v548
  %v611 = vpack.c.bf16 %v551, %v550
  %v612 = vpack.c.bf16 %v553, %v552
  %v613 = vpack.c.bf16 %v555, %v554
  %v614 = vpack.c.bf16 %v557, %v556
  %v615 = vpack.c.bf16 %v559, %v558
  %v616 = vpack.c.bf16 %v561, %v560
  %v617 = vpack.c.bf16 %v563, %v562
  %v618 = vpack.c.bf16 %v565, %v564
  %v619 = vpack.c.bf16 %v567, %v566
  %v620 = vpack.c.bf16 %v569, %v568
  %v621 = vpack.c.bf16 %v571, %v570
  %v622 = vpack.c.bf16 %v573, %v572
  %v623 = vpack.c.bf16 %v575, %v574
  %v624 = vpack.c.bf16 %v577, %v576
  %v625 = vpack.c.bf16 %v579, %v578
  %v626 = vpack.c.bf16 %v581, %v580
  %v627 = vpack.c.bf16 %v583, %v582
  %v628 = vpack.c.bf16 %v585, %v584
  %v629 = vpack.c.bf16 %v587, %v586
  %v630 = vpack.c.bf16 %v589, %v588
  %v631 = vpack.c.bf16 %v591, %v590
  %v632 = vpack.c.bf16 %v593, %v592
  %v633 = vpack.c.bf16 %v595, %v594
  %v635 = vshrl.u32 0, 16
  %v637 = vrot.slane %v635, 7
  %v638 = vshll.u32 0, 16
  %v640 = vor.u32 %v637, %v638
  %v642 = vshrl.u32 %v602, 16
  %v644 = vrot.slane %v642, 7
  %v645 = vshll.u32 %v602, 16
  %v647 = vor.u32 %v644, %v645
  %v649 = vshrl.u32 %v603, 16
  %v651 = vrot.slane %v649, 7
  %v652 = vshll.u32 %v603, 16
  %v654 = vor.u32 %v651, %v652
  %v656 = vshrl.u32 %v604, 16
  %v658 = vrot.slane %v656, 7
  %v659 = vshll.u32 %v604, 16
  %v661 = vor.u32 %v658, %v659
  %v663 = vshrl.u32 %v605, 16
  %v665 = vrot.slane %v663, 7
  %v666 = vshll.u32 %v605, 16
  %v668 = vor.u32 %v665, %v666
  %v670 = vshrl.u32 %v606, 16
  %v672 = vrot.slane %v670, 7
  %v673 = vshll.u32 %v606, 16
  %v675 = vor.u32 %v672, %v673
  %v677 = vshrl.u32 %v607, 16
  %v679 = vrot.slane %v677, 7
  %v680 = vshll.u32 %v607, 16
  %v682 = vor.u32 %v679, %v680
  %v684 = vshrl.u32 %v608, 16
  %v686 = vrot.slane %v684, 7
  %v687 = vshll.u32 %v608, 16
  %v689 = vor.u32 %v686, %v687
  %v691 = vshrl.u32 %v609, 16
  %v693 = vrot.slane %v691, 7
  %v694 = vshll.u32 %v609, 16
  %v696 = vor.u32 %v693, %v694
  %v698 = vshrl.u32 %v610, 16
  %v700 = vrot.slane %v698, 7
  %v701 = vshll.u32 %v610, 16
  %v703 = vor.u32 %v700, %v701
  %v705 = vshrl.u32 %v611, 16
  %v707 = vrot.slane %v705, 7
  %v708 = vshll.u32 %v611, 16
  %v710 = vor.u32 %v707, %v708
  %v712 = vshrl.u32 %v612, 16
  %v714 = vrot.slane %v712, 7
  %v715 = vshll.u32 %v612, 16
  %v717 = vor.u32 %v714, %v715
  %v719 = vshrl.u32 %v613, 16
  %v721 = vrot.slane %v719, 7
  %v722 = vshll.u32 %v613, 16
  %v724 = vor.u32 %v721, %v722
  %v726 = vshrl.u32 %v614, 16
  %v728 = vrot.slane %v726, 7
  %v729 = vshll.u32 %v614, 16
  %v731 = vor.u32 %v728, %v729
  %v733 = vshrl.u32 %v615, 16
  %v735 = vrot.slane %v733, 7
  %v736 = vshll.u32 %v615, 16
  %v738 = vor.u32 %v735, %v736
  %v740 = vshrl.u32 %v616, 16
  %v742 = vrot.slane %v740, 7
  %v743 = vshll.u32 %v616, 16
  %v745 = vor.u32 %v742, %v743
  %v747 = vshrl.u32 %v617, 16
  %v749 = vrot.slane %v747, 7
  %v750 = vshll.u32 %v617, 16
  %v752 = vor.u32 %v749, %v750
  %v754 = vshrl.u32 %v618, 16
  %v756 = vrot.slane %v754, 7
  %v757 = vshll.u32 %v618, 16
  %v759 = vor.u32 %v756, %v757
  %v761 = vshrl.u32 %v619, 16
  %v763 = vrot.slane %v761, 7
  %v764 = vshll.u32 %v619, 16
  %v766 = vor.u32 %v763, %v764
  %v768 = vshrl.u32 %v620, 16
  %v770 = vrot.slane %v768, 7
  %v771 = vshll.u32 %v620, 16
  %v773 = vor.u32 %v770, %v771
  %v775 = vshrl.u32 %v621, 16
  %v777 = vrot.slane %v775, 7
  %v778 = vshll.u32 %v621, 16
  %v780 = vor.u32 %v777, %v778
  %v782 = vshrl.u32 %v622, 16
  %v784 = vrot.slane %v782, 7
  %v785 = vshll.u32 %v622, 16
  %v787 = vor.u32 %v784, %v785
  %v789 = vshrl.u32 %v623, 16
  %v791 = vrot.slane %v789, 7
  %v792 = vshll.u32 %v623, 16
  %v794 = vor.u32 %v791, %v792
  %v796 = vshrl.u32 %v624, 16
  %v798 = vrot.slane %v796, 7
  %v799 = vshll.u32 %v624, 16
  %v801 = vor.u32 %v798, %v799
  %v803 = vshrl.u32 %v625, 16
  %v805 = vrot.slane %v803, 7
  %v806 = vshll.u32 %v625, 16
  %v808 = vor.u32 %v805, %v806
  %v810 = vshrl.u32 %v626, 16
  %v812 = vrot.slane %v810, 7
  %v813 = vshll.u32 %v626, 16
  %v815 = vor.u32 %v812, %v813
  %v817 = vshrl.u32 %v627, 16
  %v819 = vrot.slane %v817, 7
  %v820 = vshll.u32 %v627, 16
  %v822 = vor.u32 %v819, %v820
  %v824 = vshrl.u32 %v628, 16
  %v826 = vrot.slane %v824, 7
  %v827 = vshll.u32 %v628, 16
  %v829 = vor.u32 %v826, %v827
  %v831 = vshrl.u32 %v629, 16
  %v833 = vrot.slane %v831, 7
  %v834 = vshll.u32 %v629, 16
  %v836 = vor.u32 %v833, %v834
  %v838 = vshrl.u32 %v630, 16
  %v840 = vrot.slane %v838, 7
  %v841 = vshll.u32 %v630, 16
  %v843 = vor.u32 %v840, %v841
  %v845 = vshrl.u32 %v631, 16
  %v847 = vrot.slane %v845, 7
  %v848 = vshll.u32 %v631, 16
  %v850 = vor.u32 %v847, %v848
  %v852 = vshrl.u32 %v632, 16
  %v854 = vrot.slane %v852, 7
  %v855 = vshll.u32 %v632, 16
  %v857 = vor.u32 %v854, %v855
  %v859 = vshrl.u32 %v633, 16
  %v861 = vrot.slane %v859, 7
  %v862 = vshll.u32 %v633, 16
  %v864 = vor.u32 %v861, %v862
  %vm931 = vcmask 1040384
  %vm932 = vsmask.f32 256
  %vm933 = vmand %vm931, %vm932
  %v934 = vsel %vm933, 0, %v640
  %v935 = vsel %vm933, 0, %v647
  %v936 = vsel %vm933, 0, %v654
  %v937 = vsel %vm933, 0, %v661
  %v938 = vsel %vm933, 0, %v668
  %v939 = vsel %vm933, 0, %v675
  %v940 = vsel %vm933, 0, %v682
  %v941 = vsel %vm933, 0, %v689
  %v942 = vsel %vm933, 0, %v696
  %v943 = vsel %vm933, 0, %v703
  %v944 = vsel %vm933, 0, %v710
  %v945 = vsel %vm933, 0, %v717
  %v946 = vsel %vm933, 0, %v724
  %v947 = vsel %vm933, 0, %v731
  %v948 = vsel %vm933, 0, %v738
  %v949 = vsel %vm933, 0, %v745
  %v950 = vsel %vm933, 0, %v752
  %v951 = vsel %vm933, 0, %v759
  %v952 = vsel %vm933, 0, %v766
  %v953 = vsel %vm933, 0, %v773
  %v954 = vsel %vm933, 0, %v780
  %v955 = vsel %vm933, 0, %v787
  %v956 = vsel %vm933, 0, %v794
  %v957 = vsel %vm933, 0, %v801
  %v958 = vsel %vm933, 0, %v808
  %v959 = vsel %vm933, 0, %v815
  %v960 = vsel %vm933, 0, %v822
  %v961 = vsel %vm933, 0, %v829
  %v962 = vsel %vm933, 0, %v836
  %v963 = vsel %vm933, 0, %v843
  %v964 = vsel %vm933, 0, %v850
  %v965 = vsel %vm933, 0, %v857
  %v966 = vsel %vm933, 0, %v864
  %v967 = vsel %vm933, %v637, 0
  %v968 = vsel %vm933, %v644, 0
  %v969 = vsel %vm933, %v651, 0
  %v970 = vsel %vm933, %v658, 0
  %v971 = vsel %vm933, %v665, 0
  %v972 = vsel %vm933, %v672, 0
  %v973 = vsel %vm933, %v679, 0
  %v974 = vsel %vm933, %v686, 0
  %v975 = vsel %vm933, %v693, 0
  %v976 = vsel %vm933, %v700, 0
  %v977 = vsel %vm933, %v707, 0
  %v978 = vsel %vm933, %v714, 0
  %v979 = vsel %vm933, %v721, 0
  %v980 = vsel %vm933, %v728, 0
  %v981 = vsel %vm933, %v735, 0
  %v982 = vsel %vm933, %v742, 0
  %v983 = vsel %vm933, %v749, 0
  %v984 = vsel %vm933, %v756, 0
  %v985 = vsel %vm933, %v763, 0
  %v986 = vsel %vm933, %v770, 0
  %v987 = vsel %vm933, %v777, 0
  %v988 = vsel %vm933, %v784, 0
  %v989 = vsel %vm933, %v791, 0
  %v990 = vsel %vm933, %v798, 0
  %v991 = vsel %vm933, %v805, 0
  %v992 = vsel %vm933, %v812, 0
  %v993 = vsel %vm933, %v819, 0
  %v994 = vsel %vm933, %v826, 0
  %v995 = vsel %vm933, %v833, 0
  %v996 = vsel %vm933, %v840, 0
  %v997 = vsel %vm933, %v847, 0
  %v998 = vsel %vm933, %v854, 0
  %v999 = vsel %vm933, %v861, 0
  %vm1000 = vsmask.f32 7424
  %v1002 = vshrl.u32 %v934, 16
  %v1004 = vshll.u32 %v934, 16
  %v1006 = vrot.slane %v1004, 1
  %v1007 = vor.u32 %v1002, %v1006
  %v1009 = vshll.u32 %v967, 16
  %v1011 = vrot.slane %v1009, 1
  %v1012 = vsel %vm1000, %v1007, %v1011
  %v1014 = vshrl.u32 %v935, 16
  %v1016 = vshll.u32 %v935, 16
  %v1018 = vrot.slane %v1016, 1
  %v1019 = vor.u32 %v1014, %v1018
  %v1021 = vshll.u32 %v968, 16
  %v1023 = vrot.slane %v1021, 1
  %v1024 = vsel %vm1000, %v1019, %v1023
  %v1026 = vshrl.u32 %v936, 16
  %v1028 = vshll.u32 %v936, 16
  %v1030 = vrot.slane %v1028, 1
  %v1031 = vor.u32 %v1026, %v1030
  %v1033 = vshll.u32 %v969, 16
  %v1035 = vrot.slane %v1033, 1
  %v1036 = vsel %vm1000, %v1031, %v1035
  %v1038 = vshrl.u32 %v937, 16
  %v1040 = vshll.u32 %v937, 16
  %v1042 = vrot.slane %v1040, 1
  %v1043 = vor.u32 %v1038, %v1042
  %v1045 = vshll.u32 %v970, 16
  %v1047 = vrot.slane %v1045, 1
  %v1048 = vsel %vm1000, %v1043, %v1047
  %v1050 = vshrl.u32 %v938, 16
  %v1052 = vshll.u32 %v938, 16
  %v1054 = vrot.slane %v1052, 1
  %v1055 = vor.u32 %v1050, %v1054
  %v1057 = vshll.u32 %v971, 16
  %v1059 = vrot.slane %v1057, 1
  %v1060 = vsel %vm1000, %v1055, %v1059
  %v1062 = vshrl.u32 %v939, 16
  %v1064 = vshll.u32 %v939, 16
  %v1066 = vrot.slane %v1064, 1
  %v1067 = vor.u32 %v1062, %v1066
  %v1069 = vshll.u32 %v972, 16
  %v1071 = vrot.slane %v1069, 1
  %v1072 = vsel %vm1000, %v1067, %v1071
  %v1074 = vshrl.u32 %v940, 16
  %v1076 = vshll.u32 %v940, 16
  %v1078 = vrot.slane %v1076, 1
  %v1079 = vor.u32 %v1074, %v1078
  %v1081 = vshll.u32 %v973, 16
  %v1083 = vrot.slane %v1081, 1
  %v1084 = vsel %vm1000, %v1079, %v1083
  %v1086 = vshrl.u32 %v941, 16
  %v1088 = vshll.u32 %v941, 16
  %v1090 = vrot.slane %v1088, 1
  %v1091 = vor.u32 %v1086, %v1090
  %v1093 = vshll.u32 %v974, 16
  %v1095 = vrot.slane %v1093, 1
  %v1096 = vsel %vm1000, %v1091, %v1095
  %v1098 = vshrl.u32 %v942, 16
  %v1100 = vshll.u32 %v942, 16
  %v1102 = vrot.slane %v1100, 1
  %v1103 = vor.u32 %v1098, %v1102
  %v1105 = vshll.u32 %v975, 16
  %v1107 = vrot.slane %v1105, 1
  %v1108 = vsel %vm1000, %v1103, %v1107
  %v1110 = vshrl.u32 %v943, 16
  %v1112 = vshll.u32 %v943, 16
  %v1114 = vrot.slane %v1112, 1
  %v1115 = vor.u32 %v1110, %v1114
  %v1117 = vshll.u32 %v976, 16
  %v1119 = vrot.slane %v1117, 1
  %v1120 = vsel %vm1000, %v1115, %v1119
  %v1122 = vshrl.u32 %v944, 16
  %v1124 = vshll.u32 %v944, 16
  %v1126 = vrot.slane %v1124, 1
  %v1127 = vor.u32 %v1122, %v1126
  %v1129 = vshll.u32 %v977, 16
  %v1131 = vrot.slane %v1129, 1
  %v1132 = vsel %vm1000, %v1127, %v1131
  %v1134 = vshrl.u32 %v945, 16
  %v1136 = vshll.u32 %v945, 16
  %v1138 = vrot.slane %v1136, 1
  %v1139 = vor.u32 %v1134, %v1138
  %v1141 = vshll.u32 %v978, 16
  %v1143 = vrot.slane %v1141, 1
  %v1144 = vsel %vm1000, %v1139, %v1143
  %v1146 = vshrl.u32 %v946, 16
  %v1148 = vshll.u32 %v946, 16
  %v1150 = vrot.slane %v1148, 1
  %v1151 = vor.u32 %v1146, %v1150
  %v1153 = vshll.u32 %v979, 16
  %v1155 = vrot.slane %v1153, 1
  %v1156 = vsel %vm1000, %v1151, %v1155
  %v1158 = vshrl.u32 %v947, 16
  %v1160 = vshll.u32 %v947, 16
  %v1162 = vrot.slane %v1160, 1
  %v1163 = vor.u32 %v1158, %v1162
  %v1165 = vshll.u32 %v980, 16
  %v1167 = vrot.slane %v1165, 1
  %v1168 = vsel %vm1000, %v1163, %v1167
  %v1170 = vshrl.u32 %v948, 16
  %v1172 = vshll.u32 %v948, 16
  %v1174 = vrot.slane %v1172, 1
  %v1175 = vor.u32 %v1170, %v1174
  %v1177 = vshll.u32 %v981, 16
  %v1179 = vrot.slane %v1177, 1
  %v1180 = vsel %vm1000, %v1175, %v1179
  %v1182 = vshrl.u32 %v949, 16
  %v1184 = vshll.u32 %v949, 16
  %v1186 = vrot.slane %v1184, 1
  %v1187 = vor.u32 %v1182, %v1186
  %v1189 = vshll.u32 %v982, 16
  %v1191 = vrot.slane %v1189, 1
  %v1192 = vsel %vm1000, %v1187, %v1191
  %v1194 = vshrl.u32 %v951, 16
  %v1196 = vshll.u32 %v951, 16
  %v1198 = vrot.slane %v1196, 1
  %v1199 = vor.u32 %v1194, %v1198
  %v1201 = vshll.u32 %v984, 16
  %v1203 = vrot.slane %v1201, 1
  %v1204 = vsel %vm1000, %v1199, %v1203
  %v1206 = vshrl.u32 %v952, 16
  %v1208 = vshll.u32 %v952, 16
  %v1210 = vrot.slane %v1208, 1
  %v1211 = vor.u32 %v1206, %v1210
  %v1213 = vshll.u32 %v985, 16
  %v1215 = vrot.slane %v1213, 1
  %v1216 = vsel %vm1000, %v1211, %v1215
  %v1218 = vshrl.u32 %v953, 16
  %v1220 = vshll.u32 %v953, 16
  %v1222 = vrot.slane %v1220, 1
  %v1223 = vor.u32 %v1218, %v1222
  %v1225 = vshll.u32 %v986, 16
  %v1227 = vrot.slane %v1225, 1
  %v1228 = vsel %vm1000, %v1223, %v1227
  %v1230 = vshrl.u32 %v954, 16
  %v1232 = vshll.u32 %v954, 16
  %v1234 = vrot.slane %v1232, 1
  %v1235 = vor.u32 %v1230, %v1234
  %v1237 = vshll.u32 %v987, 16
  %v1239 = vrot.slane %v1237, 1
  %v1240 = vsel %vm1000, %v1235, %v1239
  %v1242 = vshrl.u32 %v955, 16
  %v1244 = vshll.u32 %v955, 16
  %v1246 = vrot.slane %v1244, 1
  %v1247 = vor.u32 %v1242, %v1246
  %v1249 = vshll.u32 %v988, 16
  %v1251 = vrot.slane %v1249, 1
  %v1252 = vsel %vm1000, %v1247, %v1251
  %v1254 = vshrl.u32 %v956, 16
  %v1256 = vshll.u32 %v956, 16
  %v1258 = vrot.slane %v1256, 1
  %v1259 = vor.u32 %v1254, %v1258
  %v1261 = vshll.u32 %v989, 16
  %v1263 = vrot.slane %v1261, 1
  %v1264 = vsel %vm1000, %v1259, %v1263
  %v1266 = vshrl.u32 %v957, 16
  %v1268 = vshll.u32 %v957, 16
  %v1270 = vrot.slane %v1268, 1
  %v1271 = vor.u32 %v1266, %v1270
  %v1273 = vshll.u32 %v990, 16
  %v1275 = vrot.slane %v1273, 1
  %v1276 = vsel %vm1000, %v1271, %v1275
  %v1278 = vshrl.u32 %v958, 16
  %v1280 = vshll.u32 %v958, 16
  %v1282 = vrot.slane %v1280, 1
  %v1283 = vor.u32 %v1278, %v1282
  %v1285 = vshll.u32 %v991, 16
  %v1287 = vrot.slane %v1285, 1
  %v1288 = vsel %vm1000, %v1283, %v1287
  %v1290 = vshrl.u32 %v959, 16
  %v1292 = vshll.u32 %v959, 16
  %v1294 = vrot.slane %v1292, 1
  %v1295 = vor.u32 %v1290, %v1294
  %v1297 = vshll.u32 %v992, 16
  %v1299 = vrot.slane %v1297, 1
  %v1300 = vsel %vm1000, %v1295, %v1299
  %v1302 = vshrl.u32 %v960, 16
  %v1304 = vshll.u32 %v960, 16
  %v1306 = vrot.slane %v1304, 1
  %v1307 = vor.u32 %v1302, %v1306
  %v1309 = vshll.u32 %v993, 16
  %v1311 = vrot.slane %v1309, 1
  %v1312 = vsel %vm1000, %v1307, %v1311
  %v1314 = vshrl.u32 %v961, 16
  %v1316 = vshll.u32 %v961, 16
  %v1318 = vrot.slane %v1316, 1
  %v1319 = vor.u32 %v1314, %v1318
  %v1321 = vshll.u32 %v994, 16
  %v1323 = vrot.slane %v1321, 1
  %v1324 = vsel %vm1000, %v1319, %v1323
  %v1326 = vshrl.u32 %v962, 16
  %v1328 = vshll.u32 %v962, 16
  %v1330 = vrot.slane %v1328, 1
  %v1331 = vor.u32 %v1326, %v1330
  %v1333 = vshll.u32 %v995, 16
  %v1335 = vrot.slane %v1333, 1
  %v1336 = vsel %vm1000, %v1331, %v1335
  %v1338 = vshrl.u32 %v963, 16
  %v1340 = vshll.u32 %v963, 16
  %v1342 = vrot.slane %v1340, 1
  %v1343 = vor.u32 %v1338, %v1342
  %v1345 = vshll.u32 %v996, 16
  %v1347 = vrot.slane %v1345, 1
  %v1348 = vsel %vm1000, %v1343, %v1347
  %v1350 = vshrl.u32 %v964, 16
  %v1352 = vshll.u32 %v964, 16
  %v1354 = vrot.slane %v1352, 1
  %v1355 = vor.u32 %v1350, %v1354
  %v1357 = vshll.u32 %v997, 16
  %v1359 = vrot.slane %v1357, 1
  %v1360 = vsel %vm1000, %v1355, %v1359
  %v1362 = vshrl.u32 %v965, 16
  %v1364 = vshll.u32 %v965, 16
  %v1366 = vrot.slane %v1364, 1
  %v1367 = vor.u32 %v1362, %v1366
  %v1369 = vshll.u32 %v998, 16
  %v1371 = vrot.slane %v1369, 1
  %v1372 = vsel %vm1000, %v1367, %v1371
  %1373 = vrot.lane.b32.xlu0 %v1012, 4
  %v1374 = vpop.permute.xlu0 %1373
  %1375 = vrot.lane.b32.xlu0 %v1024, 4
  %v1376 = vpop.permute.xlu0 %1375
  %1377 = vrot.lane.b32.xlu0 %v1036, 4
  %v1378 = vpop.permute.xlu0 %1377
  %1379 = vrot.lane.b32.xlu0 %v1048, 4
  %v1380 = vpop.permute.xlu0 %1379
  %1381 = vrot.lane.b32.xlu0 %v1060, 4
  %v1382 = vpop.permute.xlu0 %1381
  %1383 = vrot.lane.b32.xlu0 %v1072, 4
  %v1384 = vpop.permute.xlu0 %1383
  %1385 = vrot.lane.b32.xlu0 %v1084, 4
  %v1386 = vpop.permute.xlu0 %1385
  %1387 = vrot.lane.b32.xlu0 %v1096, 4
  %v1388 = vpop.permute.xlu0 %1387
  %1389 = vrot.lane.b32.xlu0 %v1108, 4
  %v1390 = vpop.permute.xlu0 %1389
  %1391 = vrot.lane.b32.xlu0 %v1120, 4
  %v1392 = vpop.permute.xlu0 %1391
  %1393 = vrot.lane.b32.xlu0 %v1132, 4
  %v1394 = vpop.permute.xlu0 %1393
  %1395 = vrot.lane.b32.xlu0 %v1144, 4
  %v1396 = vpop.permute.xlu0 %1395
  %1397 = vrot.lane.b32.xlu0 %v1156, 4
  %v1398 = vpop.permute.xlu0 %1397
  %1399 = vrot.lane.b32.xlu0 %v1168, 4
  %v1400 = vpop.permute.xlu0 %1399
  %1401 = vrot.lane.b32.xlu0 %v1180, 4
  %v1402 = vpop.permute.xlu0 %1401
  %1403 = vrot.lane.b32.xlu0 %v1192, 4
  %v1404 = vpop.permute.xlu0 %1403
  %1405 = vrot.lane.b32.xlu0 %v1204, 4
  %v1406 = vpop.permute.xlu0 %1405
  %1407 = vrot.lane.b32.xlu0 %v1216, 4
  %v1408 = vpop.permute.xlu0 %1407
  %1409 = vrot.lane.b32.xlu0 %v1228, 4
  %v1410 = vpop.permute.xlu0 %1409
  %1411 = vrot.lane.b32.xlu0 %v1240, 4
  %v1412 = vpop.permute.xlu0 %1411
  %1413 = vrot.lane.b32.xlu0 %v1252, 4
  %v1414 = vpop.permute.xlu0 %1413
  %1415 = vrot.lane.b32.xlu0 %v1264, 4
  %v1416 = vpop.permute.xlu0 %1415
  %1417 = vrot.lane.b32.xlu0 %v1276, 4
  %v1418 = vpop.permute.xlu0 %1417
  %1419 = vrot.lane.b32.xlu0 %v1288, 4
  %v1420 = vpop.permute.xlu0 %1419
  %1421 = vrot.lane.b32.xlu0 %v1300, 4
  %v1422 = vpop.permute.xlu0 %1421
  %1423 = vrot.lane.b32.xlu0 %v1312, 4
  %v1424 = vpop.permute.xlu0 %1423
  %1425 = vrot.lane.b32.xlu0 %v1324, 4
  %v1426 = vpop.permute.xlu0 %1425
  %1427 = vrot.lane.b32.xlu0 %v1336, 4
  %v1428 = vpop.permute.xlu0 %1427
  %1429 = vrot.lane.b32.xlu0 %v1348, 4
  %v1430 = vpop.permute.xlu0 %1429
  %1431 = vrot.lane.b32.xlu0 %v1360, 4
  %v1432 = vpop.permute.xlu0 %1431
  %1433 = vrot.lane.b32.xlu0 %v1372, 4
  %v1434 = vpop.permute.xlu0 %1433
  %vm1497 = vcmask 1046528
  %v1498 = vrot.slane %v934, 1
  %v1499 = vrot.slane %v967, 1
  %v1500 = vsel %vm1497, %v1498, %v1499
  %v1501 = vrot.slane %v935, 1
  %v1502 = vrot.slane %v968, 1
  %v1503 = vsel %vm1497, %v1501, %v1502
  %v1504 = vrot.slane %v936, 1
  %v1505 = vrot.slane %v969, 1
  %v1506 = vsel %vm1497, %v1504, %v1505
  %v1507 = vrot.slane %v937, 1
  %v1508 = vrot.slane %v970, 1
  %v1509 = vsel %vm1497, %v1507, %v1508
  %v1510 = vrot.slane %v938, 1
  %v1511 = vrot.slane %v971, 1
  %v1512 = vsel %vm1497, %v1510, %v1511
  %v1513 = vrot.slane %v939, 1
  %v1514 = vrot.slane %v972, 1
  %v1515 = vsel %vm1497, %v1513, %v1514
  %v1516 = vrot.slane %v940, 1
  %v1517 = vrot.slane %v973, 1
  %v1518 = vsel %vm1497, %v1516, %v1517
  %v1519 = vrot.slane %v941, 1
  %v1520 = vrot.slane %v974, 1
  %v1521 = vsel %vm1497, %v1519, %v1520
  %v1522 = vrot.slane %v942, 1
  %v1523 = vrot.slane %v975, 1
  %v1524 = vsel %vm1497, %v1522, %v1523
  %v1525 = vrot.slane %v943, 1
  %v1526 = vrot.slane %v976, 1
  %v1527 = vsel %vm1497, %v1525, %v1526
  %v1528 = vrot.slane %v944, 1
  %v1529 = vrot.slane %v977, 1
  %v1530 = vsel %vm1497, %v1528, %v1529
  %v1531 = vrot.slane %v945, 1
  %v1532 = vrot.slane %v978, 1
  %v1533 = vsel %vm1497, %v1531, %v1532
  %v1534 = vrot.slane %v946, 1
  %v1535 = vrot.slane %v979, 1
  %v1536 = vsel %vm1497, %v1534, %v1535
  %v1537 = vrot.slane %v947, 1
  %v1538 = vrot.slane %v980, 1
  %v1539 = vsel %vm1497, %v1537, %v1538
  %v1540 = vrot.slane %v948, 1
  %v1541 = vrot.slane %v981, 1
  %v1542 = vsel %vm1497, %v1540, %v1541
  %v1543 = vrot.slane %v949, 1
  %v1544 = vrot.slane %v982, 1
  %v1545 = vsel %vm1497, %v1543, %v1544
  %v1546 = vrot.slane %v951, 1
  %v1547 = vrot.slane %v984, 1
  %v1548 = vsel %vm1497, %v1546, %v1547
  %v1549 = vrot.slane %v952, 1
  %v1550 = vrot.slane %v985, 1
  %v1551 = vsel %vm1497, %v1549, %v1550
  %v1552 = vrot.slane %v953, 1
  %v1553 = vrot.slane %v986, 1
  %v1554 = vsel %vm1497, %v1552, %v1553
  %v1555 = vrot.slane %v954, 1
  %v1556 = vrot.slane %v987, 1
  %v1557 = vsel %vm1497, %v1555, %v1556
  %v1558 = vrot.slane %v955, 1
  %v1559 = vrot.slane %v988, 1
  %v1560 = vsel %vm1497, %v1558, %v1559
  %v1561 = vrot.slane %v956, 1
  %v1562 = vrot.slane %v989, 1
  %v1563 = vsel %vm1497, %v1561, %v1562
  %v1564 = vrot.slane %v957, 1
  %v1565 = vrot.slane %v990, 1
  %v1566 = vsel %vm1497, %v1564, %v1565
  %v1567 = vrot.slane %v958, 1
  %v1568 = vrot.slane %v991, 1
  %v1569 = vsel %vm1497, %v1567, %v1568
  %v1570 = vrot.slane %v959, 1
  %v1571 = vrot.slane %v992, 1
  %v1572 = vsel %vm1497, %v1570, %v1571
  %v1573 = vrot.slane %v960, 1
  %v1574 = vrot.slane %v993, 1
  %v1575 = vsel %vm1497, %v1573, %v1574
  %v1576 = vrot.slane %v961, 1
  %v1577 = vrot.slane %v994, 1
  %v1578 = vsel %vm1497, %v1576, %v1577
  %v1579 = vrot.slane %v962, 1
  %v1580 = vrot.slane %v995, 1
  %v1581 = vsel %vm1497, %v1579, %v1580
  %v1582 = vrot.slane %v963, 1
  %v1583 = vrot.slane %v996, 1
  %v1584 = vsel %vm1497, %v1582, %v1583
  %v1585 = vrot.slane %v964, 1
  %v1586 = vrot.slane %v997, 1
  %v1587 = vsel %vm1497, %v1585, %v1586
  %v1588 = vrot.slane %v965, 1
  %v1589 = vrot.slane %v998, 1
  %v1590 = vsel %vm1497, %v1588, %v1589
  %1591 = vrot.lane.b32.xlu0 %v1500, 8
  %v1592 = vpop.permute.xlu0 %1591
  %1593 = vrot.lane.b32.xlu0 %v1503, 8
  %v1594 = vpop.permute.xlu0 %1593
  %1595 = vrot.lane.b32.xlu0 %v1506, 8
  %v1596 = vpop.permute.xlu0 %1595
  %1597 = vrot.lane.b32.xlu0 %v1509, 8
  %v1598 = vpop.permute.xlu0 %1597
  %1599 = vrot.lane.b32.xlu0 %v1512, 8
  %v1600 = vpop.permute.xlu0 %1599
  %1601 = vrot.lane.b32.xlu0 %v1515, 8
  %v1602 = vpop.permute.xlu0 %1601
  %1603 = vrot.lane.b32.xlu0 %v1518, 8
  %v1604 = vpop.permute.xlu0 %1603
  %1605 = vrot.lane.b32.xlu0 %v1521, 8
  %v1606 = vpop.permute.xlu0 %1605
  %1607 = vrot.lane.b32.xlu0 %v1524, 8
  %v1608 = vpop.permute.xlu0 %1607
  %1609 = vrot.lane.b32.xlu0 %v1527, 8
  %v1610 = vpop.permute.xlu0 %1609
  %1611 = vrot.lane.b32.xlu0 %v1530, 8
  %v1612 = vpop.permute.xlu0 %1611
  %1613 = vrot.lane.b32.xlu0 %v1533, 8
  %v1614 = vpop.permute.xlu0 %1613
  %1615 = vrot.lane.b32.xlu0 %v1536, 8
  %v1616 = vpop.permute.xlu0 %1615
  %1617 = vrot.lane.b32.xlu0 %v1539, 8
  %v1618 = vpop.permute.xlu0 %1617
  %1619 = vrot.lane.b32.xlu0 %v1542, 8
  %v1620 = vpop.permute.xlu0 %1619
  %1621 = vrot.lane.b32.xlu0 %v1545, 8
  %v1622 = vpop.permute.xlu0 %1621
  %1623 = vrot.lane.b32.xlu0 %v1548, 8
  %v1624 = vpop.permute.xlu0 %1623
  %1625 = vrot.lane.b32.xlu0 %v1551, 8
  %v1626 = vpop.permute.xlu0 %1625
  %1627 = vrot.lane.b32.xlu0 %v1554, 8
  %v1628 = vpop.permute.xlu0 %1627
  %1629 = vrot.lane.b32.xlu0 %v1557, 8
  %v1630 = vpop.permute.xlu0 %1629
  %1631 = vrot.lane.b32.xlu0 %v1560, 8
  %v1632 = vpop.permute.xlu0 %1631
  %1633 = vrot.lane.b32.xlu0 %v1563, 8
  %v1634 = vpop.permute.xlu0 %1633
  %1635 = vrot.lane.b32.xlu0 %v1566, 8
  %v1636 = vpop.permute.xlu0 %1635
  %1637 = vrot.lane.b32.xlu0 %v1569, 8
  %v1638 = vpop.permute.xlu0 %1637
  %1639 = vrot.lane.b32.xlu0 %v1572, 8
  %v1640 = vpop.permute.xlu0 %1639
  %1641 = vrot.lane.b32.xlu0 %v1575, 8
  %v1642 = vpop.permute.xlu0 %1641
  %1643 = vrot.lane.b32.xlu0 %v1578, 8
  %v1644 = vpop.permute.xlu0 %1643
  %1645 = vrot.lane.b32.xlu0 %v1581, 8
  %v1646 = vpop.permute.xlu0 %1645
  %1647 = vrot.lane.b32.xlu0 %v1584, 8
  %v1648 = vpop.permute.xlu0 %1647
  %1649 = vrot.lane.b32.xlu0 %v1587, 8
  %v1650 = vpop.permute.xlu0 %1649
  %1651 = vrot.lane.b32.xlu0 %v1590, 8
  %v1652 = vpop.permute.xlu0 %1651
  %1655 = vrot.lane.b32.xlu0 %v935, 12
  %v1656 = vpop.permute.xlu0 %1655
  %1657 = vrot.lane.b32.xlu0 %v936, 12
  %v1658 = vpop.permute.xlu0 %1657
  %1659 = vrot.lane.b32.xlu0 %v937, 12
  %v1660 = vpop.permute.xlu0 %1659
  %1661 = vrot.lane.b32.xlu0 %v938, 12
  %v1662 = vpop.permute.xlu0 %1661
  %1663 = vrot.lane.b32.xlu0 %v939, 12
  %v1664 = vpop.permute.xlu0 %1663
  %1665 = vrot.lane.b32.xlu0 %v940, 12
  %v1666 = vpop.permute.xlu0 %1665
  %1667 = vrot.lane.b32.xlu0 %v941, 12
  %v1668 = vpop.permute.xlu0 %1667
  %1669 = vrot.lane.b32.xlu0 %v942, 12
  %v1670 = vpop.permute.xlu0 %1669
  %1671 = vrot.lane.b32.xlu0 %v943, 12
  %v1672 = vpop.permute.xlu0 %1671
  %1673 = vrot.lane.b32.xlu0 %v944, 12
  %v1674 = vpop.permute.xlu0 %1673
  %1675 = vrot.lane.b32.xlu0 %v945, 12
  %v1676 = vpop.permute.xlu0 %1675
  %1677 = vrot.lane.b32.xlu0 %v946, 12
  %v1678 = vpop.permute.xlu0 %1677
  %1679 = vrot.lane.b32.xlu0 %v947, 12
  %v1680 = vpop.permute.xlu0 %1679
  %1681 = vrot.lane.b32.xlu0 %v948, 12
  %v1682 = vpop.permute.xlu0 %1681
  %1683 = vrot.lane.b32.xlu0 %v949, 12
  %v1684 = vpop.permute.xlu0 %1683
  %1685 = vrot.lane.b32.xlu0 %v950, 12
  %v1686 = vpop.permute.xlu0 %1685
  %1687 = vrot.lane.b32.xlu0 %v951, 12
  %v1688 = vpop.permute.xlu0 %1687
  %1689 = vrot.lane.b32.xlu0 %v952, 12
  %v1690 = vpop.permute.xlu0 %1689
  %1691 = vrot.lane.b32.xlu0 %v953, 12
  %v1692 = vpop.permute.xlu0 %1691
  %1693 = vrot.lane.b32.xlu0 %v954, 12
  %v1694 = vpop.permute.xlu0 %1693
  %1695 = vrot.lane.b32.xlu0 %v955, 12
  %v1696 = vpop.permute.xlu0 %1695
  %1697 = vrot.lane.b32.xlu0 %v956, 12
  %v1698 = vpop.permute.xlu0 %1697
  %1699 = vrot.lane.b32.xlu0 %v957, 12
  %v1700 = vpop.permute.xlu0 %1699
  %1701 = vrot.lane.b32.xlu0 %v958, 12
  %v1702 = vpop.permute.xlu0 %1701
  %1703 = vrot.lane.b32.xlu0 %v959, 12
  %v1704 = vpop.permute.xlu0 %1703
  %1705 = vrot.lane.b32.xlu0 %v960, 12
  %v1706 = vpop.permute.xlu0 %1705
  %1707 = vrot.lane.b32.xlu0 %v961, 12
  %v1708 = vpop.permute.xlu0 %1707
  %1709 = vrot.lane.b32.xlu0 %v962, 12
  %v1710 = vpop.permute.xlu0 %1709
  %1711 = vrot.lane.b32.xlu0 %v963, 12
  %v1712 = vpop.permute.xlu0 %1711
  %1713 = vrot.lane.b32.xlu0 %v964, 12
  %v1714 = vpop.permute.xlu0 %1713
  %1715 = vrot.lane.b32.xlu0 %v965, 12
  %v1716 = vpop.permute.xlu0 %1715
  %1717 = vrot.lane.b32.xlu0 %v966, 12
  %v1718 = vpop.permute.xlu0 %1717
  %v1720 = vshrl.u32 %v950, 16
  %v1722 = vshll.u32 %v950, 16
  %v1724 = vrot.slane %v1722, 1
  %v1725 = vor.u32 %v1720, %v1724
  %v1727 = vshll.u32 %v983, 16
  %v1729 = vrot.slane %v1727, 1
  %v1730 = vsel %vm1000, %v1725, %v1729
  %v1732 = vshrl.u32 %v966, 16
  %v1734 = vshll.u32 %v966, 16
  %v1736 = vrot.slane %v1734, 1
  %v1737 = vor.u32 %v1732, %v1736
  %v1739 = vshll.u32 %v999, 16
  %v1741 = vrot.slane %v1739, 1
  %v1742 = vsel %vm1000, %v1737, %v1741
  %1743 = vrot.lane.b32.xlu0 %v1024, 16
  %v1744 = vpop.permute.xlu0 %1743
  %1745 = vrot.lane.b32.xlu0 %v1036, 16
  %v1746 = vpop.permute.xlu0 %1745
  %1747 = vrot.lane.b32.xlu0 %v1048, 16
  %v1748 = vpop.permute.xlu0 %1747
  %1749 = vrot.lane.b32.xlu0 %v1060, 16
  %v1750 = vpop.permute.xlu0 %1749
  %1751 = vrot.lane.b32.xlu0 %v1072, 16
  %v1752 = vpop.permute.xlu0 %1751
  %1753 = vrot.lane.b32.xlu0 %v1084, 16
  %v1754 = vpop.permute.xlu0 %1753
  %1755 = vrot.lane.b32.xlu0 %v1096, 16
  %v1756 = vpop.permute.xlu0 %1755
  %1757 = vrot.lane.b32.xlu0 %v1108, 16
  %v1758 = vpop.permute.xlu0 %1757
  %1759 = vrot.lane.b32.xlu0 %v1120, 16
  %v1760 = vpop.permute.xlu0 %1759
  %1761 = vrot.lane.b32.xlu0 %v1132, 16
  %v1762 = vpop.permute.xlu0 %1761
  %1763 = vrot.lane.b32.xlu0 %v1144, 16
  %v1764 = vpop.permute.xlu0 %1763
  %1765 = vrot.lane.b32.xlu0 %v1156, 16
  %v1766 = vpop.permute.xlu0 %1765
  %1767 = vrot.lane.b32.xlu0 %v1168, 16
  %v1768 = vpop.permute.xlu0 %1767
  %1769 = vrot.lane.b32.xlu0 %v1180, 16
  %v1770 = vpop.permute.xlu0 %1769
  %1771 = vrot.lane.b32.xlu0 %v1192, 16
  %v1772 = vpop.permute.xlu0 %1771
  %1773 = vrot.lane.b32.xlu0 %v1730, 16
  %v1774 = vpop.permute.xlu0 %1773
  %1775 = vrot.lane.b32.xlu0 %v1204, 16
  %v1776 = vpop.permute.xlu0 %1775
  %1777 = vrot.lane.b32.xlu0 %v1216, 16
  %v1778 = vpop.permute.xlu0 %1777
  %1779 = vrot.lane.b32.xlu0 %v1228, 16
  %v1780 = vpop.permute.xlu0 %1779
  %1781 = vrot.lane.b32.xlu0 %v1240, 16
  %v1782 = vpop.permute.xlu0 %1781
  %1783 = vrot.lane.b32.xlu0 %v1252, 16
  %v1784 = vpop.permute.xlu0 %1783
  %1785 = vrot.lane.b32.xlu0 %v1264, 16
  %v1786 = vpop.permute.xlu0 %1785
  %1787 = vrot.lane.b32.xlu0 %v1276, 16
  %v1788 = vpop.permute.xlu0 %1787
  %1789 = vrot.lane.b32.xlu0 %v1288, 16
  %v1790 = vpop.permute.xlu0 %1789
  %1791 = vrot.lane.b32.xlu0 %v1300, 16
  %v1792 = vpop.permute.xlu0 %1791
  %1793 = vrot.lane.b32.xlu0 %v1312, 16
  %v1794 = vpop.permute.xlu0 %1793
  %1795 = vrot.lane.b32.xlu0 %v1324, 16
  %v1796 = vpop.permute.xlu0 %1795
  %1797 = vrot.lane.b32.xlu0 %v1336, 16
  %v1798 = vpop.permute.xlu0 %1797
  %1799 = vrot.lane.b32.xlu0 %v1348, 16
  %v1800 = vpop.permute.xlu0 %1799
  %1801 = vrot.lane.b32.xlu0 %v1360, 16
  %v1802 = vpop.permute.xlu0 %1801
  %1803 = vrot.lane.b32.xlu0 %v1372, 16
  %v1804 = vpop.permute.xlu0 %1803
  %1805 = vrot.lane.b32.xlu0 %v1742, 16
  %v1806 = vpop.permute.xlu0 %1805
  %v1809 = vrot.slane %v950, 1
  %v1810 = vrot.slane %v983, 1
  %v1811 = vsel %vm1497, %v1809, %v1810
  %v1812 = vrot.slane %v966, 1
  %v1813 = vrot.slane %v999, 1
  %v1814 = vsel %vm1497, %v1812, %v1813
  %1815 = vrot.lane.b32.xlu0 %v1503, 20
  %v1816 = vpop.permute.xlu0 %1815
  %1817 = vrot.lane.b32.xlu0 %v1506, 20
  %v1818 = vpop.permute.xlu0 %1817
  %1819 = vrot.lane.b32.xlu0 %v1509, 20
  %v1820 = vpop.permute.xlu0 %1819
  %1821 = vrot.lane.b32.xlu0 %v1512, 20
  %v1822 = vpop.permute.xlu0 %1821
  %1823 = vrot.lane.b32.xlu0 %v1515, 20
  %v1824 = vpop.permute.xlu0 %1823
  %1825 = vrot.lane.b32.xlu0 %v1518, 20
  %v1826 = vpop.permute.xlu0 %1825
  %1827 = vrot.lane.b32.xlu0 %v1521, 20
  %v1828 = vpop.permute.xlu0 %1827
  %1829 = vrot.lane.b32.xlu0 %v1524, 20
  %v1830 = vpop.permute.xlu0 %1829
  %1831 = vrot.lane.b32.xlu0 %v1527, 20
  %v1832 = vpop.permute.xlu0 %1831
  %1833 = vrot.lane.b32.xlu0 %v1530, 20
  %v1834 = vpop.permute.xlu0 %1833
  %1835 = vrot.lane.b32.xlu0 %v1533, 20
  %v1836 = vpop.permute.xlu0 %1835
  %1837 = vrot.lane.b32.xlu0 %v1536, 20
  %v1838 = vpop.permute.xlu0 %1837
  %1839 = vrot.lane.b32.xlu0 %v1539, 20
  %v1840 = vpop.permute.xlu0 %1839
  %1841 = vrot.lane.b32.xlu0 %v1542, 20
  %v1842 = vpop.permute.xlu0 %1841
  %1843 = vrot.lane.b32.xlu0 %v1545, 20
  %v1844 = vpop.permute.xlu0 %1843
  %1845 = vrot.lane.b32.xlu0 %v1811, 20
  %v1846 = vpop.permute.xlu0 %1845
  %1847 = vrot.lane.b32.xlu0 %v1548, 20
  %v1848 = vpop.permute.xlu0 %1847
  %1849 = vrot.lane.b32.xlu0 %v1551, 20
  %v1850 = vpop.permute.xlu0 %1849
  %1851 = vrot.lane.b32.xlu0 %v1554, 20
  %v1852 = vpop.permute.xlu0 %1851
  %1853 = vrot.lane.b32.xlu0 %v1557, 20
  %v1854 = vpop.permute.xlu0 %1853
  %1855 = vrot.lane.b32.xlu0 %v1560, 20
  %v1856 = vpop.permute.xlu0 %1855
  %1857 = vrot.lane.b32.xlu0 %v1563, 20
  %v1858 = vpop.permute.xlu0 %1857
  %1859 = vrot.lane.b32.xlu0 %v1566, 20
  %v1860 = vpop.permute.xlu0 %1859
  %1861 = vrot.lane.b32.xlu0 %v1569, 20
  %v1862 = vpop.permute.xlu0 %1861
  %1863 = vrot.lane.b32.xlu0 %v1572, 20
  %v1864 = vpop.permute.xlu0 %1863
  %1865 = vrot.lane.b32.xlu0 %v1575, 20
  %v1866 = vpop.permute.xlu0 %1865
  %1867 = vrot.lane.b32.xlu0 %v1578, 20
  %v1868 = vpop.permute.xlu0 %1867
  %1869 = vrot.lane.b32.xlu0 %v1581, 20
  %v1870 = vpop.permute.xlu0 %1869
  %1871 = vrot.lane.b32.xlu0 %v1584, 20
  %v1872 = vpop.permute.xlu0 %1871
  %1873 = vrot.lane.b32.xlu0 %v1587, 20
  %v1874 = vpop.permute.xlu0 %1873
  %1875 = vrot.lane.b32.xlu0 %v1590, 20
  %v1876 = vpop.permute.xlu0 %1875
  %1877 = vrot.lane.b32.xlu0 %v1814, 20
  %v1878 = vpop.permute.xlu0 %1877
  %1879 = vrot.lane.b32.xlu0 %v936, 24
  %v1880 = vpop.permute.xlu0 %1879
  %1881 = vrot.lane.b32.xlu0 %v937, 24
  %v1882 = vpop.permute.xlu0 %1881
  %1883 = vrot.lane.b32.xlu0 %v938, 24
  %v1884 = vpop.permute.xlu0 %1883
  %1885 = vrot.lane.b32.xlu0 %v939, 24
  %v1886 = vpop.permute.xlu0 %1885
  %1887 = vrot.lane.b32.xlu0 %v940, 24
  %v1888 = vpop.permute.xlu0 %1887
  %1889 = vrot.lane.b32.xlu0 %v941, 24
  %v1890 = vpop.permute.xlu0 %1889
  %1891 = vrot.lane.b32.xlu0 %v942, 24
  %v1892 = vpop.permute.xlu0 %1891
  %1893 = vrot.lane.b32.xlu0 %v943, 24
  %v1894 = vpop.permute.xlu0 %1893
  %1895 = vrot.lane.b32.xlu0 %v944, 24
  %v1896 = vpop.permute.xlu0 %1895
  %1897 = vrot.lane.b32.xlu0 %v945, 24
  %v1898 = vpop.permute.xlu0 %1897
  %1899 = vrot.lane.b32.xlu0 %v946, 24
  %v1900 = vpop.permute.xlu0 %1899
  %1901 = vrot.lane.b32.xlu0 %v947, 24
  %v1902 = vpop.permute.xlu0 %1901
  %1903 = vrot.lane.b32.xlu0 %v948, 24
  %v1904 = vpop.permute.xlu0 %1903
  %1905 = vrot.lane.b32.xlu0 %v949, 24
  %v1906 = vpop.permute.xlu0 %1905
  %1907 = vrot.lane.b32.xlu0 %v950, 24
  %v1908 = vpop.permute.xlu0 %1907
  %1909 = vrot.lane.b32.xlu0 %v934, 24
  %v1910 = vpop.permute.xlu0 %1909
  %1911 = vrot.lane.b32.xlu0 %v952, 24
  %v1912 = vpop.permute.xlu0 %1911
  %1913 = vrot.lane.b32.xlu0 %v953, 24
  %v1914 = vpop.permute.xlu0 %1913
  %1915 = vrot.lane.b32.xlu0 %v954, 24
  %v1916 = vpop.permute.xlu0 %1915
  %1917 = vrot.lane.b32.xlu0 %v955, 24
  %v1918 = vpop.permute.xlu0 %1917
  %1919 = vrot.lane.b32.xlu0 %v956, 24
  %v1920 = vpop.permute.xlu0 %1919
  %1921 = vrot.lane.b32.xlu0 %v957, 24
  %v1922 = vpop.permute.xlu0 %1921
  %1923 = vrot.lane.b32.xlu0 %v958, 24
  %v1924 = vpop.permute.xlu0 %1923
  %1925 = vrot.lane.b32.xlu0 %v959, 24
  %v1926 = vpop.permute.xlu0 %1925
  %1927 = vrot.lane.b32.xlu0 %v960, 24
  %v1928 = vpop.permute.xlu0 %1927
  %1929 = vrot.lane.b32.xlu0 %v961, 24
  %v1930 = vpop.permute.xlu0 %1929
  %1931 = vrot.lane.b32.xlu0 %v962, 24
  %v1932 = vpop.permute.xlu0 %1931
  %1933 = vrot.lane.b32.xlu0 %v963, 24
  %v1934 = vpop.permute.xlu0 %1933
  %1935 = vrot.lane.b32.xlu0 %v964, 24
  %v1936 = vpop.permute.xlu0 %1935
  %1937 = vrot.lane.b32.xlu0 %v965, 24
  %v1938 = vpop.permute.xlu0 %1937
  %1939 = vrot.lane.b32.xlu0 %v966, 24
  %v1940 = vpop.permute.xlu0 %1939
  %1941 = vrot.lane.b32.xlu0 %v1036, 28
  %v1942 = vpop.permute.xlu0 %1941
  %1943 = vrot.lane.b32.xlu0 %v1048, 28
  %v1944 = vpop.permute.xlu0 %1943
  %1945 = vrot.lane.b32.xlu0 %v1060, 28
  %v1946 = vpop.permute.xlu0 %1945
  %1947 = vrot.lane.b32.xlu0 %v1072, 28
  %v1948 = vpop.permute.xlu0 %1947
  %1949 = vrot.lane.b32.xlu0 %v1084, 28
  %v1950 = vpop.permute.xlu0 %1949
  %1951 = vrot.lane.b32.xlu0 %v1096, 28
  %v1952 = vpop.permute.xlu0 %1951
  %1953 = vrot.lane.b32.xlu0 %v1108, 28
  %v1954 = vpop.permute.xlu0 %1953
  %1955 = vrot.lane.b32.xlu0 %v1120, 28
  %v1956 = vpop.permute.xlu0 %1955
  %1957 = vrot.lane.b32.xlu0 %v1132, 28
  %v1958 = vpop.permute.xlu0 %1957
  %1959 = vrot.lane.b32.xlu0 %v1144, 28
  %v1960 = vpop.permute.xlu0 %1959
  %1961 = vrot.lane.b32.xlu0 %v1156, 28
  %v1962 = vpop.permute.xlu0 %1961
  %1963 = vrot.lane.b32.xlu0 %v1168, 28
  %v1964 = vpop.permute.xlu0 %1963
  %1965 = vrot.lane.b32.xlu0 %v1180, 28
  %v1966 = vpop.permute.xlu0 %1965
  %1967 = vrot.lane.b32.xlu0 %v1192, 28
  %v1968 = vpop.permute.xlu0 %1967
  %1969 = vrot.lane.b32.xlu0 %v1730, 28
  %v1970 = vpop.permute.xlu0 %1969
  %1971 = vrot.lane.b32.xlu0 %v1012, 28
  %v1972 = vpop.permute.xlu0 %1971
  %1973 = vrot.lane.b32.xlu0 %v1216, 28
  %v1974 = vpop.permute.xlu0 %1973
  %1975 = vrot.lane.b32.xlu0 %v1228, 28
  %v1976 = vpop.permute.xlu0 %1975
  %1977 = vrot.lane.b32.xlu0 %v1240, 28
  %v1978 = vpop.permute.xlu0 %1977
  %1979 = vrot.lane.b32.xlu0 %v1252, 28
  %v1980 = vpop.permute.xlu0 %1979
  %1981 = vrot.lane.b32.xlu0 %v1264, 28
  %v1982 = vpop.permute.xlu0 %1981
  %1983 = vrot.lane.b32.xlu0 %v1276, 28
  %v1984 = vpop.permute.xlu0 %1983
  %1985 = vrot.lane.b32.xlu0 %v1288, 28
  %v1986 = vpop.permute.xlu0 %1985
  %1987 = vrot.lane.b32.xlu0 %v1300, 28
  %v1988 = vpop.permute.xlu0 %1987
  %1989 = vrot.lane.b32.xlu0 %v1312, 28
  %v1990 = vpop.permute.xlu0 %1989
  %1991 = vrot.lane.b32.xlu0 %v1324, 28
  %v1992 = vpop.permute.xlu0 %1991
  %1993 = vrot.lane.b32.xlu0 %v1336, 28
  %v1994 = vpop.permute.xlu0 %1993
  %1995 = vrot.lane.b32.xlu0 %v1348, 28
  %v1996 = vpop.permute.xlu0 %1995
  %1997 = vrot.lane.b32.xlu0 %v1360, 28
  %v1998 = vpop.permute.xlu0 %1997
  %1999 = vrot.lane.b32.xlu0 %v1372, 28
  %v2000 = vpop.permute.xlu0 %1999
  %2001 = vrot.lane.b32.xlu0 %v1742, 28
  %v2002 = vpop.permute.xlu0 %2001
  %2003 = vrot.lane.b32.xlu0 %v1506, 32
  %v2004 = vpop.permute.xlu0 %2003
  %2005 = vrot.lane.b32.xlu0 %v1509, 32
  %v2006 = vpop.permute.xlu0 %2005
  %2007 = vrot.lane.b32.xlu0 %v1512, 32
  %v2008 = vpop.permute.xlu0 %2007
  %2009 = vrot.lane.b32.xlu0 %v1515, 32
  %v2010 = vpop.permute.xlu0 %2009
  %2011 = vrot.lane.b32.xlu0 %v1518, 32
  %v2012 = vpop.permute.xlu0 %2011
  %2013 = vrot.lane.b32.xlu0 %v1521, 32
  %v2014 = vpop.permute.xlu0 %2013
  %2015 = vrot.lane.b32.xlu0 %v1524, 32
  %v2016 = vpop.permute.xlu0 %2015
  %2017 = vrot.lane.b32.xlu0 %v1527, 32
  %v2018 = vpop.permute.xlu0 %2017
  %2019 = vrot.lane.b32.xlu0 %v1530, 32
  %v2020 = vpop.permute.xlu0 %2019
  %2021 = vrot.lane.b32.xlu0 %v1533, 32
  %v2022 = vpop.permute.xlu0 %2021
  %2023 = vrot.lane.b32.xlu0 %v1536, 32
  %v2024 = vpop.permute.xlu0 %2023
  %2025 = vrot.lane.b32.xlu0 %v1539, 32
  %v2026 = vpop.permute.xlu0 %2025
  %2027 = vrot.lane.b32.xlu0 %v1542, 32
  %v2028 = vpop.permute.xlu0 %2027
  %2029 = vrot.lane.b32.xlu0 %v1545, 32
  %v2030 = vpop.permute.xlu0 %2029
  %2031 = vrot.lane.b32.xlu0 %v1811, 32
  %v2032 = vpop.permute.xlu0 %2031
  %2033 = vrot.lane.b32.xlu0 %v1500, 32
  %v2034 = vpop.permute.xlu0 %2033
  %2035 = vrot.lane.b32.xlu0 %v1551, 32
  %v2036 = vpop.permute.xlu0 %2035
  %2037 = vrot.lane.b32.xlu0 %v1554, 32
  %v2038 = vpop.permute.xlu0 %2037
  %2039 = vrot.lane.b32.xlu0 %v1557, 32
  %v2040 = vpop.permute.xlu0 %2039
  %2041 = vrot.lane.b32.xlu0 %v1560, 32
  %v2042 = vpop.permute.xlu0 %2041
  %2043 = vrot.lane.b32.xlu0 %v1563, 32
  %v2044 = vpop.permute.xlu0 %2043
  %2045 = vrot.lane.b32.xlu0 %v1566, 32
  %v2046 = vpop.permute.xlu0 %2045
  %2047 = vrot.lane.b32.xlu0 %v1569, 32
  %v2048 = vpop.permute.xlu0 %2047
  %2049 = vrot.lane.b32.xlu0 %v1572, 32
  %v2050 = vpop.permute.xlu0 %2049
  %2051 = vrot.lane.b32.xlu0 %v1575, 32
  %v2052 = vpop.permute.xlu0 %2051
  %2053 = vrot.lane.b32.xlu0 %v1578, 32
  %v2054 = vpop.permute.xlu0 %2053
  %2055 = vrot.lane.b32.xlu0 %v1581, 32
  %v2056 = vpop.permute.xlu0 %2055
  %2057 = vrot.lane.b32.xlu0 %v1584, 32
  %v2058 = vpop.permute.xlu0 %2057
  %2059 = vrot.lane.b32.xlu0 %v1587, 32
  %v2060 = vpop.permute.xlu0 %2059
  %2061 = vrot.lane.b32.xlu0 %v1590, 32
  %v2062 = vpop.permute.xlu0 %2061
  %2063 = vrot.lane.b32.xlu0 %v1814, 32
  %v2064 = vpop.permute.xlu0 %2063
  %vm2065 = vcmask 31744
  %v2067 = vsel %vm2065, %v934, %v1374
  %v2069 = vsel %vm2065, %v935, %v1376
  %v2071 = vsel %vm2065, %v936, %v1378
  %v2073 = vsel %vm2065, %v937, %v1380
  %v2075 = vsel %vm2065, %v938, %v1382
  %v2077 = vsel %vm2065, %v939, %v1384
  %v2079 = vsel %vm2065, %v940, %v1386
  %v2081 = vsel %vm2065, %v941, %v1388
  %v2083 = vsel %vm2065, %v942, %v1390
  %v2085 = vsel %vm2065, %v943, %v1392
  %v2087 = vsel %vm2065, %v944, %v1394
  %v2089 = vsel %vm2065, %v945, %v1396
  %v2091 = vsel %vm2065, %v946, %v1398
  %v2093 = vsel %vm2065, %v947, %v1400
  %v2095 = vsel %vm2065, %v948, %v1402
  %v2097 = vsel %vm2065, %v949, %v1404
  %v2099 = vsel %vm2065, %v951, %v1406
  %v2101 = vsel %vm2065, %v952, %v1408
  %v2103 = vsel %vm2065, %v953, %v1410
  %v2105 = vsel %vm2065, %v954, %v1412
  %v2107 = vsel %vm2065, %v955, %v1414
  %v2109 = vsel %vm2065, %v956, %v1416
  %v2111 = vsel %vm2065, %v957, %v1418
  %v2113 = vsel %vm2065, %v958, %v1420
  %v2115 = vsel %vm2065, %v959, %v1422
  %v2117 = vsel %vm2065, %v960, %v1424
  %v2119 = vsel %vm2065, %v961, %v1426
  %v2121 = vsel %vm2065, %v962, %v1428
  %v2123 = vsel %vm2065, %v963, %v1430
  %v2125 = vsel %vm2065, %v964, %v1432
  %v2127 = vsel %vm2065, %v965, %v1434
  %vm2128 = vcmask 64512
  %v2130 = vsel %vm2128, %v2067, %v1592
  %v2132 = vsel %vm2128, %v2069, %v1594
  %v2134 = vsel %vm2128, %v2071, %v1596
  %v2136 = vsel %vm2128, %v2073, %v1598
  %v2138 = vsel %vm2128, %v2075, %v1600
  %v2140 = vsel %vm2128, %v2077, %v1602
  %v2142 = vsel %vm2128, %v2079, %v1604
  %v2144 = vsel %vm2128, %v2081, %v1606
  %v2146 = vsel %vm2128, %v2083, %v1608
  %v2148 = vsel %vm2128, %v2085, %v1610
  %v2150 = vsel %vm2128, %v2087, %v1612
  %v2152 = vsel %vm2128, %v2089, %v1614
  %v2154 = vsel %vm2128, %v2091, %v1616
  %v2156 = vsel %vm2128, %v2093, %v1618
  %v2158 = vsel %vm2128, %v2095, %v1620
  %v2160 = vsel %vm2128, %v2097, %v1622
  %v2162 = vsel %vm2128, %v2099, %v1624
  %v2164 = vsel %vm2128, %v2101, %v1626
  %v2166 = vsel %vm2128, %v2103, %v1628
  %v2168 = vsel %vm2128, %v2105, %v1630
  %v2170 = vsel %vm2128, %v2107, %v1632
  %v2172 = vsel %vm2128, %v2109, %v1634
  %v2174 = vsel %vm2128, %v2111, %v1636
  %v2176 = vsel %vm2128, %v2113, %v1638
  %v2178 = vsel %vm2128, %v2115, %v1640
  %v2180 = vsel %vm2128, %v2117, %v1642
  %v2182 = vsel %vm2128, %v2119, %v1644
  %v2184 = vsel %vm2128, %v2121, %v1646
  %v2186 = vsel %vm2128, %v2123, %v1648
  %v2188 = vsel %vm2128, %v2125, %v1650
  %v2190 = vsel %vm2128, %v2127, %v1652
  %vm2191 = vcmask 97280
  %v2193 = vsel %vm2191, %v2130, %v1656
  %v2195 = vsel %vm2191, %v2132, %v1658
  %v2197 = vsel %vm2191, %v2134, %v1660
  %v2199 = vsel %vm2191, %v2136, %v1662
  %v2201 = vsel %vm2191, %v2138, %v1664
  %v2203 = vsel %vm2191, %v2140, %v1666
  %v2205 = vsel %vm2191, %v2142, %v1668
  %v2207 = vsel %vm2191, %v2144, %v1670
  %v2209 = vsel %vm2191, %v2146, %v1672
  %v2211 = vsel %vm2191, %v2148, %v1674
  %v2213 = vsel %vm2191, %v2150, %v1676
  %v2215 = vsel %vm2191, %v2152, %v1678
  %v2217 = vsel %vm2191, %v2154, %v1680
  %v2219 = vsel %vm2191, %v2156, %v1682
  %v2221 = vsel %vm2191, %v2158, %v1684
  %v2223 = vsel %vm2191, %v2160, %v1686
  %v2225 = vsel %vm2191, %v2130, %v1688
  %v2227 = vsel %vm2191, %v2162, %v1690
  %v2229 = vsel %vm2191, %v2164, %v1692
  %v2231 = vsel %vm2191, %v2166, %v1694
  %v2233 = vsel %vm2191, %v2168, %v1696
  %v2235 = vsel %vm2191, %v2170, %v1698
  %v2237 = vsel %vm2191, %v2172, %v1700
  %v2239 = vsel %vm2191, %v2174, %v1702
  %v2241 = vsel %vm2191, %v2176, %v1704
  %v2243 = vsel %vm2191, %v2178, %v1706
  %v2245 = vsel %vm2191, %v2180, %v1708
  %v2247 = vsel %vm2191, %v2182, %v1710
  %v2249 = vsel %vm2191, %v2184, %v1712
  %v2251 = vsel %vm2191, %v2186, %v1714
  %v2253 = vsel %vm2191, %v2188, %v1716
  %v2255 = vsel %vm2191, %v2190, %v1718
  %vm2256 = vcmask 130048
  %v2258 = vsel %vm2256, %v2193, %v1744
  %v2260 = vsel %vm2256, %v2195, %v1746
  %v2262 = vsel %vm2256, %v2197, %v1748
  %v2264 = vsel %vm2256, %v2199, %v1750
  %v2266 = vsel %vm2256, %v2201, %v1752
  %v2268 = vsel %vm2256, %v2203, %v1754
  %v2270 = vsel %vm2256, %v2205, %v1756
  %v2272 = vsel %vm2256, %v2207, %v1758
  %v2274 = vsel %vm2256, %v2209, %v1760
  %v2276 = vsel %vm2256, %v2211, %v1762
  %v2278 = vsel %vm2256, %v2213, %v1764
  %v2280 = vsel %vm2256, %v2215, %v1766
  %v2282 = vsel %vm2256, %v2217, %v1768
  %v2284 = vsel %vm2256, %v2219, %v1770
  %v2286 = vsel %vm2256, %v2221, %v1772
  %v2288 = vsel %vm2256, %v2223, %v1774
  %v2290 = vsel %vm2256, %v2225, %v1776
  %v2292 = vsel %vm2256, %v2227, %v1778
  %v2294 = vsel %vm2256, %v2229, %v1780
  %v2296 = vsel %vm2256, %v2231, %v1782
  %v2298 = vsel %vm2256, %v2233, %v1784
  %v2300 = vsel %vm2256, %v2235, %v1786
  %v2302 = vsel %vm2256, %v2237, %v1788
  %v2304 = vsel %vm2256, %v2239, %v1790
  %v2306 = vsel %vm2256, %v2241, %v1792
  %v2308 = vsel %vm2256, %v2243, %v1794
  %v2310 = vsel %vm2256, %v2245, %v1796
  %v2312 = vsel %vm2256, %v2247, %v1798
  %v2314 = vsel %vm2256, %v2249, %v1800
  %v2316 = vsel %vm2256, %v2251, %v1802
  %v2318 = vsel %vm2256, %v2253, %v1804
  %v2320 = vsel %vm2256, %v2255, %v1806
  %vm2321 = vcmask 162816
  %v2323 = vsel %vm2321, %v2258, %v1816
  %v2325 = vsel %vm2321, %v2260, %v1818
  %v2327 = vsel %vm2321, %v2262, %v1820
  %v2329 = vsel %vm2321, %v2264, %v1822
  %v2331 = vsel %vm2321, %v2266, %v1824
  %v2333 = vsel %vm2321, %v2268, %v1826
  %v2335 = vsel %vm2321, %v2270, %v1828
  %v2337 = vsel %vm2321, %v2272, %v1830
  %v2339 = vsel %vm2321, %v2274, %v1832
  %v2341 = vsel %vm2321, %v2276, %v1834
  %v2343 = vsel %vm2321, %v2278, %v1836
  %v2345 = vsel %vm2321, %v2280, %v1838
  %v2347 = vsel %vm2321, %v2282, %v1840
  %v2349 = vsel %vm2321, %v2284, %v1842
  %v2351 = vsel %vm2321, %v2286, %v1844
  %v2353 = vsel %vm2321, %v2288, %v1846
  %v2355 = vsel %vm2321, %v2290, %v1848
  %v2357 = vsel %vm2321, %v2292, %v1850
  %v2359 = vsel %vm2321, %v2294, %v1852
  %v2361 = vsel %vm2321, %v2296, %v1854
  %v2363 = vsel %vm2321, %v2298, %v1856
  %v2365 = vsel %vm2321, %v2300, %v1858
  %v2367 = vsel %vm2321, %v2302, %v1860
  %v2369 = vsel %vm2321, %v2304, %v1862
  %v2371 = vsel %vm2321, %v2306, %v1864
  %v2373 = vsel %vm2321, %v2308, %v1866
  %v2375 = vsel %vm2321, %v2310, %v1868
  %v2377 = vsel %vm2321, %v2312, %v1870
  %v2379 = vsel %vm2321, %v2314, %v1872
  %v2381 = vsel %vm2321, %v2316, %v1874
  %v2383 = vsel %vm2321, %v2318, %v1876
  %v2385 = vsel %vm2321, %v2320, %v1878
  %vm2386 = vcmask 195584
  %v2388 = vsel %vm2386, %v2323, %v1880
  %v2390 = vsel %vm2386, %v2325, %v1882
  %v2392 = vsel %vm2386, %v2327, %v1884
  %v2394 = vsel %vm2386, %v2329, %v1886
  %v2396 = vsel %vm2386, %v2331, %v1888
  %v2398 = vsel %vm2386, %v2333, %v1890
  %v2400 = vsel %vm2386, %v2335, %v1892
  %v2402 = vsel %vm2386, %v2337, %v1894
  %v2404 = vsel %vm2386, %v2339, %v1896
  %v2406 = vsel %vm2386, %v2341, %v1898
  %v2408 = vsel %vm2386, %v2343, %v1900
  %v2410 = vsel %vm2386, %v2345, %v1902
  %v2412 = vsel %vm2386, %v2347, %v1904
  %v2414 = vsel %vm2386, %v2349, %v1906
  %v2416 = vsel %vm2386, %v2351, %v1908
  %v2418 = vsel %vm2386, %v2353, %v1910
  %v2420 = vsel %vm2386, %v2355, %v1912
  %v2422 = vsel %vm2386, %v2357, %v1914
  %v2424 = vsel %vm2386, %v2359, %v1916
  %v2426 = vsel %vm2386, %v2361, %v1918
  %v2428 = vsel %vm2386, %v2363, %v1920
  %v2430 = vsel %vm2386, %v2365, %v1922
  %v2432 = vsel %vm2386, %v2367, %v1924
  %v2434 = vsel %vm2386, %v2369, %v1926
  %v2436 = vsel %vm2386, %v2371, %v1928
  %v2438 = vsel %vm2386, %v2373, %v1930
  %v2440 = vsel %vm2386, %v2375, %v1932
  %v2442 = vsel %vm2386, %v2377, %v1934
  %v2444 = vsel %vm2386, %v2379, %v1936
  %v2446 = vsel %vm2386, %v2381, %v1938
  %v2448 = vsel %vm2386, %v2383, %v1940
  %v2449 = vsel %vm2386, %v2385, %v1910
  %vm2450 = vcmask 228352
  %v2452 = vsel %vm2450, %v2388, %v1942
  %v2454 = vsel %vm2450, %v2390, %v1944
  %v2456 = vsel %vm2450, %v2392, %v1946
  %v2458 = vsel %vm2450, %v2394, %v1948
  %v2460 = vsel %vm2450, %v2396, %v1950
  %v2462 = vsel %vm2450, %v2398, %v1952
  %v2464 = vsel %vm2450, %v2400, %v1954
  %v2466 = vsel %vm2450, %v2402, %v1956
  %v2468 = vsel %vm2450, %v2404, %v1958
  %v2470 = vsel %vm2450, %v2406, %v1960
  %v2472 = vsel %vm2450, %v2408, %v1962
  %v2474 = vsel %vm2450, %v2410, %v1964
  %v2476 = vsel %vm2450, %v2412, %v1966
  %v2478 = vsel %vm2450, %v2414, %v1968
  %v2480 = vsel %vm2450, %v2416, %v1970
  %v2482 = vsel %vm2450, %v2418, %v1972
  %v2484 = vsel %vm2450, %v2420, %v1974
  %v2486 = vsel %vm2450, %v2422, %v1976
  %v2488 = vsel %vm2450, %v2424, %v1978
  %v2490 = vsel %vm2450, %v2426, %v1980
  %v2492 = vsel %vm2450, %v2428, %v1982
  %v2494 = vsel %vm2450, %v2430, %v1984
  %v2496 = vsel %vm2450, %v2432, %v1986
  %v2498 = vsel %vm2450, %v2434, %v1988
  %v2500 = vsel %vm2450, %v2436, %v1990
  %v2502 = vsel %vm2450, %v2438, %v1992
  %v2504 = vsel %vm2450, %v2440, %v1994
  %v2506 = vsel %vm2450, %v2442, %v1996
  %v2508 = vsel %vm2450, %v2444, %v1998
  %v2510 = vsel %vm2450, %v2446, %v2000
  %v2512 = vsel %vm2450, %v2448, %v2002
  %v2513 = vsel %vm2450, %v2449, %v1972
  %v2515 = vsel %vm93, %v2452, %v2004
  %v2517 = vsel %vm93, %v2454, %v2006
  %v2519 = vsel %vm93, %v2456, %v2008
  %v2521 = vsel %vm93, %v2458, %v2010
  %v2523 = vsel %vm93, %v2460, %v2012
  %v2525 = vsel %vm93, %v2462, %v2014
  %v2527 = vsel %vm93, %v2464, %v2016
  %v2529 = vsel %vm93, %v2466, %v2018
  %v2531 = vsel %vm93, %v2468, %v2020
  %v2533 = vsel %vm93, %v2470, %v2022
  %v2535 = vsel %vm93, %v2472, %v2024
  %v2537 = vsel %vm93, %v2474, %v2026
  %v2539 = vsel %vm93, %v2476, %v2028
  %v2541 = vsel %vm93, %v2478, %v2030
  %v2543 = vsel %vm93, %v2480, %v2032
  %v2545 = vsel %vm93, %v2482, %v2034
  %v2547 = vsel %vm93, %v2484, %v2036
  %v2549 = vsel %vm93, %v2486, %v2038
  %v2551 = vsel %vm93, %v2488, %v2040
  %v2553 = vsel %vm93, %v2490, %v2042
  %v2555 = vsel %vm93, %v2492, %v2044
  %v2557 = vsel %vm93, %v2494, %v2046
  %v2559 = vsel %vm93, %v2496, %v2048
  %v2561 = vsel %vm93, %v2498, %v2050
  %v2563 = vsel %vm93, %v2500, %v2052
  %v2565 = vsel %vm93, %v2502, %v2054
  %v2567 = vsel %vm93, %v2504, %v2056
  %v2569 = vsel %vm93, %v2506, %v2058
  %v2571 = vsel %vm93, %v2508, %v2060
  %v2573 = vsel %vm93, %v2510, %v2062
  %v2575 = vsel %vm93, %v2512, %v2064
  %v2576 = vsel %vm93, %v2513, %v2034
  %v2578 = vlaneseq
  %v2579 = vshrl.u32 %v2578, 7
  %v2580 = vsub.s32 0, %v2579
  %v2581 = vrot.slane %v601, %v2580
  %v2588 = vunpack.c.l.b16 %v596
  %v2589 = vunpack.c.l.b16 %v597
  %v2590 = vunpack.c.l.b16 %v598
  %v2591 = vunpack.c.l.b16 %v599
  %v2592 = vunpack.c.l.b16 %v600
  %v2593 = vpack.c.b16 %v2589, %v2588
  %v2594 = vpack.c.b16 %v2591, %v2590
  %v2595 = vpack.c.b16 %v2592, %v2592
  %vm2598 = vcmask 293888
  %v2599 = vsel %vm2598, %v2515, 0
  %v2601 = vsel %vm2598, %v2517, 0
  %v2603 = vsel %vm2598, %v2519, 0
  %v2605 = vsel %vm2598, %v2521, 0
  %v2607 = vsel %vm2598, %v2523, 0
  %v2609 = vsel %vm2598, %v2525, 0
  %v2611 = vsel %vm2598, %v2527, 0
  %v2613 = vsel %vm2598, %v2529, 0
  %v2615 = vsel %vm2598, %v2531, 0
  %v2617 = vsel %vm2598, %v2533, 0
  %v2619 = vsel %vm2598, %v2535, 0
  %v2621 = vsel %vm2598, %v2537, 0
  %v2623 = vsel %vm2598, %v2539, 0
  %v2625 = vsel %vm2598, %v2541, 0
  %v2627 = vsel %vm2598, %v2543, 0
  %v2629 = vsel %vm2598, %v2545, 0
  %v2631 = vsel %vm2598, %v2547, 0
  %v2633 = vsel %vm2598, %v2549, 0
  %v2635 = vsel %vm2598, %v2551, 0
  %v2637 = vsel %vm2598, %v2553, 0
  %v2639 = vsel %vm2598, %v2555, 0
  %v2641 = vsel %vm2598, %v2557, 0
  %v2643 = vsel %vm2598, %v2559, 0
  %v2645 = vsel %vm2598, %v2561, 0
  %v2647 = vsel %vm2598, %v2563, 0
  %v2649 = vsel %vm2598, %v2565, 0
  %v2651 = vsel %vm2598, %v2567, 0
  %v2653 = vsel %vm2598, %v2569, 0
  %v2655 = vsel %vm2598, %v2571, 0
  %v2657 = vsel %vm2598, %v2573, 0
  %v2659 = vsel %vm2598, %v2575, 0
  %v2661 = vsel %vm2598, %v2576, 0
  %vm2663 = vcmask 1041408
  %v2665 = vsel %vm2663, %v2595, 0
  %2667 = vmatprep.subr.bf16.mxu0 0
  %2668 = vmatpush1.bf16.msra.mxu0 %v2593
  %2669 = vmatprep.subr.bf16.mxu0 0
  %2670 = vmatpush1.bf16.msra.mxu0 %v2594
  %2671 = vmatprep.subr.bf16.mxu0 0
  %2672 = vmatpush1.bf16.msra.mxu0 %v2665
  %2673 = vmatprep.subr.bf16.mxu0 0
  %2674 = vmatpush1.bf16.msra.mxu0 0
  %2675 = vmatprep.subr.bf16.mxu0 0
  %2676 = vmatpush1.bf16.msra.mxu0 0
  %2677 = vmatprep.subr.bf16.mxu0 0
  %2678 = vmatpush1.bf16.msra.mxu0 0
  %2679 = vmatprep.subr.bf16.mxu0 0
  %2680 = vmatpush1.bf16.msra.mxu0 0
  %2681 = vmatprep.subr.bf16.mxu0 0
  %2682 = vmatpush1.bf16.msra.mxu0 0
  %2683 = vmatprep.subr.bf16.mxu0 0
  %2684 = vmatpush1.bf16.msra.mxu0 0
  %2685 = vmatprep.subr.bf16.mxu0 0
  %2686 = vmatpush1.bf16.msra.mxu0 0
  %2687 = vmatprep.subr.bf16.mxu0 0
  %2688 = vmatpush1.bf16.msra.mxu0 0
  %2689 = vmatprep.subr.bf16.mxu0 0
  %2690 = vmatpush1.bf16.msra.mxu0 0
  %2691 = vmatprep.subr.bf16.mxu0 0
  %2692 = vmatpush1.bf16.msra.mxu0 0
  %2693 = vmatprep.subr.bf16.mxu0 0
  %2694 = vmatpush1.bf16.msra.mxu0 0
  %2695 = vmatprep.subr.bf16.mxu0 0
  %2696 = vmatpush1.bf16.msra.mxu0 0
  %2697 = vmatprep.subr.bf16.mxu0 0
  %2698 = vmatpush1.bf16.msra.mxu0 0
  %2699 = vmatprep.mubr.bf16.mxu0 0
  %2700 = vmatmul.mubr.bf16.gmra.mrb[0].mxu0 %v2599
  %v2701 = vpop.f32.mrb[0].mxu0
  %v2702 = vadd.f32 %v2581, %v2701
  %v2703 = vpop.f32.mrb[0].mxu0
  %v2704 = vpop.f32.mrb[0].mxu0
  %v2705 = vadd.f32 %v2581, %v2704
  %v2706 = vpop.f32.mrb[0].mxu0
  %2707 = vmatprep.mubr.bf16.mxu0 0
  %2708 = vmatmul.mubr.bf16.gmra.mrb[0].mxu0 %v2601
  %v2709 = vpop.f32.mrb[0].mxu0
  %v2710 = vadd.f32 %v2581, %v2709
  %v2711 = vpop.f32.mrb[0].mxu0
  %v2712 = vpop.f32.mrb[0].mxu0
  %v2713 = vadd.f32 %v2581, %v2712
  %v2714 = vpop.f32.mrb[0].mxu0
  %2715 = vmatprep.mubr.bf16.mxu0 0
  %2716 = vmatmul.mubr.bf16.gmra.mrb[0].mxu0 %v2603
  %v2717 = vpop.f32.mrb[0].mxu0
  %v2718 = vadd.f32 %v2581, %v2717
  %v2719 = vpop.f32.mrb[0].mxu0
  %v2720 = vpop.f32.mrb[0].mxu0
  %v2721 = vadd.f32 %v2581, %v2720
  %v2722 = vpop.f32.mrb[0].mxu0
  %2723 = vmatprep.mubr.bf16.mxu0 0
  %2724 = vmatmul.mubr.bf16.gmra.mrb[0].mxu0 %v2605
  %v2725 = vpop.f32.mrb[0].mxu0
  %v2726 = vadd.f32 %v2581, %v2725
  %v2727 = vpop.f32.mrb[0].mxu0
  %v2728 = vpop.f32.mrb[0].mxu0
  %v2729 = vadd.f32 %v2581, %v2728
  %v2730 = vpop.f32.mrb[0].mxu0
  %2731 = vmatprep.mubr.bf16.mxu0 0
  %2732 = vmatmul.mubr.bf16.gmra.mrb[0].mxu0 %v2607
  %v2733 = vpop.f32.mrb[0].mxu0
  %v2734 = vadd.f32 %v2581, %v2733
  %v2735 = vpop.f32.mrb[0].mxu0
  %v2736 = vpop.f32.mrb[0].mxu0
  %v2737 = vadd.f32 %v2581, %v2736
  %v2738 = vpop.f32.mrb[0].mxu0
  %2739 = vmatprep.mubr.bf16.mxu0 0
  %2740 = vmatmul.mubr.bf16.gmra.mrb[0].mxu0 %v2609
  %v2741 = vpop.f32.mrb[0].mxu0
  %v2742 = vadd.f32 %v2581, %v2741
  %v2743 = vpop.f32.mrb[0].mxu0
  %v2744 = vpop.f32.mrb[0].mxu0
  %v2745 = vadd.f32 %v2581, %v2744
  %v2746 = vpop.f32.mrb[0].mxu0
  %2747 = vmatprep.mubr.bf16.mxu0 0
  %2748 = vmatmul.mubr.bf16.gmra.mrb[0].mxu0 %v2611
  %v2749 = vpop.f32.mrb[0].mxu0
  %v2750 = vadd.f32 %v2581, %v2749
  %v2751 = vpop.f32.mrb[0].mxu0
  %v2752 = vpop.f32.mrb[0].mxu0
  %v2753 = vadd.f32 %v2581, %v2752
  %v2754 = vpop.f32.mrb[0].mxu0
  %2755 = vmatprep.mubr.bf16.mxu0 0
  %2756 = vmatmul.mubr.bf16.gmra.mrb[0].mxu0 %v2613
  %v2757 = vpop.f32.mrb[0].mxu0
  %v2758 = vadd.f32 %v2581, %v2757
  %v2759 = vpop.f32.mrb[0].mxu0
  %v2760 = vpop.f32.mrb[0].mxu0
  %v2761 = vadd.f32 %v2581, %v2760
  %v2762 = vpop.f32.mrb[0].mxu0
  %2763 = vmatprep.mubr.bf16.mxu0 0
  %2764 = vmatmul.mubr.bf16.gmra.mrb[0].mxu0 %v2615
  %v2765 = vpop.f32.mrb[0].mxu0
  %v2766 = vadd.f32 %v2581, %v2765
  %v2767 = vpop.f32.mrb[0].mxu0
  %v2768 = vpop.f32.mrb[0].mxu0
  %v2769 = vadd.f32 %v2581, %v2768
  %v2770 = vpop.f32.mrb[0].mxu0
  %2771 = vmatprep.mubr.bf16.mxu0 0
  %2772 = vmatmul.mubr.bf16.gmra.mrb[0].mxu0 %v2617
  %v2773 = vpop.f32.mrb[0].mxu0
  %v2774 = vadd.f32 %v2581, %v2773
  %v2775 = vpop.f32.mrb[0].mxu0
  %v2776 = vpop.f32.mrb[0].mxu0
  %v2777 = vadd.f32 %v2581, %v2776
  %v2778 = vpop.f32.mrb[0].mxu0
  %2779 = vmatprep.mubr.bf16.mxu0 0
  %2780 = vmatmul.mubr.bf16.gmra.mrb[0].mxu0 %v2619
  %v2781 = vpop.f32.mrb[0].mxu0
  %v2782 = vadd.f32 %v2581, %v2781
  %v2783 = vpop.f32.mrb[0].mxu0
  %v2784 = vpop.f32.mrb[0].mxu0
  %v2785 = vadd.f32 %v2581, %v2784
  %v2786 = vpop.f32.mrb[0].mxu0
  %2787 = vmatprep.mubr.bf16.mxu0 0
  %2788 = vmatmul.mubr.bf16.gmra.mrb[0].mxu0 %v2621
  %v2789 = vpop.f32.mrb[0].mxu0
  %v2790 = vadd.f32 %v2581, %v2789
  %v2791 = vpop.f32.mrb[0].mxu0
  %v2792 = vpop.f32.mrb[0].mxu0
  %v2793 = vadd.f32 %v2581, %v2792
  %v2794 = vpop.f32.mrb[0].mxu0
  %2795 = vmatprep.mubr.bf16.mxu0 0
  %2796 = vmatmul.mubr.bf16.gmra.mrb[0].mxu0 %v2623
  %v2797 = vpop.f32.mrb[0].mxu0
  %v2798 = vadd.f32 %v2581, %v2797
  %v2799 = vpop.f32.mrb[0].mxu0
  %v2800 = vpop.f32.mrb[0].mxu0
  %v2801 = vadd.f32 %v2581, %v2800
  %v2802 = vpop.f32.mrb[0].mxu0
  %2803 = vmatprep.mubr.bf16.mxu0 0
  %2804 = vmatmul.mubr.bf16.gmra.mrb[0].mxu0 %v2625
  %v2805 = vpop.f32.mrb[0].mxu0
  %v2806 = vadd.f32 %v2581, %v2805
  %v2807 = vpop.f32.mrb[0].mxu0
  %v2808 = vpop.f32.mrb[0].mxu0
  %v2809 = vadd.f32 %v2581, %v2808
  %v2810 = vpop.f32.mrb[0].mxu0
  %2811 = vmatprep.mubr.bf16.mxu0 0
  %2812 = vmatmul.mubr.bf16.gmra.mrb[0].mxu0 %v2627
  %v2813 = vpop.f32.mrb[0].mxu0
  %v2814 = vadd.f32 %v2581, %v2813
  %v2815 = vpop.f32.mrb[0].mxu0
  %v2816 = vpop.f32.mrb[0].mxu0
  %v2817 = vadd.f32 %v2581, %v2816
  %v2818 = vpop.f32.mrb[0].mxu0
  %2819 = vmatprep.mubr.bf16.mxu0 0
  %2820 = vmatmul.mubr.bf16.gmra.mrb[0].mxu0 %v2629
  %v2821 = vpop.f32.mrb[0].mxu0
  %v2822 = vadd.f32 %v2581, %v2821
  %v2823 = vpop.f32.mrb[0].mxu0
  %v2824 = vpop.f32.mrb[0].mxu0
  %v2825 = vadd.f32 %v2581, %v2824
  %v2826 = vpop.f32.mrb[0].mxu0
  %2827 = vmatprep.mubr.bf16.mxu0 0
  %2828 = vmatmul.mubr.bf16.gmra.mrb[0].mxu0 %v2631
  %v2829 = vpop.f32.mrb[0].mxu0
  %v2830 = vadd.f32 %v2581, %v2829
  %v2831 = vpop.f32.mrb[0].mxu0
  %v2832 = vpop.f32.mrb[0].mxu0
  %v2833 = vadd.f32 %v2581, %v2832
  %v2834 = vpop.f32.mrb[0].mxu0
  %2835 = vmatprep.mubr.bf16.mxu0 0
  %2836 = vmatmul.mubr.bf16.gmra.mrb[0].mxu0 %v2633
  %v2837 = vpop.f32.mrb[0].mxu0
  %v2838 = vadd.f32 %v2581, %v2837
  %v2839 = vpop.f32.mrb[0].mxu0
  %v2840 = vpop.f32.mrb[0].mxu0
  %v2841 = vadd.f32 %v2581, %v2840
  %v2842 = vpop.f32.mrb[0].mxu0
  %2843 = vmatprep.mubr.bf16.mxu0 0
  %2844 = vmatmul.mubr.bf16.gmra.mrb[0].mxu0 %v2635
  %v2845 = vpop.f32.mrb[0].mxu0
  %v2846 = vadd.f32 %v2581, %v2845
  %v2847 = vpop.f32.mrb[0].mxu0
  %v2848 = vpop.f32.mrb[0].mxu0
  %v2849 = vadd.f32 %v2581, %v2848
  %v2850 = vpop.f32.mrb[0].mxu0
  %2851 = vmatprep.mubr.bf16.mxu0 0
  %2852 = vmatmul.mubr.bf16.gmra.mrb[0].mxu0 %v2637
  %v2853 = vpop.f32.mrb[0].mxu0
  %v2854 = vadd.f32 %v2581, %v2853
  %v2855 = vpop.f32.mrb[0].mxu0
  %v2856 = vpop.f32.mrb[0].mxu0
  %v2857 = vadd.f32 %v2581, %v2856
  %v2858 = vpop.f32.mrb[0].mxu0
  %2859 = vmatprep.mubr.bf16.mxu0 0
  %2860 = vmatmul.mubr.bf16.gmra.mrb[0].mxu0 %v2639
  %v2861 = vpop.f32.mrb[0].mxu0
  %v2862 = vadd.f32 %v2581, %v2861
  %v2863 = vpop.f32.mrb[0].mxu0
  %v2864 = vpop.f32.mrb[0].mxu0
  %v2865 = vadd.f32 %v2581, %v2864
  %v2866 = vpop.f32.mrb[0].mxu0
  %2867 = vmatprep.mubr.bf16.mxu0 0
  %2868 = vmatmul.mubr.bf16.gmra.mrb[0].mxu0 %v2641
  %v2869 = vpop.f32.mrb[0].mxu0
  %v2870 = vadd.f32 %v2581, %v2869
  %v2871 = vpop.f32.mrb[0].mxu0
  %v2872 = vpop.f32.mrb[0].mxu0
  %v2873 = vadd.f32 %v2581, %v2872
  %v2874 = vpop.f32.mrb[0].mxu0
  %2875 = vmatprep.mubr.bf16.mxu0 0
  %2876 = vmatmul.mubr.bf16.gmra.mrb[0].mxu0 %v2643
  %v2877 = vpop.f32.mrb[0].mxu0
  %v2878 = vadd.f32 %v2581, %v2877
  %v2879 = vpop.f32.mrb[0].mxu0
  %v2880 = vpop.f32.mrb[0].mxu0
  %v2881 = vadd.f32 %v2581, %v2880
  %v2882 = vpop.f32.mrb[0].mxu0
  %2883 = vmatprep.mubr.bf16.mxu0 0
  %2884 = vmatmul.mubr.bf16.gmra.mrb[0].mxu0 %v2645
  %v2885 = vpop.f32.mrb[0].mxu0
  %v2886 = vadd.f32 %v2581, %v2885
  %v2887 = vpop.f32.mrb[0].mxu0
  %v2888 = vpop.f32.mrb[0].mxu0
  %v2889 = vadd.f32 %v2581, %v2888
  %v2890 = vpop.f32.mrb[0].mxu0
  %2891 = vmatprep.mubr.bf16.mxu0 0
  %2892 = vmatmul.mubr.bf16.gmra.mrb[0].mxu0 %v2647
  %v2893 = vpop.f32.mrb[0].mxu0
  %v2894 = vadd.f32 %v2581, %v2893
  %v2895 = vpop.f32.mrb[0].mxu0
  %v2896 = vpop.f32.mrb[0].mxu0
  %v2897 = vadd.f32 %v2581, %v2896
  %v2898 = vpop.f32.mrb[0].mxu0
  %2899 = vmatprep.mubr.bf16.mxu0 0
  %2900 = vmatmul.mubr.bf16.gmra.mrb[0].mxu0 %v2649
  %v2901 = vpop.f32.mrb[0].mxu0
  %v2902 = vadd.f32 %v2581, %v2901
  %v2903 = vpop.f32.mrb[0].mxu0
  %v2904 = vpop.f32.mrb[0].mxu0
  %v2905 = vadd.f32 %v2581, %v2904
  %v2906 = vpop.f32.mrb[0].mxu0
  %2907 = vmatprep.mubr.bf16.mxu0 0
  %2908 = vmatmul.mubr.bf16.gmra.mrb[0].mxu0 %v2651
  %v2909 = vpop.f32.mrb[0].mxu0
  %v2910 = vadd.f32 %v2581, %v2909
  %v2911 = vpop.f32.mrb[0].mxu0
  %v2912 = vpop.f32.mrb[0].mxu0
  %v2913 = vadd.f32 %v2581, %v2912
  %v2914 = vpop.f32.mrb[0].mxu0
  %2915 = vmatprep.mubr.bf16.mxu0 0
  %2916 = vmatmul.mubr.bf16.gmra.mrb[0].mxu0 %v2653
  %v2917 = vpop.f32.mrb[0].mxu0
  %v2918 = vadd.f32 %v2581, %v2917
  %v2919 = vpop.f32.mrb[0].mxu0
  %v2920 = vpop.f32.mrb[0].mxu0
  %v2921 = vadd.f32 %v2581, %v2920
  %v2922 = vpop.f32.mrb[0].mxu0
  %2923 = vmatprep.mubr.bf16.mxu0 0
  %2924 = vmatmul.mubr.bf16.gmra.mrb[0].mxu0 %v2655
  %v2925 = vpop.f32.mrb[0].mxu0
  %v2926 = vadd.f32 %v2581, %v2925
  %v2927 = vpop.f32.mrb[0].mxu0
  %v2928 = vpop.f32.mrb[0].mxu0
  %v2929 = vadd.f32 %v2581, %v2928
  %v2930 = vpop.f32.mrb[0].mxu0
  %2931 = vmatprep.mubr.bf16.mxu0 0
  %2932 = vmatmul.mubr.bf16.gmra.mrb[0].mxu0 %v2657
  %v2933 = vpop.f32.mrb[0].mxu0
  %v2934 = vadd.f32 %v2581, %v2933
  %v2935 = vpop.f32.mrb[0].mxu0
  %v2936 = vpop.f32.mrb[0].mxu0
  %v2937 = vadd.f32 %v2581, %v2936
  %v2938 = vpop.f32.mrb[0].mxu0
  %2939 = vmatprep.mubr.bf16.mxu0 0
  %2940 = vmatmul.mubr.bf16.gmra.mrb[0].mxu0 %v2659
  %v2941 = vpop.f32.mrb[0].mxu0
  %v2942 = vadd.f32 %v2581, %v2941
  %v2943 = vpop.f32.mrb[0].mxu0
  %v2944 = vpop.f32.mrb[0].mxu0
  %v2945 = vadd.f32 %v2581, %v2944
  %v2946 = vpop.f32.mrb[0].mxu0
  %2947 = vmatprep.mubr.bf16.mxu0 0
  %2948 = vmatmul.mubr.bf16.gmra.mrb[0].mxu0 %v2661
  %v2949 = vpop.f32.mrb[0].mxu0
  %v2950 = vadd.f32 %v2581, %v2949
  %v2951 = vpop.f32.mrb[0].mxu0
  %v2952 = vpop.f32.mrb[0].mxu0
  %v2953 = vadd.f32 %v2581, %v2952
  %v2954 = vpop.f32.mrb[0].mxu0
  %2955 = vdwg.mxu0
  %v2956 = vld [vmem:[%s14] sm:$0xf]
  %v2957 = vld [vmem:[%s14 + $0x4] sm:$0xf]
  %v2958 = vld [vmem:[%s14 + $0x8] sm:$0xf]
  %v2959 = vld [vmem:[%s14 + $0xc] sm:$0xf]
  %v2960 = vld [vmem:[%s14 + $0x10] sm:$0xf]
  %v2961 = vld [vmem:[%s14 + $0x14] sm:$0xf]
  %v2962 = vld [vmem:[%s14 + $0x18] sm:$0xf]
  %v2963 = vld [vmem:[%s14 + $0x1c] sm:$0xf]
  %v2964 = vld [vmem:[%s14 + $0x20] sm:$0xf]
  %v2965 = vld [vmem:[%s14 + $0x24] sm:$0xf]
  %v2966 = vld [vmem:[%s14 + $0x28] sm:$0xf]
  %v2967 = vld [vmem:[%s14 + $0x2c] sm:$0xf]
  %v2968 = vld [vmem:[%s14 + $0x30] sm:$0xf]
  %v2969 = vld [vmem:[%s14 + $0x34] sm:$0xf]
  %v2970 = vld [vmem:[%s14 + $0x38] sm:$0xf]
  %v2971 = vld [vmem:[%s14 + $0x3c] sm:$0xf]
  %v2972 = vld [vmem:[%s14 + $0x40] sm:$0xf]
  %v2973 = vld [vmem:[%s14 + $0x44] sm:$0xf]
  %v2974 = vld [vmem:[%s14 + $0x48] sm:$0xf]
  %v2975 = vld [vmem:[%s14 + $0x4c] sm:$0xf]
  %v2976 = vld [vmem:[%s14 + $0x50] sm:$0xf]
  %v2977 = vld [vmem:[%s14 + $0x54] sm:$0xf]
  %v2978 = vld [vmem:[%s14 + $0x58] sm:$0xf]
  %v2979 = vld [vmem:[%s14 + $0x5c] sm:$0xf]
  %v2980 = vld [vmem:[%s14 + $0x60] sm:$0xf]
  %v2981 = vld [vmem:[%s14 + $0x64] sm:$0xf]
  %v2982 = vld [vmem:[%s14 + $0x68] sm:$0xf]
  %v2983 = vld [vmem:[%s14 + $0x6c] sm:$0xf]
  %v2984 = vld [vmem:[%s14 + $0x70] sm:$0xf]
  %v2985 = vld [vmem:[%s14 + $0x74] sm:$0xf]
  %v2986 = vld [vmem:[%s14 + $0x78] sm:$0xf]
  %v2987 = vld [vmem:[%s14 + $0x7c] sm:$0xf]
  %v2988 = vld [vmem:[%s14 + $0x80] sm:$0xf]
  %v2989 = vld [vmem:[%s14 + $0x84] sm:$0xf]
  %v2990 = vld [vmem:[%s14 + $0x88] sm:$0xf]
  %v2991 = vld [vmem:[%s14 + $0x8c] sm:$0xf]
  %v2992 = vld [vmem:[%s15] sm:$0x1]
  %v2993 = vxor.u32 %v2702, 2147483648
  %v2994 = vxor.u32 %v2705, 2147483648
  %v2995 = vxor.u32 %v2710, 2147483648
  %v2996 = vxor.u32 %v2713, 2147483648
  %v2997 = vxor.u32 %v2718, 2147483648
  %v2998 = vxor.u32 %v2721, 2147483648
  %v2999 = vxor.u32 %v2726, 2147483648
  %v3000 = vxor.u32 %v2729, 2147483648
  %v3001 = vxor.u32 %v2734, 2147483648
  %v3002 = vxor.u32 %v2737, 2147483648
  %v3003 = vxor.u32 %v2742, 2147483648
  %v3004 = vxor.u32 %v2745, 2147483648
  %v3005 = vxor.u32 %v2750, 2147483648
  %v3006 = vxor.u32 %v2753, 2147483648
  %v3007 = vxor.u32 %v2758, 2147483648
  %v3008 = vxor.u32 %v2761, 2147483648
  %v3009 = vxor.u32 %v2766, 2147483648
  %v3010 = vxor.u32 %v2769, 2147483648
  %v3011 = vxor.u32 %v2774, 2147483648
  %v3012 = vxor.u32 %v2777, 2147483648
  %v3013 = vxor.u32 %v2782, 2147483648
  %v3014 = vxor.u32 %v2785, 2147483648
  %v3015 = vxor.u32 %v2790, 2147483648
  %v3016 = vxor.u32 %v2793, 2147483648
  %v3017 = vxor.u32 %v2798, 2147483648
  %v3018 = vxor.u32 %v2801, 2147483648
  %v3019 = vxor.u32 %v2806, 2147483648
  %v3020 = vxor.u32 %v2809, 2147483648
  %v3021 = vxor.u32 %v2814, 2147483648
  %v3022 = vxor.u32 %v2817, 2147483648
  %v3023 = vxor.u32 %v2822, 2147483648
  %v3024 = vxor.u32 %v2825, 2147483648
  %v3025 = vxor.u32 %v2830, 2147483648
  %v3026 = vxor.u32 %v2833, 2147483648
  %v3027 = vxor.u32 %v2838, 2147483648
  %v3028 = vxor.u32 %v2841, 2147483648
  %v3029 = vxor.u32 %v2846, 2147483648
  %v3030 = vxor.u32 %v2849, 2147483648
  %v3031 = vxor.u32 %v2854, 2147483648
  %v3032 = vxor.u32 %v2857, 2147483648
  %v3033 = vxor.u32 %v2862, 2147483648
  %v3034 = vxor.u32 %v2865, 2147483648
  %v3035 = vxor.u32 %v2870, 2147483648
  %v3036 = vxor.u32 %v2873, 2147483648
  %v3037 = vxor.u32 %v2878, 2147483648
  %v3038 = vxor.u32 %v2881, 2147483648
  %v3039 = vxor.u32 %v2886, 2147483648
  %v3040 = vxor.u32 %v2889, 2147483648
  %v3041 = vxor.u32 %v2894, 2147483648
  %v3042 = vxor.u32 %v2897, 2147483648
  %v3043 = vxor.u32 %v2902, 2147483648
  %v3044 = vxor.u32 %v2905, 2147483648
  %v3045 = vxor.u32 %v2910, 2147483648
  %v3046 = vxor.u32 %v2913, 2147483648
  %v3047 = vxor.u32 %v2918, 2147483648
  %v3048 = vxor.u32 %v2921, 2147483648
  %v3049 = vxor.u32 %v2926, 2147483648
  %v3050 = vxor.u32 %v2929, 2147483648
  %v3051 = vxor.u32 %v2934, 2147483648
  %v3052 = vxor.u32 %v2937, 2147483648
  %v3053 = vxor.u32 %v2942, 2147483648
  %v3054 = vxor.u32 %v2945, 2147483648
  %v3055 = vxor.u32 %v2950, 2147483648
  %v3056 = vxor.u32 %v2953, 2147483648
  %v3057 = vmul.f32 %v2993, 1.442695
  %v3058 = vpow.pop %v3057
  %v3059 = vmul.f32 %v2994, 1.442695
  %v3060 = vpow.pop %v3059
  %v3061 = vmul.f32 %v2995, 1.442695
  %v3062 = vpow.pop %v3061
  %v3063 = vmul.f32 %v2996, 1.442695
  %v3064 = vpow.pop %v3063
  %v3065 = vmul.f32 %v2997, 1.442695
  %v3066 = vpow.pop %v3065
  %v3067 = vmul.f32 %v2998, 1.442695
  %v3068 = vpow.pop %v3067
  %v3069 = vmul.f32 %v2999, 1.442695
  %v3070 = vpow.pop %v3069
  %v3071 = vmul.f32 %v3000, 1.442695
  %v3072 = vpow.pop %v3071
  %v3073 = vmul.f32 %v3001, 1.442695
  %v3074 = vpow.pop %v3073
  %v3075 = vmul.f32 %v3002, 1.442695
  %v3076 = vpow.pop %v3075
  %v3077 = vmul.f32 %v3003, 1.442695
  %v3078 = vpow.pop %v3077
  %v3079 = vmul.f32 %v3004, 1.442695
  %v3080 = vpow.pop %v3079
  %v3081 = vmul.f32 %v3005, 1.442695
  %v3082 = vpow.pop %v3081
  %v3083 = vmul.f32 %v3006, 1.442695
  %v3084 = vpow.pop %v3083
  %v3085 = vmul.f32 %v3007, 1.442695
  %v3086 = vpow.pop %v3085
  %v3087 = vmul.f32 %v3008, 1.442695
  %v3088 = vpow.pop %v3087
  %v3089 = vmul.f32 %v3009, 1.442695
  %v3090 = vpow.pop %v3089
  %v3091 = vmul.f32 %v3010, 1.442695
  %v3092 = vpow.pop %v3091
  %v3093 = vmul.f32 %v3011, 1.442695
  %v3094 = vpow.pop %v3093
  %v3095 = vmul.f32 %v3012, 1.442695
  %v3096 = vpow.pop %v3095
  %v3097 = vmul.f32 %v3013, 1.442695
  %v3098 = vpow.pop %v3097
  %v3099 = vmul.f32 %v3014, 1.442695
  %v3100 = vpow.pop %v3099
  %v3101 = vmul.f32 %v3015, 1.442695
  %v3102 = vpow.pop %v3101
  %v3103 = vmul.f32 %v3016, 1.442695
  %v3104 = vpow.pop %v3103
  %v3105 = vmul.f32 %v3017, 1.442695
  %v3106 = vpow.pop %v3105
  %v3107 = vmul.f32 %v3018, 1.442695
  %v3108 = vpow.pop %v3107
  %v3109 = vmul.f32 %v3019, 1.442695
  %v3110 = vpow.pop %v3109
  %v3111 = vmul.f32 %v3020, 1.442695
  %v3112 = vpow.pop %v3111
  %v3113 = vmul.f32 %v3021, 1.442695
  %v3114 = vpow.pop %v3113
  %v3115 = vmul.f32 %v3022, 1.442695
  %v3116 = vpow.pop %v3115
  %v3117 = vmul.f32 %v3023, 1.442695
  %v3118 = vpow.pop %v3117
  %v3119 = vmul.f32 %v3024, 1.442695
  %v3120 = vpow.pop %v3119
  %v3121 = vmul.f32 %v3025, 1.442695
  %v3122 = vpow.pop %v3121
  %v3123 = vmul.f32 %v3026, 1.442695
  %v3124 = vpow.pop %v3123
  %v3125 = vmul.f32 %v3027, 1.442695
  %v3126 = vpow.pop %v3125
  %v3127 = vmul.f32 %v3028, 1.442695
  %v3128 = vpow.pop %v3127
  %v3129 = vmul.f32 %v3029, 1.442695
  %v3130 = vpow.pop %v3129
  %v3131 = vmul.f32 %v3030, 1.442695
  %v3132 = vpow.pop %v3131
  %v3133 = vmul.f32 %v3031, 1.442695
  %v3134 = vpow.pop %v3133
  %v3135 = vmul.f32 %v3032, 1.442695
  %v3136 = vpow.pop %v3135
  %v3137 = vmul.f32 %v3033, 1.442695
  %v3138 = vpow.pop %v3137
  %v3139 = vmul.f32 %v3034, 1.442695
  %v3140 = vpow.pop %v3139
  %v3141 = vmul.f32 %v3035, 1.442695
  %v3142 = vpow.pop %v3141
  %v3143 = vmul.f32 %v3036, 1.442695
  %v3144 = vpow.pop %v3143
  %v3145 = vmul.f32 %v3037, 1.442695
  %v3146 = vpow.pop %v3145
  %v3147 = vmul.f32 %v3038, 1.442695
  %v3148 = vpow.pop %v3147
  %v3149 = vmul.f32 %v3039, 1.442695
  %v3150 = vpow.pop %v3149
  %v3151 = vmul.f32 %v3040, 1.442695
  %v3152 = vpow.pop %v3151
  %v3153 = vmul.f32 %v3041, 1.442695
  %v3154 = vpow.pop %v3153
  %v3155 = vmul.f32 %v3042, 1.442695
  %v3156 = vpow.pop %v3155
  %v3157 = vmul.f32 %v3043, 1.442695
  %v3158 = vpow.pop %v3157
  %v3159 = vmul.f32 %v3044, 1.442695
  %v3160 = vpow.pop %v3159
  %v3161 = vmul.f32 %v3045, 1.442695
  %v3162 = vpow.pop %v3161
  %v3163 = vmul.f32 %v3046, 1.442695
  %v3164 = vpow.pop %v3163
  %v3165 = vmul.f32 %v3047, 1.442695
  %v3166 = vpow.pop %v3165
  %v3167 = vmul.f32 %v3048, 1.442695
  %v3168 = vpow.pop %v3167
  %v3169 = vmul.f32 %v3049, 1.442695
  %v3170 = vpow.pop %v3169
  %v3171 = vmul.f32 %v3050, 1.442695
  %v3172 = vpow.pop %v3171
  %v3173 = vmul.f32 %v3051, 1.442695
  %v3174 = vpow.pop %v3173
  %v3175 = vmul.f32 %v3052, 1.442695
  %v3176 = vpow.pop %v3175
  %v3177 = vmul.f32 %v3053, 1.442695
  %v3178 = vpow.pop %v3177
  %v3179 = vmul.f32 %v3054, 1.442695
  %v3180 = vpow.pop %v3179
  %v3181 = vmul.f32 %v3055, 1.442695
  %v3182 = vpow.pop %v3181
  %v3183 = vmul.f32 %v3056, 1.442695
  %v3184 = vpow.pop %v3183
  %v3185 = vadd.f32 %v3058, 1.0
  %v3186 = vadd.f32 %v3060, 1.0
  %v3187 = vadd.f32 %v3062, 1.0
  %v3188 = vadd.f32 %v3064, 1.0
  %v3189 = vadd.f32 %v3066, 1.0
  %v3190 = vadd.f32 %v3068, 1.0
  %v3191 = vadd.f32 %v3070, 1.0
  %v3192 = vadd.f32 %v3072, 1.0
  %v3193 = vadd.f32 %v3074, 1.0
  %v3194 = vadd.f32 %v3076, 1.0
  %v3195 = vadd.f32 %v3078, 1.0
  %v3196 = vadd.f32 %v3080, 1.0
  %v3197 = vadd.f32 %v3082, 1.0
  %v3198 = vadd.f32 %v3084, 1.0
  %v3199 = vadd.f32 %v3086, 1.0
  %v3200 = vadd.f32 %v3088, 1.0
  %v3201 = vadd.f32 %v3090, 1.0
  %v3202 = vadd.f32 %v3092, 1.0
  %v3203 = vadd.f32 %v3094, 1.0
  %v3204 = vadd.f32 %v3096, 1.0
  %v3205 = vadd.f32 %v3098, 1.0
  %v3206 = vadd.f32 %v3100, 1.0
  %v3207 = vadd.f32 %v3102, 1.0
  %v3208 = vadd.f32 %v3104, 1.0
  %v3209 = vadd.f32 %v3106, 1.0
  %v3210 = vadd.f32 %v3108, 1.0
  %v3211 = vadd.f32 %v3110, 1.0
  %v3212 = vadd.f32 %v3112, 1.0
  %v3213 = vadd.f32 %v3114, 1.0
  %v3214 = vadd.f32 %v3116, 1.0
  %v3215 = vadd.f32 %v3118, 1.0
  %v3216 = vadd.f32 %v3120, 1.0
  %v3217 = vadd.f32 %v3122, 1.0
  %v3218 = vadd.f32 %v3124, 1.0
  %v3219 = vadd.f32 %v3126, 1.0
  %v3220 = vadd.f32 %v3128, 1.0
  %v3221 = vadd.f32 %v3130, 1.0
  %v3222 = vadd.f32 %v3132, 1.0
  %v3223 = vadd.f32 %v3134, 1.0
  %v3224 = vadd.f32 %v3136, 1.0
  %v3225 = vadd.f32 %v3138, 1.0
  %v3226 = vadd.f32 %v3140, 1.0
  %v3227 = vadd.f32 %v3142, 1.0
  %v3228 = vadd.f32 %v3144, 1.0
  %v3229 = vadd.f32 %v3146, 1.0
  %v3230 = vadd.f32 %v3148, 1.0
  %v3231 = vadd.f32 %v3150, 1.0
  %v3232 = vadd.f32 %v3152, 1.0
  %v3233 = vadd.f32 %v3154, 1.0
  %v3234 = vadd.f32 %v3156, 1.0
  %v3235 = vadd.f32 %v3158, 1.0
  %v3236 = vadd.f32 %v3160, 1.0
  %v3237 = vadd.f32 %v3162, 1.0
  %v3238 = vadd.f32 %v3164, 1.0
  %v3239 = vadd.f32 %v3166, 1.0
  %v3240 = vadd.f32 %v3168, 1.0
  %v3241 = vadd.f32 %v3170, 1.0
  %v3242 = vadd.f32 %v3172, 1.0
  %v3243 = vadd.f32 %v3174, 1.0
  %v3244 = vadd.f32 %v3176, 1.0
  %v3245 = vadd.f32 %v3178, 1.0
  %v3246 = vadd.f32 %v3180, 1.0
  %v3247 = vadd.f32 %v3182, 1.0
  %v3248 = vadd.f32 %v3184, 1.0
  %v3249 = vrcp.pop %v3185
  %v3250 = vmul.f32 1.0, %v3249
  %v3251 = vrcp.pop %v3186
  %v3252 = vmul.f32 1.0, %v3251
  %v3253 = vrcp.pop %v3187
  %v3254 = vmul.f32 1.0, %v3253
  %v3255 = vrcp.pop %v3188
  %v3256 = vmul.f32 1.0, %v3255
  %v3257 = vrcp.pop %v3189
  %v3258 = vmul.f32 1.0, %v3257
  %v3259 = vrcp.pop %v3190
  %v3260 = vmul.f32 1.0, %v3259
  %v3261 = vrcp.pop %v3191
  %v3262 = vmul.f32 1.0, %v3261
  %v3263 = vrcp.pop %v3192
  %v3264 = vmul.f32 1.0, %v3263
  %v3265 = vrcp.pop %v3193
  %v3266 = vmul.f32 1.0, %v3265
  %v3267 = vrcp.pop %v3194
  %v3268 = vmul.f32 1.0, %v3267
  %v3269 = vrcp.pop %v3195
  %v3270 = vmul.f32 1.0, %v3269
  %v3271 = vrcp.pop %v3196
  %v3272 = vmul.f32 1.0, %v3271
  %v3273 = vrcp.pop %v3197
  %v3274 = vmul.f32 1.0, %v3273
  %v3275 = vrcp.pop %v3198
  %v3276 = vmul.f32 1.0, %v3275
  %v3277 = vrcp.pop %v3199
  %v3278 = vmul.f32 1.0, %v3277
  %v3279 = vrcp.pop %v3200
  %v3280 = vmul.f32 1.0, %v3279
  %v3281 = vrcp.pop %v3201
  %v3282 = vmul.f32 1.0, %v3281
  %v3283 = vrcp.pop %v3202
  %v3284 = vmul.f32 1.0, %v3283
  %v3285 = vrcp.pop %v3203
  %v3286 = vmul.f32 1.0, %v3285
  %v3287 = vrcp.pop %v3204
  %v3288 = vmul.f32 1.0, %v3287
  %v3289 = vrcp.pop %v3205
  %v3290 = vmul.f32 1.0, %v3289
  %v3291 = vrcp.pop %v3206
  %v3292 = vmul.f32 1.0, %v3291
  %v3293 = vrcp.pop %v3207
  %v3294 = vmul.f32 1.0, %v3293
  %v3295 = vrcp.pop %v3208
  %v3296 = vmul.f32 1.0, %v3295
  %v3297 = vrcp.pop %v3209
  %v3298 = vmul.f32 1.0, %v3297
  %v3299 = vrcp.pop %v3210
  %v3300 = vmul.f32 1.0, %v3299
  %v3301 = vrcp.pop %v3211
  %v3302 = vmul.f32 1.0, %v3301
  %v3303 = vrcp.pop %v3212
  %v3304 = vmul.f32 1.0, %v3303
  %v3305 = vrcp.pop %v3213
  %v3306 = vmul.f32 1.0, %v3305
  %v3307 = vrcp.pop %v3214
  %v3308 = vmul.f32 1.0, %v3307
  %v3309 = vrcp.pop %v3215
  %v3310 = vmul.f32 1.0, %v3309
  %v3311 = vrcp.pop %v3216
  %v3312 = vmul.f32 1.0, %v3311
  %v3313 = vrcp.pop %v3217
  %v3314 = vmul.f32 1.0, %v3313
  %v3315 = vrcp.pop %v3218
  %v3316 = vmul.f32 1.0, %v3315
  %v3317 = vrcp.pop %v3219
  %v3318 = vmul.f32 1.0, %v3317
  %v3319 = vrcp.pop %v3220
  %v3320 = vmul.f32 1.0, %v3319
  %v3321 = vrcp.pop %v3221
  %v3322 = vmul.f32 1.0, %v3321
  %v3323 = vrcp.pop %v3222
  %v3324 = vmul.f32 1.0, %v3323
  %v3325 = vrcp.pop %v3223
  %v3326 = vmul.f32 1.0, %v3325
  %v3327 = vrcp.pop %v3224
  %v3328 = vmul.f32 1.0, %v3327
  %v3329 = vrcp.pop %v3225
  %v3330 = vmul.f32 1.0, %v3329
  %v3331 = vrcp.pop %v3226
  %v3332 = vmul.f32 1.0, %v3331
  %v3333 = vrcp.pop %v3227
  %v3334 = vmul.f32 1.0, %v3333
  %v3335 = vrcp.pop %v3228
  %v3336 = vmul.f32 1.0, %v3335
  %v3337 = vrcp.pop %v3229
  %v3338 = vmul.f32 1.0, %v3337
  %v3339 = vrcp.pop %v3230
  %v3340 = vmul.f32 1.0, %v3339
  %v3341 = vrcp.pop %v3231
  %v3342 = vmul.f32 1.0, %v3341
  %v3343 = vrcp.pop %v3232
  %v3344 = vmul.f32 1.0, %v3343
  %v3345 = vrcp.pop %v3233
  %v3346 = vmul.f32 1.0, %v3345
  %v3347 = vrcp.pop %v3234
  %v3348 = vmul.f32 1.0, %v3347
  %v3349 = vrcp.pop %v3235
  %v3350 = vmul.f32 1.0, %v3349
  %v3351 = vrcp.pop %v3236
  %v3352 = vmul.f32 1.0, %v3351
  %v3353 = vrcp.pop %v3237
  %v3354 = vmul.f32 1.0, %v3353
  %v3355 = vrcp.pop %v3238
  %v3356 = vmul.f32 1.0, %v3355
  %v3357 = vrcp.pop %v3239
  %v3358 = vmul.f32 1.0, %v3357
  %v3359 = vrcp.pop %v3240
  %v3360 = vmul.f32 1.0, %v3359
  %v3361 = vrcp.pop %v3241
  %v3362 = vmul.f32 1.0, %v3361
  %v3363 = vrcp.pop %v3242
  %v3364 = vmul.f32 1.0, %v3363
  %v3365 = vrcp.pop %v3243
  %v3366 = vmul.f32 1.0, %v3365
  %v3367 = vrcp.pop %v3244
  %v3368 = vmul.f32 1.0, %v3367
  %v3369 = vrcp.pop %v3245
  %v3370 = vmul.f32 1.0, %v3369
  %v3371 = vrcp.pop %v3246
  %v3372 = vmul.f32 1.0, %v3371
  %v3373 = vrcp.pop %v3247
  %v3374 = vmul.f32 1.0, %v3373
  %v3375 = vrcp.pop %v3248
  %v3376 = vmul.f32 1.0, %v3375
  %v3377 = vmul.f32 %v2702, %v3250
  %v3378 = vmul.f32 %v2705, %v3252
  %v3379 = vmul.f32 %v2710, %v3254
  %v3380 = vmul.f32 %v2713, %v3256
  %v3381 = vmul.f32 %v2718, %v3258
  %v3382 = vmul.f32 %v2721, %v3260
  %v3383 = vmul.f32 %v2726, %v3262
  %v3384 = vmul.f32 %v2729, %v3264
  %v3385 = vmul.f32 %v2734, %v3266
  %v3386 = vmul.f32 %v2737, %v3268
  %v3387 = vmul.f32 %v2742, %v3270
  %v3388 = vmul.f32 %v2745, %v3272
  %v3389 = vmul.f32 %v2750, %v3274
  %v3390 = vmul.f32 %v2753, %v3276
  %v3391 = vmul.f32 %v2758, %v3278
  %v3392 = vmul.f32 %v2761, %v3280
  %v3393 = vmul.f32 %v2766, %v3282
  %v3394 = vmul.f32 %v2769, %v3284
  %v3395 = vmul.f32 %v2774, %v3286
  %v3396 = vmul.f32 %v2777, %v3288
  %v3397 = vmul.f32 %v2782, %v3290
  %v3398 = vmul.f32 %v2785, %v3292
  %v3399 = vmul.f32 %v2790, %v3294
  %v3400 = vmul.f32 %v2793, %v3296
  %v3401 = vmul.f32 %v2798, %v3298
  %v3402 = vmul.f32 %v2801, %v3300
  %v3403 = vmul.f32 %v2806, %v3302
  %v3404 = vmul.f32 %v2809, %v3304
  %v3405 = vmul.f32 %v2814, %v3306
  %v3406 = vmul.f32 %v2817, %v3308
  %v3407 = vmul.f32 %v2822, %v3310
  %v3408 = vmul.f32 %v2825, %v3312
  %v3409 = vmul.f32 %v2830, %v3314
  %v3410 = vmul.f32 %v2833, %v3316
  %v3411 = vmul.f32 %v2838, %v3318
  %v3412 = vmul.f32 %v2841, %v3320
  %v3413 = vmul.f32 %v2846, %v3322
  %v3414 = vmul.f32 %v2849, %v3324
  %v3415 = vmul.f32 %v2854, %v3326
  %v3416 = vmul.f32 %v2857, %v3328
  %v3417 = vmul.f32 %v2862, %v3330
  %v3418 = vmul.f32 %v2865, %v3332
  %v3419 = vmul.f32 %v2870, %v3334
  %v3420 = vmul.f32 %v2873, %v3336
  %v3421 = vmul.f32 %v2878, %v3338
  %v3422 = vmul.f32 %v2881, %v3340
  %v3423 = vmul.f32 %v2886, %v3342
  %v3424 = vmul.f32 %v2889, %v3344
  %v3425 = vmul.f32 %v2894, %v3346
  %v3426 = vmul.f32 %v2897, %v3348
  %v3427 = vmul.f32 %v2902, %v3350
  %v3428 = vmul.f32 %v2905, %v3352
  %v3429 = vmul.f32 %v2910, %v3354
  %v3430 = vmul.f32 %v2913, %v3356
  %v3431 = vmul.f32 %v2918, %v3358
  %v3432 = vmul.f32 %v2921, %v3360
  %v3433 = vmul.f32 %v2926, %v3362
  %v3434 = vmul.f32 %v2929, %v3364
  %v3435 = vmul.f32 %v2934, %v3366
  %v3436 = vmul.f32 %v2937, %v3368
  %v3437 = vmul.f32 %v2942, %v3370
  %v3438 = vmul.f32 %v2945, %v3372
  %v3439 = vmul.f32 %v2950, %v3374
  %v3440 = vmul.f32 %v2953, %v3376
  %v3441 = vpack.c.bf16 %v3378, %v3377
  %v3442 = vpack.c.bf16 %v3380, %v3379
  %v3443 = vpack.c.bf16 %v3382, %v3381
  %v3444 = vpack.c.bf16 %v3384, %v3383
  %v3445 = vpack.c.bf16 %v3386, %v3385
  %v3446 = vpack.c.bf16 %v3388, %v3387
  %v3447 = vpack.c.bf16 %v3390, %v3389
  %v3448 = vpack.c.bf16 %v3392, %v3391
  %v3449 = vpack.c.bf16 %v3394, %v3393
  %v3450 = vpack.c.bf16 %v3396, %v3395
  %v3451 = vpack.c.bf16 %v3398, %v3397
  %v3452 = vpack.c.bf16 %v3400, %v3399
  %v3453 = vpack.c.bf16 %v3402, %v3401
  %v3454 = vpack.c.bf16 %v3404, %v3403
  %v3455 = vpack.c.bf16 %v3406, %v3405
  %v3456 = vpack.c.bf16 %v3408, %v3407
  %v3457 = vpack.c.bf16 %v3410, %v3409
  %v3458 = vpack.c.bf16 %v3412, %v3411
  %v3459 = vpack.c.bf16 %v3414, %v3413
  %v3460 = vpack.c.bf16 %v3416, %v3415
  %v3461 = vpack.c.bf16 %v3418, %v3417
  %v3462 = vpack.c.bf16 %v3420, %v3419
  %v3463 = vpack.c.bf16 %v3422, %v3421
  %v3464 = vpack.c.bf16 %v3424, %v3423
  %v3465 = vpack.c.bf16 %v3426, %v3425
  %v3466 = vpack.c.bf16 %v3428, %v3427
  %v3467 = vpack.c.bf16 %v3430, %v3429
  %v3468 = vpack.c.bf16 %v3432, %v3431
  %v3469 = vpack.c.bf16 %v3434, %v3433
  %v3470 = vpack.c.bf16 %v3436, %v3435
  %v3471 = vpack.c.bf16 %v3438, %v3437
  %v3472 = vpack.c.bf16 %v3440, %v3439
  %v3474 = vshrl.u32 %v3441, 16
  %v3476 = vrot.slane %v3474, 7
  %v3477 = vshll.u32 %v3441, 16
  %v3479 = vor.u32 %v3476, %v3477
  %v3481 = vshrl.u32 %v3442, 16
  %v3483 = vrot.slane %v3481, 7
  %v3484 = vshll.u32 %v3442, 16
  %v3486 = vor.u32 %v3483, %v3484
  %v3488 = vshrl.u32 %v3443, 16
  %v3490 = vrot.slane %v3488, 7
  %v3491 = vshll.u32 %v3443, 16
  %v3493 = vor.u32 %v3490, %v3491
  %v3495 = vshrl.u32 %v3444, 16
  %v3497 = vrot.slane %v3495, 7
  %v3498 = vshll.u32 %v3444, 16
  %v3500 = vor.u32 %v3497, %v3498
  %v3502 = vshrl.u32 %v3445, 16
  %v3504 = vrot.slane %v3502, 7
  %v3505 = vshll.u32 %v3445, 16
  %v3507 = vor.u32 %v3504, %v3505
  %v3509 = vshrl.u32 %v3446, 16
  %v3511 = vrot.slane %v3509, 7
  %v3512 = vshll.u32 %v3446, 16
  %v3514 = vor.u32 %v3511, %v3512
  %v3516 = vshrl.u32 %v3447, 16
  %v3518 = vrot.slane %v3516, 7
  %v3519 = vshll.u32 %v3447, 16
  %v3521 = vor.u32 %v3518, %v3519
  %v3523 = vshrl.u32 %v3448, 16
  %v3525 = vrot.slane %v3523, 7
  %v3526 = vshll.u32 %v3448, 16
  %v3528 = vor.u32 %v3525, %v3526
  %v3530 = vshrl.u32 %v3449, 16
  %v3532 = vrot.slane %v3530, 7
  %v3533 = vshll.u32 %v3449, 16
  %v3535 = vor.u32 %v3532, %v3533
  %v3537 = vshrl.u32 %v3450, 16
  %v3539 = vrot.slane %v3537, 7
  %v3540 = vshll.u32 %v3450, 16
  %v3542 = vor.u32 %v3539, %v3540
  %v3544 = vshrl.u32 %v3451, 16
  %v3546 = vrot.slane %v3544, 7
  %v3547 = vshll.u32 %v3451, 16
  %v3549 = vor.u32 %v3546, %v3547
  %v3551 = vshrl.u32 %v3452, 16
  %v3553 = vrot.slane %v3551, 7
  %v3554 = vshll.u32 %v3452, 16
  %v3556 = vor.u32 %v3553, %v3554
  %v3558 = vshrl.u32 %v3453, 16
  %v3560 = vrot.slane %v3558, 7
  %v3561 = vshll.u32 %v3453, 16
  %v3563 = vor.u32 %v3560, %v3561
  %v3565 = vshrl.u32 %v3454, 16
  %v3567 = vrot.slane %v3565, 7
  %v3568 = vshll.u32 %v3454, 16
  %v3570 = vor.u32 %v3567, %v3568
  %v3572 = vshrl.u32 %v3455, 16
  %v3574 = vrot.slane %v3572, 7
  %v3575 = vshll.u32 %v3455, 16
  %v3577 = vor.u32 %v3574, %v3575
  %v3579 = vshrl.u32 %v3456, 16
  %v3581 = vrot.slane %v3579, 7
  %v3582 = vshll.u32 %v3456, 16
  %v3584 = vor.u32 %v3581, %v3582
  %v3586 = vshrl.u32 %v3457, 16
  %v3588 = vrot.slane %v3586, 7
  %v3589 = vshll.u32 %v3457, 16
  %v3591 = vor.u32 %v3588, %v3589
  %v3593 = vshrl.u32 %v3458, 16
  %v3595 = vrot.slane %v3593, 7
  %v3596 = vshll.u32 %v3458, 16
  %v3598 = vor.u32 %v3595, %v3596
  %v3600 = vshrl.u32 %v3459, 16
  %v3602 = vrot.slane %v3600, 7
  %v3603 = vshll.u32 %v3459, 16
  %v3605 = vor.u32 %v3602, %v3603
  %v3607 = vshrl.u32 %v3460, 16
  %v3609 = vrot.slane %v3607, 7
  %v3610 = vshll.u32 %v3460, 16
  %v3612 = vor.u32 %v3609, %v3610
  %v3614 = vshrl.u32 %v3461, 16
  %v3616 = vrot.slane %v3614, 7
  %v3617 = vshll.u32 %v3461, 16
  %v3619 = vor.u32 %v3616, %v3617
  %v3621 = vshrl.u32 %v3462, 16
  %v3623 = vrot.slane %v3621, 7
  %v3624 = vshll.u32 %v3462, 16
  %v3626 = vor.u32 %v3623, %v3624
  %v3628 = vshrl.u32 %v3463, 16
  %v3630 = vrot.slane %v3628, 7
  %v3631 = vshll.u32 %v3463, 16
  %v3633 = vor.u32 %v3630, %v3631
  %v3635 = vshrl.u32 %v3464, 16
  %v3637 = vrot.slane %v3635, 7
  %v3638 = vshll.u32 %v3464, 16
  %v3640 = vor.u32 %v3637, %v3638
  %v3642 = vshrl.u32 %v3465, 16
  %v3644 = vrot.slane %v3642, 7
  %v3645 = vshll.u32 %v3465, 16
  %v3647 = vor.u32 %v3644, %v3645
  %v3649 = vshrl.u32 %v3466, 16
  %v3651 = vrot.slane %v3649, 7
  %v3652 = vshll.u32 %v3466, 16
  %v3654 = vor.u32 %v3651, %v3652
  %v3656 = vshrl.u32 %v3467, 16
  %v3658 = vrot.slane %v3656, 7
  %v3659 = vshll.u32 %v3467, 16
  %v3661 = vor.u32 %v3658, %v3659
  %v3663 = vshrl.u32 %v3468, 16
  %v3665 = vrot.slane %v3663, 7
  %v3666 = vshll.u32 %v3468, 16
  %v3668 = vor.u32 %v3665, %v3666
  %v3670 = vshrl.u32 %v3469, 16
  %v3672 = vrot.slane %v3670, 7
  %v3673 = vshll.u32 %v3469, 16
  %v3675 = vor.u32 %v3672, %v3673
  %v3677 = vshrl.u32 %v3470, 16
  %v3679 = vrot.slane %v3677, 7
  %v3680 = vshll.u32 %v3470, 16
  %v3682 = vor.u32 %v3679, %v3680
  %v3684 = vshrl.u32 %v3471, 16
  %v3686 = vrot.slane %v3684, 7
  %v3687 = vshll.u32 %v3471, 16
  %v3689 = vor.u32 %v3686, %v3687
  %v3691 = vshrl.u32 %v3472, 16
  %v3693 = vrot.slane %v3691, 7
  %v3694 = vshll.u32 %v3472, 16
  %v3696 = vor.u32 %v3693, %v3694
  %v3761 = vsel %vm933, 0, %v3479
  %v3762 = vsel %vm933, 0, %v3486
  %v3763 = vsel %vm933, 0, %v3493
  %v3764 = vsel %vm933, 0, %v3500
  %v3765 = vsel %vm933, 0, %v3507
  %v3766 = vsel %vm933, 0, %v3514
  %v3767 = vsel %vm933, 0, %v3521
  %v3768 = vsel %vm933, 0, %v3528
  %v3769 = vsel %vm933, 0, %v3535
  %v3770 = vsel %vm933, 0, %v3542
  %v3771 = vsel %vm933, 0, %v3549
  %v3772 = vsel %vm933, 0, %v3556
  %v3773 = vsel %vm933, 0, %v3563
  %v3774 = vsel %vm933, 0, %v3570
  %v3775 = vsel %vm933, 0, %v3577
  %v3776 = vsel %vm933, 0, %v3584
  %v3777 = vsel %vm933, 0, %v3591
  %v3778 = vsel %vm933, 0, %v3598
  %v3779 = vsel %vm933, 0, %v3605
  %v3780 = vsel %vm933, 0, %v3612
  %v3781 = vsel %vm933, 0, %v3619
  %v3782 = vsel %vm933, 0, %v3626
  %v3783 = vsel %vm933, 0, %v3633
  %v3784 = vsel %vm933, 0, %v3640
  %v3785 = vsel %vm933, 0, %v3647
  %v3786 = vsel %vm933, 0, %v3654
  %v3787 = vsel %vm933, 0, %v3661
  %v3788 = vsel %vm933, 0, %v3668
  %v3789 = vsel %vm933, 0, %v3675
  %v3790 = vsel %vm933, 0, %v3682
  %v3791 = vsel %vm933, 0, %v3689
  %v3792 = vsel %vm933, 0, %v3696
  %v3793 = vsel %vm933, %v3476, 0
  %v3794 = vsel %vm933, %v3483, 0
  %v3795 = vsel %vm933, %v3490, 0
  %v3796 = vsel %vm933, %v3497, 0
  %v3797 = vsel %vm933, %v3504, 0
  %v3798 = vsel %vm933, %v3511, 0
  %v3799 = vsel %vm933, %v3518, 0
  %v3800 = vsel %vm933, %v3525, 0
  %v3801 = vsel %vm933, %v3532, 0
  %v3802 = vsel %vm933, %v3539, 0
  %v3803 = vsel %vm933, %v3546, 0
  %v3804 = vsel %vm933, %v3553, 0
  %v3805 = vsel %vm933, %v3560, 0
  %v3806 = vsel %vm933, %v3567, 0
  %v3807 = vsel %vm933, %v3574, 0
  %v3808 = vsel %vm933, %v3581, 0
  %v3809 = vsel %vm933, %v3588, 0
  %v3810 = vsel %vm933, %v3595, 0
  %v3811 = vsel %vm933, %v3602, 0
  %v3812 = vsel %vm933, %v3609, 0
  %v3813 = vsel %vm933, %v3616, 0
  %v3814 = vsel %vm933, %v3623, 0
  %v3815 = vsel %vm933, %v3630, 0
  %v3816 = vsel %vm933, %v3637, 0
  %v3817 = vsel %vm933, %v3644, 0
  %v3818 = vsel %vm933, %v3651, 0
  %v3819 = vsel %vm933, %v3658, 0
  %v3820 = vsel %vm933, %v3665, 0
  %v3821 = vsel %vm933, %v3672, 0
  %v3822 = vsel %vm933, %v3679, 0
  %v3823 = vsel %vm933, %v3686, 0
  %v3824 = vsel %vm933, %v3693, 0
  %v3826 = vshrl.u32 %v3761, 16
  %v3828 = vshll.u32 %v3761, 16
  %v3830 = vrot.slane %v3828, 1
  %v3831 = vor.u32 %v3826, %v3830
  %v3833 = vshll.u32 %v3793, 16
  %v3835 = vrot.slane %v3833, 1
  %v3836 = vsel %vm1000, %v3831, %v3835
  %v3838 = vshrl.u32 %v3762, 16
  %v3840 = vshll.u32 %v3762, 16
  %v3842 = vrot.slane %v3840, 1
  %v3843 = vor.u32 %v3838, %v3842
  %v3845 = vshll.u32 %v3794, 16
  %v3847 = vrot.slane %v3845, 1
  %v3848 = vsel %vm1000, %v3843, %v3847
  %v3850 = vshrl.u32 %v3763, 16
  %v3852 = vshll.u32 %v3763, 16
  %v3854 = vrot.slane %v3852, 1
  %v3855 = vor.u32 %v3850, %v3854
  %v3857 = vshll.u32 %v3795, 16
  %v3859 = vrot.slane %v3857, 1
  %v3860 = vsel %vm1000, %v3855, %v3859
  %v3862 = vshrl.u32 %v3764, 16
  %v3864 = vshll.u32 %v3764, 16
  %v3866 = vrot.slane %v3864, 1
  %v3867 = vor.u32 %v3862, %v3866
  %v3869 = vshll.u32 %v3796, 16
  %v3871 = vrot.slane %v3869, 1
  %v3872 = vsel %vm1000, %v3867, %v3871
  %v3874 = vshrl.u32 %v3765, 16
  %v3876 = vshll.u32 %v3765, 16
  %v3878 = vrot.slane %v3876, 1
  %v3879 = vor.u32 %v3874, %v3878
  %v3881 = vshll.u32 %v3797, 16
  %v3883 = vrot.slane %v3881, 1
  %v3884 = vsel %vm1000, %v3879, %v3883
  %v3886 = vshrl.u32 %v3766, 16
  %v3888 = vshll.u32 %v3766, 16
  %v3890 = vrot.slane %v3888, 1
  %v3891 = vor.u32 %v3886, %v3890
  %v3893 = vshll.u32 %v3798, 16
  %v3895 = vrot.slane %v3893, 1
  %v3896 = vsel %vm1000, %v3891, %v3895
  %v3898 = vshrl.u32 %v3767, 16
  %v3900 = vshll.u32 %v3767, 16
  %v3902 = vrot.slane %v3900, 1
  %v3903 = vor.u32 %v3898, %v3902
  %v3905 = vshll.u32 %v3799, 16
  %v3907 = vrot.slane %v3905, 1
  %v3908 = vsel %vm1000, %v3903, %v3907
  %v3910 = vshrl.u32 %v3768, 16
  %v3912 = vshll.u32 %v3768, 16
  %v3914 = vrot.slane %v3912, 1
  %v3915 = vor.u32 %v3910, %v3914
  %v3917 = vshll.u32 %v3800, 16
  %v3919 = vrot.slane %v3917, 1
  %v3920 = vsel %vm1000, %v3915, %v3919
  %v3922 = vshrl.u32 %v3769, 16
  %v3924 = vshll.u32 %v3769, 16
  %v3926 = vrot.slane %v3924, 1
  %v3927 = vor.u32 %v3922, %v3926
  %v3929 = vshll.u32 %v3801, 16
  %v3931 = vrot.slane %v3929, 1
  %v3932 = vsel %vm1000, %v3927, %v3931
  %v3934 = vshrl.u32 %v3770, 16
  %v3936 = vshll.u32 %v3770, 16
  %v3938 = vrot.slane %v3936, 1
  %v3939 = vor.u32 %v3934, %v3938
  %v3941 = vshll.u32 %v3802, 16
  %v3943 = vrot.slane %v3941, 1
  %v3944 = vsel %vm1000, %v3939, %v3943
  %v3946 = vshrl.u32 %v3771, 16
  %v3948 = vshll.u32 %v3771, 16
  %v3950 = vrot.slane %v3948, 1
  %v3951 = vor.u32 %v3946, %v3950
  %v3953 = vshll.u32 %v3803, 16
  %v3955 = vrot.slane %v3953, 1
  %v3956 = vsel %vm1000, %v3951, %v3955
  %v3958 = vshrl.u32 %v3772, 16
  %v3960 = vshll.u32 %v3772, 16
  %v3962 = vrot.slane %v3960, 1
  %v3963 = vor.u32 %v3958, %v3962
  %v3965 = vshll.u32 %v3804, 16
  %v3967 = vrot.slane %v3965, 1
  %v3968 = vsel %vm1000, %v3963, %v3967
  %v3970 = vshrl.u32 %v3773, 16
  %v3972 = vshll.u32 %v3773, 16
  %v3974 = vrot.slane %v3972, 1
  %v3975 = vor.u32 %v3970, %v3974
  %v3977 = vshll.u32 %v3805, 16
  %v3979 = vrot.slane %v3977, 1
  %v3980 = vsel %vm1000, %v3975, %v3979
  %v3982 = vshrl.u32 %v3774, 16
  %v3984 = vshll.u32 %v3774, 16
  %v3986 = vrot.slane %v3984, 1
  %v3987 = vor.u32 %v3982, %v3986
  %v3989 = vshll.u32 %v3806, 16
  %v3991 = vrot.slane %v3989, 1
  %v3992 = vsel %vm1000, %v3987, %v3991
  %v3994 = vshrl.u32 %v3775, 16
  %v3996 = vshll.u32 %v3775, 16
  %v3998 = vrot.slane %v3996, 1
  %v3999 = vor.u32 %v3994, %v3998
  %v4001 = vshll.u32 %v3807, 16
  %v4003 = vrot.slane %v4001, 1
  %v4004 = vsel %vm1000, %v3999, %v4003
  %v4006 = vshrl.u32 %v3777, 16
  %v4008 = vshll.u32 %v3777, 16
  %v4010 = vrot.slane %v4008, 1
  %v4011 = vor.u32 %v4006, %v4010
  %v4013 = vshll.u32 %v3809, 16
  %v4015 = vrot.slane %v4013, 1
  %v4016 = vsel %vm1000, %v4011, %v4015
  %v4018 = vshrl.u32 %v3778, 16
  %v4020 = vshll.u32 %v3778, 16
  %v4022 = vrot.slane %v4020, 1
  %v4023 = vor.u32 %v4018, %v4022
  %v4025 = vshll.u32 %v3810, 16
  %v4027 = vrot.slane %v4025, 1
  %v4028 = vsel %vm1000, %v4023, %v4027
  %v4030 = vshrl.u32 %v3779, 16
  %v4032 = vshll.u32 %v3779, 16
  %v4034 = vrot.slane %v4032, 1
  %v4035 = vor.u32 %v4030, %v4034
  %v4037 = vshll.u32 %v3811, 16
  %v4039 = vrot.slane %v4037, 1
  %v4040 = vsel %vm1000, %v4035, %v4039
  %v4042 = vshrl.u32 %v3780, 16
  %v4044 = vshll.u32 %v3780, 16
  %v4046 = vrot.slane %v4044, 1
  %v4047 = vor.u32 %v4042, %v4046
  %v4049 = vshll.u32 %v3812, 16
  %v4051 = vrot.slane %v4049, 1
  %v4052 = vsel %vm1000, %v4047, %v4051
  %v4054 = vshrl.u32 %v3781, 16
  %v4056 = vshll.u32 %v3781, 16
  %v4058 = vrot.slane %v4056, 1
  %v4059 = vor.u32 %v4054, %v4058
  %v4061 = vshll.u32 %v3813, 16
  %v4063 = vrot.slane %v4061, 1
  %v4064 = vsel %vm1000, %v4059, %v4063
  %v4066 = vshrl.u32 %v3782, 16
  %v4068 = vshll.u32 %v3782, 16
  %v4070 = vrot.slane %v4068, 1
  %v4071 = vor.u32 %v4066, %v4070
  %v4073 = vshll.u32 %v3814, 16
  %v4075 = vrot.slane %v4073, 1
  %v4076 = vsel %vm1000, %v4071, %v4075
  %v4078 = vshrl.u32 %v3783, 16
  %v4080 = vshll.u32 %v3783, 16
  %v4082 = vrot.slane %v4080, 1
  %v4083 = vor.u32 %v4078, %v4082
  %v4085 = vshll.u32 %v3815, 16
  %v4087 = vrot.slane %v4085, 1
  %v4088 = vsel %vm1000, %v4083, %v4087
  %v4090 = vshrl.u32 %v3784, 16
  %v4092 = vshll.u32 %v3784, 16
  %v4094 = vrot.slane %v4092, 1
  %v4095 = vor.u32 %v4090, %v4094
  %v4097 = vshll.u32 %v3816, 16
  %v4099 = vrot.slane %v4097, 1
  %v4100 = vsel %vm1000, %v4095, %v4099
  %v4102 = vshrl.u32 %v3785, 16
  %v4104 = vshll.u32 %v3785, 16
  %v4106 = vrot.slane %v4104, 1
  %v4107 = vor.u32 %v4102, %v4106
  %v4109 = vshll.u32 %v3817, 16
  %v4111 = vrot.slane %v4109, 1
  %v4112 = vsel %vm1000, %v4107, %v4111
  %v4114 = vshrl.u32 %v3786, 16
  %v4116 = vshll.u32 %v3786, 16
  %v4118 = vrot.slane %v4116, 1
  %v4119 = vor.u32 %v4114, %v4118
  %v4121 = vshll.u32 %v3818, 16
  %v4123 = vrot.slane %v4121, 1
  %v4124 = vsel %vm1000, %v4119, %v4123
  %v4126 = vshrl.u32 %v3787, 16
  %v4128 = vshll.u32 %v3787, 16
  %v4130 = vrot.slane %v4128, 1
  %v4131 = vor.u32 %v4126, %v4130
  %v4133 = vshll.u32 %v3819, 16
  %v4135 = vrot.slane %v4133, 1
  %v4136 = vsel %vm1000, %v4131, %v4135
  %v4138 = vshrl.u32 %v3788, 16
  %v4140 = vshll.u32 %v3788, 16
  %v4142 = vrot.slane %v4140, 1
  %v4143 = vor.u32 %v4138, %v4142
  %v4145 = vshll.u32 %v3820, 16
  %v4147 = vrot.slane %v4145, 1
  %v4148 = vsel %vm1000, %v4143, %v4147
  %v4150 = vshrl.u32 %v3789, 16
  %v4152 = vshll.u32 %v3789, 16
  %v4154 = vrot.slane %v4152, 1
  %v4155 = vor.u32 %v4150, %v4154
  %v4157 = vshll.u32 %v3821, 16
  %v4159 = vrot.slane %v4157, 1
  %v4160 = vsel %vm1000, %v4155, %v4159
  %v4162 = vshrl.u32 %v3790, 16
  %v4164 = vshll.u32 %v3790, 16
  %v4166 = vrot.slane %v4164, 1
  %v4167 = vor.u32 %v4162, %v4166
  %v4169 = vshll.u32 %v3822, 16
  %v4171 = vrot.slane %v4169, 1
  %v4172 = vsel %vm1000, %v4167, %v4171
  %v4174 = vshrl.u32 %v3791, 16
  %v4176 = vshll.u32 %v3791, 16
  %v4178 = vrot.slane %v4176, 1
  %v4179 = vor.u32 %v4174, %v4178
  %v4181 = vshll.u32 %v3823, 16
  %v4183 = vrot.slane %v4181, 1
  %v4184 = vsel %vm1000, %v4179, %v4183
  %4185 = vrot.lane.b32.xlu0 %v1012, 32
  %v4186 = vpop.permute.xlu0 %4185
  %4187 = vrot.lane.b32.xlu0 %v3836, 32
  %v4188 = vpop.permute.xlu0 %4187
  %4189 = vrot.lane.b32.xlu0 %v3848, 32
  %v4190 = vpop.permute.xlu0 %4189
  %4191 = vrot.lane.b32.xlu0 %v3860, 32
  %v4192 = vpop.permute.xlu0 %4191
  %4193 = vrot.lane.b32.xlu0 %v3872, 32
  %v4194 = vpop.permute.xlu0 %4193
  %4195 = vrot.lane.b32.xlu0 %v3884, 32
  %v4196 = vpop.permute.xlu0 %4195
  %4197 = vrot.lane.b32.xlu0 %v3896, 32
  %v4198 = vpop.permute.xlu0 %4197
  %4199 = vrot.lane.b32.xlu0 %v3908, 32
  %v4200 = vpop.permute.xlu0 %4199
  %4201 = vrot.lane.b32.xlu0 %v3920, 32
  %v4202 = vpop.permute.xlu0 %4201
  %4203 = vrot.lane.b32.xlu0 %v3932, 32
  %v4204 = vpop.permute.xlu0 %4203
  %4205 = vrot.lane.b32.xlu0 %v3944, 32
  %v4206 = vpop.permute.xlu0 %4205
  %4207 = vrot.lane.b32.xlu0 %v3956, 32
  %v4208 = vpop.permute.xlu0 %4207
  %4209 = vrot.lane.b32.xlu0 %v3968, 32
  %v4210 = vpop.permute.xlu0 %4209
  %4211 = vrot.lane.b32.xlu0 %v3980, 32
  %v4212 = vpop.permute.xlu0 %4211
  %4213 = vrot.lane.b32.xlu0 %v3992, 32
  %v4214 = vpop.permute.xlu0 %4213
  %4215 = vrot.lane.b32.xlu0 %v4004, 32
  %v4216 = vpop.permute.xlu0 %4215
  %4217 = vrot.lane.b32.xlu0 %v4016, 32
  %v4218 = vpop.permute.xlu0 %4217
  %4219 = vrot.lane.b32.xlu0 %v4028, 32
  %v4220 = vpop.permute.xlu0 %4219
  %4221 = vrot.lane.b32.xlu0 %v4040, 32
  %v4222 = vpop.permute.xlu0 %4221
  %4223 = vrot.lane.b32.xlu0 %v4052, 32
  %v4224 = vpop.permute.xlu0 %4223
  %4225 = vrot.lane.b32.xlu0 %v4064, 32
  %v4226 = vpop.permute.xlu0 %4225
  %4227 = vrot.lane.b32.xlu0 %v4076, 32
  %v4228 = vpop.permute.xlu0 %4227
  %4229 = vrot.lane.b32.xlu0 %v4088, 32
  %v4230 = vpop.permute.xlu0 %4229
  %4231 = vrot.lane.b32.xlu0 %v4100, 32
  %v4232 = vpop.permute.xlu0 %4231
  %4233 = vrot.lane.b32.xlu0 %v4112, 32
  %v4234 = vpop.permute.xlu0 %4233
  %4235 = vrot.lane.b32.xlu0 %v4124, 32
  %v4236 = vpop.permute.xlu0 %4235
  %4237 = vrot.lane.b32.xlu0 %v4136, 32
  %v4238 = vpop.permute.xlu0 %4237
  %4239 = vrot.lane.b32.xlu0 %v4148, 32
  %v4240 = vpop.permute.xlu0 %4239
  %4241 = vrot.lane.b32.xlu0 %v4160, 32
  %v4242 = vpop.permute.xlu0 %4241
  %4243 = vrot.lane.b32.xlu0 %v4172, 32
  %v4244 = vpop.permute.xlu0 %4243
  %4245 = vrot.lane.b32.xlu0 %v4184, 32
  %v4246 = vpop.permute.xlu0 %4245
  %v4307 = vrot.slane %v3761, 1
  %v4308 = vrot.slane %v3793, 1
  %v4309 = vsel %vm1497, %v4307, %v4308
  %v4310 = vrot.slane %v3762, 1
  %v4311 = vrot.slane %v3794, 1
  %v4312 = vsel %vm1497, %v4310, %v4311
  %v4313 = vrot.slane %v3763, 1
  %v4314 = vrot.slane %v3795, 1
  %v4315 = vsel %vm1497, %v4313, %v4314
  %v4316 = vrot.slane %v3764, 1
  %v4317 = vrot.slane %v3796, 1
  %v4318 = vsel %vm1497, %v4316, %v4317
  %v4319 = vrot.slane %v3765, 1
  %v4320 = vrot.slane %v3797, 1
  %v4321 = vsel %vm1497, %v4319, %v4320
  %v4322 = vrot.slane %v3766, 1
  %v4323 = vrot.slane %v3798, 1
  %v4324 = vsel %vm1497, %v4322, %v4323
  %v4325 = vrot.slane %v3767, 1
  %v4326 = vrot.slane %v3799, 1
  %v4327 = vsel %vm1497, %v4325, %v4326
  %v4328 = vrot.slane %v3768, 1
  %v4329 = vrot.slane %v3800, 1
  %v4330 = vsel %vm1497, %v4328, %v4329
  %v4331 = vrot.slane %v3769, 1
  %v4332 = vrot.slane %v3801, 1
  %v4333 = vsel %vm1497, %v4331, %v4332
  %v4334 = vrot.slane %v3770, 1
  %v4335 = vrot.slane %v3802, 1
  %v4336 = vsel %vm1497, %v4334, %v4335
  %v4337 = vrot.slane %v3771, 1
  %v4338 = vrot.slane %v3803, 1
  %v4339 = vsel %vm1497, %v4337, %v4338
  %v4340 = vrot.slane %v3772, 1
  %v4341 = vrot.slane %v3804, 1
  %v4342 = vsel %vm1497, %v4340, %v4341
  %v4343 = vrot.slane %v3773, 1
  %v4344 = vrot.slane %v3805, 1
  %v4345 = vsel %vm1497, %v4343, %v4344
  %v4346 = vrot.slane %v3774, 1
  %v4347 = vrot.slane %v3806, 1
  %v4348 = vsel %vm1497, %v4346, %v4347
  %v4349 = vrot.slane %v3775, 1
  %v4350 = vrot.slane %v3807, 1
  %v4351 = vsel %vm1497, %v4349, %v4350
  %v4352 = vrot.slane %v3777, 1
  %v4353 = vrot.slane %v3809, 1
  %v4354 = vsel %vm1497, %v4352, %v4353
  %v4355 = vrot.slane %v3778, 1
  %v4356 = vrot.slane %v3810, 1
  %v4357 = vsel %vm1497, %v4355, %v4356
  %v4358 = vrot.slane %v3779, 1
  %v4359 = vrot.slane %v3811, 1
  %v4360 = vsel %vm1497, %v4358, %v4359
  %v4361 = vrot.slane %v3780, 1
  %v4362 = vrot.slane %v3812, 1
  %v4363 = vsel %vm1497, %v4361, %v4362
  %v4364 = vrot.slane %v3781, 1
  %v4365 = vrot.slane %v3813, 1
  %v4366 = vsel %vm1497, %v4364, %v4365
  %v4367 = vrot.slane %v3782, 1
  %v4368 = vrot.slane %v3814, 1
  %v4369 = vsel %vm1497, %v4367, %v4368
  %v4370 = vrot.slane %v3783, 1
  %v4371 = vrot.slane %v3815, 1
  %v4372 = vsel %vm1497, %v4370, %v4371
  %v4373 = vrot.slane %v3784, 1
  %v4374 = vrot.slane %v3816, 1
  %v4375 = vsel %vm1497, %v4373, %v4374
  %v4376 = vrot.slane %v3785, 1
  %v4377 = vrot.slane %v3817, 1
  %v4378 = vsel %vm1497, %v4376, %v4377
  %v4379 = vrot.slane %v3786, 1
  %v4380 = vrot.slane %v3818, 1
  %v4381 = vsel %vm1497, %v4379, %v4380
  %v4382 = vrot.slane %v3787, 1
  %v4383 = vrot.slane %v3819, 1
  %v4384 = vsel %vm1497, %v4382, %v4383
  %v4385 = vrot.slane %v3788, 1
  %v4386 = vrot.slane %v3820, 1
  %v4387 = vsel %vm1497, %v4385, %v4386
  %v4388 = vrot.slane %v3789, 1
  %v4389 = vrot.slane %v3821, 1
  %v4390 = vsel %vm1497, %v4388, %v4389
  %v4391 = vrot.slane %v3790, 1
  %v4392 = vrot.slane %v3822, 1
  %v4393 = vsel %vm1497, %v4391, %v4392
  %v4394 = vrot.slane %v3791, 1
  %v4395 = vrot.slane %v3823, 1
  %v4396 = vsel %vm1497, %v4394, %v4395
  %4397 = vrot.lane.b32.xlu0 %v1500, 64
  %v4398 = vpop.permute.xlu0 %4397
  %4399 = vrot.lane.b32.xlu0 %v4309, 64
  %v4400 = vpop.permute.xlu0 %4399
  %4401 = vrot.lane.b32.xlu0 %v4312, 64
  %v4402 = vpop.permute.xlu0 %4401
  %4403 = vrot.lane.b32.xlu0 %v4315, 64
  %v4404 = vpop.permute.xlu0 %4403
  %4405 = vrot.lane.b32.xlu0 %v4318, 64
  %v4406 = vpop.permute.xlu0 %4405
  %4407 = vrot.lane.b32.xlu0 %v4321, 64
  %v4408 = vpop.permute.xlu0 %4407
  %4409 = vrot.lane.b32.xlu0 %v4324, 64
  %v4410 = vpop.permute.xlu0 %4409
  %4411 = vrot.lane.b32.xlu0 %v4327, 64
  %v4412 = vpop.permute.xlu0 %4411
  %4413 = vrot.lane.b32.xlu0 %v4330, 64
  %v4414 = vpop.permute.xlu0 %4413
  %4415 = vrot.lane.b32.xlu0 %v4333, 64
  %v4416 = vpop.permute.xlu0 %4415
  %4417 = vrot.lane.b32.xlu0 %v4336, 64
  %v4418 = vpop.permute.xlu0 %4417
  %4419 = vrot.lane.b32.xlu0 %v4339, 64
  %v4420 = vpop.permute.xlu0 %4419
  %4421 = vrot.lane.b32.xlu0 %v4342, 64
  %v4422 = vpop.permute.xlu0 %4421
  %4423 = vrot.lane.b32.xlu0 %v4345, 64
  %v4424 = vpop.permute.xlu0 %4423
  %4425 = vrot.lane.b32.xlu0 %v4348, 64
  %v4426 = vpop.permute.xlu0 %4425
  %4427 = vrot.lane.b32.xlu0 %v4351, 64
  %v4428 = vpop.permute.xlu0 %4427
  %4429 = vrot.lane.b32.xlu0 %v4354, 64
  %v4430 = vpop.permute.xlu0 %4429
  %4431 = vrot.lane.b32.xlu0 %v4357, 64
  %v4432 = vpop.permute.xlu0 %4431
  %4433 = vrot.lane.b32.xlu0 %v4360, 64
  %v4434 = vpop.permute.xlu0 %4433
  %4435 = vrot.lane.b32.xlu0 %v4363, 64
  %v4436 = vpop.permute.xlu0 %4435
  %4437 = vrot.lane.b32.xlu0 %v4366, 64
  %v4438 = vpop.permute.xlu0 %4437
  %4439 = vrot.lane.b32.xlu0 %v4369, 64
  %v4440 = vpop.permute.xlu0 %4439
  %4441 = vrot.lane.b32.xlu0 %v4372, 64
  %v4442 = vpop.permute.xlu0 %4441
  %4443 = vrot.lane.b32.xlu0 %v4375, 64
  %v4444 = vpop.permute.xlu0 %4443
  %4445 = vrot.lane.b32.xlu0 %v4378, 64
  %v4446 = vpop.permute.xlu0 %4445
  %4447 = vrot.lane.b32.xlu0 %v4381, 64
  %v4448 = vpop.permute.xlu0 %4447
  %4449 = vrot.lane.b32.xlu0 %v4384, 64
  %v4450 = vpop.permute.xlu0 %4449
  %4451 = vrot.lane.b32.xlu0 %v4387, 64
  %v4452 = vpop.permute.xlu0 %4451
  %4453 = vrot.lane.b32.xlu0 %v4390, 64
  %v4454 = vpop.permute.xlu0 %4453
  %4455 = vrot.lane.b32.xlu0 %v4393, 64
  %v4456 = vpop.permute.xlu0 %4455
  %4457 = vrot.lane.b32.xlu0 %v4396, 64
  %v4458 = vpop.permute.xlu0 %4457
  %4461 = vrot.lane.b32.xlu0 %v3761, 96
  %v4462 = vpop.permute.xlu0 %4461
  %4463 = vrot.lane.b32.xlu0 %v3762, 96
  %v4464 = vpop.permute.xlu0 %4463
  %4465 = vrot.lane.b32.xlu0 %v3763, 96
  %v4466 = vpop.permute.xlu0 %4465
  %4467 = vrot.lane.b32.xlu0 %v3764, 96
  %v4468 = vpop.permute.xlu0 %4467
  %4469 = vrot.lane.b32.xlu0 %v3765, 96
  %v4470 = vpop.permute.xlu0 %4469
  %4471 = vrot.lane.b32.xlu0 %v3766, 96
  %v4472 = vpop.permute.xlu0 %4471
  %4473 = vrot.lane.b32.xlu0 %v3767, 96
  %v4474 = vpop.permute.xlu0 %4473
  %4475 = vrot.lane.b32.xlu0 %v3768, 96
  %v4476 = vpop.permute.xlu0 %4475
  %4477 = vrot.lane.b32.xlu0 %v3769, 96
  %v4478 = vpop.permute.xlu0 %4477
  %4479 = vrot.lane.b32.xlu0 %v3770, 96
  %v4480 = vpop.permute.xlu0 %4479
  %4481 = vrot.lane.b32.xlu0 %v3771, 96
  %v4482 = vpop.permute.xlu0 %4481
  %4483 = vrot.lane.b32.xlu0 %v3772, 96
  %v4484 = vpop.permute.xlu0 %4483
  %4485 = vrot.lane.b32.xlu0 %v3773, 96
  %v4486 = vpop.permute.xlu0 %4485
  %4487 = vrot.lane.b32.xlu0 %v3774, 96
  %v4488 = vpop.permute.xlu0 %4487
  %4489 = vrot.lane.b32.xlu0 %v3775, 96
  %v4490 = vpop.permute.xlu0 %4489
  %4491 = vrot.lane.b32.xlu0 %v3776, 96
  %v4492 = vpop.permute.xlu0 %4491
  %4493 = vrot.lane.b32.xlu0 %v3777, 96
  %v4494 = vpop.permute.xlu0 %4493
  %4495 = vrot.lane.b32.xlu0 %v3778, 96
  %v4496 = vpop.permute.xlu0 %4495
  %4497 = vrot.lane.b32.xlu0 %v3779, 96
  %v4498 = vpop.permute.xlu0 %4497
  %4499 = vrot.lane.b32.xlu0 %v3780, 96
  %v4500 = vpop.permute.xlu0 %4499
  %4501 = vrot.lane.b32.xlu0 %v3781, 96
  %v4502 = vpop.permute.xlu0 %4501
  %4503 = vrot.lane.b32.xlu0 %v3782, 96
  %v4504 = vpop.permute.xlu0 %4503
  %4505 = vrot.lane.b32.xlu0 %v3783, 96
  %v4506 = vpop.permute.xlu0 %4505
  %4507 = vrot.lane.b32.xlu0 %v3784, 96
  %v4508 = vpop.permute.xlu0 %4507
  %4509 = vrot.lane.b32.xlu0 %v3785, 96
  %v4510 = vpop.permute.xlu0 %4509
  %4511 = vrot.lane.b32.xlu0 %v3786, 96
  %v4512 = vpop.permute.xlu0 %4511
  %4513 = vrot.lane.b32.xlu0 %v3787, 96
  %v4514 = vpop.permute.xlu0 %4513
  %4515 = vrot.lane.b32.xlu0 %v3788, 96
  %v4516 = vpop.permute.xlu0 %4515
  %4517 = vrot.lane.b32.xlu0 %v3789, 96
  %v4518 = vpop.permute.xlu0 %4517
  %4519 = vrot.lane.b32.xlu0 %v3790, 96
  %v4520 = vpop.permute.xlu0 %4519
  %4521 = vrot.lane.b32.xlu0 %v3791, 96
  %v4522 = vpop.permute.xlu0 %4521
  %4523 = vrot.lane.b32.xlu0 %v3792, 96
  %v4524 = vpop.permute.xlu0 %4523
  %v4526 = vshrl.u32 %v3776, 16
  %v4528 = vshll.u32 %v3776, 16
  %v4530 = vrot.slane %v4528, 1
  %v4531 = vor.u32 %v4526, %v4530
  %v4533 = vshll.u32 %v3808, 16
  %v4535 = vrot.slane %v4533, 1
  %v4536 = vsel %vm1000, %v4531, %v4535
  %v4538 = vshrl.u32 %v3792, 16
  %v4540 = vshll.u32 %v3792, 16
  %v4542 = vrot.slane %v4540, 1
  %v4543 = vor.u32 %v4538, %v4542
  %v4545 = vshll.u32 %v3824, 16
  %v4547 = vrot.slane %v4545, 1
  %v4548 = vsel %vm1000, %v4543, %v4547
  %v4551 = vrot.slane %v3776, 1
  %v4552 = vrot.slane %v3808, 1
  %v4553 = vsel %vm1497, %v4551, %v4552
  %v4554 = vrot.slane %v3792, 1
  %v4555 = vrot.slane %v3824, 1
  %v4556 = vsel %vm1497, %v4554, %v4555
  %4557 = vrot.lane.b32.xlu0 %v4309, 32
  %v4558 = vpop.permute.xlu0 %4557
  %4559 = vrot.lane.b32.xlu0 %v4312, 32
  %v4560 = vpop.permute.xlu0 %4559
  %4561 = vrot.lane.b32.xlu0 %v4315, 32
  %v4562 = vpop.permute.xlu0 %4561
  %4563 = vrot.lane.b32.xlu0 %v4318, 32
  %v4564 = vpop.permute.xlu0 %4563
  %4565 = vrot.lane.b32.xlu0 %v4321, 32
  %v4566 = vpop.permute.xlu0 %4565
  %4567 = vrot.lane.b32.xlu0 %v4324, 32
  %v4568 = vpop.permute.xlu0 %4567
  %4569 = vrot.lane.b32.xlu0 %v4327, 32
  %v4570 = vpop.permute.xlu0 %4569
  %4571 = vrot.lane.b32.xlu0 %v4330, 32
  %v4572 = vpop.permute.xlu0 %4571
  %4573 = vrot.lane.b32.xlu0 %v4333, 32
  %v4574 = vpop.permute.xlu0 %4573
  %4575 = vrot.lane.b32.xlu0 %v4336, 32
  %v4576 = vpop.permute.xlu0 %4575
  %4577 = vrot.lane.b32.xlu0 %v4339, 32
  %v4578 = vpop.permute.xlu0 %4577
  %4579 = vrot.lane.b32.xlu0 %v4342, 32
  %v4580 = vpop.permute.xlu0 %4579
  %4581 = vrot.lane.b32.xlu0 %v4345, 32
  %v4582 = vpop.permute.xlu0 %4581
  %4583 = vrot.lane.b32.xlu0 %v4348, 32
  %v4584 = vpop.permute.xlu0 %4583
  %4585 = vrot.lane.b32.xlu0 %v4351, 32
  %v4586 = vpop.permute.xlu0 %4585
  %4587 = vrot.lane.b32.xlu0 %v4553, 32
  %v4588 = vpop.permute.xlu0 %4587
  %4589 = vrot.lane.b32.xlu0 %v4354, 32
  %v4590 = vpop.permute.xlu0 %4589
  %4591 = vrot.lane.b32.xlu0 %v4357, 32
  %v4592 = vpop.permute.xlu0 %4591
  %4593 = vrot.lane.b32.xlu0 %v4360, 32
  %v4594 = vpop.permute.xlu0 %4593
  %4595 = vrot.lane.b32.xlu0 %v4363, 32
  %v4596 = vpop.permute.xlu0 %4595
  %4597 = vrot.lane.b32.xlu0 %v4366, 32
  %v4598 = vpop.permute.xlu0 %4597
  %4599 = vrot.lane.b32.xlu0 %v4369, 32
  %v4600 = vpop.permute.xlu0 %4599
  %4601 = vrot.lane.b32.xlu0 %v4372, 32
  %v4602 = vpop.permute.xlu0 %4601
  %4603 = vrot.lane.b32.xlu0 %v4375, 32
  %v4604 = vpop.permute.xlu0 %4603
  %4605 = vrot.lane.b32.xlu0 %v4378, 32
  %v4606 = vpop.permute.xlu0 %4605
  %4607 = vrot.lane.b32.xlu0 %v4381, 32
  %v4608 = vpop.permute.xlu0 %4607
  %4609 = vrot.lane.b32.xlu0 %v4384, 32
  %v4610 = vpop.permute.xlu0 %4609
  %4611 = vrot.lane.b32.xlu0 %v4387, 32
  %v4612 = vpop.permute.xlu0 %4611
  %4613 = vrot.lane.b32.xlu0 %v4390, 32
  %v4614 = vpop.permute.xlu0 %4613
  %4615 = vrot.lane.b32.xlu0 %v4393, 32
  %v4616 = vpop.permute.xlu0 %4615
  %4617 = vrot.lane.b32.xlu0 %v4396, 32
  %v4618 = vpop.permute.xlu0 %4617
  %4619 = vrot.lane.b32.xlu0 %v4556, 32
  %v4620 = vpop.permute.xlu0 %4619
  %4621 = vrot.lane.b32.xlu0 %v3762, 64
  %v4622 = vpop.permute.xlu0 %4621
  %4623 = vrot.lane.b32.xlu0 %v3763, 64
  %v4624 = vpop.permute.xlu0 %4623
  %4625 = vrot.lane.b32.xlu0 %v3764, 64
  %v4626 = vpop.permute.xlu0 %4625
  %4627 = vrot.lane.b32.xlu0 %v3765, 64
  %v4628 = vpop.permute.xlu0 %4627
  %4629 = vrot.lane.b32.xlu0 %v3766, 64
  %v4630 = vpop.permute.xlu0 %4629
  %4631 = vrot.lane.b32.xlu0 %v3767, 64
  %v4632 = vpop.permute.xlu0 %4631
  %4633 = vrot.lane.b32.xlu0 %v3768, 64
  %v4634 = vpop.permute.xlu0 %4633
  %4635 = vrot.lane.b32.xlu0 %v3769, 64
  %v4636 = vpop.permute.xlu0 %4635
  %4637 = vrot.lane.b32.xlu0 %v3770, 64
  %v4638 = vpop.permute.xlu0 %4637
  %4639 = vrot.lane.b32.xlu0 %v3771, 64
  %v4640 = vpop.permute.xlu0 %4639
  %4641 = vrot.lane.b32.xlu0 %v3772, 64
  %v4642 = vpop.permute.xlu0 %4641
  %4643 = vrot.lane.b32.xlu0 %v3773, 64
  %v4644 = vpop.permute.xlu0 %4643
  %4645 = vrot.lane.b32.xlu0 %v3774, 64
  %v4646 = vpop.permute.xlu0 %4645
  %4647 = vrot.lane.b32.xlu0 %v3775, 64
  %v4648 = vpop.permute.xlu0 %4647
  %4649 = vrot.lane.b32.xlu0 %v3776, 64
  %v4650 = vpop.permute.xlu0 %4649
  %4651 = vrot.lane.b32.xlu0 %v934, 64
  %v4652 = vpop.permute.xlu0 %4651
  %4653 = vrot.lane.b32.xlu0 %v3778, 64
  %v4654 = vpop.permute.xlu0 %4653
  %4655 = vrot.lane.b32.xlu0 %v3779, 64
  %v4656 = vpop.permute.xlu0 %4655
  %4657 = vrot.lane.b32.xlu0 %v3780, 64
  %v4658 = vpop.permute.xlu0 %4657
  %4659 = vrot.lane.b32.xlu0 %v3781, 64
  %v4660 = vpop.permute.xlu0 %4659
  %4661 = vrot.lane.b32.xlu0 %v3782, 64
  %v4662 = vpop.permute.xlu0 %4661
  %4663 = vrot.lane.b32.xlu0 %v3783, 64
  %v4664 = vpop.permute.xlu0 %4663
  %4665 = vrot.lane.b32.xlu0 %v3784, 64
  %v4666 = vpop.permute.xlu0 %4665
  %4667 = vrot.lane.b32.xlu0 %v3785, 64
  %v4668 = vpop.permute.xlu0 %4667
  %4669 = vrot.lane.b32.xlu0 %v3786, 64
  %v4670 = vpop.permute.xlu0 %4669
  %4671 = vrot.lane.b32.xlu0 %v3787, 64
  %v4672 = vpop.permute.xlu0 %4671
  %4673 = vrot.lane.b32.xlu0 %v3788, 64
  %v4674 = vpop.permute.xlu0 %4673
  %4675 = vrot.lane.b32.xlu0 %v3789, 64
  %v4676 = vpop.permute.xlu0 %4675
  %4677 = vrot.lane.b32.xlu0 %v3790, 64
  %v4678 = vpop.permute.xlu0 %4677
  %4679 = vrot.lane.b32.xlu0 %v3791, 64
  %v4680 = vpop.permute.xlu0 %4679
  %4681 = vrot.lane.b32.xlu0 %v3792, 64
  %v4682 = vpop.permute.xlu0 %4681
  %4683 = vrot.lane.b32.xlu0 %v3848, 96
  %v4684 = vpop.permute.xlu0 %4683
  %4685 = vrot.lane.b32.xlu0 %v3860, 96
  %v4686 = vpop.permute.xlu0 %4685
  %4687 = vrot.lane.b32.xlu0 %v3872, 96
  %v4688 = vpop.permute.xlu0 %4687
  %4689 = vrot.lane.b32.xlu0 %v3884, 96
  %v4690 = vpop.permute.xlu0 %4689
  %4691 = vrot.lane.b32.xlu0 %v3896, 96
  %v4692 = vpop.permute.xlu0 %4691
  %4693 = vrot.lane.b32.xlu0 %v3908, 96
  %v4694 = vpop.permute.xlu0 %4693
  %4695 = vrot.lane.b32.xlu0 %v3920, 96
  %v4696 = vpop.permute.xlu0 %4695
  %4697 = vrot.lane.b32.xlu0 %v3932, 96
  %v4698 = vpop.permute.xlu0 %4697
  %4699 = vrot.lane.b32.xlu0 %v3944, 96
  %v4700 = vpop.permute.xlu0 %4699
  %4701 = vrot.lane.b32.xlu0 %v3956, 96
  %v4702 = vpop.permute.xlu0 %4701
  %4703 = vrot.lane.b32.xlu0 %v3968, 96
  %v4704 = vpop.permute.xlu0 %4703
  %4705 = vrot.lane.b32.xlu0 %v3980, 96
  %v4706 = vpop.permute.xlu0 %4705
  %4707 = vrot.lane.b32.xlu0 %v3992, 96
  %v4708 = vpop.permute.xlu0 %4707
  %4709 = vrot.lane.b32.xlu0 %v4004, 96
  %v4710 = vpop.permute.xlu0 %4709
  %4711 = vrot.lane.b32.xlu0 %v4536, 96
  %v4712 = vpop.permute.xlu0 %4711
  %4713 = vrot.lane.b32.xlu0 %v1012, 96
  %v4714 = vpop.permute.xlu0 %4713
  %4715 = vrot.lane.b32.xlu0 %v4028, 96
  %v4716 = vpop.permute.xlu0 %4715
  %4717 = vrot.lane.b32.xlu0 %v4040, 96
  %v4718 = vpop.permute.xlu0 %4717
  %4719 = vrot.lane.b32.xlu0 %v4052, 96
  %v4720 = vpop.permute.xlu0 %4719
  %4721 = vrot.lane.b32.xlu0 %v4064, 96
  %v4722 = vpop.permute.xlu0 %4721
  %4723 = vrot.lane.b32.xlu0 %v4076, 96
  %v4724 = vpop.permute.xlu0 %4723
  %4725 = vrot.lane.b32.xlu0 %v4088, 96
  %v4726 = vpop.permute.xlu0 %4725
  %4727 = vrot.lane.b32.xlu0 %v4100, 96
  %v4728 = vpop.permute.xlu0 %4727
  %4729 = vrot.lane.b32.xlu0 %v4112, 96
  %v4730 = vpop.permute.xlu0 %4729
  %4731 = vrot.lane.b32.xlu0 %v4124, 96
  %v4732 = vpop.permute.xlu0 %4731
  %4733 = vrot.lane.b32.xlu0 %v4136, 96
  %v4734 = vpop.permute.xlu0 %4733
  %4735 = vrot.lane.b32.xlu0 %v4148, 96
  %v4736 = vpop.permute.xlu0 %4735
  %4737 = vrot.lane.b32.xlu0 %v4160, 96
  %v4738 = vpop.permute.xlu0 %4737
  %4739 = vrot.lane.b32.xlu0 %v4172, 96
  %v4740 = vpop.permute.xlu0 %4739
  %4741 = vrot.lane.b32.xlu0 %v4184, 96
  %v4742 = vpop.permute.xlu0 %4741
  %4743 = vrot.lane.b32.xlu0 %v4548, 96
  %v4744 = vpop.permute.xlu0 %4743
  %v4746 = vsel %vm93, %v934, %v4186
  %v4748 = vsel %vm93, %v3761, %v4188
  %v4750 = vsel %vm93, %v3762, %v4190
  %v4752 = vsel %vm93, %v3763, %v4192
  %v4754 = vsel %vm93, %v3764, %v4194
  %v4756 = vsel %vm93, %v3765, %v4196
  %v4758 = vsel %vm93, %v3766, %v4198
  %v4760 = vsel %vm93, %v3767, %v4200
  %v4762 = vsel %vm93, %v3768, %v4202
  %v4764 = vsel %vm93, %v3769, %v4204
  %v4766 = vsel %vm93, %v3770, %v4206
  %v4768 = vsel %vm93, %v3771, %v4208
  %v4770 = vsel %vm93, %v3772, %v4210
  %v4772 = vsel %vm93, %v3773, %v4212
  %v4774 = vsel %vm93, %v3774, %v4214
  %v4776 = vsel %vm93, %v3775, %v4216
  %v4778 = vsel %vm93, %v3777, %v4218
  %v4780 = vsel %vm93, %v3778, %v4220
  %v4782 = vsel %vm93, %v3779, %v4222
  %v4784 = vsel %vm93, %v3780, %v4224
  %v4786 = vsel %vm93, %v3781, %v4226
  %v4788 = vsel %vm93, %v3782, %v4228
  %v4790 = vsel %vm93, %v3783, %v4230
  %v4792 = vsel %vm93, %v3784, %v4232
  %v4794 = vsel %vm93, %v3785, %v4234
  %v4796 = vsel %vm93, %v3786, %v4236
  %v4798 = vsel %vm93, %v3787, %v4238
  %v4800 = vsel %vm93, %v3788, %v4240
  %v4802 = vsel %vm93, %v3789, %v4242
  %v4804 = vsel %vm93, %v3790, %v4244
  %v4806 = vsel %vm93, %v3791, %v4246
  %vm4807 = vcmask 523264
  %v4809 = vsel %vm4807, %v4746, %v4398
  %v4811 = vsel %vm4807, %v4748, %v4400
  %v4813 = vsel %vm4807, %v4750, %v4402
  %v4815 = vsel %vm4807, %v4752, %v4404
  %v4817 = vsel %vm4807, %v4754, %v4406
  %v4819 = vsel %vm4807, %v4756, %v4408
  %v4821 = vsel %vm4807, %v4758, %v4410
  %v4823 = vsel %vm4807, %v4760, %v4412
  %v4825 = vsel %vm4807, %v4762, %v4414
  %v4827 = vsel %vm4807, %v4764, %v4416
  %v4829 = vsel %vm4807, %v4766, %v4418
  %v4831 = vsel %vm4807, %v4768, %v4420
  %v4833 = vsel %vm4807, %v4770, %v4422
  %v4835 = vsel %vm4807, %v4772, %v4424
  %v4837 = vsel %vm4807, %v4774, %v4426
  %v4839 = vsel %vm4807, %v4776, %v4428
  %v4841 = vsel %vm4807, %v4778, %v4430
  %v4843 = vsel %vm4807, %v4780, %v4432
  %v4845 = vsel %vm4807, %v4782, %v4434
  %v4847 = vsel %vm4807, %v4784, %v4436
  %v4849 = vsel %vm4807, %v4786, %v4438
  %v4851 = vsel %vm4807, %v4788, %v4440
  %v4853 = vsel %vm4807, %v4790, %v4442
  %v4855 = vsel %vm4807, %v4792, %v4444
  %v4857 = vsel %vm4807, %v4794, %v4446
  %v4859 = vsel %vm4807, %v4796, %v4448
  %v4861 = vsel %vm4807, %v4798, %v4450
  %v4863 = vsel %vm4807, %v4800, %v4452
  %v4865 = vsel %vm4807, %v4802, %v4454
  %v4867 = vsel %vm4807, %v4804, %v4456
  %v4869 = vsel %vm4807, %v4806, %v4458
  %vm4870 = vcmask 785408
  %v4872 = vsel %vm4870, %v4809, %v4462
  %v4875 = vsel %vm4870, %v4811, %v4464
  %v4878 = vsel %vm4870, %v4813, %v4466
  %v4881 = vsel %vm4870, %v4815, %v4468
  %v4884 = vsel %vm4870, %v4817, %v4470
  %v4887 = vsel %vm4870, %v4819, %v4472
  %v4890 = vsel %vm4870, %v4821, %v4474
  %v4893 = vsel %vm4870, %v4823, %v4476
  %v4896 = vsel %vm4870, %v4825, %v4478
  %v4899 = vsel %vm4870, %v4827, %v4480
  %v4902 = vsel %vm4870, %v4829, %v4482
  %v4905 = vsel %vm4870, %v4831, %v4484
  %v4908 = vsel %vm4870, %v4833, %v4486
  %v4911 = vsel %vm4870, %v4835, %v4488
  %v4914 = vsel %vm4870, %v4837, %v4490
  %v4917 = vsel %vm4870, %v4839, %v4492
  %v4920 = vsel %vm4870, %v4809, %v4494
  %v4923 = vsel %vm4870, %v4841, %v4496
  %v4926 = vsel %vm4870, %v4843, %v4498
  %v4929 = vsel %vm4870, %v4845, %v4500
  %v4932 = vsel %vm4870, %v4847, %v4502
  %v4935 = vsel %vm4870, %v4849, %v4504
  %v4938 = vsel %vm4870, %v4851, %v4506
  %v4941 = vsel %vm4870, %v4853, %v4508
  %v4944 = vsel %vm4870, %v4855, %v4510
  %v4947 = vsel %vm4870, %v4857, %v4512
  %v4950 = vsel %vm4870, %v4859, %v4514
  %v4953 = vsel %vm4870, %v4861, %v4516
  %v4956 = vsel %vm4870, %v4863, %v4518
  %v4959 = vsel %vm4870, %v4865, %v4520
  %v4962 = vsel %vm4870, %v4867, %v4522
  %v4965 = vsel %vm4870, %v4869, %v4524
  %v4969 = vsel %vm93, %v3836, %v4558
  %v4972 = vsel %vm93, %v3848, %v4560
  %v4975 = vsel %vm93, %v3860, %v4562
  %v4978 = vsel %vm93, %v3872, %v4564
  %v4981 = vsel %vm93, %v3884, %v4566
  %v4984 = vsel %vm93, %v3896, %v4568
  %v4987 = vsel %vm93, %v3908, %v4570
  %v4990 = vsel %vm93, %v3920, %v4572
  %v4993 = vsel %vm93, %v3932, %v4574
  %v4996 = vsel %vm93, %v3944, %v4576
  %v4999 = vsel %vm93, %v3956, %v4578
  %v5002 = vsel %vm93, %v3968, %v4580
  %v5005 = vsel %vm93, %v3980, %v4582
  %v5008 = vsel %vm93, %v3992, %v4584
  %v5011 = vsel %vm93, %v4004, %v4586
  %v5014 = vsel %vm93, %v4536, %v4588
  %v5017 = vsel %vm93, %v4016, %v4590
  %v5020 = vsel %vm93, %v4028, %v4592
  %v5023 = vsel %vm93, %v4040, %v4594
  %v5026 = vsel %vm93, %v4052, %v4596
  %v5029 = vsel %vm93, %v4064, %v4598
  %v5032 = vsel %vm93, %v4076, %v4600
  %v5035 = vsel %vm93, %v4088, %v4602
  %v5038 = vsel %vm93, %v4100, %v4604
  %v5041 = vsel %vm93, %v4112, %v4606
  %v5044 = vsel %vm93, %v4124, %v4608
  %v5047 = vsel %vm93, %v4136, %v4610
  %v5050 = vsel %vm93, %v4148, %v4612
  %v5053 = vsel %vm93, %v4160, %v4614
  %v5056 = vsel %vm93, %v4172, %v4616
  %v5059 = vsel %vm93, %v4184, %v4618
  %v5062 = vsel %vm93, %v4548, %v4620
  %v5064 = vsel %vm4807, %v4969, %v4622
  %v5066 = vsel %vm4807, %v4972, %v4624
  %v5068 = vsel %vm4807, %v4975, %v4626
  %v5070 = vsel %vm4807, %v4978, %v4628
  %v5072 = vsel %vm4807, %v4981, %v4630
  %v5074 = vsel %vm4807, %v4984, %v4632
  %v5076 = vsel %vm4807, %v4987, %v4634
  %v5078 = vsel %vm4807, %v4990, %v4636
  %v5080 = vsel %vm4807, %v4993, %v4638
  %v5082 = vsel %vm4807, %v4996, %v4640
  %v5084 = vsel %vm4807, %v4999, %v4642
  %v5086 = vsel %vm4807, %v5002, %v4644
  %v5088 = vsel %vm4807, %v5005, %v4646
  %v5090 = vsel %vm4807, %v5008, %v4648
  %v5092 = vsel %vm4807, %v5011, %v4650
  %v5094 = vsel %vm4807, %v5014, %v4652
  %v5096 = vsel %vm4807, %v5017, %v4654
  %v5098 = vsel %vm4807, %v5020, %v4656
  %v5100 = vsel %vm4807, %v5023, %v4658
  %v5102 = vsel %vm4807, %v5026, %v4660
  %v5104 = vsel %vm4807, %v5029, %v4662
  %v5106 = vsel %vm4807, %v5032, %v4664
  %v5108 = vsel %vm4807, %v5035, %v4666
  %v5110 = vsel %vm4807, %v5038, %v4668
  %v5112 = vsel %vm4807, %v5041, %v4670
  %v5114 = vsel %vm4807, %v5044, %v4672
  %v5116 = vsel %vm4807, %v5047, %v4674
  %v5118 = vsel %vm4807, %v5050, %v4676
  %v5120 = vsel %vm4807, %v5053, %v4678
  %v5122 = vsel %vm4807, %v5056, %v4680
  %v5124 = vsel %vm4807, %v5059, %v4682
  %v5125 = vsel %vm4807, %v5062, %v4652
  %v5127 = vsel %vm4870, %v5064, %v4684
  %v5130 = vsel %vm4870, %v5066, %v4686
  %v5133 = vsel %vm4870, %v5068, %v4688
  %v5136 = vsel %vm4870, %v5070, %v4690
  %v5139 = vsel %vm4870, %v5072, %v4692
  %v5142 = vsel %vm4870, %v5074, %v4694
  %v5145 = vsel %vm4870, %v5076, %v4696
  %v5148 = vsel %vm4870, %v5078, %v4698
  %v5151 = vsel %vm4870, %v5080, %v4700
  %v5154 = vsel %vm4870, %v5082, %v4702
  %v5157 = vsel %vm4870, %v5084, %v4704
  %v5160 = vsel %vm4870, %v5086, %v4706
  %v5163 = vsel %vm4870, %v5088, %v4708
  %v5166 = vsel %vm4870, %v5090, %v4710
  %v5169 = vsel %vm4870, %v5092, %v4712
  %v5172 = vsel %vm4870, %v5094, %v4714
  %v5175 = vsel %vm4870, %v5096, %v4716
  %v5178 = vsel %vm4870, %v5098, %v4718
  %v5181 = vsel %vm4870, %v5100, %v4720
  %v5184 = vsel %vm4870, %v5102, %v4722
  %v5187 = vsel %vm4870, %v5104, %v4724
  %v5190 = vsel %vm4870, %v5106, %v4726
  %v5193 = vsel %vm4870, %v5108, %v4728
  %v5196 = vsel %vm4870, %v5110, %v4730
  %v5199 = vsel %vm4870, %v5112, %v4732
  %v5202 = vsel %vm4870, %v5114, %v4734
  %v5205 = vsel %vm4870, %v5116, %v4736
  %v5208 = vsel %vm4870, %v5118, %v4738
  %v5211 = vsel %vm4870, %v5120, %v4740
  %v5214 = vsel %vm4870, %v5122, %v4742
  %v5217 = vsel %vm4870, %v5124, %v4744
  %v5219 = vsel %vm4870, %v5125, %v4714
  %v5222 = vlaneseq
  %v5223 = vshrl.u32 %v5222, 7
  %v5224 = vsub.s32 0, %v5223
  %v5225 = vrot.slane %v2992, %v5224
  %v5263 = vunpack.c.l.b16 %v2956
  %v5264 = vunpack.c.l.b16 %v2957
  %v5265 = vunpack.c.l.b16 %v2958
  %v5266 = vunpack.c.l.b16 %v2959
  %v5267 = vunpack.c.l.b16 %v2960
  %v5268 = vunpack.c.l.b16 %v2961
  %v5269 = vunpack.c.l.b16 %v2962
  %v5270 = vunpack.c.l.b16 %v2963
  %v5271 = vunpack.c.l.b16 %v2964
  %v5272 = vunpack.c.l.b16 %v2965
  %v5273 = vunpack.c.l.b16 %v2966
  %v5274 = vunpack.c.l.b16 %v2967
  %v5275 = vunpack.c.l.b16 %v2968
  %v5276 = vunpack.c.l.b16 %v2969
  %v5277 = vunpack.c.l.b16 %v2970
  %v5278 = vunpack.c.l.b16 %v2971
  %v5279 = vunpack.c.l.b16 %v2972
  %v5280 = vunpack.c.l.b16 %v2973
  %v5281 = vunpack.c.l.b16 %v2974
  %v5282 = vunpack.c.l.b16 %v2975
  %v5283 = vunpack.c.l.b16 %v2976
  %v5284 = vunpack.c.l.b16 %v2977
  %v5285 = vunpack.c.l.b16 %v2978
  %v5286 = vunpack.c.l.b16 %v2979
  %v5287 = vunpack.c.l.b16 %v2980
  %v5288 = vunpack.c.l.b16 %v2981
  %v5289 = vunpack.c.l.b16 %v2982
  %v5290 = vunpack.c.l.b16 %v2983
  %v5291 = vunpack.c.l.b16 %v2984
  %v5292 = vunpack.c.l.b16 %v2985
  %v5293 = vunpack.c.l.b16 %v2986
  %v5294 = vunpack.c.l.b16 %v2987
  %v5295 = vunpack.c.l.b16 %v2988
  %v5296 = vunpack.c.l.b16 %v2989
  %v5297 = vunpack.c.l.b16 %v2990
  %v5298 = vunpack.c.l.b16 %v2991
  %v5299 = vpack.c.b16 %v5264, %v5263
  %v5300 = vpack.c.b16 %v5266, %v5265
  %v5301 = vpack.c.b16 %v5268, %v5267
  %v5302 = vpack.c.b16 %v5270, %v5269
  %v5303 = vpack.c.b16 %v5272, %v5271
  %v5304 = vpack.c.b16 %v5274, %v5273
  %v5305 = vpack.c.b16 %v5276, %v5275
  %v5306 = vpack.c.b16 %v5278, %v5277
  %v5307 = vpack.c.b16 %v5280, %v5279
  %v5308 = vpack.c.b16 %v5282, %v5281
  %v5309 = vpack.c.b16 %v5284, %v5283
  %v5310 = vpack.c.b16 %v5286, %v5285
  %v5311 = vpack.c.b16 %v5288, %v5287
  %v5312 = vpack.c.b16 %v5290, %v5289
  %v5313 = vpack.c.b16 %v5292, %v5291
  %v5314 = vpack.c.b16 %v5294, %v5293
  %v5315 = vpack.c.b16 %v5296, %v5295
  %v5316 = vpack.c.b16 %v5298, %v5297
  %v5336 = vsel %vm93, %v4312, 0
  %v5339 = vsel %vm93, %v4315, 0
  %v5342 = vsel %vm93, %v4318, 0
  %v5345 = vsel %vm93, %v4321, 0
  %v5348 = vsel %vm93, %v4324, 0
  %v5351 = vsel %vm93, %v4327, 0
  %v5354 = vsel %vm93, %v4330, 0
  %v5357 = vsel %vm93, %v4333, 0
  %v5360 = vsel %vm93, %v4336, 0
  %v5363 = vsel %vm93, %v4339, 0
  %v5366 = vsel %vm93, %v4342, 0
  %v5369 = vsel %vm93, %v4345, 0
  %v5372 = vsel %vm93, %v4348, 0
  %v5375 = vsel %vm93, %v4351, 0
  %v5378 = vsel %vm93, %v4553, 0
  %v5381 = vsel %vm93, %v1500, 0
  %v5384 = vsel %vm93, %v4357, 0
  %v5387 = vsel %vm93, %v4360, 0
  %v5390 = vsel %vm93, %v4363, 0
  %v5393 = vsel %vm93, %v4366, 0
  %v5396 = vsel %vm93, %v4369, 0
  %v5399 = vsel %vm93, %v4372, 0
  %v5402 = vsel %vm93, %v4375, 0
  %v5405 = vsel %vm93, %v4378, 0
  %v5408 = vsel %vm93, %v4381, 0
  %v5411 = vsel %vm93, %v4384, 0
  %v5414 = vsel %vm93, %v4387, 0
  %v5417 = vsel %vm93, %v4390, 0
  %v5420 = vsel %vm93, %v4393, 0
  %v5423 = vsel %vm93, %v4396, 0
  %v5426 = vsel %vm93, %v4556, 0
  %5428 = vmatprep.subr.bf16.mxu0 0
  %5429 = vmatpush1.bf16.msra.mxu0 %v5299
  %5430 = vmatprep.subr.bf16.mxu0 0
  %5431 = vmatpush1.bf16.msra.mxu0 %v5300
  %5432 = vmatprep.subr.bf16.mxu0 0
  %5433 = vmatpush1.bf16.msra.mxu0 %v5301
  %5434 = vmatprep.subr.bf16.mxu0 0
  %5435 = vmatpush1.bf16.msra.mxu0 %v5302
  %5436 = vmatprep.subr.bf16.mxu0 0
  %5437 = vmatpush1.bf16.msra.mxu0 %v5303
  %5438 = vmatprep.subr.bf16.mxu0 0
  %5439 = vmatpush1.bf16.msra.mxu0 %v5304
  %5440 = vmatprep.subr.bf16.mxu0 0
  %5441 = vmatpush1.bf16.msra.mxu0 %v5305
  %5442 = vmatprep.subr.bf16.mxu0 0
  %5443 = vmatpush1.bf16.msra.mxu0 %v5306
  %5444 = vmatprep.subr.bf16.mxu0 0
  %5445 = vmatpush1.bf16.msra.mxu0 %v5307
  %5446 = vmatprep.subr.bf16.mxu0 0
  %5447 = vmatpush1.bf16.msra.mxu0 %v5308
  %5448 = vmatprep.subr.bf16.mxu0 0
  %5449 = vmatpush1.bf16.msra.mxu0 %v5309
  %5450 = vmatprep.subr.bf16.mxu0 0
  %5451 = vmatpush1.bf16.msra.mxu0 %v5310
  %5452 = vmatprep.subr.bf16.mxu0 0
  %5453 = vmatpush1.bf16.msra.mxu0 %v5311
  %5454 = vmatprep.subr.bf16.mxu0 0
  %5455 = vmatpush1.bf16.msra.mxu0 %v5312
  %5456 = vmatprep.subr.bf16.mxu0 0
  %5457 = vmatpush1.bf16.msra.mxu0 %v5313
  %5458 = vmatprep.subr.bf16.mxu0 0
  %5459 = vmatpush1.bf16.msra.mxu0 %v5314
  %5460 = vmatprep.mubr.bf16.mxu0 %v5127
  %5461 = vmatmul.mubr.bf16.gmra.mrb[0].mxu0 %v4872
  %v5462 = vpop.f32.mrb[0].mxu0
  %v5463 = vadd.f32 %v5225, %v5462
  %v5464 = vpop.f32.mrb[0].mxu0
  %v5465 = vpop.f32.mrb[0].mxu0
  %v5466 = vadd.f32 %v5225, %v5465
  %v5467 = vpop.f32.mrb[0].mxu0
  %5468 = vmatprep.mubr.bf16.mxu0 %v5130
  %5469 = vmatmul.mubr.bf16.gmra.mrb[0].mxu0 %v4875
  %v5470 = vpop.f32.mrb[0].mxu0
  %v5471 = vadd.f32 %v5225, %v5470
  %v5472 = vpop.f32.mrb[0].mxu0
  %v5473 = vpop.f32.mrb[0].mxu0
  %v5474 = vadd.f32 %v5225, %v5473
  %v5475 = vpop.f32.mrb[0].mxu0
  %5476 = vmatprep.mubr.bf16.mxu0 %v5133
  %5477 = vmatmul.mubr.bf16.gmra.mrb[0].mxu0 %v4878
  %v5478 = vpop.f32.mrb[0].mxu0
  %v5479 = vadd.f32 %v5225, %v5478
  %v5480 = vpop.f32.mrb[0].mxu0
  %v5481 = vpop.f32.mrb[0].mxu0
  %v5482 = vadd.f32 %v5225, %v5481
  %v5483 = vpop.f32.mrb[0].mxu0
  %5484 = vmatprep.mubr.bf16.mxu0 %v5136
  %5485 = vmatmul.mubr.bf16.gmra.mrb[0].mxu0 %v4881
  %v5486 = vpop.f32.mrb[0].mxu0
  %v5487 = vadd.f32 %v5225, %v5486
  %v5488 = vpop.f32.mrb[0].mxu0
  %v5489 = vpop.f32.mrb[0].mxu0
  %v5490 = vadd.f32 %v5225, %v5489
  %v5491 = vpop.f32.mrb[0].mxu0
  %5492 = vmatprep.mubr.bf16.mxu0 %v5139
  %5493 = vmatmul.mubr.bf16.gmra.mrb[0].mxu0 %v4884
  %v5494 = vpop.f32.mrb[0].mxu0
  %v5495 = vadd.f32 %v5225, %v5494
  %v5496 = vpop.f32.mrb[0].mxu0
  %v5497 = vpop.f32.mrb[0].mxu0
  %v5498 = vadd.f32 %v5225, %v5497
  %v5499 = vpop.f32.mrb[0].mxu0
  %5500 = vmatprep.mubr.bf16.mxu0 %v5142
  %5501 = vmatmul.mubr.bf16.gmra.mrb[0].mxu0 %v4887
  %v5502 = vpop.f32.mrb[0].mxu0
  %v5503 = vadd.f32 %v5225, %v5502
  %v5504 = vpop.f32.mrb[0].mxu0
  %v5505 = vpop.f32.mrb[0].mxu0
  %v5506 = vadd.f32 %v5225, %v5505
  %v5507 = vpop.f32.mrb[0].mxu0
  %5508 = vmatprep.mubr.bf16.mxu0 %v5145
  %5509 = vmatmul.mubr.bf16.gmra.mrb[0].mxu0 %v4890
  %v5510 = vpop.f32.mrb[0].mxu0
  %v5511 = vadd.f32 %v5225, %v5510
  %v5512 = vpop.f32.mrb[0].mxu0
  %v5513 = vpop.f32.mrb[0].mxu0
  %v5514 = vadd.f32 %v5225, %v5513
  %v5515 = vpop.f32.mrb[0].mxu0
  %5516 = vmatprep.mubr.bf16.mxu0 %v5148
  %5517 = vmatmul.mubr.bf16.gmra.mrb[0].mxu0 %v4893
  %v5518 = vpop.f32.mrb[0].mxu0
  %v5519 = vadd.f32 %v5225, %v5518
  %v5520 = vpop.f32.mrb[0].mxu0
  %v5521 = vpop.f32.mrb[0].mxu0
  %v5522 = vadd.f32 %v5225, %v5521
  %v5523 = vpop.f32.mrb[0].mxu0
  %5524 = vmatprep.mubr.bf16.mxu0 %v5151
  %5525 = vmatmul.mubr.bf16.gmra.mrb[0].mxu0 %v4896
  %v5526 = vpop.f32.mrb[0].mxu0
  %v5527 = vadd.f32 %v5225, %v5526
  %v5528 = vpop.f32.mrb[0].mxu0
  %v5529 = vpop.f32.mrb[0].mxu0
  %v5530 = vadd.f32 %v5225, %v5529
  %v5531 = vpop.f32.mrb[0].mxu0
  %5532 = vmatprep.mubr.bf16.mxu0 %v5154
  %5533 = vmatmul.mubr.bf16.gmra.mrb[0].mxu0 %v4899
  %v5534 = vpop.f32.mrb[0].mxu0
  %v5535 = vadd.f32 %v5225, %v5534
  %v5536 = vpop.f32.mrb[0].mxu0
  %v5537 = vpop.f32.mrb[0].mxu0
  %v5538 = vadd.f32 %v5225, %v5537
  %v5539 = vpop.f32.mrb[0].mxu0
  %5540 = vmatprep.mubr.bf16.mxu0 %v5157
  %5541 = vmatmul.mubr.bf16.gmra.mrb[0].mxu0 %v4902
  %v5542 = vpop.f32.mrb[0].mxu0
  %v5543 = vadd.f32 %v5225, %v5542
  %v5544 = vpop.f32.mrb[0].mxu0
  %v5545 = vpop.f32.mrb[0].mxu0
  %v5546 = vadd.f32 %v5225, %v5545
  %v5547 = vpop.f32.mrb[0].mxu0
  %5548 = vmatprep.mubr.bf16.mxu0 %v5160
  %5549 = vmatmul.mubr.bf16.gmra.mrb[0].mxu0 %v4905
  %v5550 = vpop.f32.mrb[0].mxu0
  %v5551 = vadd.f32 %v5225, %v5550
  %v5552 = vpop.f32.mrb[0].mxu0
  %v5553 = vpop.f32.mrb[0].mxu0
  %v5554 = vadd.f32 %v5225, %v5553
  %v5555 = vpop.f32.mrb[0].mxu0
  %5556 = vmatprep.mubr.bf16.mxu0 %v5163
  %5557 = vmatmul.mubr.bf16.gmra.mrb[0].mxu0 %v4908
  %v5558 = vpop.f32.mrb[0].mxu0
  %v5559 = vadd.f32 %v5225, %v5558
  %v5560 = vpop.f32.mrb[0].mxu0
  %v5561 = vpop.f32.mrb[0].mxu0
  %v5562 = vadd.f32 %v5225, %v5561
  %v5563 = vpop.f32.mrb[0].mxu0
  %5564 = vmatprep.mubr.bf16.mxu0 %v5166
  %5565 = vmatmul.mubr.bf16.gmra.mrb[0].mxu0 %v4911
  %v5566 = vpop.f32.mrb[0].mxu0
  %v5567 = vadd.f32 %v5225, %v5566
  %v5568 = vpop.f32.mrb[0].mxu0
  %v5569 = vpop.f32.mrb[0].mxu0
  %v5570 = vadd.f32 %v5225, %v5569
  %v5571 = vpop.f32.mrb[0].mxu0
  %5572 = vmatprep.mubr.bf16.mxu0 %v5169
  %5573 = vmatmul.mubr.bf16.gmra.mrb[0].mxu0 %v4914
  %v5574 = vpop.f32.mrb[0].mxu0
  %v5575 = vadd.f32 %v5225, %v5574
  %v5576 = vpop.f32.mrb[0].mxu0
  %v5577 = vpop.f32.mrb[0].mxu0
  %v5578 = vadd.f32 %v5225, %v5577
  %v5579 = vpop.f32.mrb[0].mxu0
  %5580 = vmatprep.mubr.bf16.mxu0 %v5172
  %5581 = vmatmul.mubr.bf16.gmra.mrb[0].mxu0 %v4917
  %v5582 = vpop.f32.mrb[0].mxu0
  %v5583 = vadd.f32 %v5225, %v5582
  %v5584 = vpop.f32.mrb[0].mxu0
  %v5585 = vpop.f32.mrb[0].mxu0
  %v5586 = vadd.f32 %v5225, %v5585
  %v5587 = vpop.f32.mrb[0].mxu0
  %5588 = vmatprep.mubr.bf16.mxu0 %v5175
  %5589 = vmatmul.mubr.bf16.gmra.mrb[0].mxu0 %v4920
  %v5590 = vpop.f32.mrb[0].mxu0
  %v5591 = vadd.f32 %v5225, %v5590
  %v5592 = vpop.f32.mrb[0].mxu0
  %v5593 = vpop.f32.mrb[0].mxu0
  %v5594 = vadd.f32 %v5225, %v5593
  %v5595 = vpop.f32.mrb[0].mxu0
  %5596 = vmatprep.mubr.bf16.mxu0 %v5178
  %5597 = vmatmul.mubr.bf16.gmra.mrb[0].mxu0 %v4923
  %v5598 = vpop.f32.mrb[0].mxu0
  %v5599 = vadd.f32 %v5225, %v5598
  %v5600 = vpop.f32.mrb[0].mxu0
  %v5601 = vpop.f32.mrb[0].mxu0
  %v5602 = vadd.f32 %v5225, %v5601
  %v5603 = vpop.f32.mrb[0].mxu0
  %5604 = vmatprep.mubr.bf16.mxu0 %v5181
  %5605 = vmatmul.mubr.bf16.gmra.mrb[0].mxu0 %v4926
  %v5606 = vpop.f32.mrb[0].mxu0
  %v5607 = vadd.f32 %v5225, %v5606
  %v5608 = vpop.f32.mrb[0].mxu0
  %v5609 = vpop.f32.mrb[0].mxu0
  %v5610 = vadd.f32 %v5225, %v5609
  %v5611 = vpop.f32.mrb[0].mxu0
  %5612 = vmatprep.mubr.bf16.mxu0 %v5184
  %5613 = vmatmul.mubr.bf16.gmra.mrb[0].mxu0 %v4929
  %v5614 = vpop.f32.mrb[0].mxu0
  %v5615 = vadd.f32 %v5225, %v5614
  %v5616 = vpop.f32.mrb[0].mxu0
  %v5617 = vpop.f32.mrb[0].mxu0
  %v5618 = vadd.f32 %v5225, %v5617
  %v5619 = vpop.f32.mrb[0].mxu0
  %5620 = vmatprep.mubr.bf16.mxu0 %v5187
  %5621 = vmatmul.mubr.bf16.gmra.mrb[0].mxu0 %v4932
  %v5622 = vpop.f32.mrb[0].mxu0
  %v5623 = vadd.f32 %v5225, %v5622
  %v5624 = vpop.f32.mrb[0].mxu0
  %v5625 = vpop.f32.mrb[0].mxu0
  %v5626 = vadd.f32 %v5225, %v5625
  %v5627 = vpop.f32.mrb[0].mxu0
  %5628 = vmatprep.mubr.bf16.mxu0 %v5190
  %5629 = vmatmul.mubr.bf16.gmra.mrb[0].mxu0 %v4935
  %v5630 = vpop.f32.mrb[0].mxu0
  %v5631 = vadd.f32 %v5225, %v5630
  %v5632 = vpop.f32.mrb[0].mxu0
  %v5633 = vpop.f32.mrb[0].mxu0
  %v5634 = vadd.f32 %v5225, %v5633
  %v5635 = vpop.f32.mrb[0].mxu0
  %5636 = vmatprep.mubr.bf16.mxu0 %v5193
  %5637 = vmatmul.mubr.bf16.gmra.mrb[0].mxu0 %v4938
  %v5638 = vpop.f32.mrb[0].mxu0
  %v5639 = vadd.f32 %v5225, %v5638
  %v5640 = vpop.f32.mrb[0].mxu0
  %v5641 = vpop.f32.mrb[0].mxu0
  %v5642 = vadd.f32 %v5225, %v5641
  %v5643 = vpop.f32.mrb[0].mxu0
  %5644 = vmatprep.mubr.bf16.mxu0 %v5196
  %5645 = vmatmul.mubr.bf16.gmra.mrb[0].mxu0 %v4941
  %v5646 = vpop.f32.mrb[0].mxu0
  %v5647 = vadd.f32 %v5225, %v5646
  %v5648 = vpop.f32.mrb[0].mxu0
  %v5649 = vpop.f32.mrb[0].mxu0
  %v5650 = vadd.f32 %v5225, %v5649
  %v5651 = vpop.f32.mrb[0].mxu0
  %5652 = vmatprep.mubr.bf16.mxu0 %v5199
  %5653 = vmatmul.mubr.bf16.gmra.mrb[0].mxu0 %v4944
  %v5654 = vpop.f32.mrb[0].mxu0
  %v5655 = vadd.f32 %v5225, %v5654
  %v5656 = vpop.f32.mrb[0].mxu0
  %v5657 = vpop.f32.mrb[0].mxu0
  %v5658 = vadd.f32 %v5225, %v5657
  %v5659 = vpop.f32.mrb[0].mxu0
  %5660 = vmatprep.mubr.bf16.mxu0 %v5202
  %5661 = vmatmul.mubr.bf16.gmra.mrb[0].mxu0 %v4947
  %v5662 = vpop.f32.mrb[0].mxu0
  %v5663 = vadd.f32 %v5225, %v5662
  %v5664 = vpop.f32.mrb[0].mxu0
  %v5665 = vpop.f32.mrb[0].mxu0
  %v5666 = vadd.f32 %v5225, %v5665
  %v5667 = vpop.f32.mrb[0].mxu0
  %5668 = vmatprep.mubr.bf16.mxu0 %v5205
  %5669 = vmatmul.mubr.bf16.gmra.mrb[0].mxu0 %v4950
  %v5670 = vpop.f32.mrb[0].mxu0
  %v5671 = vadd.f32 %v5225, %v5670
  %v5672 = vpop.f32.mrb[0].mxu0
  %v5673 = vpop.f32.mrb[0].mxu0
  %v5674 = vadd.f32 %v5225, %v5673
  %v5675 = vpop.f32.mrb[0].mxu0
  %5676 = vmatprep.mubr.bf16.mxu0 %v5208
  %5677 = vmatmul.mubr.bf16.gmra.mrb[0].mxu0 %v4953
  %v5678 = vpop.f32.mrb[0].mxu0
  %v5679 = vadd.f32 %v5225, %v5678
  %v5680 = vpop.f32.mrb[0].mxu0
  %v5681 = vpop.f32.mrb[0].mxu0
  %v5682 = vadd.f32 %v5225, %v5681
  %v5683 = vpop.f32.mrb[0].mxu0
  %5684 = vmatprep.mubr.bf16.mxu0 %v5211
  %5685 = vmatmul.mubr.bf16.gmra.mrb[0].mxu0 %v4956
  %v5686 = vpop.f32.mrb[0].mxu0
  %v5687 = vadd.f32 %v5225, %v5686
  %v5688 = vpop.f32.mrb[0].mxu0
  %v5689 = vpop.f32.mrb[0].mxu0
  %v5690 = vadd.f32 %v5225, %v5689
  %v5691 = vpop.f32.mrb[0].mxu0
  %5692 = vmatprep.mubr.bf16.mxu0 %v5214
  %5693 = vmatmul.mubr.bf16.gmra.mrb[0].mxu0 %v4959
  %v5694 = vpop.f32.mrb[0].mxu0
  %v5695 = vadd.f32 %v5225, %v5694
  %v5696 = vpop.f32.mrb[0].mxu0
  %v5697 = vpop.f32.mrb[0].mxu0
  %v5698 = vadd.f32 %v5225, %v5697
  %v5699 = vpop.f32.mrb[0].mxu0
  %5700 = vmatprep.mubr.bf16.mxu0 %v5217
  %5701 = vmatmul.mubr.bf16.gmra.mrb[0].mxu0 %v4962
  %v5702 = vpop.f32.mrb[0].mxu0
  %v5703 = vadd.f32 %v5225, %v5702
  %v5704 = vpop.f32.mrb[0].mxu0
  %v5705 = vpop.f32.mrb[0].mxu0
  %v5706 = vadd.f32 %v5225, %v5705
  %v5707 = vpop.f32.mrb[0].mxu0
  %5708 = vmatprep.mubr.bf16.mxu0 %v5219
  %5709 = vmatmul.mubr.bf16.gmra.mrb[0].mxu0 %v4965
  %v5710 = vpop.f32.mrb[0].mxu0
  %v5711 = vadd.f32 %v5225, %v5710
  %v5712 = vpop.f32.mrb[0].mxu0
  %v5713 = vpop.f32.mrb[0].mxu0
  %v5714 = vadd.f32 %v5225, %v5713
  %v5715 = vpop.f32.mrb[0].mxu0
  %5716 = vdwg.mxu0
  %5717 = vmatprep.subr.bf16.mxu0 0
  %5718 = vmatpush1.bf16.msra.mxu0 %v5315
  %5719 = vmatprep.subr.bf16.mxu0 0
  %5720 = vmatpush1.bf16.msra.mxu0 %v5316
  %5721 = vmatprep.subr.bf16.mxu0 0
  %5722 = vmatpush1.bf16.msra.mxu0 0
  %5723 = vmatprep.subr.bf16.mxu0 0
  %5724 = vmatpush1.bf16.msra.mxu0 0
  %5725 = vmatprep.subr.bf16.mxu0 0
  %5726 = vmatpush1.bf16.msra.mxu0 0
  %5727 = vmatprep.subr.bf16.mxu0 0
  %5728 = vmatpush1.bf16.msra.mxu0 0
  %5729 = vmatprep.subr.bf16.mxu0 0
  %5730 = vmatpush1.bf16.msra.mxu0 0
  %5731 = vmatprep.subr.bf16.mxu0 0
  %5732 = vmatpush1.bf16.msra.mxu0 0
  %5733 = vmatprep.subr.bf16.mxu0 0
  %5734 = vmatpush1.bf16.msra.mxu0 0
  %5735 = vmatprep.subr.bf16.mxu0 0
  %5736 = vmatpush1.bf16.msra.mxu0 0
  %5737 = vmatprep.subr.bf16.mxu0 0
  %5738 = vmatpush1.bf16.msra.mxu0 0
  %5739 = vmatprep.subr.bf16.mxu0 0
  %5740 = vmatpush1.bf16.msra.mxu0 0
  %5741 = vmatprep.subr.bf16.mxu0 0
  %5742 = vmatpush1.bf16.msra.mxu0 0
  %5743 = vmatprep.subr.bf16.mxu0 0
  %5744 = vmatpush1.bf16.msra.mxu0 0
  %5745 = vmatprep.subr.bf16.mxu0 0
  %5746 = vmatpush1.bf16.msra.mxu0 0
  %5747 = vmatprep.subr.bf16.mxu0 0
  %5748 = vmatpush1.bf16.msra.mxu0 0
  %5749 = vmatprep.mubr.bf16.mxu0 0
  %5750 = vmatmul.mubr.bf16.gmra.mrb[0].mxu0 %v5336
  %v5751 = vpop.f32.mrb[0].mxu0
  %v5752 = vadd.f32 %v5463, %v5751
  %v5753 = vpop.f32.mrb[0].mxu0
  %v5754 = vpop.f32.mrb[0].mxu0
  %v5755 = vadd.f32 %v5466, %v5754
  %v5756 = vpop.f32.mrb[0].mxu0
  %5757 = vmatprep.mubr.bf16.mxu0 0
  %5758 = vmatmul.mubr.bf16.gmra.mrb[0].mxu0 %v5339
  %v5759 = vpop.f32.mrb[0].mxu0
  %v5760 = vadd.f32 %v5471, %v5759
  %v5761 = vpop.f32.mrb[0].mxu0
  %v5762 = vpop.f32.mrb[0].mxu0
  %v5763 = vadd.f32 %v5474, %v5762
  %v5764 = vpop.f32.mrb[0].mxu0
  %5765 = vmatprep.mubr.bf16.mxu0 0
  %5766 = vmatmul.mubr.bf16.gmra.mrb[0].mxu0 %v5342
  %v5767 = vpop.f32.mrb[0].mxu0
  %v5768 = vadd.f32 %v5479, %v5767
  %v5769 = vpop.f32.mrb[0].mxu0
  %v5770 = vpop.f32.mrb[0].mxu0
  %v5771 = vadd.f32 %v5482, %v5770
  %v5772 = vpop.f32.mrb[0].mxu0
  %5773 = vmatprep.mubr.bf16.mxu0 0
  %5774 = vmatmul.mubr.bf16.gmra.mrb[0].mxu0 %v5345
  %v5775 = vpop.f32.mrb[0].mxu0
  %v5776 = vadd.f32 %v5487, %v5775
  %v5777 = vpop.f32.mrb[0].mxu0
  %v5778 = vpop.f32.mrb[0].mxu0
  %v5779 = vadd.f32 %v5490, %v5778
  %v5780 = vpop.f32.mrb[0].mxu0
  %5781 = vmatprep.mubr.bf16.mxu0 0
  %5782 = vmatmul.mubr.bf16.gmra.mrb[0].mxu0 %v5348
  %v5783 = vpop.f32.mrb[0].mxu0
  %v5784 = vadd.f32 %v5495, %v5783
  %v5785 = vpop.f32.mrb[0].mxu0
  %v5786 = vpop.f32.mrb[0].mxu0
  %v5787 = vadd.f32 %v5498, %v5786
  %v5788 = vpop.f32.mrb[0].mxu0
  %5789 = vmatprep.mubr.bf16.mxu0 0
  %5790 = vmatmul.mubr.bf16.gmra.mrb[0].mxu0 %v5351
  %v5791 = vpop.f32.mrb[0].mxu0
  %v5792 = vadd.f32 %v5503, %v5791
  %v5793 = vpop.f32.mrb[0].mxu0
  %v5794 = vpop.f32.mrb[0].mxu0
  %v5795 = vadd.f32 %v5506, %v5794
  %v5796 = vpop.f32.mrb[0].mxu0
  %5797 = vmatprep.mubr.bf16.mxu0 0
  %5798 = vmatmul.mubr.bf16.gmra.mrb[0].mxu0 %v5354
  %v5799 = vpop.f32.mrb[0].mxu0
  %v5800 = vadd.f32 %v5511, %v5799
  %v5801 = vpop.f32.mrb[0].mxu0
  %v5802 = vpop.f32.mrb[0].mxu0
  %v5803 = vadd.f32 %v5514, %v5802
  %v5804 = vpop.f32.mrb[0].mxu0
  %5805 = vmatprep.mubr.bf16.mxu0 0
  %5806 = vmatmul.mubr.bf16.gmra.mrb[0].mxu0 %v5357
  %v5807 = vpop.f32.mrb[0].mxu0
  %v5808 = vadd.f32 %v5519, %v5807
  %v5809 = vpop.f32.mrb[0].mxu0
  %v5810 = vpop.f32.mrb[0].mxu0
  %v5811 = vadd.f32 %v5522, %v5810
  %v5812 = vpop.f32.mrb[0].mxu0
  %5813 = vmatprep.mubr.bf16.mxu0 0
  %5814 = vmatmul.mubr.bf16.gmra.mrb[0].mxu0 %v5360
  %v5815 = vpop.f32.mrb[0].mxu0
  %v5816 = vadd.f32 %v5527, %v5815
  %v5817 = vpop.f32.mrb[0].mxu0
  %v5818 = vpop.f32.mrb[0].mxu0
  %v5819 = vadd.f32 %v5530, %v5818
  %v5820 = vpop.f32.mrb[0].mxu0
  %5821 = vmatprep.mubr.bf16.mxu0 0
  %5822 = vmatmul.mubr.bf16.gmra.mrb[0].mxu0 %v5363
  %v5823 = vpop.f32.mrb[0].mxu0
  %v5824 = vadd.f32 %v5535, %v5823
  %v5825 = vpop.f32.mrb[0].mxu0
  %v5826 = vpop.f32.mrb[0].mxu0
  %v5827 = vadd.f32 %v5538, %v5826
  %v5828 = vpop.f32.mrb[0].mxu0
  %5829 = vmatprep.mubr.bf16.mxu0 0
  %5830 = vmatmul.mubr.bf16.gmra.mrb[0].mxu0 %v5366
  %v5831 = vpop.f32.mrb[0].mxu0
  %v5832 = vadd.f32 %v5543, %v5831
  %v5833 = vpop.f32.mrb[0].mxu0
  %v5834 = vpop.f32.mrb[0].mxu0
  %v5835 = vadd.f32 %v5546, %v5834
  %v5836 = vpop.f32.mrb[0].mxu0
  %5837 = vmatprep.mubr.bf16.mxu0 0
  %5838 = vmatmul.mubr.bf16.gmra.mrb[0].mxu0 %v5369
  %v5839 = vpop.f32.mrb[0].mxu0
  %v5840 = vadd.f32 %v5551, %v5839
  %v5841 = vpop.f32.mrb[0].mxu0
  %v5842 = vpop.f32.mrb[0].mxu0
  %v5843 = vadd.f32 %v5554, %v5842
  %v5844 = vpop.f32.mrb[0].mxu0
  %5845 = vmatprep.mubr.bf16.mxu0 0
  %5846 = vmatmul.mubr.bf16.gmra.mrb[0].mxu0 %v5372
  %v5847 = vpop.f32.mrb[0].mxu0
  %v5848 = vadd.f32 %v5559, %v5847
  %v5849 = vpop.f32.mrb[0].mxu0
  %v5850 = vpop.f32.mrb[0].mxu0
  %v5851 = vadd.f32 %v5562, %v5850
  %v5852 = vpop.f32.mrb[0].mxu0
  %5853 = vmatprep.mubr.bf16.mxu0 0
  %5854 = vmatmul.mubr.bf16.gmra.mrb[0].mxu0 %v5375
  %v5855 = vpop.f32.mrb[0].mxu0
  %v5856 = vadd.f32 %v5567, %v5855
  %v5857 = vpop.f32.mrb[0].mxu0
  %v5858 = vpop.f32.mrb[0].mxu0
  %v5859 = vadd.f32 %v5570, %v5858
  %v5860 = vpop.f32.mrb[0].mxu0
  %5861 = vmatprep.mubr.bf16.mxu0 0
  %5862 = vmatmul.mubr.bf16.gmra.mrb[0].mxu0 %v5378
  %v5863 = vpop.f32.mrb[0].mxu0
  %v5864 = vadd.f32 %v5575, %v5863
  %v5865 = vpop.f32.mrb[0].mxu0
  %v5866 = vpop.f32.mrb[0].mxu0
  %v5867 = vadd.f32 %v5578, %v5866
  %v5868 = vpop.f32.mrb[0].mxu0
  %5869 = vmatprep.mubr.bf16.mxu0 0
  %5870 = vmatmul.mubr.bf16.gmra.mrb[0].mxu0 %v5381
  %v5871 = vpop.f32.mrb[0].mxu0
  %v5872 = vadd.f32 %v5583, %v5871
  %v5873 = vpop.f32.mrb[0].mxu0
  %v5874 = vpop.f32.mrb[0].mxu0
  %v5875 = vadd.f32 %v5586, %v5874
  %v5876 = vpop.f32.mrb[0].mxu0
  %5877 = vmatprep.mubr.bf16.mxu0 0
  %5878 = vmatmul.mubr.bf16.gmra.mrb[0].mxu0 %v5384
  %v5879 = vpop.f32.mrb[0].mxu0
  %v5880 = vadd.f32 %v5591, %v5879
  %v5881 = vpop.f32.mrb[0].mxu0
  %v5882 = vpop.f32.mrb[0].mxu0
  %v5883 = vadd.f32 %v5594, %v5882
  %v5884 = vpop.f32.mrb[0].mxu0
  %5885 = vmatprep.mubr.bf16.mxu0 0
  %5886 = vmatmul.mubr.bf16.gmra.mrb[0].mxu0 %v5387
  %v5887 = vpop.f32.mrb[0].mxu0
  %v5888 = vadd.f32 %v5599, %v5887
  %v5889 = vpop.f32.mrb[0].mxu0
  %v5890 = vpop.f32.mrb[0].mxu0
  %v5891 = vadd.f32 %v5602, %v5890
  %v5892 = vpop.f32.mrb[0].mxu0
  %5893 = vmatprep.mubr.bf16.mxu0 0
  %5894 = vmatmul.mubr.bf16.gmra.mrb[0].mxu0 %v5390
  %v5895 = vpop.f32.mrb[0].mxu0
  %v5896 = vadd.f32 %v5607, %v5895
  %v5897 = vpop.f32.mrb[0].mxu0
  %v5898 = vpop.f32.mrb[0].mxu0
  %v5899 = vadd.f32 %v5610, %v5898
  %v5900 = vpop.f32.mrb[0].mxu0
  %5901 = vmatprep.mubr.bf16.mxu0 0
  %5902 = vmatmul.mubr.bf16.gmra.mrb[0].mxu0 %v5393
  %v5903 = vpop.f32.mrb[0].mxu0
  %v5904 = vadd.f32 %v5615, %v5903
  %v5905 = vpop.f32.mrb[0].mxu0
  %v5906 = vpop.f32.mrb[0].mxu0
  %v5907 = vadd.f32 %v5618, %v5906
  %v5908 = vpop.f32.mrb[0].mxu0
  %5909 = vmatprep.mubr.bf16.mxu0 0
  %5910 = vmatmul.mubr.bf16.gmra.mrb[0].mxu0 %v5396
  %v5911 = vpop.f32.mrb[0].mxu0
  %v5912 = vadd.f32 %v5623, %v5911
  %v5913 = vpop.f32.mrb[0].mxu0
  %v5914 = vpop.f32.mrb[0].mxu0
  %v5915 = vadd.f32 %v5626, %v5914
  %v5916 = vpop.f32.mrb[0].mxu0
  %5917 = vmatprep.mubr.bf16.mxu0 0
  %5918 = vmatmul.mubr.bf16.gmra.mrb[0].mxu0 %v5399
  %v5919 = vpop.f32.mrb[0].mxu0
  %v5920 = vadd.f32 %v5631, %v5919
  %v5921 = vpop.f32.mrb[0].mxu0
  %v5922 = vpop.f32.mrb[0].mxu0
  %v5923 = vadd.f32 %v5634, %v5922
  %v5924 = vpop.f32.mrb[0].mxu0
  %5925 = vmatprep.mubr.bf16.mxu0 0
  %5926 = vmatmul.mubr.bf16.gmra.mrb[0].mxu0 %v5402
  %v5927 = vpop.f32.mrb[0].mxu0
  %v5928 = vadd.f32 %v5639, %v5927
  %v5929 = vpop.f32.mrb[0].mxu0
  %v5930 = vpop.f32.mrb[0].mxu0
  %v5931 = vadd.f32 %v5642, %v5930
  %v5932 = vpop.f32.mrb[0].mxu0
  %5933 = vmatprep.mubr.bf16.mxu0 0
  %5934 = vmatmul.mubr.bf16.gmra.mrb[0].mxu0 %v5405
  %v5935 = vpop.f32.mrb[0].mxu0
  %v5936 = vadd.f32 %v5647, %v5935
  %v5937 = vpop.f32.mrb[0].mxu0
  %v5938 = vpop.f32.mrb[0].mxu0
  %v5939 = vadd.f32 %v5650, %v5938
  %v5940 = vpop.f32.mrb[0].mxu0
  %5941 = vmatprep.mubr.bf16.mxu0 0
  %5942 = vmatmul.mubr.bf16.gmra.mrb[0].mxu0 %v5408
  %v5943 = vpop.f32.mrb[0].mxu0
  %v5944 = vadd.f32 %v5655, %v5943
  %v5945 = vpop.f32.mrb[0].mxu0
  %v5946 = vpop.f32.mrb[0].mxu0
  %v5947 = vadd.f32 %v5658, %v5946
  %v5948 = vpop.f32.mrb[0].mxu0
  %5949 = vmatprep.mubr.bf16.mxu0 0
  %5950 = vmatmul.mubr.bf16.gmra.mrb[0].mxu0 %v5411
  %v5951 = vpop.f32.mrb[0].mxu0
  %v5952 = vadd.f32 %v5663, %v5951
  %v5953 = vpop.f32.mrb[0].mxu0
  %v5954 = vpop.f32.mrb[0].mxu0
  %v5955 = vadd.f32 %v5666, %v5954
  %v5956 = vpop.f32.mrb[0].mxu0
  %5957 = vmatprep.mubr.bf16.mxu0 0
  %5958 = vmatmul.mubr.bf16.gmra.mrb[0].mxu0 %v5414
  %v5959 = vpop.f32.mrb[0].mxu0
  %v5960 = vadd.f32 %v5671, %v5959
  %v5961 = vpop.f32.mrb[0].mxu0
  %v5962 = vpop.f32.mrb[0].mxu0
  %v5963 = vadd.f32 %v5674, %v5962
  %v5964 = vpop.f32.mrb[0].mxu0
  %5965 = vmatprep.mubr.bf16.mxu0 0
  %5966 = vmatmul.mubr.bf16.gmra.mrb[0].mxu0 %v5417
  %v5967 = vpop.f32.mrb[0].mxu0
  %v5968 = vadd.f32 %v5679, %v5967
  %v5969 = vpop.f32.mrb[0].mxu0
  %v5970 = vpop.f32.mrb[0].mxu0
  %v5971 = vadd.f32 %v5682, %v5970
  %v5972 = vpop.f32.mrb[0].mxu0
  %5973 = vmatprep.mubr.bf16.mxu0 0
  %5974 = vmatmul.mubr.bf16.gmra.mrb[0].mxu0 %v5420
  %v5975 = vpop.f32.mrb[0].mxu0
  %v5976 = vadd.f32 %v5687, %v5975
  %v5977 = vpop.f32.mrb[0].mxu0
  %v5978 = vpop.f32.mrb[0].mxu0
  %v5979 = vadd.f32 %v5690, %v5978
  %v5980 = vpop.f32.mrb[0].mxu0
  %5981 = vmatprep.mubr.bf16.mxu0 0
  %5982 = vmatmul.mubr.bf16.gmra.mrb[0].mxu0 %v5423
  %v5983 = vpop.f32.mrb[0].mxu0
  %v5984 = vadd.f32 %v5695, %v5983
  %v5985 = vpop.f32.mrb[0].mxu0
  %v5986 = vpop.f32.mrb[0].mxu0
  %v5987 = vadd.f32 %v5698, %v5986
  %v5988 = vpop.f32.mrb[0].mxu0
  %5989 = vmatprep.mubr.bf16.mxu0 0
  %5990 = vmatmul.mubr.bf16.gmra.mrb[0].mxu0 %v5426
  %v5991 = vpop.f32.mrb[0].mxu0
  %v5992 = vadd.f32 %v5703, %v5991
  %v5993 = vpop.f32.mrb[0].mxu0
  %v5994 = vpop.f32.mrb[0].mxu0
  %v5995 = vadd.f32 %v5706, %v5994
  %v5996 = vpop.f32.mrb[0].mxu0
  %5997 = vmatprep.mubr.bf16.mxu0 0
  %5998 = vmatmul.mubr.bf16.gmra.mrb[0].mxu0 %v5381
  %v5999 = vpop.f32.mrb[0].mxu0
  %v6000 = vadd.f32 %v5711, %v5999
  %v6001 = vpop.f32.mrb[0].mxu0
  %v6002 = vpop.f32.mrb[0].mxu0
  %v6003 = vadd.f32 %v5714, %v6002
  %v6004 = vpop.f32.mrb[0].mxu0
  %6005 = vdwg.mxu0
  %v6008 = vunpack.c.l.s4 1966171168
  %v6009 = vunpack.c.0.s8 %v6008
  %v6010 = vlaneseq
  %v6011 = vshrl.u32 %v6010, 7
  %v6012 = vsub.s32 %v6009, %v6011
  %v6013 = vrot.slane %v531, %v6012
  %v6014 = vcombine.high %v6013, %v6013
  %v6016 = vunpack.c.l.s4 1966171168
  %v6017 = vunpack.c.0.s8 %v6016
  %v6018 = vlaneseq
  %v6019 = vshrl.u32 %v6018, 7
  %v6020 = vsub.s32 %v6017, %v6019
  %v6021 = vrot.slane %v6013, %v6020
  %v6023 = vunpack.c.l.s4 1966171168
  %v6024 = vunpack.c.0.s8 %v6023
  %v6025 = vlaneseq
  %v6026 = vshrl.u32 %v6025, 7
  %v6027 = vsub.s32 %v6024, %v6026
  %v6028 = vrot.slane %v6014, %v6027
  %v6029 = vlaneseq
  %v6030 = vshrl.u32 %v6029, 7
  %v6031 = vsub.s32 0, %v6030
  %v6032 = vrot.slane %v6021, %v6031
  %v6033 = vlaneseq
  %v6034 = vshrl.u32 %v6033, 7
  %v6035 = vsub.s32 0, %v6034
  %v6036 = vrot.slane %v6028, %v6035
  %v6039 = vadd.f32 %v5752, %v6032
  %v6040 = vadd.f32 %v5755, %v6032
  %v6041 = vadd.f32 %v5760, %v6032
  %v6042 = vadd.f32 %v5763, %v6032
  %v6043 = vadd.f32 %v5768, %v6032
  %v6044 = vadd.f32 %v5771, %v6032
  %v6045 = vadd.f32 %v5776, %v6032
  %v6046 = vadd.f32 %v5779, %v6032
  %v6047 = vadd.f32 %v5784, %v6032
  %v6048 = vadd.f32 %v5787, %v6032
  %v6049 = vadd.f32 %v5792, %v6032
  %v6050 = vadd.f32 %v5795, %v6032
  %v6051 = vadd.f32 %v5800, %v6032
  %v6052 = vadd.f32 %v5803, %v6032
  %v6053 = vadd.f32 %v5808, %v6032
  %v6054 = vadd.f32 %v5811, %v6032
  %v6055 = vadd.f32 %v5816, %v6032
  %v6056 = vadd.f32 %v5819, %v6032
  %v6057 = vadd.f32 %v5824, %v6032
  %v6058 = vadd.f32 %v5827, %v6032
  %v6059 = vadd.f32 %v5832, %v6032
  %v6060 = vadd.f32 %v5835, %v6032
  %v6061 = vadd.f32 %v5840, %v6032
  %v6062 = vadd.f32 %v5843, %v6032
  %v6063 = vadd.f32 %v5848, %v6032
  %v6064 = vadd.f32 %v5851, %v6032
  %v6065 = vadd.f32 %v5856, %v6032
  %v6066 = vadd.f32 %v5859, %v6032
  %v6067 = vadd.f32 %v5864, %v6032
  %v6068 = vadd.f32 %v5867, %v6032
  %v6069 = vadd.f32 %v5872, %v6032
  %v6070 = vadd.f32 %v5875, %v6032
  %v6071 = vadd.f32 %v5880, %v6036
  %v6072 = vadd.f32 %v5883, %v6036
  %v6073 = vadd.f32 %v5888, %v6036
  %v6074 = vadd.f32 %v5891, %v6036
  %v6075 = vadd.f32 %v5896, %v6036
  %v6076 = vadd.f32 %v5899, %v6036
  %v6077 = vadd.f32 %v5904, %v6036
  %v6078 = vadd.f32 %v5907, %v6036
  %v6079 = vadd.f32 %v5912, %v6036
  %v6080 = vadd.f32 %v5915, %v6036
  %v6081 = vadd.f32 %v5920, %v6036
  %v6082 = vadd.f32 %v5923, %v6036
  %v6083 = vadd.f32 %v5928, %v6036
  %v6084 = vadd.f32 %v5931, %v6036
  %v6085 = vadd.f32 %v5936, %v6036
  %v6086 = vadd.f32 %v5939, %v6036
  %v6087 = vadd.f32 %v5944, %v6036
  %v6088 = vadd.f32 %v5947, %v6036
  %v6089 = vadd.f32 %v5952, %v6036
  %v6090 = vadd.f32 %v5955, %v6036
  %v6091 = vadd.f32 %v5960, %v6036
  %v6092 = vadd.f32 %v5963, %v6036
  %v6093 = vadd.f32 %v5968, %v6036
  %v6094 = vadd.f32 %v5971, %v6036
  %v6095 = vadd.f32 %v5976, %v6036
  %v6096 = vadd.f32 %v5979, %v6036
  %v6097 = vadd.f32 %v5984, %v6036
  %v6098 = vadd.f32 %v5987, %v6036
  %v6099 = vadd.f32 %v5992, %v6036
  %v6100 = vadd.f32 %v5995, %v6036
  %v6101 = vadd.f32 %v6000, %v6036
  %v6102 = vadd.f32 %v6003, %v6036
  %v6103 = vld [vmem:[%s18] sm:$0xf]
  %v6104 = vld [vmem:[%s18 + $0x4] sm:$0xf]
  %v6105 = vld [vmem:[%s18 + $0x8] sm:$0xf]
  %v6106 = vld [vmem:[%s18 + $0xc] sm:$0xf]
  %v6107 = vld [vmem:[%s18 + $0x10] sm:$0xf]
  %v6108 = vld [vmem:[%s18 + $0x14] sm:$0xf]
  %v6109 = vld [vmem:[%s18 + $0x18] sm:$0xf]
  %v6110 = vld [vmem:[%s18 + $0x1c] sm:$0xf]
  %v6111 = vld [vmem:[%s18 + $0x20] sm:$0xf]
  %v6112 = vld [vmem:[%s18 + $0x24] sm:$0xf]
  %v6113 = vld [vmem:[%s18 + $0x28] sm:$0xf]
  %v6114 = vld [vmem:[%s18 + $0x2c] sm:$0xf]
  %v6115 = vld [vmem:[%s18 + $0x30] sm:$0xf]
  %v6116 = vld [vmem:[%s18 + $0x34] sm:$0xf]
  %v6117 = vld [vmem:[%s18 + $0x38] sm:$0xf]
  %v6118 = vld [vmem:[%s18 + $0x3c] sm:$0xf]
  %v6119 = vld [vmem:[%s18 + $0x40] sm:$0xf]
  %v6120 = vld [vmem:[%s18 + $0x44] sm:$0xf]
  %v6121 = vld [vmem:[%s18 + $0x48] sm:$0xf]
  %v6122 = vld [vmem:[%s18 + $0x4c] sm:$0xf]
  %v6123 = vld [vmem:[%s18 + $0x50] sm:$0xf]
  %v6124 = vld [vmem:[%s18 + $0x54] sm:$0xf]
  %v6125 = vld [vmem:[%s18 + $0x58] sm:$0xf]
  %v6126 = vld [vmem:[%s18 + $0x5c] sm:$0xf]
  %v6127 = vld [vmem:[%s18 + $0x60] sm:$0xf]
  %v6128 = vld [vmem:[%s18 + $0x64] sm:$0xf]
  %v6129 = vld [vmem:[%s18 + $0x68] sm:$0xf]
  %v6130 = vld [vmem:[%s18 + $0x6c] sm:$0xf]
  %v6131 = vld [vmem:[%s18 + $0x70] sm:$0xf]
  %v6132 = vld [vmem:[%s18 + $0x74] sm:$0xf]
  %v6133 = vld [vmem:[%s18 + $0x78] sm:$0xf]
  %v6134 = vld [vmem:[%s18 + $0x7c] sm:$0xf]
  %v6135 = vld [vmem:[%s18 + $0x80] sm:$0xf]
  %v6136 = vld [vmem:[%s18 + $0x84] sm:$0xf]
  %v6137 = vld [vmem:[%s18 + $0x88] sm:$0xf]
  %v6138 = vld [vmem:[%s18 + $0x8c] sm:$0xf]
  %v6139 = vld [vmem:[%s19] sm:$0x1]
  %v6140 = vxor.u32 %v6039, 2147483648
  %v6141 = vxor.u32 %v6040, 2147483648
  %v6142 = vxor.u32 %v6041, 2147483648
  %v6143 = vxor.u32 %v6042, 2147483648
  %v6144 = vxor.u32 %v6043, 2147483648
  %v6145 = vxor.u32 %v6044, 2147483648
  %v6146 = vxor.u32 %v6045, 2147483648
  %v6147 = vxor.u32 %v6046, 2147483648
  %v6148 = vxor.u32 %v6047, 2147483648
  %v6149 = vxor.u32 %v6048, 2147483648
  %v6150 = vxor.u32 %v6049, 2147483648
  %v6151 = vxor.u32 %v6050, 2147483648
  %v6152 = vxor.u32 %v6051, 2147483648
  %v6153 = vxor.u32 %v6052, 2147483648
  %v6154 = vxor.u32 %v6053, 2147483648
  %v6155 = vxor.u32 %v6054, 2147483648
  %v6156 = vxor.u32 %v6055, 2147483648
  %v6157 = vxor.u32 %v6056, 2147483648
  %v6158 = vxor.u32 %v6057, 2147483648
  %v6159 = vxor.u32 %v6058, 2147483648
  %v6160 = vxor.u32 %v6059, 2147483648
  %v6161 = vxor.u32 %v6060, 2147483648
  %v6162 = vxor.u32 %v6061, 2147483648
  %v6163 = vxor.u32 %v6062, 2147483648
  %v6164 = vxor.u32 %v6063, 2147483648
  %v6165 = vxor.u32 %v6064, 2147483648
  %v6166 = vxor.u32 %v6065, 2147483648
  %v6167 = vxor.u32 %v6066, 2147483648
  %v6168 = vxor.u32 %v6067, 2147483648
  %v6169 = vxor.u32 %v6068, 2147483648
  %v6170 = vxor.u32 %v6069, 2147483648
  %v6171 = vxor.u32 %v6070, 2147483648
  %v6172 = vxor.u32 %v6071, 2147483648
  %v6173 = vxor.u32 %v6072, 2147483648
  %v6174 = vxor.u32 %v6073, 2147483648
  %v6175 = vxor.u32 %v6074, 2147483648
  %v6176 = vxor.u32 %v6075, 2147483648
  %v6177 = vxor.u32 %v6076, 2147483648
  %v6178 = vxor.u32 %v6077, 2147483648
  %v6179 = vxor.u32 %v6078, 2147483648
  %v6180 = vxor.u32 %v6079, 2147483648
  %v6181 = vxor.u32 %v6080, 2147483648
  %v6182 = vxor.u32 %v6081, 2147483648
  %v6183 = vxor.u32 %v6082, 2147483648
  %v6184 = vxor.u32 %v6083, 2147483648
  %v6185 = vxor.u32 %v6084, 2147483648
  %v6186 = vxor.u32 %v6085, 2147483648
  %v6187 = vxor.u32 %v6086, 2147483648
  %v6188 = vxor.u32 %v6087, 2147483648
  %v6189 = vxor.u32 %v6088, 2147483648
  %v6190 = vxor.u32 %v6089, 2147483648
  %v6191 = vxor.u32 %v6090, 2147483648
  %v6192 = vxor.u32 %v6091, 2147483648
  %v6193 = vxor.u32 %v6092, 2147483648
  %v6194 = vxor.u32 %v6093, 2147483648
  %v6195 = vxor.u32 %v6094, 2147483648
  %v6196 = vxor.u32 %v6095, 2147483648
  %v6197 = vxor.u32 %v6096, 2147483648
  %v6198 = vxor.u32 %v6097, 2147483648
  %v6199 = vxor.u32 %v6098, 2147483648
  %v6200 = vxor.u32 %v6099, 2147483648
  %v6201 = vxor.u32 %v6100, 2147483648
  %v6202 = vxor.u32 %v6101, 2147483648
  %v6203 = vxor.u32 %v6102, 2147483648
  %v6204 = vmul.f32 %v6140, 1.442695
  %v6205 = vpow.pop %v6204
  %v6206 = vmul.f32 %v6141, 1.442695
  %v6207 = vpow.pop %v6206
  %v6208 = vmul.f32 %v6142, 1.442695
  %v6209 = vpow.pop %v6208
  %v6210 = vmul.f32 %v6143, 1.442695
  %v6211 = vpow.pop %v6210
  %v6212 = vmul.f32 %v6144, 1.442695
  %v6213 = vpow.pop %v6212
  %v6214 = vmul.f32 %v6145, 1.442695
  %v6215 = vpow.pop %v6214
  %v6216 = vmul.f32 %v6146, 1.442695
  %v6217 = vpow.pop %v6216
  %v6218 = vmul.f32 %v6147, 1.442695
  %v6219 = vpow.pop %v6218
  %v6220 = vmul.f32 %v6148, 1.442695
  %v6221 = vpow.pop %v6220
  %v6222 = vmul.f32 %v6149, 1.442695
  %v6223 = vpow.pop %v6222
  %v6224 = vmul.f32 %v6150, 1.442695
  %v6225 = vpow.pop %v6224
  %v6226 = vmul.f32 %v6151, 1.442695
  %v6227 = vpow.pop %v6226
  %v6228 = vmul.f32 %v6152, 1.442695
  %v6229 = vpow.pop %v6228
  %v6230 = vmul.f32 %v6153, 1.442695
  %v6231 = vpow.pop %v6230
  %v6232 = vmul.f32 %v6154, 1.442695
  %v6233 = vpow.pop %v6232
  %v6234 = vmul.f32 %v6155, 1.442695
  %v6235 = vpow.pop %v6234
  %v6236 = vmul.f32 %v6156, 1.442695
  %v6237 = vpow.pop %v6236
  %v6238 = vmul.f32 %v6157, 1.442695
  %v6239 = vpow.pop %v6238
  %v6240 = vmul.f32 %v6158, 1.442695
  %v6241 = vpow.pop %v6240
  %v6242 = vmul.f32 %v6159, 1.442695
  %v6243 = vpow.pop %v6242
  %v6244 = vmul.f32 %v6160, 1.442695
  %v6245 = vpow.pop %v6244
  %v6246 = vmul.f32 %v6161, 1.442695
  %v6247 = vpow.pop %v6246
  %v6248 = vmul.f32 %v6162, 1.442695
  %v6249 = vpow.pop %v6248
  %v6250 = vmul.f32 %v6163, 1.442695
  %v6251 = vpow.pop %v6250
  %v6252 = vmul.f32 %v6164, 1.442695
  %v6253 = vpow.pop %v6252
  %v6254 = vmul.f32 %v6165, 1.442695
  %v6255 = vpow.pop %v6254
  %v6256 = vmul.f32 %v6166, 1.442695
  %v6257 = vpow.pop %v6256
  %v6258 = vmul.f32 %v6167, 1.442695
  %v6259 = vpow.pop %v6258
  %v6260 = vmul.f32 %v6168, 1.442695
  %v6261 = vpow.pop %v6260
  %v6262 = vmul.f32 %v6169, 1.442695
  %v6263 = vpow.pop %v6262
  %v6264 = vmul.f32 %v6170, 1.442695
  %v6265 = vpow.pop %v6264
  %v6266 = vmul.f32 %v6171, 1.442695
  %v6267 = vpow.pop %v6266
  %v6268 = vmul.f32 %v6172, 1.442695
  %v6269 = vpow.pop %v6268
  %v6270 = vmul.f32 %v6173, 1.442695
  %v6271 = vpow.pop %v6270
  %v6272 = vmul.f32 %v6174, 1.442695
  %v6273 = vpow.pop %v6272
  %v6274 = vmul.f32 %v6175, 1.442695
  %v6275 = vpow.pop %v6274
  %v6276 = vmul.f32 %v6176, 1.442695
  %v6277 = vpow.pop %v6276
  %v6278 = vmul.f32 %v6177, 1.442695
  %v6279 = vpow.pop %v6278
  %v6280 = vmul.f32 %v6178, 1.442695
  %v6281 = vpow.pop %v6280
  %v6282 = vmul.f32 %v6179, 1.442695
  %v6283 = vpow.pop %v6282
  %v6284 = vmul.f32 %v6180, 1.442695
  %v6285 = vpow.pop %v6284
  %v6286 = vmul.f32 %v6181, 1.442695
  %v6287 = vpow.pop %v6286
  %v6288 = vmul.f32 %v6182, 1.442695
  %v6289 = vpow.pop %v6288
  %v6290 = vmul.f32 %v6183, 1.442695
  %v6291 = vpow.pop %v6290
  %v6292 = vmul.f32 %v6184, 1.442695
  %v6293 = vpow.pop %v6292
  %v6294 = vmul.f32 %v6185, 1.442695
  %v6295 = vpow.pop %v6294
  %v6296 = vmul.f32 %v6186, 1.442695
  %v6297 = vpow.pop %v6296
  %v6298 = vmul.f32 %v6187, 1.442695
  %v6299 = vpow.pop %v6298
  %v6300 = vmul.f32 %v6188, 1.442695
  %v6301 = vpow.pop %v6300
  %v6302 = vmul.f32 %v6189, 1.442695
  %v6303 = vpow.pop %v6302
  %v6304 = vmul.f32 %v6190, 1.442695
  %v6305 = vpow.pop %v6304
  %v6306 = vmul.f32 %v6191, 1.442695
  %v6307 = vpow.pop %v6306
  %v6308 = vmul.f32 %v6192, 1.442695
  %v6309 = vpow.pop %v6308
  %v6310 = vmul.f32 %v6193, 1.442695
  %v6311 = vpow.pop %v6310
  %v6312 = vmul.f32 %v6194, 1.442695
  %v6313 = vpow.pop %v6312
  %v6314 = vmul.f32 %v6195, 1.442695
  %v6315 = vpow.pop %v6314
  %v6316 = vmul.f32 %v6196, 1.442695
  %v6317 = vpow.pop %v6316
  %v6318 = vmul.f32 %v6197, 1.442695
  %v6319 = vpow.pop %v6318
  %v6320 = vmul.f32 %v6198, 1.442695
  %v6321 = vpow.pop %v6320
  %v6322 = vmul.f32 %v6199, 1.442695
  %v6323 = vpow.pop %v6322
  %v6324 = vmul.f32 %v6200, 1.442695
  %v6325 = vpow.pop %v6324
  %v6326 = vmul.f32 %v6201, 1.442695
  %v6327 = vpow.pop %v6326
  %v6328 = vmul.f32 %v6202, 1.442695
  %v6329 = vpow.pop %v6328
  %v6330 = vmul.f32 %v6203, 1.442695
  %v6331 = vpow.pop %v6330
  %v6332 = vadd.f32 %v6205, 1.0
  %v6333 = vadd.f32 %v6207, 1.0
  %v6334 = vadd.f32 %v6209, 1.0
  %v6335 = vadd.f32 %v6211, 1.0
  %v6336 = vadd.f32 %v6213, 1.0
  %v6337 = vadd.f32 %v6215, 1.0
  %v6338 = vadd.f32 %v6217, 1.0
  %v6339 = vadd.f32 %v6219, 1.0
  %v6340 = vadd.f32 %v6221, 1.0
  %v6341 = vadd.f32 %v6223, 1.0
  %v6342 = vadd.f32 %v6225, 1.0
  %v6343 = vadd.f32 %v6227, 1.0
  %v6344 = vadd.f32 %v6229, 1.0
  %v6345 = vadd.f32 %v6231, 1.0
  %v6346 = vadd.f32 %v6233, 1.0
  %v6347 = vadd.f32 %v6235, 1.0
  %v6348 = vadd.f32 %v6237, 1.0
  %v6349 = vadd.f32 %v6239, 1.0
  %v6350 = vadd.f32 %v6241, 1.0
  %v6351 = vadd.f32 %v6243, 1.0
  %v6352 = vadd.f32 %v6245, 1.0
  %v6353 = vadd.f32 %v6247, 1.0
  %v6354 = vadd.f32 %v6249, 1.0
  %v6355 = vadd.f32 %v6251, 1.0
  %v6356 = vadd.f32 %v6253, 1.0
  %v6357 = vadd.f32 %v6255, 1.0
  %v6358 = vadd.f32 %v6257, 1.0
  %v6359 = vadd.f32 %v6259, 1.0
  %v6360 = vadd.f32 %v6261, 1.0
  %v6361 = vadd.f32 %v6263, 1.0
  %v6362 = vadd.f32 %v6265, 1.0
  %v6363 = vadd.f32 %v6267, 1.0
  %v6364 = vadd.f32 %v6269, 1.0
  %v6365 = vadd.f32 %v6271, 1.0
  %v6366 = vadd.f32 %v6273, 1.0
  %v6367 = vadd.f32 %v6275, 1.0
  %v6368 = vadd.f32 %v6277, 1.0
  %v6369 = vadd.f32 %v6279, 1.0
  %v6370 = vadd.f32 %v6281, 1.0
  %v6371 = vadd.f32 %v6283, 1.0
  %v6372 = vadd.f32 %v6285, 1.0
  %v6373 = vadd.f32 %v6287, 1.0
  %v6374 = vadd.f32 %v6289, 1.0
  %v6375 = vadd.f32 %v6291, 1.0
  %v6376 = vadd.f32 %v6293, 1.0
  %v6377 = vadd.f32 %v6295, 1.0
  %v6378 = vadd.f32 %v6297, 1.0
  %v6379 = vadd.f32 %v6299, 1.0
  %v6380 = vadd.f32 %v6301, 1.0
  %v6381 = vadd.f32 %v6303, 1.0
  %v6382 = vadd.f32 %v6305, 1.0
  %v6383 = vadd.f32 %v6307, 1.0
  %v6384 = vadd.f32 %v6309, 1.0
  %v6385 = vadd.f32 %v6311, 1.0
  %v6386 = vadd.f32 %v6313, 1.0
  %v6387 = vadd.f32 %v6315, 1.0
  %v6388 = vadd.f32 %v6317, 1.0
  %v6389 = vadd.f32 %v6319, 1.0
  %v6390 = vadd.f32 %v6321, 1.0
  %v6391 = vadd.f32 %v6323, 1.0
  %v6392 = vadd.f32 %v6325, 1.0
  %v6393 = vadd.f32 %v6327, 1.0
  %v6394 = vadd.f32 %v6329, 1.0
  %v6395 = vadd.f32 %v6331, 1.0
  %v6396 = vrcp.pop %v6332
  %v6397 = vmul.f32 1.0, %v6396
  %v6398 = vrcp.pop %v6333
  %v6399 = vmul.f32 1.0, %v6398
  %v6400 = vrcp.pop %v6334
  %v6401 = vmul.f32 1.0, %v6400
  %v6402 = vrcp.pop %v6335
  %v6403 = vmul.f32 1.0, %v6402
  %v6404 = vrcp.pop %v6336
  %v6405 = vmul.f32 1.0, %v6404
  %v6406 = vrcp.pop %v6337
  %v6407 = vmul.f32 1.0, %v6406
  %v6408 = vrcp.pop %v6338
  %v6409 = vmul.f32 1.0, %v6408
  %v6410 = vrcp.pop %v6339
  %v6411 = vmul.f32 1.0, %v6410
  %v6412 = vrcp.pop %v6340
  %v6413 = vmul.f32 1.0, %v6412
  %v6414 = vrcp.pop %v6341
  %v6415 = vmul.f32 1.0, %v6414
  %v6416 = vrcp.pop %v6342
  %v6417 = vmul.f32 1.0, %v6416
  %v6418 = vrcp.pop %v6343
  %v6419 = vmul.f32 1.0, %v6418
  %v6420 = vrcp.pop %v6344
  %v6421 = vmul.f32 1.0, %v6420
  %v6422 = vrcp.pop %v6345
  %v6423 = vmul.f32 1.0, %v6422
  %v6424 = vrcp.pop %v6346
  %v6425 = vmul.f32 1.0, %v6424
  %v6426 = vrcp.pop %v6347
  %v6427 = vmul.f32 1.0, %v6426
  %v6428 = vrcp.pop %v6348
  %v6429 = vmul.f32 1.0, %v6428
  %v6430 = vrcp.pop %v6349
  %v6431 = vmul.f32 1.0, %v6430
  %v6432 = vrcp.pop %v6350
  %v6433 = vmul.f32 1.0, %v6432
  %v6434 = vrcp.pop %v6351
  %v6435 = vmul.f32 1.0, %v6434
  %v6436 = vrcp.pop %v6352
  %v6437 = vmul.f32 1.0, %v6436
  %v6438 = vrcp.pop %v6353
  %v6439 = vmul.f32 1.0, %v6438
  %v6440 = vrcp.pop %v6354
  %v6441 = vmul.f32 1.0, %v6440
  %v6442 = vrcp.pop %v6355
  %v6443 = vmul.f32 1.0, %v6442
  %v6444 = vrcp.pop %v6356
  %v6445 = vmul.f32 1.0, %v6444
  %v6446 = vrcp.pop %v6357
  %v6447 = vmul.f32 1.0, %v6446
  %v6448 = vrcp.pop %v6358
  %v6449 = vmul.f32 1.0, %v6448
  %v6450 = vrcp.pop %v6359
  %v6451 = vmul.f32 1.0, %v6450
  %v6452 = vrcp.pop %v6360
  %v6453 = vmul.f32 1.0, %v6452
  %v6454 = vrcp.pop %v6361
  %v6455 = vmul.f32 1.0, %v6454
  %v6456 = vrcp.pop %v6362
  %v6457 = vmul.f32 1.0, %v6456
  %v6458 = vrcp.pop %v6363
  %v6459 = vmul.f32 1.0, %v6458
  %v6460 = vrcp.pop %v6364
  %v6461 = vmul.f32 1.0, %v6460
  %v6462 = vrcp.pop %v6365
  %v6463 = vmul.f32 1.0, %v6462
  %v6464 = vrcp.pop %v6366
  %v6465 = vmul.f32 1.0, %v6464
  %v6466 = vrcp.pop %v6367
  %v6467 = vmul.f32 1.0, %v6466
  %v6468 = vrcp.pop %v6368
  %v6469 = vmul.f32 1.0, %v6468
  %v6470 = vrcp.pop %v6369
  %v6471 = vmul.f32 1.0, %v6470
  %v6472 = vrcp.pop %v6370
  %v6473 = vmul.f32 1.0, %v6472
  %v6474 = vrcp.pop %v6371
  %v6475 = vmul.f32 1.0, %v6474
  %v6476 = vrcp.pop %v6372
  %v6477 = vmul.f32 1.0, %v6476
  %v6478 = vrcp.pop %v6373
  %v6479 = vmul.f32 1.0, %v6478
  %v6480 = vrcp.pop %v6374
  %v6481 = vmul.f32 1.0, %v6480
  %v6482 = vrcp.pop %v6375
  %v6483 = vmul.f32 1.0, %v6482
  %v6484 = vrcp.pop %v6376
  %v6485 = vmul.f32 1.0, %v6484
  %v6486 = vrcp.pop %v6377
  %v6487 = vmul.f32 1.0, %v6486
  %v6488 = vrcp.pop %v6378
  %v6489 = vmul.f32 1.0, %v6488
  %v6490 = vrcp.pop %v6379
  %v6491 = vmul.f32 1.0, %v6490
  %v6492 = vrcp.pop %v6380
  %v6493 = vmul.f32 1.0, %v6492
  %v6494 = vrcp.pop %v6381
  %v6495 = vmul.f32 1.0, %v6494
  %v6496 = vrcp.pop %v6382
  %v6497 = vmul.f32 1.0, %v6496
  %v6498 = vrcp.pop %v6383
  %v6499 = vmul.f32 1.0, %v6498
  %v6500 = vrcp.pop %v6384
  %v6501 = vmul.f32 1.0, %v6500
  %v6502 = vrcp.pop %v6385
  %v6503 = vmul.f32 1.0, %v6502
  %v6504 = vrcp.pop %v6386
  %v6505 = vmul.f32 1.0, %v6504
  %v6506 = vrcp.pop %v6387
  %v6507 = vmul.f32 1.0, %v6506
  %v6508 = vrcp.pop %v6388
  %v6509 = vmul.f32 1.0, %v6508
  %v6510 = vrcp.pop %v6389
  %v6511 = vmul.f32 1.0, %v6510
  %v6512 = vrcp.pop %v6390
  %v6513 = vmul.f32 1.0, %v6512
  %v6514 = vrcp.pop %v6391
  %v6515 = vmul.f32 1.0, %v6514
  %v6516 = vrcp.pop %v6392
  %v6517 = vmul.f32 1.0, %v6516
  %v6518 = vrcp.pop %v6393
  %v6519 = vmul.f32 1.0, %v6518
  %v6520 = vrcp.pop %v6394
  %v6521 = vmul.f32 1.0, %v6520
  %v6522 = vrcp.pop %v6395
  %v6523 = vmul.f32 1.0, %v6522
  %v6524 = vmul.f32 %v6039, %v6397
  %v6525 = vmul.f32 %v6040, %v6399
  %v6526 = vmul.f32 %v6041, %v6401
  %v6527 = vmul.f32 %v6042, %v6403
  %v6528 = vmul.f32 %v6043, %v6405
  %v6529 = vmul.f32 %v6044, %v6407
  %v6530 = vmul.f32 %v6045, %v6409
  %v6531 = vmul.f32 %v6046, %v6411
  %v6532 = vmul.f32 %v6047, %v6413
  %v6533 = vmul.f32 %v6048, %v6415
  %v6534 = vmul.f32 %v6049, %v6417
  %v6535 = vmul.f32 %v6050, %v6419
  %v6536 = vmul.f32 %v6051, %v6421
  %v6537 = vmul.f32 %v6052, %v6423
  %v6538 = vmul.f32 %v6053, %v6425
  %v6539 = vmul.f32 %v6054, %v6427
  %v6540 = vmul.f32 %v6055, %v6429
  %v6541 = vmul.f32 %v6056, %v6431
  %v6542 = vmul.f32 %v6057, %v6433
  %v6543 = vmul.f32 %v6058, %v6435
  %v6544 = vmul.f32 %v6059, %v6437
  %v6545 = vmul.f32 %v6060, %v6439
  %v6546 = vmul.f32 %v6061, %v6441
  %v6547 = vmul.f32 %v6062, %v6443
  %v6548 = vmul.f32 %v6063, %v6445
  %v6549 = vmul.f32 %v6064, %v6447
  %v6550 = vmul.f32 %v6065, %v6449
  %v6551 = vmul.f32 %v6066, %v6451
  %v6552 = vmul.f32 %v6067, %v6453
  %v6553 = vmul.f32 %v6068, %v6455
  %v6554 = vmul.f32 %v6069, %v6457
  %v6555 = vmul.f32 %v6070, %v6459
  %v6556 = vmul.f32 %v6071, %v6461
  %v6557 = vmul.f32 %v6072, %v6463
  %v6558 = vmul.f32 %v6073, %v6465
  %v6559 = vmul.f32 %v6074, %v6467
  %v6560 = vmul.f32 %v6075, %v6469
  %v6561 = vmul.f32 %v6076, %v6471
  %v6562 = vmul.f32 %v6077, %v6473
  %v6563 = vmul.f32 %v6078, %v6475
  %v6564 = vmul.f32 %v6079, %v6477
  %v6565 = vmul.f32 %v6080, %v6479
  %v6566 = vmul.f32 %v6081, %v6481
  %v6567 = vmul.f32 %v6082, %v6483
  %v6568 = vmul.f32 %v6083, %v6485
  %v6569 = vmul.f32 %v6084, %v6487
  %v6570 = vmul.f32 %v6085, %v6489
  %v6571 = vmul.f32 %v6086, %v6491
  %v6572 = vmul.f32 %v6087, %v6493
  %v6573 = vmul.f32 %v6088, %v6495
  %v6574 = vmul.f32 %v6089, %v6497
  %v6575 = vmul.f32 %v6090, %v6499
  %v6576 = vmul.f32 %v6091, %v6501
  %v6577 = vmul.f32 %v6092, %v6503
  %v6578 = vmul.f32 %v6093, %v6505
  %v6579 = vmul.f32 %v6094, %v6507
  %v6580 = vmul.f32 %v6095, %v6509
  %v6581 = vmul.f32 %v6096, %v6511
  %v6582 = vmul.f32 %v6097, %v6513
  %v6583 = vmul.f32 %v6098, %v6515
  %v6584 = vmul.f32 %v6099, %v6517
  %v6585 = vmul.f32 %v6100, %v6519
  %v6586 = vmul.f32 %v6101, %v6521
  %v6587 = vmul.f32 %v6102, %v6523
  %v6588 = vpack.c.bf16 %v6525, %v6524
  %v6589 = vpack.c.bf16 %v6527, %v6526
  %v6590 = vpack.c.bf16 %v6529, %v6528
  %v6591 = vpack.c.bf16 %v6531, %v6530
  %v6592 = vpack.c.bf16 %v6533, %v6532
  %v6593 = vpack.c.bf16 %v6535, %v6534
  %v6594 = vpack.c.bf16 %v6537, %v6536
  %v6595 = vpack.c.bf16 %v6539, %v6538
  %v6596 = vpack.c.bf16 %v6541, %v6540
  %v6597 = vpack.c.bf16 %v6543, %v6542
  %v6598 = vpack.c.bf16 %v6545, %v6544
  %v6599 = vpack.c.bf16 %v6547, %v6546
  %v6600 = vpack.c.bf16 %v6549, %v6548
  %v6601 = vpack.c.bf16 %v6551, %v6550
  %v6602 = vpack.c.bf16 %v6553, %v6552
  %v6603 = vpack.c.bf16 %v6555, %v6554
  %v6604 = vpack.c.bf16 %v6557, %v6556
  %v6605 = vpack.c.bf16 %v6559, %v6558
  %v6606 = vpack.c.bf16 %v6561, %v6560
  %v6607 = vpack.c.bf16 %v6563, %v6562
  %v6608 = vpack.c.bf16 %v6565, %v6564
  %v6609 = vpack.c.bf16 %v6567, %v6566
  %v6610 = vpack.c.bf16 %v6569, %v6568
  %v6611 = vpack.c.bf16 %v6571, %v6570
  %v6612 = vpack.c.bf16 %v6573, %v6572
  %v6613 = vpack.c.bf16 %v6575, %v6574
  %v6614 = vpack.c.bf16 %v6577, %v6576
  %v6615 = vpack.c.bf16 %v6579, %v6578
  %v6616 = vpack.c.bf16 %v6581, %v6580
  %v6617 = vpack.c.bf16 %v6583, %v6582
  %v6618 = vpack.c.bf16 %v6585, %v6584
  %v6619 = vpack.c.bf16 %v6587, %v6586
  %v6621 = vshrl.u32 %v6588, 16
  %v6623 = vrot.slane %v6621, 7
  %v6624 = vshll.u32 %v6588, 16
  %v6626 = vor.u32 %v6623, %v6624
  %v6628 = vshrl.u32 %v6589, 16
  %v6630 = vrot.slane %v6628, 7
  %v6631 = vshll.u32 %v6589, 16
  %v6633 = vor.u32 %v6630, %v6631
  %v6635 = vshrl.u32 %v6590, 16
  %v6637 = vrot.slane %v6635, 7
  %v6638 = vshll.u32 %v6590, 16
  %v6640 = vor.u32 %v6637, %v6638
  %v6642 = vshrl.u32 %v6591, 16
  %v6644 = vrot.slane %v6642, 7
  %v6645 = vshll.u32 %v6591, 16
  %v6647 = vor.u32 %v6644, %v6645
  %v6649 = vshrl.u32 %v6592, 16
  %v6651 = vrot.slane %v6649, 7
  %v6652 = vshll.u32 %v6592, 16
  %v6654 = vor.u32 %v6651, %v6652
  %v6656 = vshrl.u32 %v6593, 16
  %v6658 = vrot.slane %v6656, 7
  %v6659 = vshll.u32 %v6593, 16
  %v6661 = vor.u32 %v6658, %v6659
  %v6663 = vshrl.u32 %v6594, 16
  %v6665 = vrot.slane %v6663, 7
  %v6666 = vshll.u32 %v6594, 16
  %v6668 = vor.u32 %v6665, %v6666
  %v6670 = vshrl.u32 %v6595, 16
  %v6672 = vrot.slane %v6670, 7
  %v6673 = vshll.u32 %v6595, 16
  %v6675 = vor.u32 %v6672, %v6673
  %v6677 = vshrl.u32 %v6596, 16
  %v6679 = vrot.slane %v6677, 7
  %v6680 = vshll.u32 %v6596, 16
  %v6682 = vor.u32 %v6679, %v6680
  %v6684 = vshrl.u32 %v6597, 16
  %v6686 = vrot.slane %v6684, 7
  %v6687 = vshll.u32 %v6597, 16
  %v6689 = vor.u32 %v6686, %v6687
  %v6691 = vshrl.u32 %v6598, 16
  %v6693 = vrot.slane %v6691, 7
  %v6694 = vshll.u32 %v6598, 16
  %v6696 = vor.u32 %v6693, %v6694
  %v6698 = vshrl.u32 %v6599, 16
  %v6700 = vrot.slane %v6698, 7
  %v6701 = vshll.u32 %v6599, 16
  %v6703 = vor.u32 %v6700, %v6701
  %v6705 = vshrl.u32 %v6600, 16
  %v6707 = vrot.slane %v6705, 7
  %v6708 = vshll.u32 %v6600, 16
  %v6710 = vor.u32 %v6707, %v6708
  %v6712 = vshrl.u32 %v6601, 16
  %v6714 = vrot.slane %v6712, 7
  %v6715 = vshll.u32 %v6601, 16
  %v6717 = vor.u32 %v6714, %v6715
  %v6719 = vshrl.u32 %v6602, 16
  %v6721 = vrot.slane %v6719, 7
  %v6722 = vshll.u32 %v6602, 16
  %v6724 = vor.u32 %v6721, %v6722
  %v6726 = vshrl.u32 %v6603, 16
  %v6728 = vrot.slane %v6726, 7
  %v6729 = vshll.u32 %v6603, 16
  %v6731 = vor.u32 %v6728, %v6729
  %v6733 = vshrl.u32 %v6604, 16
  %v6735 = vrot.slane %v6733, 7
  %v6736 = vshll.u32 %v6604, 16
  %v6738 = vor.u32 %v6735, %v6736
  %v6740 = vshrl.u32 %v6605, 16
  %v6742 = vrot.slane %v6740, 7
  %v6743 = vshll.u32 %v6605, 16
  %v6745 = vor.u32 %v6742, %v6743
  %v6747 = vshrl.u32 %v6606, 16
  %v6749 = vrot.slane %v6747, 7
  %v6750 = vshll.u32 %v6606, 16
  %v6752 = vor.u32 %v6749, %v6750
  %v6754 = vshrl.u32 %v6607, 16
  %v6756 = vrot.slane %v6754, 7
  %v6757 = vshll.u32 %v6607, 16
  %v6759 = vor.u32 %v6756, %v6757
  %v6761 = vshrl.u32 %v6608, 16
  %v6763 = vrot.slane %v6761, 7
  %v6764 = vshll.u32 %v6608, 16
  %v6766 = vor.u32 %v6763, %v6764
  %v6768 = vshrl.u32 %v6609, 16
  %v6770 = vrot.slane %v6768, 7
  %v6771 = vshll.u32 %v6609, 16
  %v6773 = vor.u32 %v6770, %v6771
  %v6775 = vshrl.u32 %v6610, 16
  %v6777 = vrot.slane %v6775, 7
  %v6778 = vshll.u32 %v6610, 16
  %v6780 = vor.u32 %v6777, %v6778
  %v6782 = vshrl.u32 %v6611, 16
  %v6784 = vrot.slane %v6782, 7
  %v6785 = vshll.u32 %v6611, 16
  %v6787 = vor.u32 %v6784, %v6785
  %v6789 = vshrl.u32 %v6612, 16
  %v6791 = vrot.slane %v6789, 7
  %v6792 = vshll.u32 %v6612, 16
  %v6794 = vor.u32 %v6791, %v6792
  %v6796 = vshrl.u32 %v6613, 16
  %v6798 = vrot.slane %v6796, 7
  %v6799 = vshll.u32 %v6613, 16
  %v6801 = vor.u32 %v6798, %v6799
  %v6803 = vshrl.u32 %v6614, 16
  %v6805 = vrot.slane %v6803, 7
  %v6806 = vshll.u32 %v6614, 16
  %v6808 = vor.u32 %v6805, %v6806
  %v6810 = vshrl.u32 %v6615, 16
  %v6812 = vrot.slane %v6810, 7
  %v6813 = vshll.u32 %v6615, 16
  %v6815 = vor.u32 %v6812, %v6813
  %v6817 = vshrl.u32 %v6616, 16
  %v6819 = vrot.slane %v6817, 7
  %v6820 = vshll.u32 %v6616, 16
  %v6822 = vor.u32 %v6819, %v6820
  %v6824 = vshrl.u32 %v6617, 16
  %v6826 = vrot.slane %v6824, 7
  %v6827 = vshll.u32 %v6617, 16
  %v6829 = vor.u32 %v6826, %v6827
  %v6831 = vshrl.u32 %v6618, 16
  %v6833 = vrot.slane %v6831, 7
  %v6834 = vshll.u32 %v6618, 16
  %v6836 = vor.u32 %v6833, %v6834
  %v6838 = vshrl.u32 %v6619, 16
  %v6840 = vrot.slane %v6838, 7
  %v6841 = vshll.u32 %v6619, 16
  %v6843 = vor.u32 %v6840, %v6841
  %v6908 = vsel %vm933, 0, %v6626
  %v6909 = vsel %vm933, 0, %v6633
  %v6910 = vsel %vm933, 0, %v6640
  %v6911 = vsel %vm933, 0, %v6647
  %v6912 = vsel %vm933, 0, %v6654
  %v6913 = vsel %vm933, 0, %v6661
  %v6914 = vsel %vm933, 0, %v6668
  %v6915 = vsel %vm933, 0, %v6675
  %v6916 = vsel %vm933, 0, %v6682
  %v6917 = vsel %vm933, 0, %v6689
  %v6918 = vsel %vm933, 0, %v6696
  %v6919 = vsel %vm933, 0, %v6703
  %v6920 = vsel %vm933, 0, %v6710
  %v6921 = vsel %vm933, 0, %v6717
  %v6922 = vsel %vm933, 0, %v6724
  %v6923 = vsel %vm933, 0, %v6731
  %v6924 = vsel %vm933, 0, %v6738
  %v6925 = vsel %vm933, 0, %v6745
  %v6926 = vsel %vm933, 0, %v6752
  %v6927 = vsel %vm933, 0, %v6759
  %v6928 = vsel %vm933, 0, %v6766
  %v6929 = vsel %vm933, 0, %v6773
  %v6930 = vsel %vm933, 0, %v6780
  %v6931 = vsel %vm933, 0, %v6787
  %v6932 = vsel %vm933, 0, %v6794
  %v6933 = vsel %vm933, 0, %v6801
  %v6934 = vsel %vm933, 0, %v6808
  %v6935 = vsel %vm933, 0, %v6815
  %v6936 = vsel %vm933, 0, %v6822
  %v6937 = vsel %vm933, 0, %v6829
  %v6938 = vsel %vm933, 0, %v6836
  %v6939 = vsel %vm933, 0, %v6843
  %v6940 = vsel %vm933, %v6623, 0
  %v6941 = vsel %vm933, %v6630, 0
  %v6942 = vsel %vm933, %v6637, 0
  %v6943 = vsel %vm933, %v6644, 0
  %v6944 = vsel %vm933, %v6651, 0
  %v6945 = vsel %vm933, %v6658, 0
  %v6946 = vsel %vm933, %v6665, 0
  %v6947 = vsel %vm933, %v6672, 0
  %v6948 = vsel %vm933, %v6679, 0
  %v6949 = vsel %vm933, %v6686, 0
  %v6950 = vsel %vm933, %v6693, 0
  %v6951 = vsel %vm933, %v6700, 0
  %v6952 = vsel %vm933, %v6707, 0
  %v6953 = vsel %vm933, %v6714, 0
  %v6954 = vsel %vm933, %v6721, 0
  %v6955 = vsel %vm933, %v6728, 0
  %v6956 = vsel %vm933, %v6735, 0
  %v6957 = vsel %vm933, %v6742, 0
  %v6958 = vsel %vm933, %v6749, 0
  %v6959 = vsel %vm933, %v6756, 0
  %v6960 = vsel %vm933, %v6763, 0
  %v6961 = vsel %vm933, %v6770, 0
  %v6962 = vsel %vm933, %v6777, 0
  %v6963 = vsel %vm933, %v6784, 0
  %v6964 = vsel %vm933, %v6791, 0
  %v6965 = vsel %vm933, %v6798, 0
  %v6966 = vsel %vm933, %v6805, 0
  %v6967 = vsel %vm933, %v6812, 0
  %v6968 = vsel %vm933, %v6819, 0
  %v6969 = vsel %vm933, %v6826, 0
  %v6970 = vsel %vm933, %v6833, 0
  %v6971 = vsel %vm933, %v6840, 0
  %v6973 = vshrl.u32 %v6908, 16
  %v6975 = vshll.u32 %v6908, 16
  %v6977 = vrot.slane %v6975, 1
  %v6978 = vor.u32 %v6973, %v6977
  %v6980 = vshll.u32 %v6940, 16
  %v6982 = vrot.slane %v6980, 1
  %v6983 = vsel %vm1000, %v6978, %v6982
  %v6985 = vshrl.u32 %v6909, 16
  %v6987 = vshll.u32 %v6909, 16
  %v6989 = vrot.slane %v6987, 1
  %v6990 = vor.u32 %v6985, %v6989
  %v6992 = vshll.u32 %v6941, 16
  %v6994 = vrot.slane %v6992, 1
  %v6995 = vsel %vm1000, %v6990, %v6994
  %v6997 = vshrl.u32 %v6910, 16
  %v6999 = vshll.u32 %v6910, 16
  %v7001 = vrot.slane %v6999, 1
  %v7002 = vor.u32 %v6997, %v7001
  %v7004 = vshll.u32 %v6942, 16
  %v7006 = vrot.slane %v7004, 1
  %v7007 = vsel %vm1000, %v7002, %v7006
  %v7009 = vshrl.u32 %v6911, 16
  %v7011 = vshll.u32 %v6911, 16
  %v7013 = vrot.slane %v7011, 1
  %v7014 = vor.u32 %v7009, %v7013
  %v7016 = vshll.u32 %v6943, 16
  %v7018 = vrot.slane %v7016, 1
  %v7019 = vsel %vm1000, %v7014, %v7018
  %v7021 = vshrl.u32 %v6912, 16
  %v7023 = vshll.u32 %v6912, 16
  %v7025 = vrot.slane %v7023, 1
  %v7026 = vor.u32 %v7021, %v7025
  %v7028 = vshll.u32 %v6944, 16
  %v7030 = vrot.slane %v7028, 1
  %v7031 = vsel %vm1000, %v7026, %v7030
  %v7033 = vshrl.u32 %v6913, 16
  %v7035 = vshll.u32 %v6913, 16
  %v7037 = vrot.slane %v7035, 1
  %v7038 = vor.u32 %v7033, %v7037
  %v7040 = vshll.u32 %v6945, 16
  %v7042 = vrot.slane %v7040, 1
  %v7043 = vsel %vm1000, %v7038, %v7042
  %v7045 = vshrl.u32 %v6914, 16
  %v7047 = vshll.u32 %v6914, 16
  %v7049 = vrot.slane %v7047, 1
  %v7050 = vor.u32 %v7045, %v7049
  %v7052 = vshll.u32 %v6946, 16
  %v7054 = vrot.slane %v7052, 1
  %v7055 = vsel %vm1000, %v7050, %v7054
  %v7057 = vshrl.u32 %v6915, 16
  %v7059 = vshll.u32 %v6915, 16
  %v7061 = vrot.slane %v7059, 1
  %v7062 = vor.u32 %v7057, %v7061
  %v7064 = vshll.u32 %v6947, 16
  %v7066 = vrot.slane %v7064, 1
  %v7067 = vsel %vm1000, %v7062, %v7066
  %v7069 = vshrl.u32 %v6916, 16
  %v7071 = vshll.u32 %v6916, 16
  %v7073 = vrot.slane %v7071, 1
  %v7074 = vor.u32 %v7069, %v7073
  %v7076 = vshll.u32 %v6948, 16
  %v7078 = vrot.slane %v7076, 1
  %v7079 = vsel %vm1000, %v7074, %v7078
  %v7081 = vshrl.u32 %v6917, 16
  %v7083 = vshll.u32 %v6917, 16
  %v7085 = vrot.slane %v7083, 1
  %v7086 = vor.u32 %v7081, %v7085
  %v7088 = vshll.u32 %v6949, 16
  %v7090 = vrot.slane %v7088, 1
  %v7091 = vsel %vm1000, %v7086, %v7090
  %v7093 = vshrl.u32 %v6918, 16
  %v7095 = vshll.u32 %v6918, 16
  %v7097 = vrot.slane %v7095, 1
  %v7098 = vor.u32 %v7093, %v7097
  %v7100 = vshll.u32 %v6950, 16
  %v7102 = vrot.slane %v7100, 1
  %v7103 = vsel %vm1000, %v7098, %v7102
  %v7105 = vshrl.u32 %v6919, 16
  %v7107 = vshll.u32 %v6919, 16
  %v7109 = vrot.slane %v7107, 1
  %v7110 = vor.u32 %v7105, %v7109
  %v7112 = vshll.u32 %v6951, 16
  %v7114 = vrot.slane %v7112, 1
  %v7115 = vsel %vm1000, %v7110, %v7114
  %v7117 = vshrl.u32 %v6920, 16
  %v7119 = vshll.u32 %v6920, 16
  %v7121 = vrot.slane %v7119, 1
  %v7122 = vor.u32 %v7117, %v7121
  %v7124 = vshll.u32 %v6952, 16
  %v7126 = vrot.slane %v7124, 1
  %v7127 = vsel %vm1000, %v7122, %v7126
  %v7129 = vshrl.u32 %v6921, 16
  %v7131 = vshll.u32 %v6921, 16
  %v7133 = vrot.slane %v7131, 1
  %v7134 = vor.u32 %v7129, %v7133
  %v7136 = vshll.u32 %v6953, 16
  %v7138 = vrot.slane %v7136, 1
  %v7139 = vsel %vm1000, %v7134, %v7138
  %v7141 = vshrl.u32 %v6922, 16
  %v7143 = vshll.u32 %v6922, 16
  %v7145 = vrot.slane %v7143, 1
  %v7146 = vor.u32 %v7141, %v7145
  %v7148 = vshll.u32 %v6954, 16
  %v7150 = vrot.slane %v7148, 1
  %v7151 = vsel %vm1000, %v7146, %v7150
  %v7153 = vshrl.u32 %v6924, 16
  %v7155 = vshll.u32 %v6924, 16
  %v7157 = vrot.slane %v7155, 1
  %v7158 = vor.u32 %v7153, %v7157
  %v7160 = vshll.u32 %v6956, 16
  %v7162 = vrot.slane %v7160, 1
  %v7163 = vsel %vm1000, %v7158, %v7162
  %v7165 = vshrl.u32 %v6925, 16
  %v7167 = vshll.u32 %v6925, 16
  %v7169 = vrot.slane %v7167, 1
  %v7170 = vor.u32 %v7165, %v7169
  %v7172 = vshll.u32 %v6957, 16
  %v7174 = vrot.slane %v7172, 1
  %v7175 = vsel %vm1000, %v7170, %v7174
  %v7177 = vshrl.u32 %v6926, 16
  %v7179 = vshll.u32 %v6926, 16
  %v7181 = vrot.slane %v7179, 1
  %v7182 = vor.u32 %v7177, %v7181
  %v7184 = vshll.u32 %v6958, 16
  %v7186 = vrot.slane %v7184, 1
  %v7187 = vsel %vm1000, %v7182, %v7186
  %v7189 = vshrl.u32 %v6927, 16
  %v7191 = vshll.u32 %v6927, 16
  %v7193 = vrot.slane %v7191, 1
  %v7194 = vor.u32 %v7189, %v7193
  %v7196 = vshll.u32 %v6959, 16
  %v7198 = vrot.slane %v7196, 1
  %v7199 = vsel %vm1000, %v7194, %v7198
  %v7201 = vshrl.u32 %v6928, 16
  %v7203 = vshll.u32 %v6928, 16
  %v7205 = vrot.slane %v7203, 1
  %v7206 = vor.u32 %v7201, %v7205
  %v7208 = vshll.u32 %v6960, 16
  %v7210 = vrot.slane %v7208, 1
  %v7211 = vsel %vm1000, %v7206, %v7210
  %v7213 = vshrl.u32 %v6929, 16
  %v7215 = vshll.u32 %v6929, 16
  %v7217 = vrot.slane %v7215, 1
  %v7218 = vor.u32 %v7213, %v7217
  %v7220 = vshll.u32 %v6961, 16
  %v7222 = vrot.slane %v7220, 1
  %v7223 = vsel %vm1000, %v7218, %v7222
  %v7225 = vshrl.u32 %v6930, 16
  %v7227 = vshll.u32 %v6930, 16
  %v7229 = vrot.slane %v7227, 1
  %v7230 = vor.u32 %v7225, %v7229
  %v7232 = vshll.u32 %v6962, 16
  %v7234 = vrot.slane %v7232, 1
  %v7235 = vsel %vm1000, %v7230, %v7234
  %v7237 = vshrl.u32 %v6931, 16
  %v7239 = vshll.u32 %v6931, 16
  %v7241 = vrot.slane %v7239, 1
  %v7242 = vor.u32 %v7237, %v7241
  %v7244 = vshll.u32 %v6963, 16
  %v7246 = vrot.slane %v7244, 1
  %v7247 = vsel %vm1000, %v7242, %v7246
  %v7249 = vshrl.u32 %v6932, 16
  %v7251 = vshll.u32 %v6932, 16
  %v7253 = vrot.slane %v7251, 1
  %v7254 = vor.u32 %v7249, %v7253
  %v7256 = vshll.u32 %v6964, 16
  %v7258 = vrot.slane %v7256, 1
  %v7259 = vsel %vm1000, %v7254, %v7258
  %v7261 = vshrl.u32 %v6933, 16
  %v7263 = vshll.u32 %v6933, 16
  %v7265 = vrot.slane %v7263, 1
  %v7266 = vor.u32 %v7261, %v7265
  %v7268 = vshll.u32 %v6965, 16
  %v7270 = vrot.slane %v7268, 1
  %v7271 = vsel %vm1000, %v7266, %v7270
  %v7273 = vshrl.u32 %v6934, 16
  %v7275 = vshll.u32 %v6934, 16
  %v7277 = vrot.slane %v7275, 1
  %v7278 = vor.u32 %v7273, %v7277
  %v7280 = vshll.u32 %v6966, 16
  %v7282 = vrot.slane %v7280, 1
  %v7283 = vsel %vm1000, %v7278, %v7282
  %v7285 = vshrl.u32 %v6935, 16
  %v7287 = vshll.u32 %v6935, 16
  %v7289 = vrot.slane %v7287, 1
  %v7290 = vor.u32 %v7285, %v7289
  %v7292 = vshll.u32 %v6967, 16
  %v7294 = vrot.slane %v7292, 1
  %v7295 = vsel %vm1000, %v7290, %v7294
  %v7297 = vshrl.u32 %v6936, 16
  %v7299 = vshll.u32 %v6936, 16
  %v7301 = vrot.slane %v7299, 1
  %v7302 = vor.u32 %v7297, %v7301
  %v7304 = vshll.u32 %v6968, 16
  %v7306 = vrot.slane %v7304, 1
  %v7307 = vsel %vm1000, %v7302, %v7306
  %v7309 = vshrl.u32 %v6937, 16
  %v7311 = vshll.u32 %v6937, 16
  %v7313 = vrot.slane %v7311, 1
  %v7314 = vor.u32 %v7309, %v7313
  %v7316 = vshll.u32 %v6969, 16
  %v7318 = vrot.slane %v7316, 1
  %v7319 = vsel %vm1000, %v7314, %v7318
  %v7321 = vshrl.u32 %v6938, 16
  %v7323 = vshll.u32 %v6938, 16
  %v7325 = vrot.slane %v7323, 1
  %v7326 = vor.u32 %v7321, %v7325
  %v7328 = vshll.u32 %v6970, 16
  %v7330 = vrot.slane %v7328, 1
  %v7331 = vsel %vm1000, %v7326, %v7330
  %7332 = vrot.lane.b32.xlu0 %v6983, 32
  %v7333 = vpop.permute.xlu0 %7332
  %7334 = vrot.lane.b32.xlu0 %v6995, 32
  %v7335 = vpop.permute.xlu0 %7334
  %7336 = vrot.lane.b32.xlu0 %v7007, 32
  %v7337 = vpop.permute.xlu0 %7336
  %7338 = vrot.lane.b32.xlu0 %v7019, 32
  %v7339 = vpop.permute.xlu0 %7338
  %7340 = vrot.lane.b32.xlu0 %v7031, 32
  %v7341 = vpop.permute.xlu0 %7340
  %7342 = vrot.lane.b32.xlu0 %v7043, 32
  %v7343 = vpop.permute.xlu0 %7342
  %7344 = vrot.lane.b32.xlu0 %v7055, 32
  %v7345 = vpop.permute.xlu0 %7344
  %7346 = vrot.lane.b32.xlu0 %v7067, 32
  %v7347 = vpop.permute.xlu0 %7346
  %7348 = vrot.lane.b32.xlu0 %v7079, 32
  %v7349 = vpop.permute.xlu0 %7348
  %7350 = vrot.lane.b32.xlu0 %v7091, 32
  %v7351 = vpop.permute.xlu0 %7350
  %7352 = vrot.lane.b32.xlu0 %v7103, 32
  %v7353 = vpop.permute.xlu0 %7352
  %7354 = vrot.lane.b32.xlu0 %v7115, 32
  %v7355 = vpop.permute.xlu0 %7354
  %7356 = vrot.lane.b32.xlu0 %v7127, 32
  %v7357 = vpop.permute.xlu0 %7356
  %7358 = vrot.lane.b32.xlu0 %v7139, 32
  %v7359 = vpop.permute.xlu0 %7358
  %7360 = vrot.lane.b32.xlu0 %v7151, 32
  %v7361 = vpop.permute.xlu0 %7360
  %7362 = vrot.lane.b32.xlu0 %v7163, 32
  %v7363 = vpop.permute.xlu0 %7362
  %7364 = vrot.lane.b32.xlu0 %v7175, 32
  %v7365 = vpop.permute.xlu0 %7364
  %7366 = vrot.lane.b32.xlu0 %v7187, 32
  %v7367 = vpop.permute.xlu0 %7366
  %7368 = vrot.lane.b32.xlu0 %v7199, 32
  %v7369 = vpop.permute.xlu0 %7368
  %7370 = vrot.lane.b32.xlu0 %v7211, 32
  %v7371 = vpop.permute.xlu0 %7370
  %7372 = vrot.lane.b32.xlu0 %v7223, 32
  %v7373 = vpop.permute.xlu0 %7372
  %7374 = vrot.lane.b32.xlu0 %v7235, 32
  %v7375 = vpop.permute.xlu0 %7374
  %7376 = vrot.lane.b32.xlu0 %v7247, 32
  %v7377 = vpop.permute.xlu0 %7376
  %7378 = vrot.lane.b32.xlu0 %v7259, 32
  %v7379 = vpop.permute.xlu0 %7378
  %7380 = vrot.lane.b32.xlu0 %v7271, 32
  %v7381 = vpop.permute.xlu0 %7380
  %7382 = vrot.lane.b32.xlu0 %v7283, 32
  %v7383 = vpop.permute.xlu0 %7382
  %7384 = vrot.lane.b32.xlu0 %v7295, 32
  %v7385 = vpop.permute.xlu0 %7384
  %7386 = vrot.lane.b32.xlu0 %v7307, 32
  %v7387 = vpop.permute.xlu0 %7386
  %7388 = vrot.lane.b32.xlu0 %v7319, 32
  %v7389 = vpop.permute.xlu0 %7388
  %7390 = vrot.lane.b32.xlu0 %v7331, 32
  %v7391 = vpop.permute.xlu0 %7390
  %v7452 = vrot.slane %v6908, 1
  %v7453 = vrot.slane %v6940, 1
  %v7454 = vsel %vm1497, %v7452, %v7453
  %v7455 = vrot.slane %v6909, 1
  %v7456 = vrot.slane %v6941, 1
  %v7457 = vsel %vm1497, %v7455, %v7456
  %v7458 = vrot.slane %v6910, 1
  %v7459 = vrot.slane %v6942, 1
  %v7460 = vsel %vm1497, %v7458, %v7459
  %v7461 = vrot.slane %v6911, 1
  %v7462 = vrot.slane %v6943, 1
  %v7463 = vsel %vm1497, %v7461, %v7462
  %v7464 = vrot.slane %v6912, 1
  %v7465 = vrot.slane %v6944, 1
  %v7466 = vsel %vm1497, %v7464, %v7465
  %v7467 = vrot.slane %v6913, 1
  %v7468 = vrot.slane %v6945, 1
  %v7469 = vsel %vm1497, %v7467, %v7468
  %v7470 = vrot.slane %v6914, 1
  %v7471 = vrot.slane %v6946, 1
  %v7472 = vsel %vm1497, %v7470, %v7471
  %v7473 = vrot.slane %v6915, 1
  %v7474 = vrot.slane %v6947, 1
  %v7475 = vsel %vm1497, %v7473, %v7474
  %v7476 = vrot.slane %v6916, 1
  %v7477 = vrot.slane %v6948, 1
  %v7478 = vsel %vm1497, %v7476, %v7477
  %v7479 = vrot.slane %v6917, 1
  %v7480 = vrot.slane %v6949, 1
  %v7481 = vsel %vm1497, %v7479, %v7480
  %v7482 = vrot.slane %v6918, 1
  %v7483 = vrot.slane %v6950, 1
  %v7484 = vsel %vm1497, %v7482, %v7483
  %v7485 = vrot.slane %v6919, 1
  %v7486 = vrot.slane %v6951, 1
  %v7487 = vsel %vm1497, %v7485, %v7486
  %v7488 = vrot.slane %v6920, 1
  %v7489 = vrot.slane %v6952, 1
  %v7490 = vsel %vm1497, %v7488, %v7489
  %v7491 = vrot.slane %v6921, 1
  %v7492 = vrot.slane %v6953, 1
  %v7493 = vsel %vm1497, %v7491, %v7492
  %v7494 = vrot.slane %v6922, 1
  %v7495 = vrot.slane %v6954, 1
  %v7496 = vsel %vm1497, %v7494, %v7495
  %v7497 = vrot.slane %v6924, 1
  %v7498 = vrot.slane %v6956, 1
  %v7499 = vsel %vm1497, %v7497, %v7498
  %v7500 = vrot.slane %v6925, 1
  %v7501 = vrot.slane %v6957, 1
  %v7502 = vsel %vm1497, %v7500, %v7501
  %v7503 = vrot.slane %v6926, 1
  %v7504 = vrot.slane %v6958, 1
  %v7505 = vsel %vm1497, %v7503, %v7504
  %v7506 = vrot.slane %v6927, 1
  %v7507 = vrot.slane %v6959, 1
  %v7508 = vsel %vm1497, %v7506, %v7507
  %v7509 = vrot.slane %v6928, 1
  %v7510 = vrot.slane %v6960, 1
  %v7511 = vsel %vm1497, %v7509, %v7510
  %v7512 = vrot.slane %v6929, 1
  %v7513 = vrot.slane %v6961, 1
  %v7514 = vsel %vm1497, %v7512, %v7513
  %v7515 = vrot.slane %v6930, 1
  %v7516 = vrot.slane %v6962, 1
  %v7517 = vsel %vm1497, %v7515, %v7516
  %v7518 = vrot.slane %v6931, 1
  %v7519 = vrot.slane %v6963, 1
  %v7520 = vsel %vm1497, %v7518, %v7519
  %v7521 = vrot.slane %v6932, 1
  %v7522 = vrot.slane %v6964, 1
  %v7523 = vsel %vm1497, %v7521, %v7522
  %v7524 = vrot.slane %v6933, 1
  %v7525 = vrot.slane %v6965, 1
  %v7526 = vsel %vm1497, %v7524, %v7525
  %v7527 = vrot.slane %v6934, 1
  %v7528 = vrot.slane %v6966, 1
  %v7529 = vsel %vm1497, %v7527, %v7528
  %v7530 = vrot.slane %v6935, 1
  %v7531 = vrot.slane %v6967, 1
  %v7532 = vsel %vm1497, %v7530, %v7531
  %v7533 = vrot.slane %v6936, 1
  %v7534 = vrot.slane %v6968, 1
  %v7535 = vsel %vm1497, %v7533, %v7534
  %v7536 = vrot.slane %v6937, 1
  %v7537 = vrot.slane %v6969, 1
  %v7538 = vsel %vm1497, %v7536, %v7537
  %v7539 = vrot.slane %v6938, 1
  %v7540 = vrot.slane %v6970, 1
  %v7541 = vsel %vm1497, %v7539, %v7540
  %7542 = vrot.lane.b32.xlu0 %v7454, 64
  %v7543 = vpop.permute.xlu0 %7542
  %7544 = vrot.lane.b32.xlu0 %v7457, 64
  %v7545 = vpop.permute.xlu0 %7544
  %7546 = vrot.lane.b32.xlu0 %v7460, 64
  %v7547 = vpop.permute.xlu0 %7546
  %7548 = vrot.lane.b32.xlu0 %v7463, 64
  %v7549 = vpop.permute.xlu0 %7548
  %7550 = vrot.lane.b32.xlu0 %v7466, 64
  %v7551 = vpop.permute.xlu0 %7550
  %7552 = vrot.lane.b32.xlu0 %v7469, 64
  %v7553 = vpop.permute.xlu0 %7552
  %7554 = vrot.lane.b32.xlu0 %v7472, 64
  %v7555 = vpop.permute.xlu0 %7554
  %7556 = vrot.lane.b32.xlu0 %v7475, 64
  %v7557 = vpop.permute.xlu0 %7556
  %7558 = vrot.lane.b32.xlu0 %v7478, 64
  %v7559 = vpop.permute.xlu0 %7558
  %7560 = vrot.lane.b32.xlu0 %v7481, 64
  %v7561 = vpop.permute.xlu0 %7560
  %7562 = vrot.lane.b32.xlu0 %v7484, 64
  %v7563 = vpop.permute.xlu0 %7562
  %7564 = vrot.lane.b32.xlu0 %v7487, 64
  %v7565 = vpop.permute.xlu0 %7564
  %7566 = vrot.lane.b32.xlu0 %v7490, 64
  %v7567 = vpop.permute.xlu0 %7566
  %7568 = vrot.lane.b32.xlu0 %v7493, 64
  %v7569 = vpop.permute.xlu0 %7568
  %7570 = vrot.lane.b32.xlu0 %v7496, 64
  %v7571 = vpop.permute.xlu0 %7570
  %7572 = vrot.lane.b32.xlu0 %v7499, 64
  %v7573 = vpop.permute.xlu0 %7572
  %7574 = vrot.lane.b32.xlu0 %v7502, 64
  %v7575 = vpop.permute.xlu0 %7574
  %7576 = vrot.lane.b32.xlu0 %v7505, 64
  %v7577 = vpop.permute.xlu0 %7576
  %7578 = vrot.lane.b32.xlu0 %v7508, 64
  %v7579 = vpop.permute.xlu0 %7578
  %7580 = vrot.lane.b32.xlu0 %v7511, 64
  %v7581 = vpop.permute.xlu0 %7580
  %7582 = vrot.lane.b32.xlu0 %v7514, 64
  %v7583 = vpop.permute.xlu0 %7582
  %7584 = vrot.lane.b32.xlu0 %v7517, 64
  %v7585 = vpop.permute.xlu0 %7584
  %7586 = vrot.lane.b32.xlu0 %v7520, 64
  %v7587 = vpop.permute.xlu0 %7586
  %7588 = vrot.lane.b32.xlu0 %v7523, 64
  %v7589 = vpop.permute.xlu0 %7588
  %7590 = vrot.lane.b32.xlu0 %v7526, 64
  %v7591 = vpop.permute.xlu0 %7590
  %7592 = vrot.lane.b32.xlu0 %v7529, 64
  %v7593 = vpop.permute.xlu0 %7592
  %7594 = vrot.lane.b32.xlu0 %v7532, 64
  %v7595 = vpop.permute.xlu0 %7594
  %7596 = vrot.lane.b32.xlu0 %v7535, 64
  %v7597 = vpop.permute.xlu0 %7596
  %7598 = vrot.lane.b32.xlu0 %v7538, 64
  %v7599 = vpop.permute.xlu0 %7598
  %7600 = vrot.lane.b32.xlu0 %v7541, 64
  %v7601 = vpop.permute.xlu0 %7600
  %7604 = vrot.lane.b32.xlu0 %v6908, 96
  %v7605 = vpop.permute.xlu0 %7604
  %7606 = vrot.lane.b32.xlu0 %v6909, 96
  %v7607 = vpop.permute.xlu0 %7606
  %7608 = vrot.lane.b32.xlu0 %v6910, 96
  %v7609 = vpop.permute.xlu0 %7608
  %7610 = vrot.lane.b32.xlu0 %v6911, 96
  %v7611 = vpop.permute.xlu0 %7610
  %7612 = vrot.lane.b32.xlu0 %v6912, 96
  %v7613 = vpop.permute.xlu0 %7612
  %7614 = vrot.lane.b32.xlu0 %v6913, 96
  %v7615 = vpop.permute.xlu0 %7614
  %7616 = vrot.lane.b32.xlu0 %v6914, 96
  %v7617 = vpop.permute.xlu0 %7616
  %7618 = vrot.lane.b32.xlu0 %v6915, 96
  %v7619 = vpop.permute.xlu0 %7618
  %7620 = vrot.lane.b32.xlu0 %v6916, 96
  %v7621 = vpop.permute.xlu0 %7620
  %7622 = vrot.lane.b32.xlu0 %v6917, 96
  %v7623 = vpop.permute.xlu0 %7622
  %7624 = vrot.lane.b32.xlu0 %v6918, 96
  %v7625 = vpop.permute.xlu0 %7624
  %7626 = vrot.lane.b32.xlu0 %v6919, 96
  %v7627 = vpop.permute.xlu0 %7626
  %7628 = vrot.lane.b32.xlu0 %v6920, 96
  %v7629 = vpop.permute.xlu0 %7628
  %7630 = vrot.lane.b32.xlu0 %v6921, 96
  %v7631 = vpop.permute.xlu0 %7630
  %7632 = vrot.lane.b32.xlu0 %v6922, 96
  %v7633 = vpop.permute.xlu0 %7632
  %7634 = vrot.lane.b32.xlu0 %v6923, 96
  %v7635 = vpop.permute.xlu0 %7634
  %7636 = vrot.lane.b32.xlu0 %v6924, 96
  %v7637 = vpop.permute.xlu0 %7636
  %7638 = vrot.lane.b32.xlu0 %v6925, 96
  %v7639 = vpop.permute.xlu0 %7638
  %7640 = vrot.lane.b32.xlu0 %v6926, 96
  %v7641 = vpop.permute.xlu0 %7640
  %7642 = vrot.lane.b32.xlu0 %v6927, 96
  %v7643 = vpop.permute.xlu0 %7642
  %7644 = vrot.lane.b32.xlu0 %v6928, 96
  %v7645 = vpop.permute.xlu0 %7644
  %7646 = vrot.lane.b32.xlu0 %v6929, 96
  %v7647 = vpop.permute.xlu0 %7646
  %7648 = vrot.lane.b32.xlu0 %v6930, 96
  %v7649 = vpop.permute.xlu0 %7648
  %7650 = vrot.lane.b32.xlu0 %v6931, 96
  %v7651 = vpop.permute.xlu0 %7650
  %7652 = vrot.lane.b32.xlu0 %v6932, 96
  %v7653 = vpop.permute.xlu0 %7652
  %7654 = vrot.lane.b32.xlu0 %v6933, 96
  %v7655 = vpop.permute.xlu0 %7654
  %7656 = vrot.lane.b32.xlu0 %v6934, 96
  %v7657 = vpop.permute.xlu0 %7656
  %7658 = vrot.lane.b32.xlu0 %v6935, 96
  %v7659 = vpop.permute.xlu0 %7658
  %7660 = vrot.lane.b32.xlu0 %v6936, 96
  %v7661 = vpop.permute.xlu0 %7660
  %7662 = vrot.lane.b32.xlu0 %v6937, 96
  %v7663 = vpop.permute.xlu0 %7662
  %7664 = vrot.lane.b32.xlu0 %v6938, 96
  %v7665 = vpop.permute.xlu0 %7664
  %7666 = vrot.lane.b32.xlu0 %v6939, 96
  %v7667 = vpop.permute.xlu0 %7666
  %v7669 = vshrl.u32 %v6923, 16
  %v7671 = vshll.u32 %v6923, 16
  %v7673 = vrot.slane %v7671, 1
  %v7674 = vor.u32 %v7669, %v7673
  %v7676 = vshll.u32 %v6955, 16
  %v7678 = vrot.slane %v7676, 1
  %v7679 = vsel %vm1000, %v7674, %v7678
  %v7681 = vshrl.u32 %v6939, 16
  %v7683 = vshll.u32 %v6939, 16
  %v7685 = vrot.slane %v7683, 1
  %v7686 = vor.u32 %v7681, %v7685
  %v7688 = vshll.u32 %v6971, 16
  %v7690 = vrot.slane %v7688, 1
  %v7691 = vsel %vm1000, %v7686, %v7690
  %v7694 = vrot.slane %v6923, 1
  %v7695 = vrot.slane %v6955, 1
  %v7696 = vsel %vm1497, %v7694, %v7695
  %v7697 = vrot.slane %v6939, 1
  %v7698 = vrot.slane %v6971, 1
  %v7699 = vsel %vm1497, %v7697, %v7698
  %7700 = vrot.lane.b32.xlu0 %v7454, 32
  %v7701 = vpop.permute.xlu0 %7700
  %7702 = vrot.lane.b32.xlu0 %v7457, 32
  %v7703 = vpop.permute.xlu0 %7702
  %7704 = vrot.lane.b32.xlu0 %v7460, 32
  %v7705 = vpop.permute.xlu0 %7704
  %7706 = vrot.lane.b32.xlu0 %v7463, 32
  %v7707 = vpop.permute.xlu0 %7706
  %7708 = vrot.lane.b32.xlu0 %v7466, 32
  %v7709 = vpop.permute.xlu0 %7708
  %7710 = vrot.lane.b32.xlu0 %v7469, 32
  %v7711 = vpop.permute.xlu0 %7710
  %7712 = vrot.lane.b32.xlu0 %v7472, 32
  %v7713 = vpop.permute.xlu0 %7712
  %7714 = vrot.lane.b32.xlu0 %v7475, 32
  %v7715 = vpop.permute.xlu0 %7714
  %7716 = vrot.lane.b32.xlu0 %v7478, 32
  %v7717 = vpop.permute.xlu0 %7716
  %7718 = vrot.lane.b32.xlu0 %v7481, 32
  %v7719 = vpop.permute.xlu0 %7718
  %7720 = vrot.lane.b32.xlu0 %v7484, 32
  %v7721 = vpop.permute.xlu0 %7720
  %7722 = vrot.lane.b32.xlu0 %v7487, 32
  %v7723 = vpop.permute.xlu0 %7722
  %7724 = vrot.lane.b32.xlu0 %v7490, 32
  %v7725 = vpop.permute.xlu0 %7724
  %7726 = vrot.lane.b32.xlu0 %v7493, 32
  %v7727 = vpop.permute.xlu0 %7726
  %7728 = vrot.lane.b32.xlu0 %v7496, 32
  %v7729 = vpop.permute.xlu0 %7728
  %7730 = vrot.lane.b32.xlu0 %v7696, 32
  %v7731 = vpop.permute.xlu0 %7730
  %7732 = vrot.lane.b32.xlu0 %v7499, 32
  %v7733 = vpop.permute.xlu0 %7732
  %7734 = vrot.lane.b32.xlu0 %v7502, 32
  %v7735 = vpop.permute.xlu0 %7734
  %7736 = vrot.lane.b32.xlu0 %v7505, 32
  %v7737 = vpop.permute.xlu0 %7736
  %7738 = vrot.lane.b32.xlu0 %v7508, 32
  %v7739 = vpop.permute.xlu0 %7738
  %7740 = vrot.lane.b32.xlu0 %v7511, 32
  %v7741 = vpop.permute.xlu0 %7740
  %7742 = vrot.lane.b32.xlu0 %v7514, 32
  %v7743 = vpop.permute.xlu0 %7742
  %7744 = vrot.lane.b32.xlu0 %v7517, 32
  %v7745 = vpop.permute.xlu0 %7744
  %7746 = vrot.lane.b32.xlu0 %v7520, 32
  %v7747 = vpop.permute.xlu0 %7746
  %7748 = vrot.lane.b32.xlu0 %v7523, 32
  %v7749 = vpop.permute.xlu0 %7748
  %7750 = vrot.lane.b32.xlu0 %v7526, 32
  %v7751 = vpop.permute.xlu0 %7750
  %7752 = vrot.lane.b32.xlu0 %v7529, 32
  %v7753 = vpop.permute.xlu0 %7752
  %7754 = vrot.lane.b32.xlu0 %v7532, 32
  %v7755 = vpop.permute.xlu0 %7754
  %7756 = vrot.lane.b32.xlu0 %v7535, 32
  %v7757 = vpop.permute.xlu0 %7756
  %7758 = vrot.lane.b32.xlu0 %v7538, 32
  %v7759 = vpop.permute.xlu0 %7758
  %7760 = vrot.lane.b32.xlu0 %v7541, 32
  %v7761 = vpop.permute.xlu0 %7760
  %7762 = vrot.lane.b32.xlu0 %v7699, 32
  %v7763 = vpop.permute.xlu0 %7762
  %7764 = vrot.lane.b32.xlu0 %v6909, 64
  %v7765 = vpop.permute.xlu0 %7764
  %7766 = vrot.lane.b32.xlu0 %v6910, 64
  %v7767 = vpop.permute.xlu0 %7766
  %7768 = vrot.lane.b32.xlu0 %v6911, 64
  %v7769 = vpop.permute.xlu0 %7768
  %7770 = vrot.lane.b32.xlu0 %v6912, 64
  %v7771 = vpop.permute.xlu0 %7770
  %7772 = vrot.lane.b32.xlu0 %v6913, 64
  %v7773 = vpop.permute.xlu0 %7772
  %7774 = vrot.lane.b32.xlu0 %v6914, 64
  %v7775 = vpop.permute.xlu0 %7774
  %7776 = vrot.lane.b32.xlu0 %v6915, 64
  %v7777 = vpop.permute.xlu0 %7776
  %7778 = vrot.lane.b32.xlu0 %v6916, 64
  %v7779 = vpop.permute.xlu0 %7778
  %7780 = vrot.lane.b32.xlu0 %v6917, 64
  %v7781 = vpop.permute.xlu0 %7780
  %7782 = vrot.lane.b32.xlu0 %v6918, 64
  %v7783 = vpop.permute.xlu0 %7782
  %7784 = vrot.lane.b32.xlu0 %v6919, 64
  %v7785 = vpop.permute.xlu0 %7784
  %7786 = vrot.lane.b32.xlu0 %v6920, 64
  %v7787 = vpop.permute.xlu0 %7786
  %7788 = vrot.lane.b32.xlu0 %v6921, 64
  %v7789 = vpop.permute.xlu0 %7788
  %7790 = vrot.lane.b32.xlu0 %v6922, 64
  %v7791 = vpop.permute.xlu0 %7790
  %7792 = vrot.lane.b32.xlu0 %v6923, 64
  %v7793 = vpop.permute.xlu0 %7792
  %7794 = vrot.lane.b32.xlu0 %v6925, 64
  %v7795 = vpop.permute.xlu0 %7794
  %7796 = vrot.lane.b32.xlu0 %v6926, 64
  %v7797 = vpop.permute.xlu0 %7796
  %7798 = vrot.lane.b32.xlu0 %v6927, 64
  %v7799 = vpop.permute.xlu0 %7798
  %7800 = vrot.lane.b32.xlu0 %v6928, 64
  %v7801 = vpop.permute.xlu0 %7800
  %7802 = vrot.lane.b32.xlu0 %v6929, 64
  %v7803 = vpop.permute.xlu0 %7802
  %7804 = vrot.lane.b32.xlu0 %v6930, 64
  %v7805 = vpop.permute.xlu0 %7804
  %7806 = vrot.lane.b32.xlu0 %v6931, 64
  %v7807 = vpop.permute.xlu0 %7806
  %7808 = vrot.lane.b32.xlu0 %v6932, 64
  %v7809 = vpop.permute.xlu0 %7808
  %7810 = vrot.lane.b32.xlu0 %v6933, 64
  %v7811 = vpop.permute.xlu0 %7810
  %7812 = vrot.lane.b32.xlu0 %v6934, 64
  %v7813 = vpop.permute.xlu0 %7812
  %7814 = vrot.lane.b32.xlu0 %v6935, 64
  %v7815 = vpop.permute.xlu0 %7814
  %7816 = vrot.lane.b32.xlu0 %v6936, 64
  %v7817 = vpop.permute.xlu0 %7816
  %7818 = vrot.lane.b32.xlu0 %v6937, 64
  %v7819 = vpop.permute.xlu0 %7818
  %7820 = vrot.lane.b32.xlu0 %v6938, 64
  %v7821 = vpop.permute.xlu0 %7820
  %7822 = vrot.lane.b32.xlu0 %v6939, 64
  %v7823 = vpop.permute.xlu0 %7822
  %7824 = vrot.lane.b32.xlu0 %v6995, 96
  %v7825 = vpop.permute.xlu0 %7824
  %7826 = vrot.lane.b32.xlu0 %v7007, 96
  %v7827 = vpop.permute.xlu0 %7826
  %7828 = vrot.lane.b32.xlu0 %v7019, 96
  %v7829 = vpop.permute.xlu0 %7828
  %7830 = vrot.lane.b32.xlu0 %v7031, 96
  %v7831 = vpop.permute.xlu0 %7830
  %7832 = vrot.lane.b32.xlu0 %v7043, 96
  %v7833 = vpop.permute.xlu0 %7832
  %7834 = vrot.lane.b32.xlu0 %v7055, 96
  %v7835 = vpop.permute.xlu0 %7834
  %7836 = vrot.lane.b32.xlu0 %v7067, 96
  %v7837 = vpop.permute.xlu0 %7836
  %7838 = vrot.lane.b32.xlu0 %v7079, 96
  %v7839 = vpop.permute.xlu0 %7838
  %7840 = vrot.lane.b32.xlu0 %v7091, 96
  %v7841 = vpop.permute.xlu0 %7840
  %7842 = vrot.lane.b32.xlu0 %v7103, 96
  %v7843 = vpop.permute.xlu0 %7842
  %7844 = vrot.lane.b32.xlu0 %v7115, 96
  %v7845 = vpop.permute.xlu0 %7844
  %7846 = vrot.lane.b32.xlu0 %v7127, 96
  %v7847 = vpop.permute.xlu0 %7846
  %7848 = vrot.lane.b32.xlu0 %v7139, 96
  %v7849 = vpop.permute.xlu0 %7848
  %7850 = vrot.lane.b32.xlu0 %v7151, 96
  %v7851 = vpop.permute.xlu0 %7850
  %7852 = vrot.lane.b32.xlu0 %v7679, 96
  %v7853 = vpop.permute.xlu0 %7852
  %7854 = vrot.lane.b32.xlu0 %v7175, 96
  %v7855 = vpop.permute.xlu0 %7854
  %7856 = vrot.lane.b32.xlu0 %v7187, 96
  %v7857 = vpop.permute.xlu0 %7856
  %7858 = vrot.lane.b32.xlu0 %v7199, 96
  %v7859 = vpop.permute.xlu0 %7858
  %7860 = vrot.lane.b32.xlu0 %v7211, 96
  %v7861 = vpop.permute.xlu0 %7860
  %7862 = vrot.lane.b32.xlu0 %v7223, 96
  %v7863 = vpop.permute.xlu0 %7862
  %7864 = vrot.lane.b32.xlu0 %v7235, 96
  %v7865 = vpop.permute.xlu0 %7864
  %7866 = vrot.lane.b32.xlu0 %v7247, 96
  %v7867 = vpop.permute.xlu0 %7866
  %7868 = vrot.lane.b32.xlu0 %v7259, 96
  %v7869 = vpop.permute.xlu0 %7868
  %7870 = vrot.lane.b32.xlu0 %v7271, 96
  %v7871 = vpop.permute.xlu0 %7870
  %7872 = vrot.lane.b32.xlu0 %v7283, 96
  %v7873 = vpop.permute.xlu0 %7872
  %7874 = vrot.lane.b32.xlu0 %v7295, 96
  %v7875 = vpop.permute.xlu0 %7874
  %7876 = vrot.lane.b32.xlu0 %v7307, 96
  %v7877 = vpop.permute.xlu0 %7876
  %7878 = vrot.lane.b32.xlu0 %v7319, 96
  %v7879 = vpop.permute.xlu0 %7878
  %7880 = vrot.lane.b32.xlu0 %v7331, 96
  %v7881 = vpop.permute.xlu0 %7880
  %7882 = vrot.lane.b32.xlu0 %v7691, 96
  %v7883 = vpop.permute.xlu0 %7882
  %v7885 = vsel %vm93, %v6908, %v7333
  %v7887 = vsel %vm93, %v6909, %v7335
  %v7889 = vsel %vm93, %v6910, %v7337
  %v7891 = vsel %vm93, %v6911, %v7339
  %v7893 = vsel %vm93, %v6912, %v7341
  %v7895 = vsel %vm93, %v6913, %v7343
  %v7897 = vsel %vm93, %v6914, %v7345
  %v7899 = vsel %vm93, %v6915, %v7347
  %v7901 = vsel %vm93, %v6916, %v7349
  %v7903 = vsel %vm93, %v6917, %v7351
  %v7905 = vsel %vm93, %v6918, %v7353
  %v7907 = vsel %vm93, %v6919, %v7355
  %v7909 = vsel %vm93, %v6920, %v7357
  %v7911 = vsel %vm93, %v6921, %v7359
  %v7913 = vsel %vm93, %v6922, %v7361
  %v7915 = vsel %vm93, %v6924, %v7363
  %v7917 = vsel %vm93, %v6925, %v7365
  %v7919 = vsel %vm93, %v6926, %v7367
  %v7921 = vsel %vm93, %v6927, %v7369
  %v7923 = vsel %vm93, %v6928, %v7371
  %v7925 = vsel %vm93, %v6929, %v7373
  %v7927 = vsel %vm93, %v6930, %v7375
  %v7929 = vsel %vm93, %v6931, %v7377
  %v7931 = vsel %vm93, %v6932, %v7379
  %v7933 = vsel %vm93, %v6933, %v7381
  %v7935 = vsel %vm93, %v6934, %v7383
  %v7937 = vsel %vm93, %v6935, %v7385
  %v7939 = vsel %vm93, %v6936, %v7387
  %v7941 = vsel %vm93, %v6937, %v7389
  %v7943 = vsel %vm93, %v6938, %v7391
  %v7945 = vsel %vm4807, %v7885, %v7543
  %v7947 = vsel %vm4807, %v7887, %v7545
  %v7949 = vsel %vm4807, %v7889, %v7547
  %v7951 = vsel %vm4807, %v7891, %v7549
  %v7953 = vsel %vm4807, %v7893, %v7551
  %v7955 = vsel %vm4807, %v7895, %v7553
  %v7957 = vsel %vm4807, %v7897, %v7555
  %v7959 = vsel %vm4807, %v7899, %v7557
  %v7961 = vsel %vm4807, %v7901, %v7559
  %v7963 = vsel %vm4807, %v7903, %v7561
  %v7965 = vsel %vm4807, %v7905, %v7563
  %v7967 = vsel %vm4807, %v7907, %v7565
  %v7969 = vsel %vm4807, %v7909, %v7567
  %v7971 = vsel %vm4807, %v7911, %v7569
  %v7973 = vsel %vm4807, %v7913, %v7571
  %v7975 = vsel %vm4807, %v7915, %v7573
  %v7977 = vsel %vm4807, %v7917, %v7575
  %v7979 = vsel %vm4807, %v7919, %v7577
  %v7981 = vsel %vm4807, %v7921, %v7579
  %v7983 = vsel %vm4807, %v7923, %v7581
  %v7985 = vsel %vm4807, %v7925, %v7583
  %v7987 = vsel %vm4807, %v7927, %v7585
  %v7989 = vsel %vm4807, %v7929, %v7587
  %v7991 = vsel %vm4807, %v7931, %v7589
  %v7993 = vsel %vm4807, %v7933, %v7591
  %v7995 = vsel %vm4807, %v7935, %v7593
  %v7997 = vsel %vm4807, %v7937, %v7595
  %v7999 = vsel %vm4807, %v7939, %v7597
  %v8001 = vsel %vm4807, %v7941, %v7599
  %v8003 = vsel %vm4807, %v7943, %v7601
  %v8005 = vsel %vm4870, %v4809, %v7605
  %v8008 = vsel %vm4870, %v7945, %v7607
  %v8011 = vsel %vm4870, %v7947, %v7609
  %v8014 = vsel %vm4870, %v7949, %v7611
  %v8017 = vsel %vm4870, %v7951, %v7613
  %v8020 = vsel %vm4870, %v7953, %v7615
  %v8023 = vsel %vm4870, %v7955, %v7617
  %v8026 = vsel %vm4870, %v7957, %v7619
  %v8029 = vsel %vm4870, %v7959, %v7621
  %v8032 = vsel %vm4870, %v7961, %v7623
  %v8035 = vsel %vm4870, %v7963, %v7625
  %v8038 = vsel %vm4870, %v7965, %v7627
  %v8041 = vsel %vm4870, %v7967, %v7629
  %v8044 = vsel %vm4870, %v7969, %v7631
  %v8047 = vsel %vm4870, %v7971, %v7633
  %v8050 = vsel %vm4870, %v7973, %v7635
  %v8053 = vsel %vm4870, %v4809, %v7637
  %v8056 = vsel %vm4870, %v7975, %v7639
  %v8059 = vsel %vm4870, %v7977, %v7641
  %v8062 = vsel %vm4870, %v7979, %v7643
  %v8065 = vsel %vm4870, %v7981, %v7645
  %v8068 = vsel %vm4870, %v7983, %v7647
  %v8071 = vsel %vm4870, %v7985, %v7649
  %v8074 = vsel %vm4870, %v7987, %v7651
  %v8077 = vsel %vm4870, %v7989, %v7653
  %v8080 = vsel %vm4870, %v7991, %v7655
  %v8083 = vsel %vm4870, %v7993, %v7657
  %v8086 = vsel %vm4870, %v7995, %v7659
  %v8089 = vsel %vm4870, %v7997, %v7661
  %v8092 = vsel %vm4870, %v7999, %v7663
  %v8095 = vsel %vm4870, %v8001, %v7665
  %v8098 = vsel %vm4870, %v8003, %v7667
  %v8102 = vsel %vm93, %v6983, %v7701
  %v8105 = vsel %vm93, %v6995, %v7703
  %v8108 = vsel %vm93, %v7007, %v7705
  %v8111 = vsel %vm93, %v7019, %v7707
  %v8114 = vsel %vm93, %v7031, %v7709
  %v8117 = vsel %vm93, %v7043, %v7711
  %v8120 = vsel %vm93, %v7055, %v7713
  %v8123 = vsel %vm93, %v7067, %v7715
  %v8126 = vsel %vm93, %v7079, %v7717
  %v8129 = vsel %vm93, %v7091, %v7719
  %v8132 = vsel %vm93, %v7103, %v7721
  %v8135 = vsel %vm93, %v7115, %v7723
  %v8138 = vsel %vm93, %v7127, %v7725
  %v8141 = vsel %vm93, %v7139, %v7727
  %v8144 = vsel %vm93, %v7151, %v7729
  %v8147 = vsel %vm93, %v7679, %v7731
  %v8150 = vsel %vm93, %v7163, %v7733
  %v8153 = vsel %vm93, %v7175, %v7735
  %v8156 = vsel %vm93, %v7187, %v7737
  %v8159 = vsel %vm93, %v7199, %v7739
  %v8162 = vsel %vm93, %v7211, %v7741
  %v8165 = vsel %vm93, %v7223, %v7743
  %v8168 = vsel %vm93, %v7235, %v7745
  %v8171 = vsel %vm93, %v7247, %v7747
  %v8174 = vsel %vm93, %v7259, %v7749
  %v8177 = vsel %vm93, %v7271, %v7751
  %v8180 = vsel %vm93, %v7283, %v7753
  %v8183 = vsel %vm93, %v7295, %v7755
  %v8186 = vsel %vm93, %v7307, %v7757
  %v8189 = vsel %vm93, %v7319, %v7759
  %v8192 = vsel %vm93, %v7331, %v7761
  %v8195 = vsel %vm93, %v7691, %v7763
  %v8197 = vsel %vm4807, %v8102, %v7765
  %v8199 = vsel %vm4807, %v8105, %v7767
  %v8201 = vsel %vm4807, %v8108, %v7769
  %v8203 = vsel %vm4807, %v8111, %v7771
  %v8205 = vsel %vm4807, %v8114, %v7773
  %v8207 = vsel %vm4807, %v8117, %v7775
  %v8209 = vsel %vm4807, %v8120, %v7777
  %v8211 = vsel %vm4807, %v8123, %v7779
  %v8213 = vsel %vm4807, %v8126, %v7781
  %v8215 = vsel %vm4807, %v8129, %v7783
  %v8217 = vsel %vm4807, %v8132, %v7785
  %v8219 = vsel %vm4807, %v8135, %v7787
  %v8221 = vsel %vm4807, %v8138, %v7789
  %v8223 = vsel %vm4807, %v8141, %v7791
  %v8225 = vsel %vm4807, %v8144, %v7793
  %v8226 = vsel %vm4807, %v8147, %v4652
  %v8228 = vsel %vm4807, %v8150, %v7795
  %v8230 = vsel %vm4807, %v8153, %v7797
  %v8232 = vsel %vm4807, %v8156, %v7799
  %v8234 = vsel %vm4807, %v8159, %v7801
  %v8236 = vsel %vm4807, %v8162, %v7803
  %v8238 = vsel %vm4807, %v8165, %v7805
  %v8240 = vsel %vm4807, %v8168, %v7807
  %v8242 = vsel %vm4807, %v8171, %v7809
  %v8244 = vsel %vm4807, %v8174, %v7811
  %v8246 = vsel %vm4807, %v8177, %v7813
  %v8248 = vsel %vm4807, %v8180, %v7815
  %v8250 = vsel %vm4807, %v8183, %v7817
  %v8252 = vsel %vm4807, %v8186, %v7819
  %v8254 = vsel %vm4807, %v8189, %v7821
  %v8256 = vsel %vm4807, %v8192, %v7823
  %v8257 = vsel %vm4807, %v8195, %v4652
  %v8259 = vsel %vm4870, %v8197, %v7825
  %v8262 = vsel %vm4870, %v8199, %v7827
  %v8265 = vsel %vm4870, %v8201, %v7829
  %v8268 = vsel %vm4870, %v8203, %v7831
  %v8271 = vsel %vm4870, %v8205, %v7833
  %v8274 = vsel %vm4870, %v8207, %v7835
  %v8277 = vsel %vm4870, %v8209, %v7837
  %v8280 = vsel %vm4870, %v8211, %v7839
  %v8283 = vsel %vm4870, %v8213, %v7841
  %v8286 = vsel %vm4870, %v8215, %v7843
  %v8289 = vsel %vm4870, %v8217, %v7845
  %v8292 = vsel %vm4870, %v8219, %v7847
  %v8295 = vsel %vm4870, %v8221, %v7849
  %v8298 = vsel %vm4870, %v8223, %v7851
  %v8301 = vsel %vm4870, %v8225, %v7853
  %v8303 = vsel %vm4870, %v8226, %v4714
  %v8306 = vsel %vm4870, %v8228, %v7855
  %v8309 = vsel %vm4870, %v8230, %v7857
  %v8312 = vsel %vm4870, %v8232, %v7859
  %v8315 = vsel %vm4870, %v8234, %v7861
  %v8318 = vsel %vm4870, %v8236, %v7863
  %v8321 = vsel %vm4870, %v8238, %v7865
  %v8324 = vsel %vm4870, %v8240, %v7867
  %v8327 = vsel %vm4870, %v8242, %v7869
  %v8330 = vsel %vm4870, %v8244, %v7871
  %v8333 = vsel %vm4870, %v8246, %v7873
  %v8336 = vsel %vm4870, %v8248, %v7875
  %v8339 = vsel %vm4870, %v8250, %v7877
  %v8342 = vsel %vm4870, %v8252, %v7879
  %v8345 = vsel %vm4870, %v8254, %v7881
  %v8348 = vsel %vm4870, %v8256, %v7883
  %v8350 = vsel %vm4870, %v8257, %v4714
  %v8353 = vlaneseq
  %v8354 = vshrl.u32 %v8353, 7
  %v8355 = vsub.s32 0, %v8354
  %v8356 = vrot.slane %v6139, %v8355
  %v8394 = vunpack.c.l.b16 %v6103
  %v8395 = vunpack.c.l.b16 %v6104
  %v8396 = vunpack.c.l.b16 %v6105
  %v8397 = vunpack.c.l.b16 %v6106
  %v8398 = vunpack.c.l.b16 %v6107
  %v8399 = vunpack.c.l.b16 %v6108
  %v8400 = vunpack.c.l.b16 %v6109
  %v8401 = vunpack.c.l.b16 %v6110
  %v8402 = vunpack.c.l.b16 %v6111
  %v8403 = vunpack.c.l.b16 %v6112
  %v8404 = vunpack.c.l.b16 %v6113
  %v8405 = vunpack.c.l.b16 %v6114
  %v8406 = vunpack.c.l.b16 %v6115
  %v8407 = vunpack.c.l.b16 %v6116
  %v8408 = vunpack.c.l.b16 %v6117
  %v8409 = vunpack.c.l.b16 %v6118
  %v8410 = vunpack.c.l.b16 %v6119
  %v8411 = vunpack.c.l.b16 %v6120
  %v8412 = vunpack.c.l.b16 %v6121
  %v8413 = vunpack.c.l.b16 %v6122
  %v8414 = vunpack.c.l.b16 %v6123
  %v8415 = vunpack.c.l.b16 %v6124
  %v8416 = vunpack.c.l.b16 %v6125
  %v8417 = vunpack.c.l.b16 %v6126
  %v8418 = vunpack.c.l.b16 %v6127
  %v8419 = vunpack.c.l.b16 %v6128
  %v8420 = vunpack.c.l.b16 %v6129
  %v8421 = vunpack.c.l.b16 %v6130
  %v8422 = vunpack.c.l.b16 %v6131
  %v8423 = vunpack.c.l.b16 %v6132
  %v8424 = vunpack.c.l.b16 %v6133
  %v8425 = vunpack.c.l.b16 %v6134
  %v8426 = vunpack.c.l.b16 %v6135
  %v8427 = vunpack.c.l.b16 %v6136
  %v8428 = vunpack.c.l.b16 %v6137
  %v8429 = vunpack.c.l.b16 %v6138
  %v8430 = vpack.c.b16 %v8395, %v8394
  %v8431 = vpack.c.b16 %v8397, %v8396
  %v8432 = vpack.c.b16 %v8399, %v8398
  %v8433 = vpack.c.b16 %v8401, %v8400
  %v8434 = vpack.c.b16 %v8403, %v8402
  %v8435 = vpack.c.b16 %v8405, %v8404
  %v8436 = vpack.c.b16 %v8407, %v8406
  %v8437 = vpack.c.b16 %v8409, %v8408
  %v8438 = vpack.c.b16 %v8411, %v8410
  %v8439 = vpack.c.b16 %v8413, %v8412
  %v8440 = vpack.c.b16 %v8415, %v8414
  %v8441 = vpack.c.b16 %v8417, %v8416
  %v8442 = vpack.c.b16 %v8419, %v8418
  %v8443 = vpack.c.b16 %v8421, %v8420
  %v8444 = vpack.c.b16 %v8423, %v8422
  %v8445 = vpack.c.b16 %v8425, %v8424
  %v8446 = vpack.c.b16 %v8427, %v8426
  %v8447 = vpack.c.b16 %v8429, %v8428
  %v8467 = vsel %vm93, %v7457, 0
  %v8470 = vsel %vm93, %v7460, 0
  %v8473 = vsel %vm93, %v7463, 0
  %v8476 = vsel %vm93, %v7466, 0
  %v8479 = vsel %vm93, %v7469, 0
  %v8482 = vsel %vm93, %v7472, 0
  %v8485 = vsel %vm93, %v7475, 0
  %v8488 = vsel %vm93, %v7478, 0
  %v8491 = vsel %vm93, %v7481, 0
  %v8494 = vsel %vm93, %v7484, 0
  %v8497 = vsel %vm93, %v7487, 0
  %v8500 = vsel %vm93, %v7490, 0
  %v8503 = vsel %vm93, %v7493, 0
  %v8506 = vsel %vm93, %v7496, 0
  %v8509 = vsel %vm93, %v7696, 0
  %v8512 = vsel %vm93, %v7502, 0
  %v8515 = vsel %vm93, %v7505, 0
  %v8518 = vsel %vm93, %v7508, 0
  %v8521 = vsel %vm93, %v7511, 0
  %v8524 = vsel %vm93, %v7514, 0
  %v8527 = vsel %vm93, %v7517, 0
  %v8530 = vsel %vm93, %v7520, 0
  %v8533 = vsel %vm93, %v7523, 0
  %v8536 = vsel %vm93, %v7526, 0
  %v8539 = vsel %vm93, %v7529, 0
  %v8542 = vsel %vm93, %v7532, 0
  %v8545 = vsel %vm93, %v7535, 0
  %v8548 = vsel %vm93, %v7538, 0
  %v8551 = vsel %vm93, %v7541, 0
  %v8554 = vsel %vm93, %v7699, 0
  %8556 = vmatprep.subr.bf16.mxu0 0
  %8557 = vmatpush1.bf16.msra.mxu0 %v8430
  %8558 = vmatprep.subr.bf16.mxu0 0
  %8559 = vmatpush1.bf16.msra.mxu0 %v8431
  %8560 = vmatprep.subr.bf16.mxu0 0
  %8561 = vmatpush1.bf16.msra.mxu0 %v8432
  %8562 = vmatprep.subr.bf16.mxu0 0
  %8563 = vmatpush1.bf16.msra.mxu0 %v8433
  %8564 = vmatprep.subr.bf16.mxu0 0
  %8565 = vmatpush1.bf16.msra.mxu0 %v8434
  %8566 = vmatprep.subr.bf16.mxu0 0
  %8567 = vmatpush1.bf16.msra.mxu0 %v8435
  %8568 = vmatprep.subr.bf16.mxu0 0
  %8569 = vmatpush1.bf16.msra.mxu0 %v8436
  %8570 = vmatprep.subr.bf16.mxu0 0
  %8571 = vmatpush1.bf16.msra.mxu0 %v8437
  %8572 = vmatprep.subr.bf16.mxu0 0
  %8573 = vmatpush1.bf16.msra.mxu0 %v8438
  %8574 = vmatprep.subr.bf16.mxu0 0
  %8575 = vmatpush1.bf16.msra.mxu0 %v8439
  %8576 = vmatprep.subr.bf16.mxu0 0
  %8577 = vmatpush1.bf16.msra.mxu0 %v8440
  %8578 = vmatprep.subr.bf16.mxu0 0
  %8579 = vmatpush1.bf16.msra.mxu0 %v8441
  %8580 = vmatprep.subr.bf16.mxu0 0
  %8581 = vmatpush1.bf16.msra.mxu0 %v8442
  %8582 = vmatprep.subr.bf16.mxu0 0
  %8583 = vmatpush1.bf16.msra.mxu0 %v8443
  %8584 = vmatprep.subr.bf16.mxu0 0
  %8585 = vmatpush1.bf16.msra.mxu0 %v8444
  %8586 = vmatprep.subr.bf16.mxu0 0
  %8587 = vmatpush1.bf16.msra.mxu0 %v8445
  %8588 = vmatprep.mubr.bf16.mxu0 %v8259
  %8589 = vmatmul.mubr.bf16.gmra.mrb[0].mxu0 %v8005
  %v8590 = vpop.f32.mrb[0].mxu0
  %v8591 = vadd.f32 %v8356, %v8590
  %v8592 = vpop.f32.mrb[0].mxu0
  %v8593 = vpop.f32.mrb[0].mxu0
  %v8594 = vadd.f32 %v8356, %v8593
  %v8595 = vpop.f32.mrb[0].mxu0
  %8596 = vmatprep.mubr.bf16.mxu0 %v8262
  %8597 = vmatmul.mubr.bf16.gmra.mrb[0].mxu0 %v8008
  %v8598 = vpop.f32.mrb[0].mxu0
  %v8599 = vadd.f32 %v8356, %v8598
  %v8600 = vpop.f32.mrb[0].mxu0
  %v8601 = vpop.f32.mrb[0].mxu0
  %v8602 = vadd.f32 %v8356, %v8601
  %v8603 = vpop.f32.mrb[0].mxu0
  %8604 = vmatprep.mubr.bf16.mxu0 %v8265
  %8605 = vmatmul.mubr.bf16.gmra.mrb[0].mxu0 %v8011
  %v8606 = vpop.f32.mrb[0].mxu0
  %v8607 = vadd.f32 %v8356, %v8606
  %v8608 = vpop.f32.mrb[0].mxu0
  %v8609 = vpop.f32.mrb[0].mxu0
  %v8610 = vadd.f32 %v8356, %v8609
  %v8611 = vpop.f32.mrb[0].mxu0
  %8612 = vmatprep.mubr.bf16.mxu0 %v8268
  %8613 = vmatmul.mubr.bf16.gmra.mrb[0].mxu0 %v8014
  %v8614 = vpop.f32.mrb[0].mxu0
  %v8615 = vadd.f32 %v8356, %v8614
  %v8616 = vpop.f32.mrb[0].mxu0
  %v8617 = vpop.f32.mrb[0].mxu0
  %v8618 = vadd.f32 %v8356, %v8617
  %v8619 = vpop.f32.mrb[0].mxu0
  %8620 = vmatprep.mubr.bf16.mxu0 %v8271
  %8621 = vmatmul.mubr.bf16.gmra.mrb[0].mxu0 %v8017
  %v8622 = vpop.f32.mrb[0].mxu0
  %v8623 = vadd.f32 %v8356, %v8622
  %v8624 = vpop.f32.mrb[0].mxu0
  %v8625 = vpop.f32.mrb[0].mxu0
  %v8626 = vadd.f32 %v8356, %v8625
  %v8627 = vpop.f32.mrb[0].mxu0
  %8628 = vmatprep.mubr.bf16.mxu0 %v8274
  %8629 = vmatmul.mubr.bf16.gmra.mrb[0].mxu0 %v8020
  %v8630 = vpop.f32.mrb[0].mxu0
  %v8631 = vadd.f32 %v8356, %v8630
  %v8632 = vpop.f32.mrb[0].mxu0
  %v8633 = vpop.f32.mrb[0].mxu0
  %v8634 = vadd.f32 %v8356, %v8633
  %v8635 = vpop.f32.mrb[0].mxu0
  %8636 = vmatprep.mubr.bf16.mxu0 %v8277
  %8637 = vmatmul.mubr.bf16.gmra.mrb[0].mxu0 %v8023
  %v8638 = vpop.f32.mrb[0].mxu0
  %v8639 = vadd.f32 %v8356, %v8638
  %v8640 = vpop.f32.mrb[0].mxu0
  %v8641 = vpop.f32.mrb[0].mxu0
  %v8642 = vadd.f32 %v8356, %v8641
  %v8643 = vpop.f32.mrb[0].mxu0
  %8644 = vmatprep.mubr.bf16.mxu0 %v8280
  %8645 = vmatmul.mubr.bf16.gmra.mrb[0].mxu0 %v8026
  %v8646 = vpop.f32.mrb[0].mxu0
  %v8647 = vadd.f32 %v8356, %v8646
  %v8648 = vpop.f32.mrb[0].mxu0
  %v8649 = vpop.f32.mrb[0].mxu0
  %v8650 = vadd.f32 %v8356, %v8649
  %v8651 = vpop.f32.mrb[0].mxu0
  %8652 = vmatprep.mubr.bf16.mxu0 %v8283
  %8653 = vmatmul.mubr.bf16.gmra.mrb[0].mxu0 %v8029
  %v8654 = vpop.f32.mrb[0].mxu0
  %v8655 = vadd.f32 %v8356, %v8654
  %v8656 = vpop.f32.mrb[0].mxu0
  %v8657 = vpop.f32.mrb[0].mxu0
  %v8658 = vadd.f32 %v8356, %v8657
  %v8659 = vpop.f32.mrb[0].mxu0
  %8660 = vmatprep.mubr.bf16.mxu0 %v8286
  %8661 = vmatmul.mubr.bf16.gmra.mrb[0].mxu0 %v8032
  %v8662 = vpop.f32.mrb[0].mxu0
  %v8663 = vadd.f32 %v8356, %v8662
  %v8664 = vpop.f32.mrb[0].mxu0
  %v8665 = vpop.f32.mrb[0].mxu0
  %v8666 = vadd.f32 %v8356, %v8665
  %v8667 = vpop.f32.mrb[0].mxu0
  %8668 = vmatprep.mubr.bf16.mxu0 %v8289
  %8669 = vmatmul.mubr.bf16.gmra.mrb[0].mxu0 %v8035
  %v8670 = vpop.f32.mrb[0].mxu0
  %v8671 = vadd.f32 %v8356, %v8670
  %v8672 = vpop.f32.mrb[0].mxu0
  %v8673 = vpop.f32.mrb[0].mxu0
  %v8674 = vadd.f32 %v8356, %v8673
  %v8675 = vpop.f32.mrb[0].mxu0
  %8676 = vmatprep.mubr.bf16.mxu0 %v8292
  %8677 = vmatmul.mubr.bf16.gmra.mrb[0].mxu0 %v8038
  %v8678 = vpop.f32.mrb[0].mxu0
  %v8679 = vadd.f32 %v8356, %v8678
  %v8680 = vpop.f32.mrb[0].mxu0
  %v8681 = vpop.f32.mrb[0].mxu0
  %v8682 = vadd.f32 %v8356, %v8681
  %v8683 = vpop.f32.mrb[0].mxu0
  %8684 = vmatprep.mubr.bf16.mxu0 %v8295
  %8685 = vmatmul.mubr.bf16.gmra.mrb[0].mxu0 %v8041
  %v8686 = vpop.f32.mrb[0].mxu0
  %v8687 = vadd.f32 %v8356, %v8686
  %v8688 = vpop.f32.mrb[0].mxu0
  %v8689 = vpop.f32.mrb[0].mxu0
  %v8690 = vadd.f32 %v8356, %v8689
  %v8691 = vpop.f32.mrb[0].mxu0
  %8692 = vmatprep.mubr.bf16.mxu0 %v8298
  %8693 = vmatmul.mubr.bf16.gmra.mrb[0].mxu0 %v8044
  %v8694 = vpop.f32.mrb[0].mxu0
  %v8695 = vadd.f32 %v8356, %v8694
  %v8696 = vpop.f32.mrb[0].mxu0
  %v8697 = vpop.f32.mrb[0].mxu0
  %v8698 = vadd.f32 %v8356, %v8697
  %v8699 = vpop.f32.mrb[0].mxu0
  %8700 = vmatprep.mubr.bf16.mxu0 %v8301
  %8701 = vmatmul.mubr.bf16.gmra.mrb[0].mxu0 %v8047
  %v8702 = vpop.f32.mrb[0].mxu0
  %v8703 = vadd.f32 %v8356, %v8702
  %v8704 = vpop.f32.mrb[0].mxu0
  %v8705 = vpop.f32.mrb[0].mxu0
  %v8706 = vadd.f32 %v8356, %v8705
  %v8707 = vpop.f32.mrb[0].mxu0
  %8708 = vmatprep.mubr.bf16.mxu0 %v8303
  %8709 = vmatmul.mubr.bf16.gmra.mrb[0].mxu0 %v8050
  %v8710 = vpop.f32.mrb[0].mxu0
  %v8711 = vadd.f32 %v8356, %v8710
  %v8712 = vpop.f32.mrb[0].mxu0
  %v8713 = vpop.f32.mrb[0].mxu0
  %v8714 = vadd.f32 %v8356, %v8713
  %v8715 = vpop.f32.mrb[0].mxu0
  %8716 = vmatprep.mubr.bf16.mxu0 %v8306
  %8717 = vmatmul.mubr.bf16.gmra.mrb[0].mxu0 %v8053
  %v8718 = vpop.f32.mrb[0].mxu0
  %v8719 = vadd.f32 %v8356, %v8718
  %v8720 = vpop.f32.mrb[0].mxu0
  %v8721 = vpop.f32.mrb[0].mxu0
  %v8722 = vadd.f32 %v8356, %v8721
  %v8723 = vpop.f32.mrb[0].mxu0
  %8724 = vmatprep.mubr.bf16.mxu0 %v8309
  %8725 = vmatmul.mubr.bf16.gmra.mrb[0].mxu0 %v8056
  %v8726 = vpop.f32.mrb[0].mxu0
  %v8727 = vadd.f32 %v8356, %v8726
  %v8728 = vpop.f32.mrb[0].mxu0
  %v8729 = vpop.f32.mrb[0].mxu0
  %v8730 = vadd.f32 %v8356, %v8729
  %v8731 = vpop.f32.mrb[0].mxu0
  %8732 = vmatprep.mubr.bf16.mxu0 %v8312
  %8733 = vmatmul.mubr.bf16.gmra.mrb[0].mxu0 %v8059
  %v8734 = vpop.f32.mrb[0].mxu0
  %v8735 = vadd.f32 %v8356, %v8734
  %v8736 = vpop.f32.mrb[0].mxu0
  %v8737 = vpop.f32.mrb[0].mxu0
  %v8738 = vadd.f32 %v8356, %v8737
  %v8739 = vpop.f32.mrb[0].mxu0
  %8740 = vmatprep.mubr.bf16.mxu0 %v8315
  %8741 = vmatmul.mubr.bf16.gmra.mrb[0].mxu0 %v8062
  %v8742 = vpop.f32.mrb[0].mxu0
  %v8743 = vadd.f32 %v8356, %v8742
  %v8744 = vpop.f32.mrb[0].mxu0
  %v8745 = vpop.f32.mrb[0].mxu0
  %v8746 = vadd.f32 %v8356, %v8745
  %v8747 = vpop.f32.mrb[0].mxu0
  %8748 = vmatprep.mubr.bf16.mxu0 %v8318
  %8749 = vmatmul.mubr.bf16.gmra.mrb[0].mxu0 %v8065
  %v8750 = vpop.f32.mrb[0].mxu0
  %v8751 = vadd.f32 %v8356, %v8750
  %v8752 = vpop.f32.mrb[0].mxu0
  %v8753 = vpop.f32.mrb[0].mxu0
  %v8754 = vadd.f32 %v8356, %v8753
  %v8755 = vpop.f32.mrb[0].mxu0
  %8756 = vmatprep.mubr.bf16.mxu0 %v8321
  %8757 = vmatmul.mubr.bf16.gmra.mrb[0].mxu0 %v8068
  %v8758 = vpop.f32.mrb[0].mxu0
  %v8759 = vadd.f32 %v8356, %v8758
  %v8760 = vpop.f32.mrb[0].mxu0
  %v8761 = vpop.f32.mrb[0].mxu0
  %v8762 = vadd.f32 %v8356, %v8761
  %v8763 = vpop.f32.mrb[0].mxu0
  %8764 = vmatprep.mubr.bf16.mxu0 %v8324
  %8765 = vmatmul.mubr.bf16.gmra.mrb[0].mxu0 %v8071
  %v8766 = vpop.f32.mrb[0].mxu0
  %v8767 = vadd.f32 %v8356, %v8766
  %v8768 = vpop.f32.mrb[0].mxu0
  %v8769 = vpop.f32.mrb[0].mxu0
  %v8770 = vadd.f32 %v8356, %v8769
  %v8771 = vpop.f32.mrb[0].mxu0
  %8772 = vmatprep.mubr.bf16.mxu0 %v8327
  %8773 = vmatmul.mubr.bf16.gmra.mrb[0].mxu0 %v8074
  %v8774 = vpop.f32.mrb[0].mxu0
  %v8775 = vadd.f32 %v8356, %v8774
  %v8776 = vpop.f32.mrb[0].mxu0
  %v8777 = vpop.f32.mrb[0].mxu0
  %v8778 = vadd.f32 %v8356, %v8777
  %v8779 = vpop.f32.mrb[0].mxu0
  %8780 = vmatprep.mubr.bf16.mxu0 %v8330
  %8781 = vmatmul.mubr.bf16.gmra.mrb[0].mxu0 %v8077
  %v8782 = vpop.f32.mrb[0].mxu0
  %v8783 = vadd.f32 %v8356, %v8782
  %v8784 = vpop.f32.mrb[0].mxu0
  %v8785 = vpop.f32.mrb[0].mxu0
  %v8786 = vadd.f32 %v8356, %v8785
  %v8787 = vpop.f32.mrb[0].mxu0
  %8788 = vmatprep.mubr.bf16.mxu0 %v8333
  %8789 = vmatmul.mubr.bf16.gmra.mrb[0].mxu0 %v8080
  %v8790 = vpop.f32.mrb[0].mxu0
  %v8791 = vadd.f32 %v8356, %v8790
  %v8792 = vpop.f32.mrb[0].mxu0
  %v8793 = vpop.f32.mrb[0].mxu0
  %v8794 = vadd.f32 %v8356, %v8793
  %v8795 = vpop.f32.mrb[0].mxu0
  %8796 = vmatprep.mubr.bf16.mxu0 %v8336
  %8797 = vmatmul.mubr.bf16.gmra.mrb[0].mxu0 %v8083
  %v8798 = vpop.f32.mrb[0].mxu0
  %v8799 = vadd.f32 %v8356, %v8798
  %v8800 = vpop.f32.mrb[0].mxu0
  %v8801 = vpop.f32.mrb[0].mxu0
  %v8802 = vadd.f32 %v8356, %v8801
  %v8803 = vpop.f32.mrb[0].mxu0
  %8804 = vmatprep.mubr.bf16.mxu0 %v8339
  %8805 = vmatmul.mubr.bf16.gmra.mrb[0].mxu0 %v8086
  %v8806 = vpop.f32.mrb[0].mxu0
  %v8807 = vadd.f32 %v8356, %v8806
  %v8808 = vpop.f32.mrb[0].mxu0
  %v8809 = vpop.f32.mrb[0].mxu0
  %v8810 = vadd.f32 %v8356, %v8809
  %v8811 = vpop.f32.mrb[0].mxu0
  %8812 = vmatprep.mubr.bf16.mxu0 %v8342
  %8813 = vmatmul.mubr.bf16.gmra.mrb[0].mxu0 %v8089
  %v8814 = vpop.f32.mrb[0].mxu0
  %v8815 = vadd.f32 %v8356, %v8814
  %v8816 = vpop.f32.mrb[0].mxu0
  %v8817 = vpop.f32.mrb[0].mxu0
  %v8818 = vadd.f32 %v8356, %v8817
  %v8819 = vpop.f32.mrb[0].mxu0
  %8820 = vmatprep.mubr.bf16.mxu0 %v8345
  %8821 = vmatmul.mubr.bf16.gmra.mrb[0].mxu0 %v8092
  %v8822 = vpop.f32.mrb[0].mxu0
  %v8823 = vadd.f32 %v8356, %v8822
  %v8824 = vpop.f32.mrb[0].mxu0
  %v8825 = vpop.f32.mrb[0].mxu0
  %v8826 = vadd.f32 %v8356, %v8825
  %v8827 = vpop.f32.mrb[0].mxu0
  %8828 = vmatprep.mubr.bf16.mxu0 %v8348
  %8829 = vmatmul.mubr.bf16.gmra.mrb[0].mxu0 %v8095
  %v8830 = vpop.f32.mrb[0].mxu0
  %v8831 = vadd.f32 %v8356, %v8830
  %v8832 = vpop.f32.mrb[0].mxu0
  %v8833 = vpop.f32.mrb[0].mxu0
  %v8834 = vadd.f32 %v8356, %v8833
  %v8835 = vpop.f32.mrb[0].mxu0
  %8836 = vmatprep.mubr.bf16.mxu0 %v8350
  %8837 = vmatmul.mubr.bf16.gmra.mrb[0].mxu0 %v8098
  %v8838 = vpop.f32.mrb[0].mxu0
  %v8839 = vadd.f32 %v8356, %v8838
  %v8840 = vpop.f32.mrb[0].mxu0
  %v8841 = vpop.f32.mrb[0].mxu0
  %v8842 = vadd.f32 %v8356, %v8841
  %v8843 = vpop.f32.mrb[0].mxu0
  %8844 = vdwg.mxu0
  %8845 = vmatprep.subr.bf16.mxu0 0
  %8846 = vmatpush1.bf16.msra.mxu0 %v8446
  %8847 = vmatprep.subr.bf16.mxu0 0
  %8848 = vmatpush1.bf16.msra.mxu0 %v8447
  %8849 = vmatprep.subr.bf16.mxu0 0
  %8850 = vmatpush1.bf16.msra.mxu0 0
  %8851 = vmatprep.subr.bf16.mxu0 0
  %8852 = vmatpush1.bf16.msra.mxu0 0
  %8853 = vmatprep.subr.bf16.mxu0 0
  %8854 = vmatpush1.bf16.msra.mxu0 0
  %8855 = vmatprep.subr.bf16.mxu0 0
  %8856 = vmatpush1.bf16.msra.mxu0 0
  %8857 = vmatprep.subr.bf16.mxu0 0
  %8858 = vmatpush1.bf16.msra.mxu0 0
  %8859 = vmatprep.subr.bf16.mxu0 0
  %8860 = vmatpush1.bf16.msra.mxu0 0
  %8861 = vmatprep.subr.bf16.mxu0 0
  %8862 = vmatpush1.bf16.msra.mxu0 0
  %8863 = vmatprep.subr.bf16.mxu0 0
  %8864 = vmatpush1.bf16.msra.mxu0 0
  %8865 = vmatprep.subr.bf16.mxu0 0
  %8866 = vmatpush1.bf16.msra.mxu0 0
  %8867 = vmatprep.subr.bf16.mxu0 0
  %8868 = vmatpush1.bf16.msra.mxu0 0
  %8869 = vmatprep.subr.bf16.mxu0 0
  %8870 = vmatpush1.bf16.msra.mxu0 0
  %8871 = vmatprep.subr.bf16.mxu0 0
  %8872 = vmatpush1.bf16.msra.mxu0 0
  %8873 = vmatprep.subr.bf16.mxu0 0
  %8874 = vmatpush1.bf16.msra.mxu0 0
  %8875 = vmatprep.subr.bf16.mxu0 0
  %8876 = vmatpush1.bf16.msra.mxu0 0
  %8877 = vmatprep.mubr.bf16.mxu0 0
  %8878 = vmatmul.mubr.bf16.gmra.mrb[0].mxu0 %v8467
  %v8879 = vpop.f32.mrb[0].mxu0
  %v8880 = vadd.f32 %v8591, %v8879
  %v8881 = vpop.f32.mrb[0].mxu0
  %v8882 = vpop.f32.mrb[0].mxu0
  %v8883 = vadd.f32 %v8594, %v8882
  %v8884 = vpop.f32.mrb[0].mxu0
  %8885 = vmatprep.mubr.bf16.mxu0 0
  %8886 = vmatmul.mubr.bf16.gmra.mrb[0].mxu0 %v8470
  %v8887 = vpop.f32.mrb[0].mxu0
  %v8888 = vadd.f32 %v8599, %v8887
  %v8889 = vpop.f32.mrb[0].mxu0
  %v8890 = vpop.f32.mrb[0].mxu0
  %v8891 = vadd.f32 %v8602, %v8890
  %v8892 = vpop.f32.mrb[0].mxu0
  %8893 = vmatprep.mubr.bf16.mxu0 0
  %8894 = vmatmul.mubr.bf16.gmra.mrb[0].mxu0 %v8473
  %v8895 = vpop.f32.mrb[0].mxu0
  %v8896 = vadd.f32 %v8607, %v8895
  %v8897 = vpop.f32.mrb[0].mxu0
  %v8898 = vpop.f32.mrb[0].mxu0
  %v8899 = vadd.f32 %v8610, %v8898
  %v8900 = vpop.f32.mrb[0].mxu0
  %8901 = vmatprep.mubr.bf16.mxu0 0
  %8902 = vmatmul.mubr.bf16.gmra.mrb[0].mxu0 %v8476
  %v8903 = vpop.f32.mrb[0].mxu0
  %v8904 = vadd.f32 %v8615, %v8903
  %v8905 = vpop.f32.mrb[0].mxu0
  %v8906 = vpop.f32.mrb[0].mxu0
  %v8907 = vadd.f32 %v8618, %v8906
  %v8908 = vpop.f32.mrb[0].mxu0
  %8909 = vmatprep.mubr.bf16.mxu0 0
  %8910 = vmatmul.mubr.bf16.gmra.mrb[0].mxu0 %v8479
  %v8911 = vpop.f32.mrb[0].mxu0
  %v8912 = vadd.f32 %v8623, %v8911
  %v8913 = vpop.f32.mrb[0].mxu0
  %v8914 = vpop.f32.mrb[0].mxu0
  %v8915 = vadd.f32 %v8626, %v8914
  %v8916 = vpop.f32.mrb[0].mxu0
  %8917 = vmatprep.mubr.bf16.mxu0 0
  %8918 = vmatmul.mubr.bf16.gmra.mrb[0].mxu0 %v8482
  %v8919 = vpop.f32.mrb[0].mxu0
  %v8920 = vadd.f32 %v8631, %v8919
  %v8921 = vpop.f32.mrb[0].mxu0
  %v8922 = vpop.f32.mrb[0].mxu0
  %v8923 = vadd.f32 %v8634, %v8922
  %v8924 = vpop.f32.mrb[0].mxu0
  %8925 = vmatprep.mubr.bf16.mxu0 0
  %8926 = vmatmul.mubr.bf16.gmra.mrb[0].mxu0 %v8485
  %v8927 = vpop.f32.mrb[0].mxu0
  %v8928 = vadd.f32 %v8639, %v8927
  %v8929 = vpop.f32.mrb[0].mxu0
  %v8930 = vpop.f32.mrb[0].mxu0
  %v8931 = vadd.f32 %v8642, %v8930
  %v8932 = vpop.f32.mrb[0].mxu0
  %8933 = vmatprep.mubr.bf16.mxu0 0
  %8934 = vmatmul.mubr.bf16.gmra.mrb[0].mxu0 %v8488
  %v8935 = vpop.f32.mrb[0].mxu0
  %v8936 = vadd.f32 %v8647, %v8935
  %v8937 = vpop.f32.mrb[0].mxu0
  %v8938 = vpop.f32.mrb[0].mxu0
  %v8939 = vadd.f32 %v8650, %v8938
  %v8940 = vpop.f32.mrb[0].mxu0
  %8941 = vmatprep.mubr.bf16.mxu0 0
  %8942 = vmatmul.mubr.bf16.gmra.mrb[0].mxu0 %v8491
  %v8943 = vpop.f32.mrb[0].mxu0
  %v8944 = vadd.f32 %v8655, %v8943
  %v8945 = vpop.f32.mrb[0].mxu0
  %v8946 = vpop.f32.mrb[0].mxu0
  %v8947 = vadd.f32 %v8658, %v8946
  %v8948 = vpop.f32.mrb[0].mxu0
  %8949 = vmatprep.mubr.bf16.mxu0 0
  %8950 = vmatmul.mubr.bf16.gmra.mrb[0].mxu0 %v8494
  %v8951 = vpop.f32.mrb[0].mxu0
  %v8952 = vadd.f32 %v8663, %v8951
  %v8953 = vpop.f32.mrb[0].mxu0
  %v8954 = vpop.f32.mrb[0].mxu0
  %v8955 = vadd.f32 %v8666, %v8954
  %v8956 = vpop.f32.mrb[0].mxu0
  %8957 = vmatprep.mubr.bf16.mxu0 0
  %8958 = vmatmul.mubr.bf16.gmra.mrb[0].mxu0 %v8497
  %v8959 = vpop.f32.mrb[0].mxu0
  %v8960 = vadd.f32 %v8671, %v8959
  %v8961 = vpop.f32.mrb[0].mxu0
  %v8962 = vpop.f32.mrb[0].mxu0
  %v8963 = vadd.f32 %v8674, %v8962
  %v8964 = vpop.f32.mrb[0].mxu0
  %8965 = vmatprep.mubr.bf16.mxu0 0
  %8966 = vmatmul.mubr.bf16.gmra.mrb[0].mxu0 %v8500
  %v8967 = vpop.f32.mrb[0].mxu0
  %v8968 = vadd.f32 %v8679, %v8967
  %v8969 = vpop.f32.mrb[0].mxu0
  %v8970 = vpop.f32.mrb[0].mxu0
  %v8971 = vadd.f32 %v8682, %v8970
  %v8972 = vpop.f32.mrb[0].mxu0
  %8973 = vmatprep.mubr.bf16.mxu0 0
  %8974 = vmatmul.mubr.bf16.gmra.mrb[0].mxu0 %v8503
  %v8975 = vpop.f32.mrb[0].mxu0
  %v8976 = vadd.f32 %v8687, %v8975
  %v8977 = vpop.f32.mrb[0].mxu0
  %v8978 = vpop.f32.mrb[0].mxu0
  %v8979 = vadd.f32 %v8690, %v8978
  %v8980 = vpop.f32.mrb[0].mxu0
  %8981 = vmatprep.mubr.bf16.mxu0 0
  %8982 = vmatmul.mubr.bf16.gmra.mrb[0].mxu0 %v8506
  %v8983 = vpop.f32.mrb[0].mxu0
  %v8984 = vadd.f32 %v8695, %v8983
  %v8985 = vpop.f32.mrb[0].mxu0
  %v8986 = vpop.f32.mrb[0].mxu0
  %v8987 = vadd.f32 %v8698, %v8986
  %v8988 = vpop.f32.mrb[0].mxu0
  %8989 = vmatprep.mubr.bf16.mxu0 0
  %8990 = vmatmul.mubr.bf16.gmra.mrb[0].mxu0 %v8509
  %v8991 = vpop.f32.mrb[0].mxu0
  %v8992 = vadd.f32 %v8703, %v8991
  %v8993 = vpop.f32.mrb[0].mxu0
  %v8994 = vpop.f32.mrb[0].mxu0
  %v8995 = vadd.f32 %v8706, %v8994
  %v8996 = vpop.f32.mrb[0].mxu0
  %8997 = vmatprep.mubr.bf16.mxu0 0
  %8998 = vmatmul.mubr.bf16.gmra.mrb[0].mxu0 %v5381
  %v8999 = vpop.f32.mrb[0].mxu0
  %v9000 = vadd.f32 %v8711, %v8999
  %v9001 = vpop.f32.mrb[0].mxu0
  %v9002 = vpop.f32.mrb[0].mxu0
  %v9003 = vadd.f32 %v8714, %v9002
  %v9004 = vpop.f32.mrb[0].mxu0
  %9005 = vmatprep.mubr.bf16.mxu0 0
  %9006 = vmatmul.mubr.bf16.gmra.mrb[0].mxu0 %v8512
  %v9007 = vpop.f32.mrb[0].mxu0
  %v9008 = vadd.f32 %v8719, %v9007
  %v9009 = vpop.f32.mrb[0].mxu0
  %v9010 = vpop.f32.mrb[0].mxu0
  %v9011 = vadd.f32 %v8722, %v9010
  %v9012 = vpop.f32.mrb[0].mxu0
  %9013 = vmatprep.mubr.bf16.mxu0 0
  %9014 = vmatmul.mubr.bf16.gmra.mrb[0].mxu0 %v8515
  %v9015 = vpop.f32.mrb[0].mxu0
  %v9016 = vadd.f32 %v8727, %v9015
  %v9017 = vpop.f32.mrb[0].mxu0
  %v9018 = vpop.f32.mrb[0].mxu0
  %v9019 = vadd.f32 %v8730, %v9018
  %v9020 = vpop.f32.mrb[0].mxu0
  %9021 = vmatprep.mubr.bf16.mxu0 0
  %9022 = vmatmul.mubr.bf16.gmra.mrb[0].mxu0 %v8518
  %v9023 = vpop.f32.mrb[0].mxu0
  %v9024 = vadd.f32 %v8735, %v9023
  %v9025 = vpop.f32.mrb[0].mxu0
  %v9026 = vpop.f32.mrb[0].mxu0
  %v9027 = vadd.f32 %v8738, %v9026
  %v9028 = vpop.f32.mrb[0].mxu0
  %9029 = vmatprep.mubr.bf16.mxu0 0
  %9030 = vmatmul.mubr.bf16.gmra.mrb[0].mxu0 %v8521
  %v9031 = vpop.f32.mrb[0].mxu0
  %v9032 = vadd.f32 %v8743, %v9031
  %v9033 = vpop.f32.mrb[0].mxu0
  %v9034 = vpop.f32.mrb[0].mxu0
  %v9035 = vadd.f32 %v8746, %v9034
  %v9036 = vpop.f32.mrb[0].mxu0
  %9037 = vmatprep.mubr.bf16.mxu0 0
  %9038 = vmatmul.mubr.bf16.gmra.mrb[0].mxu0 %v8524
  %v9039 = vpop.f32.mrb[0].mxu0
  %v9040 = vadd.f32 %v8751, %v9039
  %v9041 = vpop.f32.mrb[0].mxu0
  %v9042 = vpop.f32.mrb[0].mxu0
  %v9043 = vadd.f32 %v8754, %v9042
  %v9044 = vpop.f32.mrb[0].mxu0
  %9045 = vmatprep.mubr.bf16.mxu0 0
  %9046 = vmatmul.mubr.bf16.gmra.mrb[0].mxu0 %v8527
  %v9047 = vpop.f32.mrb[0].mxu0
  %v9048 = vadd.f32 %v8759, %v9047
  %v9049 = vpop.f32.mrb[0].mxu0
  %v9050 = vpop.f32.mrb[0].mxu0
  %v9051 = vadd.f32 %v8762, %v9050
  %v9052 = vpop.f32.mrb[0].mxu0
  %9053 = vmatprep.mubr.bf16.mxu0 0
  %9054 = vmatmul.mubr.bf16.gmra.mrb[0].mxu0 %v8530
  %v9055 = vpop.f32.mrb[0].mxu0
  %v9056 = vadd.f32 %v8767, %v9055
  %v9057 = vpop.f32.mrb[0].mxu0
  %v9058 = vpop.f32.mrb[0].mxu0
  %v9059 = vadd.f32 %v8770, %v9058
  %v9060 = vpop.f32.mrb[0].mxu0
  %9061 = vmatprep.mubr.bf16.mxu0 0
  %9062 = vmatmul.mubr.bf16.gmra.mrb[0].mxu0 %v8533
  %v9063 = vpop.f32.mrb[0].mxu0
  %v9064 = vadd.f32 %v8775, %v9063
  %v9065 = vpop.f32.mrb[0].mxu0
  %v9066 = vpop.f32.mrb[0].mxu0
  %v9067 = vadd.f32 %v8778, %v9066
  %v9068 = vpop.f32.mrb[0].mxu0
  %9069 = vmatprep.mubr.bf16.mxu0 0
  %9070 = vmatmul.mubr.bf16.gmra.mrb[0].mxu0 %v8536
  %v9071 = vpop.f32.mrb[0].mxu0
  %v9072 = vadd.f32 %v8783, %v9071
  %v9073 = vpop.f32.mrb[0].mxu0
  %v9074 = vpop.f32.mrb[0].mxu0
  %v9075 = vadd.f32 %v8786, %v9074
  %v9076 = vpop.f32.mrb[0].mxu0
  %9077 = vmatprep.mubr.bf16.mxu0 0
  %9078 = vmatmul.mubr.bf16.gmra.mrb[0].mxu0 %v8539
  %v9079 = vpop.f32.mrb[0].mxu0
  %v9080 = vadd.f32 %v8791, %v9079
  %v9081 = vpop.f32.mrb[0].mxu0
  %v9082 = vpop.f32.mrb[0].mxu0
  %v9083 = vadd.f32 %v8794, %v9082
  %v9084 = vpop.f32.mrb[0].mxu0
  %9085 = vmatprep.mubr.bf16.mxu0 0
  %9086 = vmatmul.mubr.bf16.gmra.mrb[0].mxu0 %v8542
  %v9087 = vpop.f32.mrb[0].mxu0
  %v9088 = vadd.f32 %v8799, %v9087
  %v9089 = vpop.f32.mrb[0].mxu0
  %v9090 = vpop.f32.mrb[0].mxu0
  %v9091 = vadd.f32 %v8802, %v9090
  %v9092 = vpop.f32.mrb[0].mxu0
  %9093 = vmatprep.mubr.bf16.mxu0 0
  %9094 = vmatmul.mubr.bf16.gmra.mrb[0].mxu0 %v8545
  %v9095 = vpop.f32.mrb[0].mxu0
  %v9096 = vadd.f32 %v8807, %v9095
  %v9097 = vpop.f32.mrb[0].mxu0
  %v9098 = vpop.f32.mrb[0].mxu0
  %v9099 = vadd.f32 %v8810, %v9098
  %v9100 = vpop.f32.mrb[0].mxu0
  %9101 = vmatprep.mubr.bf16.mxu0 0
  %9102 = vmatmul.mubr.bf16.gmra.mrb[0].mxu0 %v8548
  %v9103 = vpop.f32.mrb[0].mxu0
  %v9104 = vadd.f32 %v8815, %v9103
  %v9105 = vpop.f32.mrb[0].mxu0
  %v9106 = vpop.f32.mrb[0].mxu0
  %v9107 = vadd.f32 %v8818, %v9106
  %v9108 = vpop.f32.mrb[0].mxu0
  %9109 = vmatprep.mubr.bf16.mxu0 0
  %9110 = vmatmul.mubr.bf16.gmra.mrb[0].mxu0 %v8551
  %v9111 = vpop.f32.mrb[0].mxu0
  %v9112 = vadd.f32 %v8823, %v9111
  %v9113 = vpop.f32.mrb[0].mxu0
  %v9114 = vpop.f32.mrb[0].mxu0
  %v9115 = vadd.f32 %v8826, %v9114
  %v9116 = vpop.f32.mrb[0].mxu0
  %9117 = vmatprep.mubr.bf16.mxu0 0
  %9118 = vmatmul.mubr.bf16.gmra.mrb[0].mxu0 %v8554
  %v9119 = vpop.f32.mrb[0].mxu0
  %v9120 = vadd.f32 %v8831, %v9119
  %v9121 = vpop.f32.mrb[0].mxu0
  %v9122 = vpop.f32.mrb[0].mxu0
  %v9123 = vadd.f32 %v8834, %v9122
  %v9124 = vpop.f32.mrb[0].mxu0
  %9125 = vmatprep.mubr.bf16.mxu0 0
  %9126 = vmatmul.mubr.bf16.gmra.mrb[0].mxu0 %v5381
  %v9127 = vpop.f32.mrb[0].mxu0
  %v9128 = vadd.f32 %v8839, %v9127
  %v9129 = vpop.f32.mrb[0].mxu0
  %v9130 = vpop.f32.mrb[0].mxu0
  %v9131 = vadd.f32 %v8842, %v9130
  %v9132 = vpop.f32.mrb[0].mxu0
  %9133 = vdwg.mxu0
  %v9134 = vadd.f32 %v2702, %v8880
  %v9135 = vadd.f32 %v2705, %v8883
  %v9136 = vadd.f32 %v2710, %v8888
  %v9137 = vadd.f32 %v2713, %v8891
  %v9138 = vadd.f32 %v2718, %v8896
  %v9139 = vadd.f32 %v2721, %v8899
  %v9140 = vadd.f32 %v2726, %v8904
  %v9141 = vadd.f32 %v2729, %v8907
  %v9142 = vadd.f32 %v2734, %v8912
  %v9143 = vadd.f32 %v2737, %v8915
  %v9144 = vadd.f32 %v2742, %v8920
  %v9145 = vadd.f32 %v2745, %v8923
  %v9146 = vadd.f32 %v2750, %v8928
  %v9147 = vadd.f32 %v2753, %v8931
  %v9148 = vadd.f32 %v2758, %v8936
  %v9149 = vadd.f32 %v2761, %v8939
  %v9150 = vadd.f32 %v2766, %v8944
  %v9151 = vadd.f32 %v2769, %v8947
  %v9152 = vadd.f32 %v2774, %v8952
  %v9153 = vadd.f32 %v2777, %v8955
  %v9154 = vadd.f32 %v2782, %v8960
  %v9155 = vadd.f32 %v2785, %v8963
  %v9156 = vadd.f32 %v2790, %v8968
  %v9157 = vadd.f32 %v2793, %v8971
  %v9158 = vadd.f32 %v2798, %v8976
  %v9159 = vadd.f32 %v2801, %v8979
  %v9160 = vadd.f32 %v2806, %v8984
  %v9161 = vadd.f32 %v2809, %v8987
  %v9162 = vadd.f32 %v2814, %v8992
  %v9163 = vadd.f32 %v2817, %v8995
  %v9164 = vadd.f32 %v2822, %v9000
  %v9165 = vadd.f32 %v2825, %v9003
  %v9166 = vadd.f32 %v2830, %v9008
  %v9167 = vadd.f32 %v2833, %v9011
  %v9168 = vadd.f32 %v2838, %v9016
  %v9169 = vadd.f32 %v2841, %v9019
  %v9170 = vadd.f32 %v2846, %v9024
  %v9171 = vadd.f32 %v2849, %v9027
  %v9172 = vadd.f32 %v2854, %v9032
  %v9173 = vadd.f32 %v2857, %v9035
  %v9174 = vadd.f32 %v2862, %v9040
  %v9175 = vadd.f32 %v2865, %v9043
  %v9176 = vadd.f32 %v2870, %v9048
  %v9177 = vadd.f32 %v2873, %v9051
  %v9178 = vadd.f32 %v2878, %v9056
  %v9179 = vadd.f32 %v2881, %v9059
  %v9180 = vadd.f32 %v2886, %v9064
  %v9181 = vadd.f32 %v2889, %v9067
  %v9182 = vadd.f32 %v2894, %v9072
  %v9183 = vadd.f32 %v2897, %v9075
  %v9184 = vadd.f32 %v2902, %v9080
  %v9185 = vadd.f32 %v2905, %v9083
  %v9186 = vadd.f32 %v2910, %v9088
  %v9187 = vadd.f32 %v2913, %v9091
  %v9188 = vadd.f32 %v2918, %v9096
  %v9189 = vadd.f32 %v2921, %v9099
  %v9190 = vadd.f32 %v2926, %v9104
  %v9191 = vadd.f32 %v2929, %v9107
  %v9192 = vadd.f32 %v2934, %v9112
  %v9193 = vadd.f32 %v2937, %v9115
  %v9194 = vadd.f32 %v2942, %v9120
  %v9195 = vadd.f32 %v2945, %v9123
  %v9196 = vadd.f32 %v2950, %v9128
  %v9197 = vadd.f32 %v2953, %v9131
  %v9198 = vpack.c.bf16 %v9135, %v9134
  %v9199 = vpack.c.bf16 %v9137, %v9136
  %v9200 = vpack.c.bf16 %v9139, %v9138
  %v9201 = vpack.c.bf16 %v9141, %v9140
  %v9202 = vpack.c.bf16 %v9143, %v9142
  %v9203 = vpack.c.bf16 %v9145, %v9144
  %v9204 = vpack.c.bf16 %v9147, %v9146
  %v9205 = vpack.c.bf16 %v9149, %v9148
  %v9206 = vpack.c.bf16 %v9151, %v9150
  %v9207 = vpack.c.bf16 %v9153, %v9152
  %v9208 = vpack.c.bf16 %v9155, %v9154
  %v9209 = vpack.c.bf16 %v9157, %v9156
  %v9210 = vpack.c.bf16 %v9159, %v9158
  %v9211 = vpack.c.bf16 %v9161, %v9160
  %v9212 = vpack.c.bf16 %v9163, %v9162
  %v9213 = vpack.c.bf16 %v9165, %v9164
  %v9214 = vpack.c.bf16 %v9167, %v9166
  %v9215 = vpack.c.bf16 %v9169, %v9168
  %v9216 = vpack.c.bf16 %v9171, %v9170
  %v9217 = vpack.c.bf16 %v9173, %v9172
  %v9218 = vpack.c.bf16 %v9175, %v9174
  %v9219 = vpack.c.bf16 %v9177, %v9176
  %v9220 = vpack.c.bf16 %v9179, %v9178
  %v9221 = vpack.c.bf16 %v9181, %v9180
  %v9222 = vpack.c.bf16 %v9183, %v9182
  %v9223 = vpack.c.bf16 %v9185, %v9184
  %v9224 = vpack.c.bf16 %v9187, %v9186
  %v9225 = vpack.c.bf16 %v9189, %v9188
  %v9226 = vpack.c.bf16 %v9191, %v9190
  %v9227 = vpack.c.bf16 %v9193, %v9192
  %v9228 = vpack.c.bf16 %v9195, %v9194
  %v9229 = vpack.c.bf16 %v9197, %v9196
  %v9230 = vld [vmem:[%s20] sm:$0xf]
  %v9231 = vld [vmem:[%s20 + $0x4] sm:$0xf]
  %v9232 = vld [vmem:[%s20 + $0x8] sm:$0xf]
  %v9233 = vld [vmem:[%s20 + $0xc] sm:$0xf]
  %v9238 = vunpack.c.l.b16 %v9230
  %v9239 = vunpack.c.l.b16 %v9231
  %v9240 = vunpack.c.l.b16 %v9232
  %v9241 = vunpack.c.l.b16 %v9233
  %v9242 = vpack.c.b16 %v9239, %v9238
  %v9243 = vpack.c.b16 %v9241, %v9240
  %v9247 = vsel %vm93, %v9198, 0
  %v9250 = vsel %vm93, %v9199, 0
  %v9253 = vsel %vm93, %v9200, 0
  %v9256 = vsel %vm93, %v9201, 0
  %v9259 = vsel %vm93, %v9202, 0
  %v9262 = vsel %vm93, %v9203, 0
  %v9265 = vsel %vm93, %v9204, 0
  %v9268 = vsel %vm93, %v9205, 0
  %v9271 = vsel %vm93, %v9206, 0
  %v9274 = vsel %vm93, %v9207, 0
  %v9277 = vsel %vm93, %v9208, 0
  %v9280 = vsel %vm93, %v9209, 0
  %v9283 = vsel %vm93, %v9210, 0
  %v9286 = vsel %vm93, %v9211, 0
  %v9289 = vsel %vm93, %v9212, 0
  %v9292 = vsel %vm93, %v9213, 0
  %v9295 = vsel %vm93, %v9214, 0
  %v9298 = vsel %vm93, %v9215, 0
  %v9301 = vsel %vm93, %v9216, 0
  %v9304 = vsel %vm93, %v9217, 0
  %v9307 = vsel %vm93, %v9218, 0
  %v9310 = vsel %vm93, %v9219, 0
  %v9313 = vsel %vm93, %v9220, 0
  %v9316 = vsel %vm93, %v9221, 0
  %v9319 = vsel %vm93, %v9222, 0
  %v9322 = vsel %vm93, %v9223, 0
  %v9325 = vsel %vm93, %v9224, 0
  %v9328 = vsel %vm93, %v9225, 0
  %v9331 = vsel %vm93, %v9226, 0
  %v9334 = vsel %vm93, %v9227, 0
  %v9337 = vsel %vm93, %v9228, 0
  %v9340 = vsel %vm93, %v9229, 0
  %9342 = vmatprep.subr.bf16.mxu0 0
  %9343 = vmatpush1.bf16.msra.mxu0 %v9242
  %9344 = vmatprep.subr.bf16.mxu0 0
  %9345 = vmatpush1.bf16.msra.mxu0 %v9243
  %9346 = vmatprep.subr.bf16.mxu0 0
  %9347 = vmatpush1.bf16.msra.mxu0 0
  %9348 = vmatprep.subr.bf16.mxu0 0
  %9349 = vmatpush1.bf16.msra.mxu0 0
  %9350 = vmatprep.subr.bf16.mxu0 0
  %9351 = vmatpush1.bf16.msra.mxu0 0
  %9352 = vmatprep.subr.bf16.mxu0 0
  %9353 = vmatpush1.bf16.msra.mxu0 0
  %9354 = vmatprep.subr.bf16.mxu0 0
  %9355 = vmatpush1.bf16.msra.mxu0 0
  %9356 = vmatprep.subr.bf16.mxu0 0
  %9357 = vmatpush1.bf16.msra.mxu0 0
  %9358 = vmatprep.subr.bf16.mxu0 0
  %9359 = vmatpush1.bf16.msra.mxu0 0
  %9360 = vmatprep.subr.bf16.mxu0 0
  %9361 = vmatpush1.bf16.msra.mxu0 0
  %9362 = vmatprep.subr.bf16.mxu0 0
  %9363 = vmatpush1.bf16.msra.mxu0 0
  %9364 = vmatprep.subr.bf16.mxu0 0
  %9365 = vmatpush1.bf16.msra.mxu0 0
  %9366 = vmatprep.subr.bf16.mxu0 0
  %9367 = vmatpush1.bf16.msra.mxu0 0
  %9368 = vmatprep.subr.bf16.mxu0 0
  %9369 = vmatpush1.bf16.msra.mxu0 0
  %9370 = vmatprep.subr.bf16.mxu0 0
  %9371 = vmatpush1.bf16.msra.mxu0 0
  %9372 = vmatprep.subr.bf16.mxu0 0
  %9373 = vmatpush1.bf16.msra.mxu0 0
  %9374 = vmatprep.mubr.bf16.mxu0 0
  %9375 = vmatmul.mubr.bf16.gmra.mrb[0].mxu0 %v9247
  %v9376 = vpop.f32.mrb[0].mxu0
  %v9377 = vadd.f32 0.0, %v9376
  %v9378 = vpop.f32.mrb[0].mxu0
  %v9379 = vpop.f32.mrb[0].mxu0
  %v9380 = vadd.f32 0.0, %v9379
  %v9381 = vpop.f32.mrb[0].mxu0
  %9382 = vmatprep.mubr.bf16.mxu0 0
  %9383 = vmatmul.mubr.bf16.gmra.mrb[0].mxu0 %v9250
  %v9384 = vpop.f32.mrb[0].mxu0
  %v9385 = vadd.f32 0.0, %v9384
  %v9386 = vpop.f32.mrb[0].mxu0
  %v9387 = vpop.f32.mrb[0].mxu0
  %v9388 = vadd.f32 0.0, %v9387
  %v9389 = vpop.f32.mrb[0].mxu0
  %9390 = vmatprep.mubr.bf16.mxu0 0
  %9391 = vmatmul.mubr.bf16.gmra.mrb[0].mxu0 %v9253
  %v9392 = vpop.f32.mrb[0].mxu0
  %v9393 = vadd.f32 0.0, %v9392
  %v9394 = vpop.f32.mrb[0].mxu0
  %v9395 = vpop.f32.mrb[0].mxu0
  %v9396 = vadd.f32 0.0, %v9395
  %v9397 = vpop.f32.mrb[0].mxu0
  %9398 = vmatprep.mubr.bf16.mxu0 0
  %9399 = vmatmul.mubr.bf16.gmra.mrb[0].mxu0 %v9256
  %v9400 = vpop.f32.mrb[0].mxu0
  %v9401 = vadd.f32 0.0, %v9400
  %v9402 = vpop.f32.mrb[0].mxu0
  %v9403 = vpop.f32.mrb[0].mxu0
  %v9404 = vadd.f32 0.0, %v9403
  %v9405 = vpop.f32.mrb[0].mxu0
  %9406 = vmatprep.mubr.bf16.mxu0 0
  %9407 = vmatmul.mubr.bf16.gmra.mrb[0].mxu0 %v9259
  %v9408 = vpop.f32.mrb[0].mxu0
  %v9409 = vadd.f32 0.0, %v9408
  %v9410 = vpop.f32.mrb[0].mxu0
  %v9411 = vpop.f32.mrb[0].mxu0
  %v9412 = vadd.f32 0.0, %v9411
  %v9413 = vpop.f32.mrb[0].mxu0
  %9414 = vmatprep.mubr.bf16.mxu0 0
  %9415 = vmatmul.mubr.bf16.gmra.mrb[0].mxu0 %v9262
  %v9416 = vpop.f32.mrb[0].mxu0
  %v9417 = vadd.f32 0.0, %v9416
  %v9418 = vpop.f32.mrb[0].mxu0
  %v9419 = vpop.f32.mrb[0].mxu0
  %v9420 = vadd.f32 0.0, %v9419
  %v9421 = vpop.f32.mrb[0].mxu0
  %9422 = vmatprep.mubr.bf16.mxu0 0
  %9423 = vmatmul.mubr.bf16.gmra.mrb[0].mxu0 %v9265
  %v9424 = vpop.f32.mrb[0].mxu0
  %v9425 = vadd.f32 0.0, %v9424
  %v9426 = vpop.f32.mrb[0].mxu0
  %v9427 = vpop.f32.mrb[0].mxu0
  %v9428 = vadd.f32 0.0, %v9427
  %v9429 = vpop.f32.mrb[0].mxu0
  %9430 = vmatprep.mubr.bf16.mxu0 0
  %9431 = vmatmul.mubr.bf16.gmra.mrb[0].mxu0 %v9268
  %v9432 = vpop.f32.mrb[0].mxu0
  %v9433 = vadd.f32 0.0, %v9432
  %v9434 = vpop.f32.mrb[0].mxu0
  %v9435 = vpop.f32.mrb[0].mxu0
  %v9436 = vadd.f32 0.0, %v9435
  %v9437 = vpop.f32.mrb[0].mxu0
  %9438 = vmatprep.mubr.bf16.mxu0 0
  %9439 = vmatmul.mubr.bf16.gmra.mrb[0].mxu0 %v9271
  %v9440 = vpop.f32.mrb[0].mxu0
  %v9441 = vadd.f32 0.0, %v9440
  %v9442 = vpop.f32.mrb[0].mxu0
  %v9443 = vpop.f32.mrb[0].mxu0
  %v9444 = vadd.f32 0.0, %v9443
  %v9445 = vpop.f32.mrb[0].mxu0
  %9446 = vmatprep.mubr.bf16.mxu0 0
  %9447 = vmatmul.mubr.bf16.gmra.mrb[0].mxu0 %v9274
  %v9448 = vpop.f32.mrb[0].mxu0
  %v9449 = vadd.f32 0.0, %v9448
  %v9450 = vpop.f32.mrb[0].mxu0
  %v9451 = vpop.f32.mrb[0].mxu0
  %v9452 = vadd.f32 0.0, %v9451
  %v9453 = vpop.f32.mrb[0].mxu0
  %9454 = vmatprep.mubr.bf16.mxu0 0
  %9455 = vmatmul.mubr.bf16.gmra.mrb[0].mxu0 %v9277
  %v9456 = vpop.f32.mrb[0].mxu0
  %v9457 = vadd.f32 0.0, %v9456
  %v9458 = vpop.f32.mrb[0].mxu0
  %v9459 = vpop.f32.mrb[0].mxu0
  %v9460 = vadd.f32 0.0, %v9459
  %v9461 = vpop.f32.mrb[0].mxu0
  %9462 = vmatprep.mubr.bf16.mxu0 0
  %9463 = vmatmul.mubr.bf16.gmra.mrb[0].mxu0 %v9280
  %v9464 = vpop.f32.mrb[0].mxu0
  %v9465 = vadd.f32 0.0, %v9464
  %v9466 = vpop.f32.mrb[0].mxu0
  %v9467 = vpop.f32.mrb[0].mxu0
  %v9468 = vadd.f32 0.0, %v9467
  %v9469 = vpop.f32.mrb[0].mxu0
  %9470 = vmatprep.mubr.bf16.mxu0 0
  %9471 = vmatmul.mubr.bf16.gmra.mrb[0].mxu0 %v9283
  %v9472 = vpop.f32.mrb[0].mxu0
  %v9473 = vadd.f32 0.0, %v9472
  %v9474 = vpop.f32.mrb[0].mxu0
  %v9475 = vpop.f32.mrb[0].mxu0
  %v9476 = vadd.f32 0.0, %v9475
  %v9477 = vpop.f32.mrb[0].mxu0
  %9478 = vmatprep.mubr.bf16.mxu0 0
  %9479 = vmatmul.mubr.bf16.gmra.mrb[0].mxu0 %v9286
  %v9480 = vpop.f32.mrb[0].mxu0
  %v9481 = vadd.f32 0.0, %v9480
  %v9482 = vpop.f32.mrb[0].mxu0
  %v9483 = vpop.f32.mrb[0].mxu0
  %v9484 = vadd.f32 0.0, %v9483
  %v9485 = vpop.f32.mrb[0].mxu0
  %9486 = vmatprep.mubr.bf16.mxu0 0
  %9487 = vmatmul.mubr.bf16.gmra.mrb[0].mxu0 %v9289
  %v9488 = vpop.f32.mrb[0].mxu0
  %v9489 = vadd.f32 0.0, %v9488
  %v9490 = vpop.f32.mrb[0].mxu0
  %v9491 = vpop.f32.mrb[0].mxu0
  %v9492 = vadd.f32 0.0, %v9491
  %v9493 = vpop.f32.mrb[0].mxu0
  %9494 = vmatprep.mubr.bf16.mxu0 0
  %9495 = vmatmul.mubr.bf16.gmra.mrb[0].mxu0 %v9292
  %v9496 = vpop.f32.mrb[0].mxu0
  %v9497 = vadd.f32 0.0, %v9496
  %v9498 = vpop.f32.mrb[0].mxu0
  %v9499 = vpop.f32.mrb[0].mxu0
  %v9500 = vadd.f32 0.0, %v9499
  %v9501 = vpop.f32.mrb[0].mxu0
  %9502 = vmatprep.mubr.bf16.mxu0 0
  %9503 = vmatmul.mubr.bf16.gmra.mrb[0].mxu0 %v9295
  %v9504 = vpop.f32.mrb[0].mxu0
  %v9505 = vadd.f32 0.0, %v9504
  %v9506 = vpop.f32.mrb[0].mxu0
  %v9507 = vpop.f32.mrb[0].mxu0
  %v9508 = vadd.f32 0.0, %v9507
  %v9509 = vpop.f32.mrb[0].mxu0
  %9510 = vmatprep.mubr.bf16.mxu0 0
  %9511 = vmatmul.mubr.bf16.gmra.mrb[0].mxu0 %v9298
  %v9512 = vpop.f32.mrb[0].mxu0
  %v9513 = vadd.f32 0.0, %v9512
  %v9514 = vpop.f32.mrb[0].mxu0
  %v9515 = vpop.f32.mrb[0].mxu0
  %v9516 = vadd.f32 0.0, %v9515
  %v9517 = vpop.f32.mrb[0].mxu0
  %9518 = vmatprep.mubr.bf16.mxu0 0
  %9519 = vmatmul.mubr.bf16.gmra.mrb[0].mxu0 %v9301
  %v9520 = vpop.f32.mrb[0].mxu0
  %v9521 = vadd.f32 0.0, %v9520
  %v9522 = vpop.f32.mrb[0].mxu0
  %v9523 = vpop.f32.mrb[0].mxu0
  %v9524 = vadd.f32 0.0, %v9523
  %v9525 = vpop.f32.mrb[0].mxu0
  %9526 = vmatprep.mubr.bf16.mxu0 0
  %9527 = vmatmul.mubr.bf16.gmra.mrb[0].mxu0 %v9304
  %v9528 = vpop.f32.mrb[0].mxu0
  %v9529 = vadd.f32 0.0, %v9528
  %v9530 = vpop.f32.mrb[0].mxu0
  %v9531 = vpop.f32.mrb[0].mxu0
  %v9532 = vadd.f32 0.0, %v9531
  %v9533 = vpop.f32.mrb[0].mxu0
  %9534 = vmatprep.mubr.bf16.mxu0 0
  %9535 = vmatmul.mubr.bf16.gmra.mrb[0].mxu0 %v9307
  %v9536 = vpop.f32.mrb[0].mxu0
  %v9537 = vadd.f32 0.0, %v9536
  %v9538 = vpop.f32.mrb[0].mxu0
  %v9539 = vpop.f32.mrb[0].mxu0
  %v9540 = vadd.f32 0.0, %v9539
  %v9541 = vpop.f32.mrb[0].mxu0
  %9542 = vmatprep.mubr.bf16.mxu0 0
  %9543 = vmatmul.mubr.bf16.gmra.mrb[0].mxu0 %v9310
  %v9544 = vpop.f32.mrb[0].mxu0
  %v9545 = vadd.f32 0.0, %v9544
  %v9546 = vpop.f32.mrb[0].mxu0
  %v9547 = vpop.f32.mrb[0].mxu0
  %v9548 = vadd.f32 0.0, %v9547
  %v9549 = vpop.f32.mrb[0].mxu0
  %9550 = vmatprep.mubr.bf16.mxu0 0
  %9551 = vmatmul.mubr.bf16.gmra.mrb[0].mxu0 %v9313
  %v9552 = vpop.f32.mrb[0].mxu0
  %v9553 = vadd.f32 0.0, %v9552
  %v9554 = vpop.f32.mrb[0].mxu0
  %v9555 = vpop.f32.mrb[0].mxu0
  %v9556 = vadd.f32 0.0, %v9555
  %v9557 = vpop.f32.mrb[0].mxu0
  %9558 = vmatprep.mubr.bf16.mxu0 0
  %9559 = vmatmul.mubr.bf16.gmra.mrb[0].mxu0 %v9316
  %v9560 = vpop.f32.mrb[0].mxu0
  %v9561 = vadd.f32 0.0, %v9560
  %v9562 = vpop.f32.mrb[0].mxu0
  %v9563 = vpop.f32.mrb[0].mxu0
  %v9564 = vadd.f32 0.0, %v9563
  %v9565 = vpop.f32.mrb[0].mxu0
  %9566 = vmatprep.mubr.bf16.mxu0 0
  %9567 = vmatmul.mubr.bf16.gmra.mrb[0].mxu0 %v9319
  %v9568 = vpop.f32.mrb[0].mxu0
  %v9569 = vadd.f32 0.0, %v9568
  %v9570 = vpop.f32.mrb[0].mxu0
  %v9571 = vpop.f32.mrb[0].mxu0
  %v9572 = vadd.f32 0.0, %v9571
  %v9573 = vpop.f32.mrb[0].mxu0
  %9574 = vmatprep.mubr.bf16.mxu0 0
  %9575 = vmatmul.mubr.bf16.gmra.mrb[0].mxu0 %v9322
  %v9576 = vpop.f32.mrb[0].mxu0
  %v9577 = vadd.f32 0.0, %v9576
  %v9578 = vpop.f32.mrb[0].mxu0
  %v9579 = vpop.f32.mrb[0].mxu0
  %v9580 = vadd.f32 0.0, %v9579
  %v9581 = vpop.f32.mrb[0].mxu0
  %9582 = vmatprep.mubr.bf16.mxu0 0
  %9583 = vmatmul.mubr.bf16.gmra.mrb[0].mxu0 %v9325
  %v9584 = vpop.f32.mrb[0].mxu0
  %v9585 = vadd.f32 0.0, %v9584
  %v9586 = vpop.f32.mrb[0].mxu0
  %v9587 = vpop.f32.mrb[0].mxu0
  %v9588 = vadd.f32 0.0, %v9587
  %v9589 = vpop.f32.mrb[0].mxu0
  %9590 = vmatprep.mubr.bf16.mxu0 0
  %9591 = vmatmul.mubr.bf16.gmra.mrb[0].mxu0 %v9328
  %v9592 = vpop.f32.mrb[0].mxu0
  %v9593 = vadd.f32 0.0, %v9592
  %v9594 = vpop.f32.mrb[0].mxu0
  %v9595 = vpop.f32.mrb[0].mxu0
  %v9596 = vadd.f32 0.0, %v9595
  %v9597 = vpop.f32.mrb[0].mxu0
  %9598 = vmatprep.mubr.bf16.mxu0 0
  %9599 = vmatmul.mubr.bf16.gmra.mrb[0].mxu0 %v9331
  %v9600 = vpop.f32.mrb[0].mxu0
  %v9601 = vadd.f32 0.0, %v9600
  %v9602 = vpop.f32.mrb[0].mxu0
  %v9603 = vpop.f32.mrb[0].mxu0
  %v9604 = vadd.f32 0.0, %v9603
  %v9605 = vpop.f32.mrb[0].mxu0
  %9606 = vmatprep.mubr.bf16.mxu0 0
  %9607 = vmatmul.mubr.bf16.gmra.mrb[0].mxu0 %v9334
  %v9608 = vpop.f32.mrb[0].mxu0
  %v9609 = vadd.f32 0.0, %v9608
  %v9610 = vpop.f32.mrb[0].mxu0
  %v9611 = vpop.f32.mrb[0].mxu0
  %v9612 = vadd.f32 0.0, %v9611
  %v9613 = vpop.f32.mrb[0].mxu0
  %9614 = vmatprep.mubr.bf16.mxu0 0
  %9615 = vmatmul.mubr.bf16.gmra.mrb[0].mxu0 %v9337
  %v9616 = vpop.f32.mrb[0].mxu0
  %v9617 = vadd.f32 0.0, %v9616
  %v9618 = vpop.f32.mrb[0].mxu0
  %v9619 = vpop.f32.mrb[0].mxu0
  %v9620 = vadd.f32 0.0, %v9619
  %v9621 = vpop.f32.mrb[0].mxu0
  %9622 = vmatprep.mubr.bf16.mxu0 0
  %9623 = vmatmul.mubr.bf16.gmra.mrb[0].mxu0 %v9340
  %v9624 = vpop.f32.mrb[0].mxu0
  %v9625 = vadd.f32 0.0, %v9624
  %v9626 = vpop.f32.mrb[0].mxu0
  %v9627 = vpop.f32.mrb[0].mxu0
  %v9628 = vadd.f32 0.0, %v9627
  %v9629 = vpop.f32.mrb[0].mxu0
  %9630 = vdwg.mxu0
  %v9631 = vld [vmem:[%s3] sm:$0xff]
  %v9632 = vld [vmem:[%s3 + $0x8] sm:$0xff]
  %v9633 = vpack.c.bf16 %v9631, %v9631
  %v9634 = vpack.c.bf16 %v9632, %v9632
  %v9635 = vld [vmem:[%s21] sm:$0xf]
  %v9636 = vld [vmem:[%s21 + $0x4] sm:$0xf]
  %v9637 = vld [vmem:[%s21 + $0x8] sm:$0xf]
  %v9638 = vld [vmem:[%s21 + $0xc] sm:$0xf]
  %v9641 = vunpack.c.l.b16 %v9633
  %v9642 = vunpack.c.l.b16 %v9634
  %v9643 = vpack.c.b16 %v9642, %v9641
  %v9648 = vunpack.c.l.b16 %v9635
  %v9649 = vunpack.c.l.b16 %v9636
  %v9650 = vunpack.c.l.b16 %v9637
  %v9651 = vunpack.c.l.b16 %v9638
  %v9652 = vpack.c.b16 %v9649, %v9648
  %v9653 = vpack.c.b16 %v9651, %v9650
  %v9657 = vsel %vm93, %v9643, 0
  %9659 = vmatprep.subr.bf16.mxu0 0
  %9660 = vmatpush1.bf16.msra.mxu0 %v9652
  %9661 = vmatprep.subr.bf16.mxu0 0
  %9662 = vmatpush1.bf16.msra.mxu0 %v9653
  %9663 = vmatprep.subr.bf16.mxu0 0
  %9664 = vmatpush1.bf16.msra.mxu0 0
  %9665 = vmatprep.subr.bf16.mxu0 0
  %9666 = vmatpush1.bf16.msra.mxu0 0
  %9667 = vmatprep.subr.bf16.mxu0 0
  %9668 = vmatpush1.bf16.msra.mxu0 0
  %9669 = vmatprep.subr.bf16.mxu0 0
  %9670 = vmatpush1.bf16.msra.mxu0 0
  %9671 = vmatprep.subr.bf16.mxu0 0
  %9672 = vmatpush1.bf16.msra.mxu0 0
  %9673 = vmatprep.subr.bf16.mxu0 0
  %9674 = vmatpush1.bf16.msra.mxu0 0
  %9675 = vmatprep.subr.bf16.mxu0 0
  %9676 = vmatpush1.bf16.msra.mxu0 0
  %9677 = vmatprep.subr.bf16.mxu0 0
  %9678 = vmatpush1.bf16.msra.mxu0 0
  %9679 = vmatprep.subr.bf16.mxu0 0
  %9680 = vmatpush1.bf16.msra.mxu0 0
  %9681 = vmatprep.subr.bf16.mxu0 0
  %9682 = vmatpush1.bf16.msra.mxu0 0
  %9683 = vmatprep.subr.bf16.mxu0 0
  %9684 = vmatpush1.bf16.msra.mxu0 0
  %9685 = vmatprep.subr.bf16.mxu0 0
  %9686 = vmatpush1.bf16.msra.mxu0 0
  %9687 = vmatprep.subr.bf16.mxu0 0
  %9688 = vmatpush1.bf16.msra.mxu0 0
  %9689 = vmatprep.subr.bf16.mxu0 0
  %9690 = vmatpush1.bf16.msra.mxu0 0
  %9691 = vmatprep.mubr.bf16.mxu0 0
  %9692 = vmatmul.mubr.bf16.gmra.mrb[0].mxu0 %v9657
  %v9693 = vpop.f32.mrb[0].mxu0
  %v9694 = vadd.f32 0.0, %v9693
  %v9695 = vpop.f32.mrb[0].mxu0
  %v9696 = vpop.f32.mrb[0].mxu0
  %v9697 = vadd.f32 0.0, %v9696
  %v9698 = vpop.f32.mrb[0].mxu0
  %9699 = vdwg.mxu0
  %v9700 = vpack.c.bf16 %v9694, %v9694
  %v9701 = vpack.c.bf16 %v9697, %v9697
  %v9702 = vpack.c.bf16 %v9380, %v9377
  %v9703 = vpack.c.bf16 %v9388, %v9385
  %v9704 = vpack.c.bf16 %v9396, %v9393
  %v9705 = vpack.c.bf16 %v9404, %v9401
  %v9706 = vpack.c.bf16 %v9412, %v9409
  %v9707 = vpack.c.bf16 %v9420, %v9417
  %v9708 = vpack.c.bf16 %v9428, %v9425
  %v9709 = vpack.c.bf16 %v9436, %v9433
  %v9710 = vpack.c.bf16 %v9444, %v9441
  %v9711 = vpack.c.bf16 %v9452, %v9449
  %v9712 = vpack.c.bf16 %v9460, %v9457
  %v9713 = vpack.c.bf16 %v9468, %v9465
  %v9714 = vpack.c.bf16 %v9476, %v9473
  %v9715 = vpack.c.bf16 %v9484, %v9481
  %v9716 = vpack.c.bf16 %v9492, %v9489
  %v9717 = vpack.c.bf16 %v9500, %v9497
  %v9718 = vpack.c.bf16 %v9508, %v9505
  %v9719 = vpack.c.bf16 %v9516, %v9513
  %v9720 = vpack.c.bf16 %v9524, %v9521
  %v9721 = vpack.c.bf16 %v9532, %v9529
  %v9722 = vpack.c.bf16 %v9540, %v9537
  %v9723 = vpack.c.bf16 %v9548, %v9545
  %v9724 = vpack.c.bf16 %v9556, %v9553
  %v9725 = vpack.c.bf16 %v9564, %v9561
  %v9726 = vpack.c.bf16 %v9572, %v9569
  %v9727 = vpack.c.bf16 %v9580, %v9577
  %v9728 = vpack.c.bf16 %v9588, %v9585
  %v9729 = vpack.c.bf16 %v9596, %v9593
  %v9730 = vpack.c.bf16 %v9604, %v9601
  %v9731 = vpack.c.bf16 %v9612, %v9609
  %v9732 = vpack.c.bf16 %v9620, %v9617
  %v9733 = vpack.c.bf16 %v9628, %v9625
  %v9735 = vsel %vm93, %v9702, 0
  %v9738 = vsel %vm93, %v9703, 0
  %v9741 = vsel %vm93, %v9704, 0
  %v9744 = vsel %vm93, %v9705, 0
  %v9747 = vsel %vm93, %v9706, 0
  %v9750 = vsel %vm93, %v9707, 0
  %v9753 = vsel %vm93, %v9708, 0
  %v9756 = vsel %vm93, %v9709, 0
  %v9759 = vsel %vm93, %v9710, 0
  %v9762 = vsel %vm93, %v9711, 0
  %v9765 = vsel %vm93, %v9712, 0
  %v9768 = vsel %vm93, %v9713, 0
  %v9771 = vsel %vm93, %v9714, 0
  %v9774 = vsel %vm93, %v9715, 0
  %v9777 = vsel %vm93, %v9716, 0
  %v9780 = vsel %vm93, %v9717, 0
  %v9783 = vsel %vm93, %v9700, 0
  %9785 = vmatprep.subr.bf16.mxu0 0
  %9786 = vmatpush1.bf16.xpose.msra.mxu0 %v9783
  %9787 = vmatprep.subr.bf16.mxu0 0
  %9788 = vmatpush1.bf16.xpose.msra.mxu0 0
  %9789 = vmatprep.subr.bf16.mxu0 0
  %9790 = vmatpush1.bf16.xpose.msra.mxu0 0
  %9791 = vmatprep.subr.bf16.mxu0 0
  %9792 = vmatpush1.bf16.xpose.msra.mxu0 0
  %9793 = vmatprep.subr.bf16.mxu0 0
  %9794 = vmatpush1.bf16.xpose.msra.mxu0 0
  %9795 = vmatprep.subr.bf16.mxu0 0
  %9796 = vmatpush1.bf16.xpose.msra.mxu0 0
  %9797 = vmatprep.subr.bf16.mxu0 0
  %9798 = vmatpush1.bf16.xpose.msra.mxu0 0
  %9799 = vmatprep.subr.bf16.mxu0 0
  %9800 = vmatpush1.bf16.xpose.msra.mxu0 0
  %9801 = vmatprep.subr.bf16.mxu0 0
  %9802 = vmatpush1.bf16.xpose.msra.mxu0 0
  %9803 = vmatprep.subr.bf16.mxu0 0
  %9804 = vmatpush1.bf16.xpose.msra.mxu0 0
  %9805 = vmatprep.subr.bf16.mxu0 0
  %9806 = vmatpush1.bf16.xpose.msra.mxu0 0
  %9807 = vmatprep.subr.bf16.mxu0 0
  %9808 = vmatpush1.bf16.xpose.msra.mxu0 0
  %9809 = vmatprep.subr.bf16.mxu0 0
  %9810 = vmatpush1.bf16.xpose.msra.mxu0 0
  %9811 = vmatprep.subr.bf16.mxu0 0
  %9812 = vmatpush1.bf16.xpose.msra.mxu0 0
  %9813 = vmatprep.subr.bf16.mxu0 0
  %9814 = vmatpush1.bf16.xpose.msra.mxu0 0
  %9815 = vmatprep.subr.bf16.mxu0 0
  %9816 = vmatpush1.bf16.xpose.msra.mxu0 0
  %9817 = vmatprep.mubr.bf16.mxu0 0
  %9818 = vmatmul.mubr.bf16.gmra.mrb[0].mxu0 %v9735
  %v9819 = vpop.f32.mrb[0].mxu0
  %v9820 = vadd.f32 0.0, %v9819
  %v9821 = vpop.f32.mrb[0].mxu0
  %v9822 = vpop.f32.mrb[0].mxu0
  %v9823 = vadd.f32 0.0, %v9822
  %v9824 = vpop.f32.mrb[0].mxu0
  %9825 = vmatprep.mubr.bf16.mxu0 0
  %9826 = vmatmul.mubr.bf16.gmra.mrb[0].mxu0 %v9738
  %v9827 = vpop.f32.mrb[0].mxu0
  %v9828 = vadd.f32 0.0, %v9827
  %v9829 = vpop.f32.mrb[0].mxu0
  %v9830 = vpop.f32.mrb[0].mxu0
  %v9831 = vadd.f32 0.0, %v9830
  %v9832 = vpop.f32.mrb[0].mxu0
  %9833 = vmatprep.mubr.bf16.mxu0 0
  %9834 = vmatmul.mubr.bf16.gmra.mrb[0].mxu0 %v9741
  %v9835 = vpop.f32.mrb[0].mxu0
  %v9836 = vadd.f32 0.0, %v9835
  %v9837 = vpop.f32.mrb[0].mxu0
  %v9838 = vpop.f32.mrb[0].mxu0
  %v9839 = vadd.f32 0.0, %v9838
  %v9840 = vpop.f32.mrb[0].mxu0
  %9841 = vmatprep.mubr.bf16.mxu0 0
  %9842 = vmatmul.mubr.bf16.gmra.mrb[0].mxu0 %v9744
  %v9843 = vpop.f32.mrb[0].mxu0
  %v9844 = vadd.f32 0.0, %v9843
  %v9845 = vpop.f32.mrb[0].mxu0
  %v9846 = vpop.f32.mrb[0].mxu0
  %v9847 = vadd.f32 0.0, %v9846
  %v9848 = vpop.f32.mrb[0].mxu0
  %9849 = vmatprep.mubr.bf16.mxu0 0
  %9850 = vmatmul.mubr.bf16.gmra.mrb[0].mxu0 %v9747
  %v9851 = vpop.f32.mrb[0].mxu0
  %v9852 = vadd.f32 0.0, %v9851
  %v9853 = vpop.f32.mrb[0].mxu0
  %v9854 = vpop.f32.mrb[0].mxu0
  %v9855 = vadd.f32 0.0, %v9854
  %v9856 = vpop.f32.mrb[0].mxu0
  %9857 = vmatprep.mubr.bf16.mxu0 0
  %9858 = vmatmul.mubr.bf16.gmra.mrb[0].mxu0 %v9750
  %v9859 = vpop.f32.mrb[0].mxu0
  %v9860 = vadd.f32 0.0, %v9859
  %v9861 = vpop.f32.mrb[0].mxu0
  %v9862 = vpop.f32.mrb[0].mxu0
  %v9863 = vadd.f32 0.0, %v9862
  %v9864 = vpop.f32.mrb[0].mxu0
  %9865 = vmatprep.mubr.bf16.mxu0 0
  %9866 = vmatmul.mubr.bf16.gmra.mrb[0].mxu0 %v9753
  %v9867 = vpop.f32.mrb[0].mxu0
  %v9868 = vadd.f32 0.0, %v9867
  %v9869 = vpop.f32.mrb[0].mxu0
  %v9870 = vpop.f32.mrb[0].mxu0
  %v9871 = vadd.f32 0.0, %v9870
  %v9872 = vpop.f32.mrb[0].mxu0
  %9873 = vmatprep.mubr.bf16.mxu0 0
  %9874 = vmatmul.mubr.bf16.gmra.mrb[0].mxu0 %v9756
  %v9875 = vpop.f32.mrb[0].mxu0
  %v9876 = vadd.f32 0.0, %v9875
  %v9877 = vpop.f32.mrb[0].mxu0
  %v9878 = vpop.f32.mrb[0].mxu0
  %v9879 = vadd.f32 0.0, %v9878
  %v9880 = vpop.f32.mrb[0].mxu0
  %9881 = vmatprep.mubr.bf16.mxu0 0
  %9882 = vmatmul.mubr.bf16.gmra.mrb[0].mxu0 %v9759
  %v9883 = vpop.f32.mrb[0].mxu0
  %v9884 = vadd.f32 0.0, %v9883
  %v9885 = vpop.f32.mrb[0].mxu0
  %v9886 = vpop.f32.mrb[0].mxu0
  %v9887 = vadd.f32 0.0, %v9886
  %v9888 = vpop.f32.mrb[0].mxu0
  %9889 = vmatprep.mubr.bf16.mxu0 0
  %9890 = vmatmul.mubr.bf16.gmra.mrb[0].mxu0 %v9762
  %v9891 = vpop.f32.mrb[0].mxu0
  %v9892 = vadd.f32 0.0, %v9891
  %v9893 = vpop.f32.mrb[0].mxu0
  %v9894 = vpop.f32.mrb[0].mxu0
  %v9895 = vadd.f32 0.0, %v9894
  %v9896 = vpop.f32.mrb[0].mxu0
  %9897 = vmatprep.mubr.bf16.mxu0 0
  %9898 = vmatmul.mubr.bf16.gmra.mrb[0].mxu0 %v9765
  %v9899 = vpop.f32.mrb[0].mxu0
  %v9900 = vadd.f32 0.0, %v9899
  %v9901 = vpop.f32.mrb[0].mxu0
  %v9902 = vpop.f32.mrb[0].mxu0
  %v9903 = vadd.f32 0.0, %v9902
  %v9904 = vpop.f32.mrb[0].mxu0
  %9905 = vmatprep.mubr.bf16.mxu0 0
  %9906 = vmatmul.mubr.bf16.gmra.mrb[0].mxu0 %v9768
  %v9907 = vpop.f32.mrb[0].mxu0
  %v9908 = vadd.f32 0.0, %v9907
  %v9909 = vpop.f32.mrb[0].mxu0
  %v9910 = vpop.f32.mrb[0].mxu0
  %v9911 = vadd.f32 0.0, %v9910
  %v9912 = vpop.f32.mrb[0].mxu0
  %9913 = vmatprep.mubr.bf16.mxu0 0
  %9914 = vmatmul.mubr.bf16.gmra.mrb[0].mxu0 %v9771
  %v9915 = vpop.f32.mrb[0].mxu0
  %v9916 = vadd.f32 0.0, %v9915
  %v9917 = vpop.f32.mrb[0].mxu0
  %v9918 = vpop.f32.mrb[0].mxu0
  %v9919 = vadd.f32 0.0, %v9918
  %v9920 = vpop.f32.mrb[0].mxu0
  %9921 = vmatprep.mubr.bf16.mxu0 0
  %9922 = vmatmul.mubr.bf16.gmra.mrb[0].mxu0 %v9774
  %v9923 = vpop.f32.mrb[0].mxu0
  %v9924 = vadd.f32 0.0, %v9923
  %v9925 = vpop.f32.mrb[0].mxu0
  %v9926 = vpop.f32.mrb[0].mxu0
  %v9927 = vadd.f32 0.0, %v9926
  %v9928 = vpop.f32.mrb[0].mxu0
  %9929 = vmatprep.mubr.bf16.mxu0 0
  %9930 = vmatmul.mubr.bf16.gmra.mrb[0].mxu0 %v9777
  %v9931 = vpop.f32.mrb[0].mxu0
  %v9932 = vadd.f32 0.0, %v9931
  %v9933 = vpop.f32.mrb[0].mxu0
  %v9934 = vpop.f32.mrb[0].mxu0
  %v9935 = vadd.f32 0.0, %v9934
  %v9936 = vpop.f32.mrb[0].mxu0
  %9937 = vmatprep.mubr.bf16.mxu0 0
  %9938 = vmatmul.mubr.bf16.gmra.mrb[0].mxu0 %v9780
  %v9939 = vpop.f32.mrb[0].mxu0
  %v9940 = vadd.f32 0.0, %v9939
  %v9941 = vpop.f32.mrb[0].mxu0
  %v9942 = vpop.f32.mrb[0].mxu0
  %v9943 = vadd.f32 0.0, %v9942
  %v9944 = vpop.f32.mrb[0].mxu0
  %9945 = vdwg.mxu0
  %v9947 = vsel %vm93, %v9718, 0
  %v9950 = vsel %vm93, %v9719, 0
  %v9953 = vsel %vm93, %v9720, 0
  %v9956 = vsel %vm93, %v9721, 0
  %v9959 = vsel %vm93, %v9722, 0
  %v9962 = vsel %vm93, %v9723, 0
  %v9965 = vsel %vm93, %v9724, 0
  %v9968 = vsel %vm93, %v9725, 0
  %v9971 = vsel %vm93, %v9726, 0
  %v9974 = vsel %vm93, %v9727, 0
  %v9977 = vsel %vm93, %v9728, 0
  %v9980 = vsel %vm93, %v9729, 0
  %v9983 = vsel %vm93, %v9730, 0
  %v9986 = vsel %vm93, %v9731, 0
  %v9989 = vsel %vm93, %v9732, 0
  %v9992 = vsel %vm93, %v9733, 0
  %v9995 = vsel %vm93, %v9701, 0
  %9997 = vmatprep.subr.bf16.mxu0 0
  %9998 = vmatpush1.bf16.xpose.msra.mxu0 %v9995
  %9999 = vmatprep.subr.bf16.mxu0 0
  %10000 = vmatpush1.bf16.xpose.msra.mxu0 0
  %10001 = vmatprep.subr.bf16.mxu0 0
  %10002 = vmatpush1.bf16.xpose.msra.mxu0 0
  %10003 = vmatprep.subr.bf16.mxu0 0
  %10004 = vmatpush1.bf16.xpose.msra.mxu0 0
  %10005 = vmatprep.subr.bf16.mxu0 0
  %10006 = vmatpush1.bf16.xpose.msra.mxu0 0
  %10007 = vmatprep.subr.bf16.mxu0 0
  %10008 = vmatpush1.bf16.xpose.msra.mxu0 0
  %10009 = vmatprep.subr.bf16.mxu0 0
  %10010 = vmatpush1.bf16.xpose.msra.mxu0 0
  %10011 = vmatprep.subr.bf16.mxu0 0
  %10012 = vmatpush1.bf16.xpose.msra.mxu0 0
  %10013 = vmatprep.subr.bf16.mxu0 0
  %10014 = vmatpush1.bf16.xpose.msra.mxu0 0
  %10015 = vmatprep.subr.bf16.mxu0 0
  %10016 = vmatpush1.bf16.xpose.msra.mxu0 0
  %10017 = vmatprep.subr.bf16.mxu0 0
  %10018 = vmatpush1.bf16.xpose.msra.mxu0 0
  %10019 = vmatprep.subr.bf16.mxu0 0
  %10020 = vmatpush1.bf16.xpose.msra.mxu0 0
  %10021 = vmatprep.subr.bf16.mxu0 0
  %10022 = vmatpush1.bf16.xpose.msra.mxu0 0
  %10023 = vmatprep.subr.bf16.mxu0 0
  %10024 = vmatpush1.bf16.xpose.msra.mxu0 0
  %10025 = vmatprep.subr.bf16.mxu0 0
  %10026 = vmatpush1.bf16.xpose.msra.mxu0 0
  %10027 = vmatprep.subr.bf16.mxu0 0
  %10028 = vmatpush1.bf16.xpose.msra.mxu0 0
  %10029 = vmatprep.mubr.bf16.mxu0 0
  %10030 = vmatmul.mubr.bf16.gmra.mrb[0].mxu0 %v9947
  %v10031 = vpop.f32.mrb[0].mxu0
  %v10032 = vadd.f32 0.0, %v10031
  %v10033 = vpop.f32.mrb[0].mxu0
  %v10034 = vpop.f32.mrb[0].mxu0
  %v10035 = vadd.f32 0.0, %v10034
  %v10036 = vpop.f32.mrb[0].mxu0
  %10037 = vmatprep.mubr.bf16.mxu0 0
  %10038 = vmatmul.mubr.bf16.gmra.mrb[0].mxu0 %v9950
  %v10039 = vpop.f32.mrb[0].mxu0
  %v10040 = vadd.f32 0.0, %v10039
  %v10041 = vpop.f32.mrb[0].mxu0
  %v10042 = vpop.f32.mrb[0].mxu0
  %v10043 = vadd.f32 0.0, %v10042
  %v10044 = vpop.f32.mrb[0].mxu0
  %10045 = vmatprep.mubr.bf16.mxu0 0
  %10046 = vmatmul.mubr.bf16.gmra.mrb[0].mxu0 %v9953
  %v10047 = vpop.f32.mrb[0].mxu0
  %v10048 = vadd.f32 0.0, %v10047
  %v10049 = vpop.f32.mrb[0].mxu0
  %v10050 = vpop.f32.mrb[0].mxu0
  %v10051 = vadd.f32 0.0, %v10050
  %v10052 = vpop.f32.mrb[0].mxu0
  %10053 = vmatprep.mubr.bf16.mxu0 0
  %10054 = vmatmul.mubr.bf16.gmra.mrb[0].mxu0 %v9956
  %v10055 = vpop.f32.mrb[0].mxu0
  %v10056 = vadd.f32 0.0, %v10055
  %v10057 = vpop.f32.mrb[0].mxu0
  %v10058 = vpop.f32.mrb[0].mxu0
  %v10059 = vadd.f32 0.0, %v10058
  %v10060 = vpop.f32.mrb[0].mxu0
  %10061 = vmatprep.mubr.bf16.mxu0 0
  %10062 = vmatmul.mubr.bf16.gmra.mrb[0].mxu0 %v9959
  %v10063 = vpop.f32.mrb[0].mxu0
  %v10064 = vadd.f32 0.0, %v10063
  %v10065 = vpop.f32.mrb[0].mxu0
  %v10066 = vpop.f32.mrb[0].mxu0
  %v10067 = vadd.f32 0.0, %v10066
  %v10068 = vpop.f32.mrb[0].mxu0
  %10069 = vmatprep.mubr.bf16.mxu0 0
  %10070 = vmatmul.mubr.bf16.gmra.mrb[0].mxu0 %v9962
  %v10071 = vpop.f32.mrb[0].mxu0
  %v10072 = vadd.f32 0.0, %v10071
  %v10073 = vpop.f32.mrb[0].mxu0
  %v10074 = vpop.f32.mrb[0].mxu0
  %v10075 = vadd.f32 0.0, %v10074
  %v10076 = vpop.f32.mrb[0].mxu0
  %10077 = vmatprep.mubr.bf16.mxu0 0
  %10078 = vmatmul.mubr.bf16.gmra.mrb[0].mxu0 %v9965
  %v10079 = vpop.f32.mrb[0].mxu0
  %v10080 = vadd.f32 0.0, %v10079
  %v10081 = vpop.f32.mrb[0].mxu0
  %v10082 = vpop.f32.mrb[0].mxu0
  %v10083 = vadd.f32 0.0, %v10082
  %v10084 = vpop.f32.mrb[0].mxu0
  %10085 = vmatprep.mubr.bf16.mxu0 0
  %10086 = vmatmul.mubr.bf16.gmra.mrb[0].mxu0 %v9968
  %v10087 = vpop.f32.mrb[0].mxu0
  %v10088 = vadd.f32 0.0, %v10087
  %v10089 = vpop.f32.mrb[0].mxu0
  %v10090 = vpop.f32.mrb[0].mxu0
  %v10091 = vadd.f32 0.0, %v10090
  %v10092 = vpop.f32.mrb[0].mxu0
  %10093 = vmatprep.mubr.bf16.mxu0 0
  %10094 = vmatmul.mubr.bf16.gmra.mrb[0].mxu0 %v9971
  %v10095 = vpop.f32.mrb[0].mxu0
  %v10096 = vadd.f32 0.0, %v10095
  %v10097 = vpop.f32.mrb[0].mxu0
  %v10098 = vpop.f32.mrb[0].mxu0
  %v10099 = vadd.f32 0.0, %v10098
  %v10100 = vpop.f32.mrb[0].mxu0
  %10101 = vmatprep.mubr.bf16.mxu0 0
  %10102 = vmatmul.mubr.bf16.gmra.mrb[0].mxu0 %v9974
  %v10103 = vpop.f32.mrb[0].mxu0
  %v10104 = vadd.f32 0.0, %v10103
  %v10105 = vpop.f32.mrb[0].mxu0
  %v10106 = vpop.f32.mrb[0].mxu0
  %v10107 = vadd.f32 0.0, %v10106
  %v10108 = vpop.f32.mrb[0].mxu0
  %10109 = vmatprep.mubr.bf16.mxu0 0
  %10110 = vmatmul.mubr.bf16.gmra.mrb[0].mxu0 %v9977
  %v10111 = vpop.f32.mrb[0].mxu0
  %v10112 = vadd.f32 0.0, %v10111
  %v10113 = vpop.f32.mrb[0].mxu0
  %v10114 = vpop.f32.mrb[0].mxu0
  %v10115 = vadd.f32 0.0, %v10114
  %v10116 = vpop.f32.mrb[0].mxu0
  %10117 = vmatprep.mubr.bf16.mxu0 0
  %10118 = vmatmul.mubr.bf16.gmra.mrb[0].mxu0 %v9980
  %v10119 = vpop.f32.mrb[0].mxu0
  %v10120 = vadd.f32 0.0, %v10119
  %v10121 = vpop.f32.mrb[0].mxu0
  %v10122 = vpop.f32.mrb[0].mxu0
  %v10123 = vadd.f32 0.0, %v10122
  %v10124 = vpop.f32.mrb[0].mxu0
  %10125 = vmatprep.mubr.bf16.mxu0 0
  %10126 = vmatmul.mubr.bf16.gmra.mrb[0].mxu0 %v9983
  %v10127 = vpop.f32.mrb[0].mxu0
  %v10128 = vadd.f32 0.0, %v10127
  %v10129 = vpop.f32.mrb[0].mxu0
  %v10130 = vpop.f32.mrb[0].mxu0
  %v10131 = vadd.f32 0.0, %v10130
  %v10132 = vpop.f32.mrb[0].mxu0
  %10133 = vmatprep.mubr.bf16.mxu0 0
  %10134 = vmatmul.mubr.bf16.gmra.mrb[0].mxu0 %v9986
  %v10135 = vpop.f32.mrb[0].mxu0
  %v10136 = vadd.f32 0.0, %v10135
  %v10137 = vpop.f32.mrb[0].mxu0
  %v10138 = vpop.f32.mrb[0].mxu0
  %v10139 = vadd.f32 0.0, %v10138
  %v10140 = vpop.f32.mrb[0].mxu0
  %10141 = vmatprep.mubr.bf16.mxu0 0
  %10142 = vmatmul.mubr.bf16.gmra.mrb[0].mxu0 %v9989
  %v10143 = vpop.f32.mrb[0].mxu0
  %v10144 = vadd.f32 0.0, %v10143
  %v10145 = vpop.f32.mrb[0].mxu0
  %v10146 = vpop.f32.mrb[0].mxu0
  %v10147 = vadd.f32 0.0, %v10146
  %v10148 = vpop.f32.mrb[0].mxu0
  %10149 = vmatprep.mubr.bf16.mxu0 0
  %10150 = vmatmul.mubr.bf16.gmra.mrb[0].mxu0 %v9992
  %v10151 = vpop.f32.mrb[0].mxu0
  %v10152 = vadd.f32 0.0, %v10151
  %v10153 = vpop.f32.mrb[0].mxu0
  %v10154 = vpop.f32.mrb[0].mxu0
  %v10155 = vadd.f32 0.0, %v10154
  %v10156 = vpop.f32.mrb[0].mxu0
  %10157 = vdwg.mxu0
  %v10158 = vsel %vm2128, %v9820, -inf
  %10159 = vmax.xlane.f32.xlu0 %v10158
  %v10160 = vpop.xlane.xlu0 %10159
  %v10161 = vsel %vm2128, %v9823, -inf
  %10162 = vmax.xlane.f32.xlu0 %v10161
  %v10163 = vpop.xlane.xlu0 %10162
  %v10164 = vsel %vm2128, %v9828, -inf
  %10165 = vmax.xlane.f32.xlu0 %v10164
  %v10166 = vpop.xlane.xlu0 %10165
  %v10167 = vsel %vm2128, %v9831, -inf
  %10168 = vmax.xlane.f32.xlu0 %v10167
  %v10169 = vpop.xlane.xlu0 %10168
  %v10170 = vsel %vm2128, %v9836, -inf
  %10171 = vmax.xlane.f32.xlu0 %v10170
  %v10172 = vpop.xlane.xlu0 %10171
  %v10173 = vsel %vm2128, %v9839, -inf
  %10174 = vmax.xlane.f32.xlu0 %v10173
  %v10175 = vpop.xlane.xlu0 %10174
  %v10176 = vsel %vm2128, %v9844, -inf
  %10177 = vmax.xlane.f32.xlu0 %v10176
  %v10178 = vpop.xlane.xlu0 %10177
  %v10179 = vsel %vm2128, %v9847, -inf
  %10180 = vmax.xlane.f32.xlu0 %v10179
  %v10181 = vpop.xlane.xlu0 %10180
  %v10182 = vsel %vm2128, %v9852, -inf
  %10183 = vmax.xlane.f32.xlu0 %v10182
  %v10184 = vpop.xlane.xlu0 %10183
  %v10185 = vsel %vm2128, %v9855, -inf
  %10186 = vmax.xlane.f32.xlu0 %v10185
  %v10187 = vpop.xlane.xlu0 %10186
  %v10188 = vsel %vm2128, %v9860, -inf
  %10189 = vmax.xlane.f32.xlu0 %v10188
  %v10190 = vpop.xlane.xlu0 %10189
  %v10191 = vsel %vm2128, %v9863, -inf
  %10192 = vmax.xlane.f32.xlu0 %v10191
  %v10193 = vpop.xlane.xlu0 %10192
  %v10194 = vsel %vm2128, %v9868, -inf
  %10195 = vmax.xlane.f32.xlu0 %v10194
  %v10196 = vpop.xlane.xlu0 %10195
  %v10197 = vsel %vm2128, %v9871, -inf
  %10198 = vmax.xlane.f32.xlu0 %v10197
  %v10199 = vpop.xlane.xlu0 %10198
  %v10200 = vsel %vm2128, %v9876, -inf
  %10201 = vmax.xlane.f32.xlu0 %v10200
  %v10202 = vpop.xlane.xlu0 %10201
  %v10203 = vsel %vm2128, %v9879, -inf
  %10204 = vmax.xlane.f32.xlu0 %v10203
  %v10205 = vpop.xlane.xlu0 %10204
  %v10206 = vsel %vm2128, %v9884, -inf
  %10207 = vmax.xlane.f32.xlu0 %v10206
  %v10208 = vpop.xlane.xlu0 %10207
  %v10209 = vsel %vm2128, %v9887, -inf
  %10210 = vmax.xlane.f32.xlu0 %v10209
  %v10211 = vpop.xlane.xlu0 %10210
  %v10212 = vsel %vm2128, %v9892, -inf
  %10213 = vmax.xlane.f32.xlu0 %v10212
  %v10214 = vpop.xlane.xlu0 %10213
  %v10215 = vsel %vm2128, %v9895, -inf
  %10216 = vmax.xlane.f32.xlu0 %v10215
  %v10217 = vpop.xlane.xlu0 %10216
  %v10218 = vsel %vm2128, %v9900, -inf
  %10219 = vmax.xlane.f32.xlu0 %v10218
  %v10220 = vpop.xlane.xlu0 %10219
  %v10221 = vsel %vm2128, %v9903, -inf
  %10222 = vmax.xlane.f32.xlu0 %v10221
  %v10223 = vpop.xlane.xlu0 %10222
  %v10224 = vsel %vm2128, %v9908, -inf
  %10225 = vmax.xlane.f32.xlu0 %v10224
  %v10226 = vpop.xlane.xlu0 %10225
  %v10227 = vsel %vm2128, %v9911, -inf
  %10228 = vmax.xlane.f32.xlu0 %v10227
  %v10229 = vpop.xlane.xlu0 %10228
  %v10230 = vsel %vm2128, %v9916, -inf
  %10231 = vmax.xlane.f32.xlu0 %v10230
  %v10232 = vpop.xlane.xlu0 %10231
  %v10233 = vsel %vm2128, %v9919, -inf
  %10234 = vmax.xlane.f32.xlu0 %v10233
  %v10235 = vpop.xlane.xlu0 %10234
  %v10236 = vsel %vm2128, %v9924, -inf
  %10237 = vmax.xlane.f32.xlu0 %v10236
  %v10238 = vpop.xlane.xlu0 %10237
  %v10239 = vsel %vm2128, %v9927, -inf
  %10240 = vmax.xlane.f32.xlu0 %v10239
  %v10241 = vpop.xlane.xlu0 %10240
  %v10242 = vsel %vm2128, %v9932, -inf
  %10243 = vmax.xlane.f32.xlu0 %v10242
  %v10244 = vpop.xlane.xlu0 %10243
  %v10245 = vsel %vm2128, %v9935, -inf
  %10246 = vmax.xlane.f32.xlu0 %v10245
  %v10247 = vpop.xlane.xlu0 %10246
  %v10248 = vsel %vm2128, %v9940, -inf
  %10249 = vmax.xlane.f32.xlu0 %v10248
  %v10250 = vpop.xlane.xlu0 %10249
  %v10251 = vsel %vm2128, %v9943, -inf
  %10252 = vmax.xlane.f32.xlu0 %v10251
  %v10253 = vpop.xlane.xlu0 %10252
  %v10254 = vsel %vm2128, %v10032, -inf
  %10255 = vmax.xlane.f32.xlu0 %v10254
  %v10256 = vpop.xlane.xlu0 %10255
  %v10257 = vsel %vm2128, %v10035, -inf
  %10258 = vmax.xlane.f32.xlu0 %v10257
  %v10259 = vpop.xlane.xlu0 %10258
  %v10260 = vsel %vm2128, %v10040, -inf
  %10261 = vmax.xlane.f32.xlu0 %v10260
  %v10262 = vpop.xlane.xlu0 %10261
  %v10263 = vsel %vm2128, %v10043, -inf
  %10264 = vmax.xlane.f32.xlu0 %v10263
  %v10265 = vpop.xlane.xlu0 %10264
  %v10266 = vsel %vm2128, %v10048, -inf
  %10267 = vmax.xlane.f32.xlu0 %v10266
  %v10268 = vpop.xlane.xlu0 %10267
  %v10269 = vsel %vm2128, %v10051, -inf
  %10270 = vmax.xlane.f32.xlu0 %v10269
  %v10271 = vpop.xlane.xlu0 %10270
  %v10272 = vsel %vm2128, %v10056, -inf
  %10273 = vmax.xlane.f32.xlu0 %v10272
  %v10274 = vpop.xlane.xlu0 %10273
  %v10275 = vsel %vm2128, %v10059, -inf
  %10276 = vmax.xlane.f32.xlu0 %v10275
  %v10277 = vpop.xlane.xlu0 %10276
  %v10278 = vsel %vm2128, %v10064, -inf
  %10279 = vmax.xlane.f32.xlu0 %v10278
  %v10280 = vpop.xlane.xlu0 %10279
  %v10281 = vsel %vm2128, %v10067, -inf
  %10282 = vmax.xlane.f32.xlu0 %v10281
  %v10283 = vpop.xlane.xlu0 %10282
  %v10284 = vsel %vm2128, %v10072, -inf
  %10285 = vmax.xlane.f32.xlu0 %v10284
  %v10286 = vpop.xlane.xlu0 %10285
  %v10287 = vsel %vm2128, %v10075, -inf
  %10288 = vmax.xlane.f32.xlu0 %v10287
  %v10289 = vpop.xlane.xlu0 %10288
  %v10290 = vsel %vm2128, %v10080, -inf
  %10291 = vmax.xlane.f32.xlu0 %v10290
  %v10292 = vpop.xlane.xlu0 %10291
  %v10293 = vsel %vm2128, %v10083, -inf
  %10294 = vmax.xlane.f32.xlu0 %v10293
  %v10295 = vpop.xlane.xlu0 %10294
  %v10296 = vsel %vm2128, %v10088, -inf
  %10297 = vmax.xlane.f32.xlu0 %v10296
  %v10298 = vpop.xlane.xlu0 %10297
  %v10299 = vsel %vm2128, %v10091, -inf
  %10300 = vmax.xlane.f32.xlu0 %v10299
  %v10301 = vpop.xlane.xlu0 %10300
  %v10302 = vsel %vm2128, %v10096, -inf
  %10303 = vmax.xlane.f32.xlu0 %v10302
  %v10304 = vpop.xlane.xlu0 %10303
  %v10305 = vsel %vm2128, %v10099, -inf
  %10306 = vmax.xlane.f32.xlu0 %v10305
  %v10307 = vpop.xlane.xlu0 %10306
  %v10308 = vsel %vm2128, %v10104, -inf
  %10309 = vmax.xlane.f32.xlu0 %v10308
  %v10310 = vpop.xlane.xlu0 %10309
  %v10311 = vsel %vm2128, %v10107, -inf
  %10312 = vmax.xlane.f32.xlu0 %v10311
  %v10313 = vpop.xlane.xlu0 %10312
  %v10314 = vsel %vm2128, %v10112, -inf
  %10315 = vmax.xlane.f32.xlu0 %v10314
  %v10316 = vpop.xlane.xlu0 %10315
  %v10317 = vsel %vm2128, %v10115, -inf
  %10318 = vmax.xlane.f32.xlu0 %v10317
  %v10319 = vpop.xlane.xlu0 %10318
  %v10320 = vsel %vm2128, %v10120, -inf
  %10321 = vmax.xlane.f32.xlu0 %v10320
  %v10322 = vpop.xlane.xlu0 %10321
  %v10323 = vsel %vm2128, %v10123, -inf
  %10324 = vmax.xlane.f32.xlu0 %v10323
  %v10325 = vpop.xlane.xlu0 %10324
  %v10326 = vsel %vm2128, %v10128, -inf
  %10327 = vmax.xlane.f32.xlu0 %v10326
  %v10328 = vpop.xlane.xlu0 %10327
  %v10329 = vsel %vm2128, %v10131, -inf
  %10330 = vmax.xlane.f32.xlu0 %v10329
  %v10331 = vpop.xlane.xlu0 %10330
  %v10332 = vsel %vm2128, %v10136, -inf
  %10333 = vmax.xlane.f32.xlu0 %v10332
  %v10334 = vpop.xlane.xlu0 %10333
  %v10335 = vsel %vm2128, %v10139, -inf
  %10336 = vmax.xlane.f32.xlu0 %v10335
  %v10337 = vpop.xlane.xlu0 %10336
  %v10338 = vsel %vm2128, %v10144, -inf
  %10339 = vmax.xlane.f32.xlu0 %v10338
  %v10340 = vpop.xlane.xlu0 %10339
  %v10341 = vsel %vm2128, %v10147, -inf
  %10342 = vmax.xlane.f32.xlu0 %v10341
  %v10343 = vpop.xlane.xlu0 %10342
  %v10344 = vsel %vm2128, %v10152, -inf
  %10345 = vmax.xlane.f32.xlu0 %v10344
  %v10346 = vpop.xlane.xlu0 %10345
  %v10347 = vsel %vm2128, %v10155, -inf
  %10348 = vmax.xlane.f32.xlu0 %v10347
  %v10349 = vpop.xlane.xlu0 %10348
  %v10350 = vsub.f32 %v9820, %v10160
  %v10351 = vsub.f32 %v9823, %v10163
  %v10352 = vsub.f32 %v9828, %v10166
  %v10353 = vsub.f32 %v9831, %v10169
  %v10354 = vsub.f32 %v9836, %v10172
  %v10355 = vsub.f32 %v9839, %v10175
  %v10356 = vsub.f32 %v9844, %v10178
  %v10357 = vsub.f32 %v9847, %v10181
  %v10358 = vsub.f32 %v9852, %v10184
  %v10359 = vsub.f32 %v9855, %v10187
  %v10360 = vsub.f32 %v9860, %v10190
  %v10361 = vsub.f32 %v9863, %v10193
  %v10362 = vsub.f32 %v9868, %v10196
  %v10363 = vsub.f32 %v9871, %v10199
  %v10364 = vsub.f32 %v9876, %v10202
  %v10365 = vsub.f32 %v9879, %v10205
  %v10366 = vsub.f32 %v9884, %v10208
  %v10367 = vsub.f32 %v9887, %v10211
  %v10368 = vsub.f32 %v9892, %v10214
  %v10369 = vsub.f32 %v9895, %v10217
  %v10370 = vsub.f32 %v9900, %v10220
  %v10371 = vsub.f32 %v9903, %v10223
  %v10372 = vsub.f32 %v9908, %v10226
  %v10373 = vsub.f32 %v9911, %v10229
  %v10374 = vsub.f32 %v9916, %v10232
  %v10375 = vsub.f32 %v9919, %v10235
  %v10376 = vsub.f32 %v9924, %v10238
  %v10377 = vsub.f32 %v9927, %v10241
  %v10378 = vsub.f32 %v9932, %v10244
  %v10379 = vsub.f32 %v9935, %v10247
  %v10380 = vsub.f32 %v9940, %v10250
  %v10381 = vsub.f32 %v9943, %v10253
  %v10382 = vsub.f32 %v10032, %v10256
  %v10383 = vsub.f32 %v10035, %v10259
  %v10384 = vsub.f32 %v10040, %v10262
  %v10385 = vsub.f32 %v10043, %v10265
  %v10386 = vsub.f32 %v10048, %v10268
  %v10387 = vsub.f32 %v10051, %v10271
  %v10388 = vsub.f32 %v10056, %v10274
  %v10389 = vsub.f32 %v10059, %v10277
  %v10390 = vsub.f32 %v10064, %v10280
  %v10391 = vsub.f32 %v10067, %v10283
  %v10392 = vsub.f32 %v10072, %v10286
  %v10393 = vsub.f32 %v10075, %v10289
  %v10394 = vsub.f32 %v10080, %v10292
  %v10395 = vsub.f32 %v10083, %v10295
  %v10396 = vsub.f32 %v10088, %v10298
  %v10397 = vsub.f32 %v10091, %v10301
  %v10398 = vsub.f32 %v10096, %v10304
  %v10399 = vsub.f32 %v10099, %v10307
  %v10400 = vsub.f32 %v10104, %v10310
  %v10401 = vsub.f32 %v10107, %v10313
  %v10402 = vsub.f32 %v10112, %v10316
  %v10403 = vsub.f32 %v10115, %v10319
  %v10404 = vsub.f32 %v10120, %v10322
  %v10405 = vsub.f32 %v10123, %v10325
  %v10406 = vsub.f32 %v10128, %v10328
  %v10407 = vsub.f32 %v10131, %v10331
  %v10408 = vsub.f32 %v10136, %v10334
  %v10409 = vsub.f32 %v10139, %v10337
  %v10410 = vsub.f32 %v10144, %v10340
  %v10411 = vsub.f32 %v10147, %v10343
  %v10412 = vsub.f32 %v10152, %v10346
  %v10413 = vsub.f32 %v10155, %v10349
  %v10414 = vmul.f32 %v10350, 1.442695
  %v10415 = vpow.pop %v10414
  %v10416 = vmul.f32 %v10351, 1.442695
  %v10417 = vpow.pop %v10416
  %v10418 = vmul.f32 %v10352, 1.442695
  %v10419 = vpow.pop %v10418
  %v10420 = vmul.f32 %v10353, 1.442695
  %v10421 = vpow.pop %v10420
  %v10422 = vmul.f32 %v10354, 1.442695
  %v10423 = vpow.pop %v10422
  %v10424 = vmul.f32 %v10355, 1.442695
  %v10425 = vpow.pop %v10424
  %v10426 = vmul.f32 %v10356, 1.442695
  %v10427 = vpow.pop %v10426
  %v10428 = vmul.f32 %v10357, 1.442695
  %v10429 = vpow.pop %v10428
  %v10430 = vmul.f32 %v10358, 1.442695
  %v10431 = vpow.pop %v10430
  %v10432 = vmul.f32 %v10359, 1.442695
  %v10433 = vpow.pop %v10432
  %v10434 = vmul.f32 %v10360, 1.442695
  %v10435 = vpow.pop %v10434
  %v10436 = vmul.f32 %v10361, 1.442695
  %v10437 = vpow.pop %v10436
  %v10438 = vmul.f32 %v10362, 1.442695
  %v10439 = vpow.pop %v10438
  %v10440 = vmul.f32 %v10363, 1.442695
  %v10441 = vpow.pop %v10440
  %v10442 = vmul.f32 %v10364, 1.442695
  %v10443 = vpow.pop %v10442
  %v10444 = vmul.f32 %v10365, 1.442695
  %v10445 = vpow.pop %v10444
  %v10446 = vmul.f32 %v10366, 1.442695
  %v10447 = vpow.pop %v10446
  %v10448 = vmul.f32 %v10367, 1.442695
  %v10449 = vpow.pop %v10448
  %v10450 = vmul.f32 %v10368, 1.442695
  %v10451 = vpow.pop %v10450
  %v10452 = vmul.f32 %v10369, 1.442695
  %v10453 = vpow.pop %v10452
  %v10454 = vmul.f32 %v10370, 1.442695
  %v10455 = vpow.pop %v10454
  %v10456 = vmul.f32 %v10371, 1.442695
  %v10457 = vpow.pop %v10456
  %v10458 = vmul.f32 %v10372, 1.442695
  %v10459 = vpow.pop %v10458
  %v10460 = vmul.f32 %v10373, 1.442695
  %v10461 = vpow.pop %v10460
  %v10462 = vmul.f32 %v10374, 1.442695
  %v10463 = vpow.pop %v10462
  %v10464 = vmul.f32 %v10375, 1.442695
  %v10465 = vpow.pop %v10464
  %v10466 = vmul.f32 %v10376, 1.442695
  %v10467 = vpow.pop %v10466
  %v10468 = vmul.f32 %v10377, 1.442695
  %v10469 = vpow.pop %v10468
  %v10470 = vmul.f32 %v10378, 1.442695
  %v10471 = vpow.pop %v10470
  %v10472 = vmul.f32 %v10379, 1.442695
  %v10473 = vpow.pop %v10472
  %v10474 = vmul.f32 %v10380, 1.442695
  %v10475 = vpow.pop %v10474
  %v10476 = vmul.f32 %v10381, 1.442695
  %v10477 = vpow.pop %v10476
  %v10478 = vmul.f32 %v10382, 1.442695
  %v10479 = vpow.pop %v10478
  %v10480 = vmul.f32 %v10383, 1.442695
  %v10481 = vpow.pop %v10480
  %v10482 = vmul.f32 %v10384, 1.442695
  %v10483 = vpow.pop %v10482
  %v10484 = vmul.f32 %v10385, 1.442695
  %v10485 = vpow.pop %v10484
  %v10486 = vmul.f32 %v10386, 1.442695
  %v10487 = vpow.pop %v10486
  %v10488 = vmul.f32 %v10387, 1.442695
  %v10489 = vpow.pop %v10488
  %v10490 = vmul.f32 %v10388, 1.442695
  %v10491 = vpow.pop %v10490
  %v10492 = vmul.f32 %v10389, 1.442695
  %v10493 = vpow.pop %v10492
  %v10494 = vmul.f32 %v10390, 1.442695
  %v10495 = vpow.pop %v10494
  %v10496 = vmul.f32 %v10391, 1.442695
  %v10497 = vpow.pop %v10496
  %v10498 = vmul.f32 %v10392, 1.442695
  %v10499 = vpow.pop %v10498
  %v10500 = vmul.f32 %v10393, 1.442695
  %v10501 = vpow.pop %v10500
  %v10502 = vmul.f32 %v10394, 1.442695
  %v10503 = vpow.pop %v10502
  %v10504 = vmul.f32 %v10395, 1.442695
  %v10505 = vpow.pop %v10504
  %v10506 = vmul.f32 %v10396, 1.442695
  %v10507 = vpow.pop %v10506
  %v10508 = vmul.f32 %v10397, 1.442695
  %v10509 = vpow.pop %v10508
  %v10510 = vmul.f32 %v10398, 1.442695
  %v10511 = vpow.pop %v10510
  %v10512 = vmul.f32 %v10399, 1.442695
  %v10513 = vpow.pop %v10512
  %v10514 = vmul.f32 %v10400, 1.442695
  %v10515 = vpow.pop %v10514
  %v10516 = vmul.f32 %v10401, 1.442695
  %v10517 = vpow.pop %v10516
  %v10518 = vmul.f32 %v10402, 1.442695
  %v10519 = vpow.pop %v10518
  %v10520 = vmul.f32 %v10403, 1.442695
  %v10521 = vpow.pop %v10520
  %v10522 = vmul.f32 %v10404, 1.442695
  %v10523 = vpow.pop %v10522
  %v10524 = vmul.f32 %v10405, 1.442695
  %v10525 = vpow.pop %v10524
  %v10526 = vmul.f32 %v10406, 1.442695
  %v10527 = vpow.pop %v10526
  %v10528 = vmul.f32 %v10407, 1.442695
  %v10529 = vpow.pop %v10528
  %v10530 = vmul.f32 %v10408, 1.442695
  %v10531 = vpow.pop %v10530
  %v10532 = vmul.f32 %v10409, 1.442695
  %v10533 = vpow.pop %v10532
  %v10534 = vmul.f32 %v10410, 1.442695
  %v10535 = vpow.pop %v10534
  %v10536 = vmul.f32 %v10411, 1.442695
  %v10537 = vpow.pop %v10536
  %v10538 = vmul.f32 %v10412, 1.442695
  %v10539 = vpow.pop %v10538
  %v10540 = vmul.f32 %v10413, 1.442695
  %v10541 = vpow.pop %v10540
  %v10542 = vsel %vm2128, %v10415, 0.0
  %10543 = vadd.xlane.f32.xlu0 %v10542
  %v10544 = vpop.xlane.xlu0 %10543
  %v10545 = vsel %vm2128, %v10417, 0.0
  %10546 = vadd.xlane.f32.xlu0 %v10545
  %v10547 = vpop.xlane.xlu0 %10546
  %v10548 = vsel %vm2128, %v10419, 0.0
  %10549 = vadd.xlane.f32.xlu0 %v10548
  %v10550 = vpop.xlane.xlu0 %10549
  %v10551 = vsel %vm2128, %v10421, 0.0
  %10552 = vadd.xlane.f32.xlu0 %v10551
  %v10553 = vpop.xlane.xlu0 %10552
  %v10554 = vsel %vm2128, %v10423, 0.0
  %10555 = vadd.xlane.f32.xlu0 %v10554
  %v10556 = vpop.xlane.xlu0 %10555
  %v10557 = vsel %vm2128, %v10425, 0.0
  %10558 = vadd.xlane.f32.xlu0 %v10557
  %v10559 = vpop.xlane.xlu0 %10558
  %v10560 = vsel %vm2128, %v10427, 0.0
  %10561 = vadd.xlane.f32.xlu0 %v10560
  %v10562 = vpop.xlane.xlu0 %10561
  %v10563 = vsel %vm2128, %v10429, 0.0
  %10564 = vadd.xlane.f32.xlu0 %v10563
  %v10565 = vpop.xlane.xlu0 %10564
  %v10566 = vsel %vm2128, %v10431, 0.0
  %10567 = vadd.xlane.f32.xlu0 %v10566
  %v10568 = vpop.xlane.xlu0 %10567
  %v10569 = vsel %vm2128, %v10433, 0.0
  %10570 = vadd.xlane.f32.xlu0 %v10569
  %v10571 = vpop.xlane.xlu0 %10570
  %v10572 = vsel %vm2128, %v10435, 0.0
  %10573 = vadd.xlane.f32.xlu0 %v10572
  %v10574 = vpop.xlane.xlu0 %10573
  %v10575 = vsel %vm2128, %v10437, 0.0
  %10576 = vadd.xlane.f32.xlu0 %v10575
  %v10577 = vpop.xlane.xlu0 %10576
  %v10578 = vsel %vm2128, %v10439, 0.0
  %10579 = vadd.xlane.f32.xlu0 %v10578
  %v10580 = vpop.xlane.xlu0 %10579
  %v10581 = vsel %vm2128, %v10441, 0.0
  %10582 = vadd.xlane.f32.xlu0 %v10581
  %v10583 = vpop.xlane.xlu0 %10582
  %v10584 = vsel %vm2128, %v10443, 0.0
  %10585 = vadd.xlane.f32.xlu0 %v10584
  %v10586 = vpop.xlane.xlu0 %10585
  %v10587 = vsel %vm2128, %v10445, 0.0
  %10588 = vadd.xlane.f32.xlu0 %v10587
  %v10589 = vpop.xlane.xlu0 %10588
  %v10590 = vsel %vm2128, %v10447, 0.0
  %10591 = vadd.xlane.f32.xlu0 %v10590
  %v10592 = vpop.xlane.xlu0 %10591
  %v10593 = vsel %vm2128, %v10449, 0.0
  %10594 = vadd.xlane.f32.xlu0 %v10593
  %v10595 = vpop.xlane.xlu0 %10594
  %v10596 = vsel %vm2128, %v10451, 0.0
  %10597 = vadd.xlane.f32.xlu0 %v10596
  %v10598 = vpop.xlane.xlu0 %10597
  %v10599 = vsel %vm2128, %v10453, 0.0
  %10600 = vadd.xlane.f32.xlu0 %v10599
  %v10601 = vpop.xlane.xlu0 %10600
  %v10602 = vsel %vm2128, %v10455, 0.0
  %10603 = vadd.xlane.f32.xlu0 %v10602
  %v10604 = vpop.xlane.xlu0 %10603
  %v10605 = vsel %vm2128, %v10457, 0.0
  %10606 = vadd.xlane.f32.xlu0 %v10605
  %v10607 = vpop.xlane.xlu0 %10606
  %v10608 = vsel %vm2128, %v10459, 0.0
  %10609 = vadd.xlane.f32.xlu0 %v10608
  %v10610 = vpop.xlane.xlu0 %10609
  %v10611 = vsel %vm2128, %v10461, 0.0
  %10612 = vadd.xlane.f32.xlu0 %v10611
  %v10613 = vpop.xlane.xlu0 %10612
  %v10614 = vsel %vm2128, %v10463, 0.0
  %10615 = vadd.xlane.f32.xlu0 %v10614
  %v10616 = vpop.xlane.xlu0 %10615
  %v10617 = vsel %vm2128, %v10465, 0.0
  %10618 = vadd.xlane.f32.xlu0 %v10617
  %v10619 = vpop.xlane.xlu0 %10618
  %v10620 = vsel %vm2128, %v10467, 0.0
  %10621 = vadd.xlane.f32.xlu0 %v10620
  %v10622 = vpop.xlane.xlu0 %10621
  %v10623 = vsel %vm2128, %v10469, 0.0
  %10624 = vadd.xlane.f32.xlu0 %v10623
  %v10625 = vpop.xlane.xlu0 %10624
  %v10626 = vsel %vm2128, %v10471, 0.0
  %10627 = vadd.xlane.f32.xlu0 %v10626
  %v10628 = vpop.xlane.xlu0 %10627
  %v10629 = vsel %vm2128, %v10473, 0.0
  %10630 = vadd.xlane.f32.xlu0 %v10629
  %v10631 = vpop.xlane.xlu0 %10630
  %v10632 = vsel %vm2128, %v10475, 0.0
  %10633 = vadd.xlane.f32.xlu0 %v10632
  %v10634 = vpop.xlane.xlu0 %10633
  %v10635 = vsel %vm2128, %v10477, 0.0
  %10636 = vadd.xlane.f32.xlu0 %v10635
  %v10637 = vpop.xlane.xlu0 %10636
  %v10638 = vsel %vm2128, %v10479, 0.0
  %10639 = vadd.xlane.f32.xlu0 %v10638
  %v10640 = vpop.xlane.xlu0 %10639
  %v10641 = vsel %vm2128, %v10481, 0.0
  %10642 = vadd.xlane.f32.xlu0 %v10641
  %v10643 = vpop.xlane.xlu0 %10642
  %v10644 = vsel %vm2128, %v10483, 0.0
  %10645 = vadd.xlane.f32.xlu0 %v10644
  %v10646 = vpop.xlane.xlu0 %10645
  %v10647 = vsel %vm2128, %v10485, 0.0
  %10648 = vadd.xlane.f32.xlu0 %v10647
  %v10649 = vpop.xlane.xlu0 %10648
  %v10650 = vsel %vm2128, %v10487, 0.0
  %10651 = vadd.xlane.f32.xlu0 %v10650
  %v10652 = vpop.xlane.xlu0 %10651
  %v10653 = vsel %vm2128, %v10489, 0.0
  %10654 = vadd.xlane.f32.xlu0 %v10653
  %v10655 = vpop.xlane.xlu0 %10654
  %v10656 = vsel %vm2128, %v10491, 0.0
  %10657 = vadd.xlane.f32.xlu0 %v10656
  %v10658 = vpop.xlane.xlu0 %10657
  %v10659 = vsel %vm2128, %v10493, 0.0
  %10660 = vadd.xlane.f32.xlu0 %v10659
  %v10661 = vpop.xlane.xlu0 %10660
  %v10662 = vsel %vm2128, %v10495, 0.0
  %10663 = vadd.xlane.f32.xlu0 %v10662
  %v10664 = vpop.xlane.xlu0 %10663
  %v10665 = vsel %vm2128, %v10497, 0.0
  %10666 = vadd.xlane.f32.xlu0 %v10665
  %v10667 = vpop.xlane.xlu0 %10666
  %v10668 = vsel %vm2128, %v10499, 0.0
  %10669 = vadd.xlane.f32.xlu0 %v10668
  %v10670 = vpop.xlane.xlu0 %10669
  %v10671 = vsel %vm2128, %v10501, 0.0
  %10672 = vadd.xlane.f32.xlu0 %v10671
  %v10673 = vpop.xlane.xlu0 %10672
  %v10674 = vsel %vm2128, %v10503, 0.0
  %10675 = vadd.xlane.f32.xlu0 %v10674
  %v10676 = vpop.xlane.xlu0 %10675
  %v10677 = vsel %vm2128, %v10505, 0.0
  %10678 = vadd.xlane.f32.xlu0 %v10677
  %v10679 = vpop.xlane.xlu0 %10678
  %v10680 = vsel %vm2128, %v10507, 0.0
  %10681 = vadd.xlane.f32.xlu0 %v10680
  %v10682 = vpop.xlane.xlu0 %10681
  %v10683 = vsel %vm2128, %v10509, 0.0
  %10684 = vadd.xlane.f32.xlu0 %v10683
  %v10685 = vpop.xlane.xlu0 %10684
  %v10686 = vsel %vm2128, %v10511, 0.0
  %10687 = vadd.xlane.f32.xlu0 %v10686
  %v10688 = vpop.xlane.xlu0 %10687
  %v10689 = vsel %vm2128, %v10513, 0.0
  %10690 = vadd.xlane.f32.xlu0 %v10689
  %v10691 = vpop.xlane.xlu0 %10690
  %v10692 = vsel %vm2128, %v10515, 0.0
  %10693 = vadd.xlane.f32.xlu0 %v10692
  %v10694 = vpop.xlane.xlu0 %10693
  %v10695 = vsel %vm2128, %v10517, 0.0
  %10696 = vadd.xlane.f32.xlu0 %v10695
  %v10697 = vpop.xlane.xlu0 %10696
  %v10698 = vsel %vm2128, %v10519, 0.0
  %10699 = vadd.xlane.f32.xlu0 %v10698
  %v10700 = vpop.xlane.xlu0 %10699
  %v10701 = vsel %vm2128, %v10521, 0.0
  %10702 = vadd.xlane.f32.xlu0 %v10701
  %v10703 = vpop.xlane.xlu0 %10702
  %v10704 = vsel %vm2128, %v10523, 0.0
  %10705 = vadd.xlane.f32.xlu0 %v10704
  %v10706 = vpop.xlane.xlu0 %10705
  %v10707 = vsel %vm2128, %v10525, 0.0
  %10708 = vadd.xlane.f32.xlu0 %v10707
  %v10709 = vpop.xlane.xlu0 %10708
  %v10710 = vsel %vm2128, %v10527, 0.0
  %10711 = vadd.xlane.f32.xlu0 %v10710
  %v10712 = vpop.xlane.xlu0 %10711
  %v10713 = vsel %vm2128, %v10529, 0.0
  %10714 = vadd.xlane.f32.xlu0 %v10713
  %v10715 = vpop.xlane.xlu0 %10714
  %v10716 = vsel %vm2128, %v10531, 0.0
  %10717 = vadd.xlane.f32.xlu0 %v10716
  %v10718 = vpop.xlane.xlu0 %10717
  %v10719 = vsel %vm2128, %v10533, 0.0
  %10720 = vadd.xlane.f32.xlu0 %v10719
  %v10721 = vpop.xlane.xlu0 %10720
  %v10722 = vsel %vm2128, %v10535, 0.0
  %10723 = vadd.xlane.f32.xlu0 %v10722
  %v10724 = vpop.xlane.xlu0 %10723
  %v10725 = vsel %vm2128, %v10537, 0.0
  %10726 = vadd.xlane.f32.xlu0 %v10725
  %v10727 = vpop.xlane.xlu0 %10726
  %v10728 = vsel %vm2128, %v10539, 0.0
  %10729 = vadd.xlane.f32.xlu0 %v10728
  %v10730 = vpop.xlane.xlu0 %10729
  %v10731 = vsel %vm2128, %v10541, 0.0
  %10732 = vadd.xlane.f32.xlu0 %v10731
  %v10733 = vpop.xlane.xlu0 %10732
  %v10734 = vrcp.pop %v10544
  %v10735 = vrcp.pop %v10547
  %v10736 = vrcp.pop %v10550
  %v10737 = vrcp.pop %v10553
  %v10738 = vrcp.pop %v10556
  %v10739 = vrcp.pop %v10559
  %v10740 = vrcp.pop %v10562
  %v10741 = vrcp.pop %v10565
  %v10742 = vrcp.pop %v10568
  %v10743 = vrcp.pop %v10571
  %v10744 = vrcp.pop %v10574
  %v10745 = vrcp.pop %v10577
  %v10746 = vrcp.pop %v10580
  %v10747 = vrcp.pop %v10583
  %v10748 = vrcp.pop %v10586
  %v10749 = vrcp.pop %v10589
  %v10750 = vrcp.pop %v10592
  %v10751 = vrcp.pop %v10595
  %v10752 = vrcp.pop %v10598
  %v10753 = vrcp.pop %v10601
  %v10754 = vrcp.pop %v10604
  %v10755 = vrcp.pop %v10607
  %v10756 = vrcp.pop %v10610
  %v10757 = vrcp.pop %v10613
  %v10758 = vrcp.pop %v10616
  %v10759 = vrcp.pop %v10619
  %v10760 = vrcp.pop %v10622
  %v10761 = vrcp.pop %v10625
  %v10762 = vrcp.pop %v10628
  %v10763 = vrcp.pop %v10631
  %v10764 = vrcp.pop %v10634
  %v10765 = vrcp.pop %v10637
  %v10766 = vrcp.pop %v10640
  %v10767 = vrcp.pop %v10643
  %v10768 = vrcp.pop %v10646
  %v10769 = vrcp.pop %v10649
  %v10770 = vrcp.pop %v10652
  %v10771 = vrcp.pop %v10655
  %v10772 = vrcp.pop %v10658
  %v10773 = vrcp.pop %v10661
  %v10774 = vrcp.pop %v10664
  %v10775 = vrcp.pop %v10667
  %v10776 = vrcp.pop %v10670
  %v10777 = vrcp.pop %v10673
  %v10778 = vrcp.pop %v10676
  %v10779 = vrcp.pop %v10679
  %v10780 = vrcp.pop %v10682
  %v10781 = vrcp.pop %v10685
  %v10782 = vrcp.pop %v10688
  %v10783 = vrcp.pop %v10691
  %v10784 = vrcp.pop %v10694
  %v10785 = vrcp.pop %v10697
  %v10786 = vrcp.pop %v10700
  %v10787 = vrcp.pop %v10703
  %v10788 = vrcp.pop %v10706
  %v10789 = vrcp.pop %v10709
  %v10790 = vrcp.pop %v10712
  %v10791 = vrcp.pop %v10715
  %v10792 = vrcp.pop %v10718
  %v10793 = vrcp.pop %v10721
  %v10794 = vrcp.pop %v10724
  %v10795 = vrcp.pop %v10727
  %v10796 = vrcp.pop %v10730
  %v10797 = vrcp.pop %v10733
  %v10798 = vmul.f32 %v10415, %v10734
  %v10799 = vmul.f32 %v10417, %v10735
  %v10800 = vmul.f32 %v10419, %v10736
  %v10801 = vmul.f32 %v10421, %v10737
  %v10802 = vmul.f32 %v10423, %v10738
  %v10803 = vmul.f32 %v10425, %v10739
  %v10804 = vmul.f32 %v10427, %v10740
  %v10805 = vmul.f32 %v10429, %v10741
  %v10806 = vmul.f32 %v10431, %v10742
  %v10807 = vmul.f32 %v10433, %v10743
  %v10808 = vmul.f32 %v10435, %v10744
  %v10809 = vmul.f32 %v10437, %v10745
  %v10810 = vmul.f32 %v10439, %v10746
  %v10811 = vmul.f32 %v10441, %v10747
  %v10812 = vmul.f32 %v10443, %v10748
  %v10813 = vmul.f32 %v10445, %v10749
  %v10814 = vmul.f32 %v10447, %v10750
  %v10815 = vmul.f32 %v10449, %v10751
  %v10816 = vmul.f32 %v10451, %v10752
  %v10817 = vmul.f32 %v10453, %v10753
  %v10818 = vmul.f32 %v10455, %v10754
  %v10819 = vmul.f32 %v10457, %v10755
  %v10820 = vmul.f32 %v10459, %v10756
  %v10821 = vmul.f32 %v10461, %v10757
  %v10822 = vmul.f32 %v10463, %v10758
  %v10823 = vmul.f32 %v10465, %v10759
  %v10824 = vmul.f32 %v10467, %v10760
  %v10825 = vmul.f32 %v10469, %v10761
  %v10826 = vmul.f32 %v10471, %v10762
  %v10827 = vmul.f32 %v10473, %v10763
  %v10828 = vmul.f32 %v10475, %v10764
  %v10829 = vmul.f32 %v10477, %v10765
  %v10830 = vmul.f32 %v10479, %v10766
  %v10831 = vmul.f32 %v10481, %v10767
  %v10832 = vmul.f32 %v10483, %v10768
  %v10833 = vmul.f32 %v10485, %v10769
  %v10834 = vmul.f32 %v10487, %v10770
  %v10835 = vmul.f32 %v10489, %v10771
  %v10836 = vmul.f32 %v10491, %v10772
  %v10837 = vmul.f32 %v10493, %v10773
  %v10838 = vmul.f32 %v10495, %v10774
  %v10839 = vmul.f32 %v10497, %v10775
  %v10840 = vmul.f32 %v10499, %v10776
  %v10841 = vmul.f32 %v10501, %v10777
  %v10842 = vmul.f32 %v10503, %v10778
  %v10843 = vmul.f32 %v10505, %v10779
  %v10844 = vmul.f32 %v10507, %v10780
  %v10845 = vmul.f32 %v10509, %v10781
  %v10846 = vmul.f32 %v10511, %v10782
  %v10847 = vmul.f32 %v10513, %v10783
  %v10848 = vmul.f32 %v10515, %v10784
  %v10849 = vmul.f32 %v10517, %v10785
  %v10850 = vmul.f32 %v10519, %v10786
  %v10851 = vmul.f32 %v10521, %v10787
  %v10852 = vmul.f32 %v10523, %v10788
  %v10853 = vmul.f32 %v10525, %v10789
  %v10854 = vmul.f32 %v10527, %v10790
  %v10855 = vmul.f32 %v10529, %v10791
  %v10856 = vmul.f32 %v10531, %v10792
  %v10857 = vmul.f32 %v10533, %v10793
  %v10858 = vmul.f32 %v10535, %v10794
  %v10859 = vmul.f32 %v10537, %v10795
  %v10860 = vmul.f32 %v10539, %v10796
  %v10861 = vmul.f32 %v10541, %v10797
  %v10862 = vpack.c.bf16 %v10799, %v10798
  %v10863 = vpack.c.bf16 %v10801, %v10800
  %v10864 = vpack.c.bf16 %v10803, %v10802
  %v10865 = vpack.c.bf16 %v10805, %v10804
  %v10866 = vpack.c.bf16 %v10807, %v10806
  %v10867 = vpack.c.bf16 %v10809, %v10808
  %v10868 = vpack.c.bf16 %v10811, %v10810
  %v10869 = vpack.c.bf16 %v10813, %v10812
  %v10870 = vpack.c.bf16 %v10815, %v10814
  %v10871 = vpack.c.bf16 %v10817, %v10816
  %v10872 = vpack.c.bf16 %v10819, %v10818
  %v10873 = vpack.c.bf16 %v10821, %v10820
  %v10874 = vpack.c.bf16 %v10823, %v10822
  %v10875 = vpack.c.bf16 %v10825, %v10824
  %v10876 = vpack.c.bf16 %v10827, %v10826
  %v10877 = vpack.c.bf16 %v10829, %v10828
  %v10878 = vpack.c.bf16 %v10831, %v10830
  %v10879 = vpack.c.bf16 %v10833, %v10832
  %v10880 = vpack.c.bf16 %v10835, %v10834
  %v10881 = vpack.c.bf16 %v10837, %v10836
  %v10882 = vpack.c.bf16 %v10839, %v10838
  %v10883 = vpack.c.bf16 %v10841, %v10840
  %v10884 = vpack.c.bf16 %v10843, %v10842
  %v10885 = vpack.c.bf16 %v10845, %v10844
  %v10886 = vpack.c.bf16 %v10847, %v10846
  %v10887 = vpack.c.bf16 %v10849, %v10848
  %v10888 = vpack.c.bf16 %v10851, %v10850
  %v10889 = vpack.c.bf16 %v10853, %v10852
  %v10890 = vpack.c.bf16 %v10855, %v10854
  %v10891 = vpack.c.bf16 %v10857, %v10856
  %v10892 = vpack.c.bf16 %v10859, %v10858
  %v10893 = vpack.c.bf16 %v10861, %v10860
  %10895 = vrot.lane.b32.xlu0 %v9700, 96
  %v10896 = vpop.permute.xlu0 %10895
  %v10898 = vsel %vm2128, %v10862, 0
  %v10901 = vsel %vm2128, %v10863, 0
  %v10904 = vsel %vm2128, %v10864, 0
  %v10907 = vsel %vm2128, %v10865, 0
  %v10910 = vsel %vm2128, %v10866, 0
  %v10913 = vsel %vm2128, %v10867, 0
  %v10916 = vsel %vm2128, %v10868, 0
  %v10919 = vsel %vm2128, %v10869, 0
  %v10922 = vsel %vm2128, %v10870, 0
  %v10925 = vsel %vm2128, %v10871, 0
  %v10928 = vsel %vm2128, %v10872, 0
  %v10931 = vsel %vm2128, %v10873, 0
  %v10934 = vsel %vm2128, %v10874, 0
  %v10937 = vsel %vm2128, %v10875, 0
  %v10940 = vsel %vm2128, %v10876, 0
  %v10943 = vsel %vm2128, %v10877, 0
  %vm10945 = vcmask 1043456
  %v10947 = vsel %vm10945, %v10896, 0
  %10949 = vmatprep.subr.bf16.mxu0 0
  %10950 = vmatpush1.bf16.msra.mxu0 %v10947
  %10951 = vmatprep.subr.bf16.mxu0 0
  %10952 = vmatpush1.bf16.msra.mxu0 0
  %10953 = vmatprep.subr.bf16.mxu0 0
  %10954 = vmatpush1.bf16.msra.mxu0 0
  %10955 = vmatprep.subr.bf16.mxu0 0
  %10956 = vmatpush1.bf16.msra.mxu0 0
  %10957 = vmatprep.subr.bf16.mxu0 0
  %10958 = vmatpush1.bf16.msra.mxu0 0
  %10959 = vmatprep.subr.bf16.mxu0 0
  %10960 = vmatpush1.bf16.msra.mxu0 0
  %10961 = vmatprep.subr.bf16.mxu0 0
  %10962 = vmatpush1.bf16.msra.mxu0 0
  %10963 = vmatprep.subr.bf16.mxu0 0
  %10964 = vmatpush1.bf16.msra.mxu0 0
  %10965 = vmatprep.subr.bf16.mxu0 0
  %10966 = vmatpush1.bf16.msra.mxu0 0
  %10967 = vmatprep.subr.bf16.mxu0 0
  %10968 = vmatpush1.bf16.msra.mxu0 0
  %10969 = vmatprep.subr.bf16.mxu0 0
  %10970 = vmatpush1.bf16.msra.mxu0 0
  %10971 = vmatprep.subr.bf16.mxu0 0
  %10972 = vmatpush1.bf16.msra.mxu0 0
  %10973 = vmatprep.subr.bf16.mxu0 0
  %10974 = vmatpush1.bf16.msra.mxu0 0
  %10975 = vmatprep.subr.bf16.mxu0 0
  %10976 = vmatpush1.bf16.msra.mxu0 0
  %10977 = vmatprep.subr.bf16.mxu0 0
  %10978 = vmatpush1.bf16.msra.mxu0 0
  %10979 = vmatprep.subr.bf16.mxu0 0
  %10980 = vmatpush1.bf16.msra.mxu0 0
  %10981 = vmatprep.mubr.bf16.mxu0 0
  %10982 = vmatmul.mubr.bf16.gmra.mrb[0].mxu0 %v10898
  %v10983 = vpop.f32.mrb[0].mxu0
  %v10984 = vadd.f32 0.0, %v10983
  %v10985 = vpop.f32.mrb[0].mxu0
  %v10986 = vpop.f32.mrb[0].mxu0
  %v10987 = vadd.f32 0.0, %v10986
  %v10988 = vpop.f32.mrb[0].mxu0
  %10989 = vmatprep.mubr.bf16.mxu0 0
  %10990 = vmatmul.mubr.bf16.gmra.mrb[0].mxu0 %v10901
  %v10991 = vpop.f32.mrb[0].mxu0
  %v10992 = vadd.f32 0.0, %v10991
  %v10993 = vpop.f32.mrb[0].mxu0
  %v10994 = vpop.f32.mrb[0].mxu0
  %v10995 = vadd.f32 0.0, %v10994
  %v10996 = vpop.f32.mrb[0].mxu0
  %10997 = vmatprep.mubr.bf16.mxu0 0
  %10998 = vmatmul.mubr.bf16.gmra.mrb[0].mxu0 %v10904
  %v10999 = vpop.f32.mrb[0].mxu0
  %v11000 = vadd.f32 0.0, %v10999
  %v11001 = vpop.f32.mrb[0].mxu0
  %v11002 = vpop.f32.mrb[0].mxu0
  %v11003 = vadd.f32 0.0, %v11002
  %v11004 = vpop.f32.mrb[0].mxu0
  %11005 = vmatprep.mubr.bf16.mxu0 0
  %11006 = vmatmul.mubr.bf16.gmra.mrb[0].mxu0 %v10907
  %v11007 = vpop.f32.mrb[0].mxu0
  %v11008 = vadd.f32 0.0, %v11007
  %v11009 = vpop.f32.mrb[0].mxu0
  %v11010 = vpop.f32.mrb[0].mxu0
  %v11011 = vadd.f32 0.0, %v11010
  %v11012 = vpop.f32.mrb[0].mxu0
  %11013 = vmatprep.mubr.bf16.mxu0 0
  %11014 = vmatmul.mubr.bf16.gmra.mrb[0].mxu0 %v10910
  %v11015 = vpop.f32.mrb[0].mxu0
  %v11016 = vadd.f32 0.0, %v11015
  %v11017 = vpop.f32.mrb[0].mxu0
  %v11018 = vpop.f32.mrb[0].mxu0
  %v11019 = vadd.f32 0.0, %v11018
  %v11020 = vpop.f32.mrb[0].mxu0
  %11021 = vmatprep.mubr.bf16.mxu0 0
  %11022 = vmatmul.mubr.bf16.gmra.mrb[0].mxu0 %v10913
  %v11023 = vpop.f32.mrb[0].mxu0
  %v11024 = vadd.f32 0.0, %v11023
  %v11025 = vpop.f32.mrb[0].mxu0
  %v11026 = vpop.f32.mrb[0].mxu0
  %v11027 = vadd.f32 0.0, %v11026
  %v11028 = vpop.f32.mrb[0].mxu0
  %11029 = vmatprep.mubr.bf16.mxu0 0
  %11030 = vmatmul.mubr.bf16.gmra.mrb[0].mxu0 %v10916
  %v11031 = vpop.f32.mrb[0].mxu0
  %v11032 = vadd.f32 0.0, %v11031
  %v11033 = vpop.f32.mrb[0].mxu0
  %v11034 = vpop.f32.mrb[0].mxu0
  %v11035 = vadd.f32 0.0, %v11034
  %v11036 = vpop.f32.mrb[0].mxu0
  %11037 = vmatprep.mubr.bf16.mxu0 0
  %11038 = vmatmul.mubr.bf16.gmra.mrb[0].mxu0 %v10919
  %v11039 = vpop.f32.mrb[0].mxu0
  %v11040 = vadd.f32 0.0, %v11039
  %v11041 = vpop.f32.mrb[0].mxu0
  %v11042 = vpop.f32.mrb[0].mxu0
  %v11043 = vadd.f32 0.0, %v11042
  %v11044 = vpop.f32.mrb[0].mxu0
  %11045 = vmatprep.mubr.bf16.mxu0 0
  %11046 = vmatmul.mubr.bf16.gmra.mrb[0].mxu0 %v10922
  %v11047 = vpop.f32.mrb[0].mxu0
  %v11048 = vadd.f32 0.0, %v11047
  %v11049 = vpop.f32.mrb[0].mxu0
  %v11050 = vpop.f32.mrb[0].mxu0
  %v11051 = vadd.f32 0.0, %v11050
  %v11052 = vpop.f32.mrb[0].mxu0
  %11053 = vmatprep.mubr.bf16.mxu0 0
  %11054 = vmatmul.mubr.bf16.gmra.mrb[0].mxu0 %v10925
  %v11055 = vpop.f32.mrb[0].mxu0
  %v11056 = vadd.f32 0.0, %v11055
  %v11057 = vpop.f32.mrb[0].mxu0
  %v11058 = vpop.f32.mrb[0].mxu0
  %v11059 = vadd.f32 0.0, %v11058
  %v11060 = vpop.f32.mrb[0].mxu0
  %11061 = vmatprep.mubr.bf16.mxu0 0
  %11062 = vmatmul.mubr.bf16.gmra.mrb[0].mxu0 %v10928
  %v11063 = vpop.f32.mrb[0].mxu0
  %v11064 = vadd.f32 0.0, %v11063
  %v11065 = vpop.f32.mrb[0].mxu0
  %v11066 = vpop.f32.mrb[0].mxu0
  %v11067 = vadd.f32 0.0, %v11066
  %v11068 = vpop.f32.mrb[0].mxu0
  %11069 = vmatprep.mubr.bf16.mxu0 0
  %11070 = vmatmul.mubr.bf16.gmra.mrb[0].mxu0 %v10931
  %v11071 = vpop.f32.mrb[0].mxu0
  %v11072 = vadd.f32 0.0, %v11071
  %v11073 = vpop.f32.mrb[0].mxu0
  %v11074 = vpop.f32.mrb[0].mxu0
  %v11075 = vadd.f32 0.0, %v11074
  %v11076 = vpop.f32.mrb[0].mxu0
  %11077 = vmatprep.mubr.bf16.mxu0 0
  %11078 = vmatmul.mubr.bf16.gmra.mrb[0].mxu0 %v10934
  %v11079 = vpop.f32.mrb[0].mxu0
  %v11080 = vadd.f32 0.0, %v11079
  %v11081 = vpop.f32.mrb[0].mxu0
  %v11082 = vpop.f32.mrb[0].mxu0
  %v11083 = vadd.f32 0.0, %v11082
  %v11084 = vpop.f32.mrb[0].mxu0
  %11085 = vmatprep.mubr.bf16.mxu0 0
  %11086 = vmatmul.mubr.bf16.gmra.mrb[0].mxu0 %v10937
  %v11087 = vpop.f32.mrb[0].mxu0
  %v11088 = vadd.f32 0.0, %v11087
  %v11089 = vpop.f32.mrb[0].mxu0
  %v11090 = vpop.f32.mrb[0].mxu0
  %v11091 = vadd.f32 0.0, %v11090
  %v11092 = vpop.f32.mrb[0].mxu0
  %11093 = vmatprep.mubr.bf16.mxu0 0
  %11094 = vmatmul.mubr.bf16.gmra.mrb[0].mxu0 %v10940
  %v11095 = vpop.f32.mrb[0].mxu0
  %v11096 = vadd.f32 0.0, %v11095
  %v11097 = vpop.f32.mrb[0].mxu0
  %v11098 = vpop.f32.mrb[0].mxu0
  %v11099 = vadd.f32 0.0, %v11098
  %v11100 = vpop.f32.mrb[0].mxu0
  %11101 = vmatprep.mubr.bf16.mxu0 0
  %11102 = vmatmul.mubr.bf16.gmra.mrb[0].mxu0 %v10943
  %v11103 = vpop.f32.mrb[0].mxu0
  %v11104 = vadd.f32 0.0, %v11103
  %v11105 = vpop.f32.mrb[0].mxu0
  %v11106 = vpop.f32.mrb[0].mxu0
  %v11107 = vadd.f32 0.0, %v11106
  %v11108 = vpop.f32.mrb[0].mxu0
  %11109 = vdwg.mxu0
  %11111 = vrot.lane.b32.xlu0 %v9701, 96
  %v11112 = vpop.permute.xlu0 %11111
  %v11114 = vsel %vm2128, %v10878, 0
  %v11117 = vsel %vm2128, %v10879, 0
  %v11120 = vsel %vm2128, %v10880, 0
  %v11123 = vsel %vm2128, %v10881, 0
  %v11126 = vsel %vm2128, %v10882, 0
  %v11129 = vsel %vm2128, %v10883, 0
  %v11132 = vsel %vm2128, %v10884, 0
  %v11135 = vsel %vm2128, %v10885, 0
  %v11138 = vsel %vm2128, %v10886, 0
  %v11141 = vsel %vm2128, %v10887, 0
  %v11144 = vsel %vm2128, %v10888, 0
  %v11147 = vsel %vm2128, %v10889, 0
  %v11150 = vsel %vm2128, %v10890, 0
  %v11153 = vsel %vm2128, %v10891, 0
  %v11156 = vsel %vm2128, %v10892, 0
  %v11159 = vsel %vm2128, %v10893, 0
  %v11162 = vsel %vm10945, %v11112, 0
  %11164 = vmatprep.subr.bf16.mxu0 0
  %11165 = vmatpush1.bf16.msra.mxu0 %v11162
  %11166 = vmatprep.subr.bf16.mxu0 0
  %11167 = vmatpush1.bf16.msra.mxu0 0
  %11168 = vmatprep.subr.bf16.mxu0 0
  %11169 = vmatpush1.bf16.msra.mxu0 0
  %11170 = vmatprep.subr.bf16.mxu0 0
  %11171 = vmatpush1.bf16.msra.mxu0 0
  %11172 = vmatprep.subr.bf16.mxu0 0
  %11173 = vmatpush1.bf16.msra.mxu0 0
  %11174 = vmatprep.subr.bf16.mxu0 0
  %11175 = vmatpush1.bf16.msra.mxu0 0
  %11176 = vmatprep.subr.bf16.mxu0 0
  %11177 = vmatpush1.bf16.msra.mxu0 0
  %11178 = vmatprep.subr.bf16.mxu0 0
  %11179 = vmatpush1.bf16.msra.mxu0 0
  %11180 = vmatprep.subr.bf16.mxu0 0
  %11181 = vmatpush1.bf16.msra.mxu0 0
  %11182 = vmatprep.subr.bf16.mxu0 0
  %11183 = vmatpush1.bf16.msra.mxu0 0
  %11184 = vmatprep.subr.bf16.mxu0 0
  %11185 = vmatpush1.bf16.msra.mxu0 0
  %11186 = vmatprep.subr.bf16.mxu0 0
  %11187 = vmatpush1.bf16.msra.mxu0 0
  %11188 = vmatprep.subr.bf16.mxu0 0
  %11189 = vmatpush1.bf16.msra.mxu0 0
  %11190 = vmatprep.subr.bf16.mxu0 0
  %11191 = vmatpush1.bf16.msra.mxu0 0
  %11192 = vmatprep.subr.bf16.mxu0 0
  %11193 = vmatpush1.bf16.msra.mxu0 0
  %11194 = vmatprep.subr.bf16.mxu0 0
  %11195 = vmatpush1.bf16.msra.mxu0 0
  %11196 = vmatprep.mubr.bf16.mxu0 0
  %11197 = vmatmul.mubr.bf16.gmra.mrb[0].mxu0 %v11114
  %v11198 = vpop.f32.mrb[0].mxu0
  %v11199 = vadd.f32 0.0, %v11198
  %v11200 = vpop.f32.mrb[0].mxu0
  %v11201 = vpop.f32.mrb[0].mxu0
  %v11202 = vadd.f32 0.0, %v11201
  %v11203 = vpop.f32.mrb[0].mxu0
  %11204 = vmatprep.mubr.bf16.mxu0 0
  %11205 = vmatmul.mubr.bf16.gmra.mrb[0].mxu0 %v11117
  %v11206 = vpop.f32.mrb[0].mxu0
  %v11207 = vadd.f32 0.0, %v11206
  %v11208 = vpop.f32.mrb[0].mxu0
  %v11209 = vpop.f32.mrb[0].mxu0
  %v11210 = vadd.f32 0.0, %v11209
  %v11211 = vpop.f32.mrb[0].mxu0
  %11212 = vmatprep.mubr.bf16.mxu0 0
  %11213 = vmatmul.mubr.bf16.gmra.mrb[0].mxu0 %v11120
  %v11214 = vpop.f32.mrb[0].mxu0
  %v11215 = vadd.f32 0.0, %v11214
  %v11216 = vpop.f32.mrb[0].mxu0
  %v11217 = vpop.f32.mrb[0].mxu0
  %v11218 = vadd.f32 0.0, %v11217
  %v11219 = vpop.f32.mrb[0].mxu0
  %11220 = vmatprep.mubr.bf16.mxu0 0
  %11221 = vmatmul.mubr.bf16.gmra.mrb[0].mxu0 %v11123
  %v11222 = vpop.f32.mrb[0].mxu0
  %v11223 = vadd.f32 0.0, %v11222
  %v11224 = vpop.f32.mrb[0].mxu0
  %v11225 = vpop.f32.mrb[0].mxu0
  %v11226 = vadd.f32 0.0, %v11225
  %v11227 = vpop.f32.mrb[0].mxu0
  %11228 = vmatprep.mubr.bf16.mxu0 0
  %11229 = vmatmul.mubr.bf16.gmra.mrb[0].mxu0 %v11126
  %v11230 = vpop.f32.mrb[0].mxu0
  %v11231 = vadd.f32 0.0, %v11230
  %v11232 = vpop.f32.mrb[0].mxu0
  %v11233 = vpop.f32.mrb[0].mxu0
  %v11234 = vadd.f32 0.0, %v11233
  %v11235 = vpop.f32.mrb[0].mxu0
  %11236 = vmatprep.mubr.bf16.mxu0 0
  %11237 = vmatmul.mubr.bf16.gmra.mrb[0].mxu0 %v11129
  %v11238 = vpop.f32.mrb[0].mxu0
  %v11239 = vadd.f32 0.0, %v11238
  %v11240 = vpop.f32.mrb[0].mxu0
  %v11241 = vpop.f32.mrb[0].mxu0
  %v11242 = vadd.f32 0.0, %v11241
  %v11243 = vpop.f32.mrb[0].mxu0
  %11244 = vmatprep.mubr.bf16.mxu0 0
  %11245 = vmatmul.mubr.bf16.gmra.mrb[0].mxu0 %v11132
  %v11246 = vpop.f32.mrb[0].mxu0
  %v11247 = vadd.f32 0.0, %v11246
  %v11248 = vpop.f32.mrb[0].mxu0
  %v11249 = vpop.f32.mrb[0].mxu0
  %v11250 = vadd.f32 0.0, %v11249
  %v11251 = vpop.f32.mrb[0].mxu0
  %11252 = vmatprep.mubr.bf16.mxu0 0
  %11253 = vmatmul.mubr.bf16.gmra.mrb[0].mxu0 %v11135
  %v11254 = vpop.f32.mrb[0].mxu0
  %v11255 = vadd.f32 0.0, %v11254
  %v11256 = vpop.f32.mrb[0].mxu0
  %v11257 = vpop.f32.mrb[0].mxu0
  %v11258 = vadd.f32 0.0, %v11257
  %v11259 = vpop.f32.mrb[0].mxu0
  %11260 = vmatprep.mubr.bf16.mxu0 0
  %11261 = vmatmul.mubr.bf16.gmra.mrb[0].mxu0 %v11138
  %v11262 = vpop.f32.mrb[0].mxu0
  %v11263 = vadd.f32 0.0, %v11262
  %v11264 = vpop.f32.mrb[0].mxu0
  %v11265 = vpop.f32.mrb[0].mxu0
  %v11266 = vadd.f32 0.0, %v11265
  %v11267 = vpop.f32.mrb[0].mxu0
  %11268 = vmatprep.mubr.bf16.mxu0 0
  %11269 = vmatmul.mubr.bf16.gmra.mrb[0].mxu0 %v11141
  %v11270 = vpop.f32.mrb[0].mxu0
  %v11271 = vadd.f32 0.0, %v11270
  %v11272 = vpop.f32.mrb[0].mxu0
  %v11273 = vpop.f32.mrb[0].mxu0
  %v11274 = vadd.f32 0.0, %v11273
  %v11275 = vpop.f32.mrb[0].mxu0
  %11276 = vmatprep.mubr.bf16.mxu0 0
  %11277 = vmatmul.mubr.bf16.gmra.mrb[0].mxu0 %v11144
  %v11278 = vpop.f32.mrb[0].mxu0
  %v11279 = vadd.f32 0.0, %v11278
  %v11280 = vpop.f32.mrb[0].mxu0
  %v11281 = vpop.f32.mrb[0].mxu0
  %v11282 = vadd.f32 0.0, %v11281
  %v11283 = vpop.f32.mrb[0].mxu0
  %11284 = vmatprep.mubr.bf16.mxu0 0
  %11285 = vmatmul.mubr.bf16.gmra.mrb[0].mxu0 %v11147
  %v11286 = vpop.f32.mrb[0].mxu0
  %v11287 = vadd.f32 0.0, %v11286
  %v11288 = vpop.f32.mrb[0].mxu0
  %v11289 = vpop.f32.mrb[0].mxu0
  %v11290 = vadd.f32 0.0, %v11289
  %v11291 = vpop.f32.mrb[0].mxu0
  %11292 = vmatprep.mubr.bf16.mxu0 0
  %11293 = vmatmul.mubr.bf16.gmra.mrb[0].mxu0 %v11150
  %v11294 = vpop.f32.mrb[0].mxu0
  %v11295 = vadd.f32 0.0, %v11294
  %v11296 = vpop.f32.mrb[0].mxu0
  %v11297 = vpop.f32.mrb[0].mxu0
  %v11298 = vadd.f32 0.0, %v11297
  %v11299 = vpop.f32.mrb[0].mxu0
  %11300 = vmatprep.mubr.bf16.mxu0 0
  %11301 = vmatmul.mubr.bf16.gmra.mrb[0].mxu0 %v11153
  %v11302 = vpop.f32.mrb[0].mxu0
  %v11303 = vadd.f32 0.0, %v11302
  %v11304 = vpop.f32.mrb[0].mxu0
  %v11305 = vpop.f32.mrb[0].mxu0
  %v11306 = vadd.f32 0.0, %v11305
  %v11307 = vpop.f32.mrb[0].mxu0
  %11308 = vmatprep.mubr.bf16.mxu0 0
  %11309 = vmatmul.mubr.bf16.gmra.mrb[0].mxu0 %v11156
  %v11310 = vpop.f32.mrb[0].mxu0
  %v11311 = vadd.f32 0.0, %v11310
  %v11312 = vpop.f32.mrb[0].mxu0
  %v11313 = vpop.f32.mrb[0].mxu0
  %v11314 = vadd.f32 0.0, %v11313
  %v11315 = vpop.f32.mrb[0].mxu0
  %11316 = vmatprep.mubr.bf16.mxu0 0
  %11317 = vmatmul.mubr.bf16.gmra.mrb[0].mxu0 %v11159
  %v11318 = vpop.f32.mrb[0].mxu0
  %v11319 = vadd.f32 0.0, %v11318
  %v11320 = vpop.f32.mrb[0].mxu0
  %v11321 = vpop.f32.mrb[0].mxu0
  %v11322 = vadd.f32 0.0, %v11321
  %v11323 = vpop.f32.mrb[0].mxu0
  %11324 = vdwg.mxu0
  %v11325 = vpack.c.bf16 %v10987, %v10984
  %v11326 = vpack.c.bf16 %v10995, %v10992
  %v11327 = vpack.c.bf16 %v11003, %v11000
  %v11328 = vpack.c.bf16 %v11011, %v11008
  %v11329 = vpack.c.bf16 %v11019, %v11016
  %v11330 = vpack.c.bf16 %v11027, %v11024
  %v11331 = vpack.c.bf16 %v11035, %v11032
  %v11332 = vpack.c.bf16 %v11043, %v11040
  %v11333 = vpack.c.bf16 %v11051, %v11048
  %v11334 = vpack.c.bf16 %v11059, %v11056
  %v11335 = vpack.c.bf16 %v11067, %v11064
  %v11336 = vpack.c.bf16 %v11075, %v11072
  %v11337 = vpack.c.bf16 %v11083, %v11080
  %v11338 = vpack.c.bf16 %v11091, %v11088
  %v11339 = vpack.c.bf16 %v11099, %v11096
  %v11340 = vpack.c.bf16 %v11107, %v11104
  %v11341 = vpack.c.bf16 %v11202, %v11199
  %v11342 = vpack.c.bf16 %v11210, %v11207
  %v11343 = vpack.c.bf16 %v11218, %v11215
  %v11344 = vpack.c.bf16 %v11226, %v11223
  %v11345 = vpack.c.bf16 %v11234, %v11231
  %v11346 = vpack.c.bf16 %v11242, %v11239
  %v11347 = vpack.c.bf16 %v11250, %v11247
  %v11348 = vpack.c.bf16 %v11258, %v11255
  %v11349 = vpack.c.bf16 %v11266, %v11263
  %v11350 = vpack.c.bf16 %v11274, %v11271
  %v11351 = vpack.c.bf16 %v11282, %v11279
  %v11352 = vpack.c.bf16 %v11290, %v11287
  %v11353 = vpack.c.bf16 %v11298, %v11295
  %v11354 = vpack.c.bf16 %v11306, %v11303
  %v11355 = vpack.c.bf16 %v11314, %v11311
  %v11356 = vpack.c.bf16 %v11322, %v11319
  %v11357 = vld [vmem:[%s22] sm:$0xf]
  %v11358 = vld [vmem:[%s22 + $0x4] sm:$0xf]
  %v11359 = vld [vmem:[%s22 + $0x8] sm:$0xf]
  %v11360 = vld [vmem:[%s22 + $0xc] sm:$0xf]
  %v11365 = vunpack.c.l.b16 %v11357
  %v11366 = vunpack.c.l.b16 %v11358
  %v11367 = vunpack.c.l.b16 %v11359
  %v11368 = vunpack.c.l.b16 %v11360
  %v11369 = vpack.c.b16 %v11366, %v11365
  %v11370 = vpack.c.b16 %v11368, %v11367
  %v11374 = vsel %vm93, %v11325, 0
  %v11377 = vsel %vm93, %v11326, 0
  %v11380 = vsel %vm93, %v11327, 0
  %v11383 = vsel %vm93, %v11328, 0
  %v11386 = vsel %vm93, %v11329, 0
  %v11389 = vsel %vm93, %v11330, 0
  %v11392 = vsel %vm93, %v11331, 0
  %v11395 = vsel %vm93, %v11332, 0
  %v11398 = vsel %vm93, %v11333, 0
  %v11401 = vsel %vm93, %v11334, 0
  %v11404 = vsel %vm93, %v11335, 0
  %v11407 = vsel %vm93, %v11336, 0
  %v11410 = vsel %vm93, %v11337, 0
  %v11413 = vsel %vm93, %v11338, 0
  %v11416 = vsel %vm93, %v11339, 0
  %v11419 = vsel %vm93, %v11340, 0
  %v11422 = vsel %vm93, %v11341, 0
  %v11425 = vsel %vm93, %v11342, 0
  %v11428 = vsel %vm93, %v11343, 0
  %v11431 = vsel %vm93, %v11344, 0
  %v11434 = vsel %vm93, %v11345, 0
  %v11437 = vsel %vm93, %v11346, 0
  %v11440 = vsel %vm93, %v11347, 0
  %v11443 = vsel %vm93, %v11348, 0
  %v11446 = vsel %vm93, %v11349, 0
  %v11449 = vsel %vm93, %v11350, 0
  %v11452 = vsel %vm93, %v11351, 0
  %v11455 = vsel %vm93, %v11352, 0
  %v11458 = vsel %vm93, %v11353, 0
  %v11461 = vsel %vm93, %v11354, 0
  %v11464 = vsel %vm93, %v11355, 0
  %v11467 = vsel %vm93, %v11356, 0
  %11469 = vmatprep.subr.bf16.mxu0 0
  %11470 = vmatpush1.bf16.msra.mxu0 %v11369
  %11471 = vmatprep.subr.bf16.mxu0 0
  %11472 = vmatpush1.bf16.msra.mxu0 %v11370
  %11473 = vmatprep.subr.bf16.mxu0 0
  %11474 = vmatpush1.bf16.msra.mxu0 0
  %11475 = vmatprep.subr.bf16.mxu0 0
  %11476 = vmatpush1.bf16.msra.mxu0 0
  %11477 = vmatprep.subr.bf16.mxu0 0
  %11478 = vmatpush1.bf16.msra.mxu0 0
  %11479 = vmatprep.subr.bf16.mxu0 0
  %11480 = vmatpush1.bf16.msra.mxu0 0
  %11481 = vmatprep.subr.bf16.mxu0 0
  %11482 = vmatpush1.bf16.msra.mxu0 0
  %11483 = vmatprep.subr.bf16.mxu0 0
  %11484 = vmatpush1.bf16.msra.mxu0 0
  %11485 = vmatprep.subr.bf16.mxu0 0
  %11486 = vmatpush1.bf16.msra.mxu0 0
  %11487 = vmatprep.subr.bf16.mxu0 0
  %11488 = vmatpush1.bf16.msra.mxu0 0
  %11489 = vmatprep.subr.bf16.mxu0 0
  %11490 = vmatpush1.bf16.msra.mxu0 0
  %11491 = vmatprep.subr.bf16.mxu0 0
  %11492 = vmatpush1.bf16.msra.mxu0 0
  %11493 = vmatprep.subr.bf16.mxu0 0
  %11494 = vmatpush1.bf16.msra.mxu0 0
  %11495 = vmatprep.subr.bf16.mxu0 0
  %11496 = vmatpush1.bf16.msra.mxu0 0
  %11497 = vmatprep.subr.bf16.mxu0 0
  %11498 = vmatpush1.bf16.msra.mxu0 0
  %11499 = vmatprep.subr.bf16.mxu0 0
  %11500 = vmatpush1.bf16.msra.mxu0 0
  %11501 = vmatprep.mubr.bf16.mxu0 0
  %11502 = vmatmul.mubr.bf16.gmra.mrb[0].mxu0 %v11374
  %v11503 = vpop.f32.mrb[0].mxu0
  %v11504 = vadd.f32 0.0, %v11503
  %v11505 = vpop.f32.mrb[0].mxu0
  %v11506 = vpop.f32.mrb[0].mxu0
  %v11507 = vadd.f32 0.0, %v11506
  %v11508 = vpop.f32.mrb[0].mxu0
  %11509 = vmatprep.mubr.bf16.mxu0 0
  %11510 = vmatmul.mubr.bf16.gmra.mrb[0].mxu0 %v11377
  %v11511 = vpop.f32.mrb[0].mxu0
  %v11512 = vadd.f32 0.0, %v11511
  %v11513 = vpop.f32.mrb[0].mxu0
  %v11514 = vpop.f32.mrb[0].mxu0
  %v11515 = vadd.f32 0.0, %v11514
  %v11516 = vpop.f32.mrb[0].mxu0
  %11517 = vmatprep.mubr.bf16.mxu0 0
  %11518 = vmatmul.mubr.bf16.gmra.mrb[0].mxu0 %v11380
  %v11519 = vpop.f32.mrb[0].mxu0
  %v11520 = vadd.f32 0.0, %v11519
  %v11521 = vpop.f32.mrb[0].mxu0
  %v11522 = vpop.f32.mrb[0].mxu0
  %v11523 = vadd.f32 0.0, %v11522
  %v11524 = vpop.f32.mrb[0].mxu0
  %11525 = vmatprep.mubr.bf16.mxu0 0
  %11526 = vmatmul.mubr.bf16.gmra.mrb[0].mxu0 %v11383
  %v11527 = vpop.f32.mrb[0].mxu0
  %v11528 = vadd.f32 0.0, %v11527
  %v11529 = vpop.f32.mrb[0].mxu0
  %v11530 = vpop.f32.mrb[0].mxu0
  %v11531 = vadd.f32 0.0, %v11530
  %v11532 = vpop.f32.mrb[0].mxu0
  %11533 = vmatprep.mubr.bf16.mxu0 0
  %11534 = vmatmul.mubr.bf16.gmra.mrb[0].mxu0 %v11386
  %v11535 = vpop.f32.mrb[0].mxu0
  %v11536 = vadd.f32 0.0, %v11535
  %v11537 = vpop.f32.mrb[0].mxu0
  %v11538 = vpop.f32.mrb[0].mxu0
  %v11539 = vadd.f32 0.0, %v11538
  %v11540 = vpop.f32.mrb[0].mxu0
  %11541 = vmatprep.mubr.bf16.mxu0 0
  %11542 = vmatmul.mubr.bf16.gmra.mrb[0].mxu0 %v11389
  %v11543 = vpop.f32.mrb[0].mxu0
  %v11544 = vadd.f32 0.0, %v11543
  %v11545 = vpop.f32.mrb[0].mxu0
  %v11546 = vpop.f32.mrb[0].mxu0
  %v11547 = vadd.f32 0.0, %v11546
  %v11548 = vpop.f32.mrb[0].mxu0
  %11549 = vmatprep.mubr.bf16.mxu0 0
  %11550 = vmatmul.mubr.bf16.gmra.mrb[0].mxu0 %v11392
  %v11551 = vpop.f32.mrb[0].mxu0
  %v11552 = vadd.f32 0.0, %v11551
  %v11553 = vpop.f32.mrb[0].mxu0
  %v11554 = vpop.f32.mrb[0].mxu0
  %v11555 = vadd.f32 0.0, %v11554
  %v11556 = vpop.f32.mrb[0].mxu0
  %11557 = vmatprep.mubr.bf16.mxu0 0
  %11558 = vmatmul.mubr.bf16.gmra.mrb[0].mxu0 %v11395
  %v11559 = vpop.f32.mrb[0].mxu0
  %v11560 = vadd.f32 0.0, %v11559
  %v11561 = vpop.f32.mrb[0].mxu0
  %v11562 = vpop.f32.mrb[0].mxu0
  %v11563 = vadd.f32 0.0, %v11562
  %v11564 = vpop.f32.mrb[0].mxu0
  %11565 = vmatprep.mubr.bf16.mxu0 0
  %11566 = vmatmul.mubr.bf16.gmra.mrb[0].mxu0 %v11398
  %v11567 = vpop.f32.mrb[0].mxu0
  %v11568 = vadd.f32 0.0, %v11567
  %v11569 = vpop.f32.mrb[0].mxu0
  %v11570 = vpop.f32.mrb[0].mxu0
  %v11571 = vadd.f32 0.0, %v11570
  %v11572 = vpop.f32.mrb[0].mxu0
  %11573 = vmatprep.mubr.bf16.mxu0 0
  %11574 = vmatmul.mubr.bf16.gmra.mrb[0].mxu0 %v11401
  %v11575 = vpop.f32.mrb[0].mxu0
  %v11576 = vadd.f32 0.0, %v11575
  %v11577 = vpop.f32.mrb[0].mxu0
  %v11578 = vpop.f32.mrb[0].mxu0
  %v11579 = vadd.f32 0.0, %v11578
  %v11580 = vpop.f32.mrb[0].mxu0
  %11581 = vmatprep.mubr.bf16.mxu0 0
  %11582 = vmatmul.mubr.bf16.gmra.mrb[0].mxu0 %v11404
  %v11583 = vpop.f32.mrb[0].mxu0
  %v11584 = vadd.f32 0.0, %v11583
  %v11585 = vpop.f32.mrb[0].mxu0
  %v11586 = vpop.f32.mrb[0].mxu0
  %v11587 = vadd.f32 0.0, %v11586
  %v11588 = vpop.f32.mrb[0].mxu0
  %11589 = vmatprep.mubr.bf16.mxu0 0
  %11590 = vmatmul.mubr.bf16.gmra.mrb[0].mxu0 %v11407
  %v11591 = vpop.f32.mrb[0].mxu0
  %v11592 = vadd.f32 0.0, %v11591
  %v11593 = vpop.f32.mrb[0].mxu0
  %v11594 = vpop.f32.mrb[0].mxu0
  %v11595 = vadd.f32 0.0, %v11594
  %v11596 = vpop.f32.mrb[0].mxu0
  %11597 = vmatprep.mubr.bf16.mxu0 0
  %11598 = vmatmul.mubr.bf16.gmra.mrb[0].mxu0 %v11410
  %v11599 = vpop.f32.mrb[0].mxu0
  %v11600 = vadd.f32 0.0, %v11599
  %v11601 = vpop.f32.mrb[0].mxu0
  %v11602 = vpop.f32.mrb[0].mxu0
  %v11603 = vadd.f32 0.0, %v11602
  %v11604 = vpop.f32.mrb[0].mxu0
  %11605 = vmatprep.mubr.bf16.mxu0 0
  %11606 = vmatmul.mubr.bf16.gmra.mrb[0].mxu0 %v11413
  %v11607 = vpop.f32.mrb[0].mxu0
  %v11608 = vadd.f32 0.0, %v11607
  %v11609 = vpop.f32.mrb[0].mxu0
  %v11610 = vpop.f32.mrb[0].mxu0
  %v11611 = vadd.f32 0.0, %v11610
  %v11612 = vpop.f32.mrb[0].mxu0
  %11613 = vmatprep.mubr.bf16.mxu0 0
  %11614 = vmatmul.mubr.bf16.gmra.mrb[0].mxu0 %v11416
  %v11615 = vpop.f32.mrb[0].mxu0
  %v11616 = vadd.f32 0.0, %v11615
  %v11617 = vpop.f32.mrb[0].mxu0
  %v11618 = vpop.f32.mrb[0].mxu0
  %v11619 = vadd.f32 0.0, %v11618
  %v11620 = vpop.f32.mrb[0].mxu0
  %11621 = vmatprep.mubr.bf16.mxu0 0
  %11622 = vmatmul.mubr.bf16.gmra.mrb[0].mxu0 %v11419
  %v11623 = vpop.f32.mrb[0].mxu0
  %v11624 = vadd.f32 0.0, %v11623
  %v11625 = vpop.f32.mrb[0].mxu0
  %v11626 = vpop.f32.mrb[0].mxu0
  %v11627 = vadd.f32 0.0, %v11626
  %v11628 = vpop.f32.mrb[0].mxu0
  %11629 = vmatprep.mubr.bf16.mxu0 0
  %11630 = vmatmul.mubr.bf16.gmra.mrb[0].mxu0 %v11422
  %v11631 = vpop.f32.mrb[0].mxu0
  %v11632 = vadd.f32 0.0, %v11631
  %v11633 = vpop.f32.mrb[0].mxu0
  %v11634 = vpop.f32.mrb[0].mxu0
  %v11635 = vadd.f32 0.0, %v11634
  %v11636 = vpop.f32.mrb[0].mxu0
  %11637 = vmatprep.mubr.bf16.mxu0 0
  %11638 = vmatmul.mubr.bf16.gmra.mrb[0].mxu0 %v11425
  %v11639 = vpop.f32.mrb[0].mxu0
  %v11640 = vadd.f32 0.0, %v11639
  %v11641 = vpop.f32.mrb[0].mxu0
  %v11642 = vpop.f32.mrb[0].mxu0
  %v11643 = vadd.f32 0.0, %v11642
  %v11644 = vpop.f32.mrb[0].mxu0
  %11645 = vmatprep.mubr.bf16.mxu0 0
  %11646 = vmatmul.mubr.bf16.gmra.mrb[0].mxu0 %v11428
  %v11647 = vpop.f32.mrb[0].mxu0
  %v11648 = vadd.f32 0.0, %v11647
  %v11649 = vpop.f32.mrb[0].mxu0
  %v11650 = vpop.f32.mrb[0].mxu0
  %v11651 = vadd.f32 0.0, %v11650
  %v11652 = vpop.f32.mrb[0].mxu0
  %11653 = vmatprep.mubr.bf16.mxu0 0
  %11654 = vmatmul.mubr.bf16.gmra.mrb[0].mxu0 %v11431
  %v11655 = vpop.f32.mrb[0].mxu0
  %v11656 = vadd.f32 0.0, %v11655
  %v11657 = vpop.f32.mrb[0].mxu0
  %v11658 = vpop.f32.mrb[0].mxu0
  %v11659 = vadd.f32 0.0, %v11658
  %v11660 = vpop.f32.mrb[0].mxu0
  %11661 = vmatprep.mubr.bf16.mxu0 0
  %11662 = vmatmul.mubr.bf16.gmra.mrb[0].mxu0 %v11434
  %v11663 = vpop.f32.mrb[0].mxu0
  %v11664 = vadd.f32 0.0, %v11663
  %v11665 = vpop.f32.mrb[0].mxu0
  %v11666 = vpop.f32.mrb[0].mxu0
  %v11667 = vadd.f32 0.0, %v11666
  %v11668 = vpop.f32.mrb[0].mxu0
  %11669 = vmatprep.mubr.bf16.mxu0 0
  %11670 = vmatmul.mubr.bf16.gmra.mrb[0].mxu0 %v11437
  %v11671 = vpop.f32.mrb[0].mxu0
  %v11672 = vadd.f32 0.0, %v11671
  %v11673 = vpop.f32.mrb[0].mxu0
  %v11674 = vpop.f32.mrb[0].mxu0
  %v11675 = vadd.f32 0.0, %v11674
  %v11676 = vpop.f32.mrb[0].mxu0
  %11677 = vmatprep.mubr.bf16.mxu0 0
  %11678 = vmatmul.mubr.bf16.gmra.mrb[0].mxu0 %v11440
  %v11679 = vpop.f32.mrb[0].mxu0
  %v11680 = vadd.f32 0.0, %v11679
  %v11681 = vpop.f32.mrb[0].mxu0
  %v11682 = vpop.f32.mrb[0].mxu0
  %v11683 = vadd.f32 0.0, %v11682
  %v11684 = vpop.f32.mrb[0].mxu0
  %11685 = vmatprep.mubr.bf16.mxu0 0
  %11686 = vmatmul.mubr.bf16.gmra.mrb[0].mxu0 %v11443
  %v11687 = vpop.f32.mrb[0].mxu0
  %v11688 = vadd.f32 0.0, %v11687
  %v11689 = vpop.f32.mrb[0].mxu0
  %v11690 = vpop.f32.mrb[0].mxu0
  %v11691 = vadd.f32 0.0, %v11690
  %v11692 = vpop.f32.mrb[0].mxu0
  %11693 = vmatprep.mubr.bf16.mxu0 0
  %11694 = vmatmul.mubr.bf16.gmra.mrb[0].mxu0 %v11446
  %v11695 = vpop.f32.mrb[0].mxu0
  %v11696 = vadd.f32 0.0, %v11695
  %v11697 = vpop.f32.mrb[0].mxu0
  %v11698 = vpop.f32.mrb[0].mxu0
  %v11699 = vadd.f32 0.0, %v11698
  %v11700 = vpop.f32.mrb[0].mxu0
  %11701 = vmatprep.mubr.bf16.mxu0 0
  %11702 = vmatmul.mubr.bf16.gmra.mrb[0].mxu0 %v11449
  %v11703 = vpop.f32.mrb[0].mxu0
  %v11704 = vadd.f32 0.0, %v11703
  %v11705 = vpop.f32.mrb[0].mxu0
  %v11706 = vpop.f32.mrb[0].mxu0
  %v11707 = vadd.f32 0.0, %v11706
  %v11708 = vpop.f32.mrb[0].mxu0
  %11709 = vmatprep.mubr.bf16.mxu0 0
  %11710 = vmatmul.mubr.bf16.gmra.mrb[0].mxu0 %v11452
  %v11711 = vpop.f32.mrb[0].mxu0
  %v11712 = vadd.f32 0.0, %v11711
  %v11713 = vpop.f32.mrb[0].mxu0
  %v11714 = vpop.f32.mrb[0].mxu0
  %v11715 = vadd.f32 0.0, %v11714
  %v11716 = vpop.f32.mrb[0].mxu0
  %11717 = vmatprep.mubr.bf16.mxu0 0
  %11718 = vmatmul.mubr.bf16.gmra.mrb[0].mxu0 %v11455
  %v11719 = vpop.f32.mrb[0].mxu0
  %v11720 = vadd.f32 0.0, %v11719
  %v11721 = vpop.f32.mrb[0].mxu0
  %v11722 = vpop.f32.mrb[0].mxu0
  %v11723 = vadd.f32 0.0, %v11722
  %v11724 = vpop.f32.mrb[0].mxu0
  %11725 = vmatprep.mubr.bf16.mxu0 0
  %11726 = vmatmul.mubr.bf16.gmra.mrb[0].mxu0 %v11458
  %v11727 = vpop.f32.mrb[0].mxu0
  %v11728 = vadd.f32 0.0, %v11727
  %v11729 = vpop.f32.mrb[0].mxu0
  %v11730 = vpop.f32.mrb[0].mxu0
  %v11731 = vadd.f32 0.0, %v11730
  %v11732 = vpop.f32.mrb[0].mxu0
  %11733 = vmatprep.mubr.bf16.mxu0 0
  %11734 = vmatmul.mubr.bf16.gmra.mrb[0].mxu0 %v11461
  %v11735 = vpop.f32.mrb[0].mxu0
  %v11736 = vadd.f32 0.0, %v11735
  %v11737 = vpop.f32.mrb[0].mxu0
  %v11738 = vpop.f32.mrb[0].mxu0
  %v11739 = vadd.f32 0.0, %v11738
  %v11740 = vpop.f32.mrb[0].mxu0
  %11741 = vmatprep.mubr.bf16.mxu0 0
  %11742 = vmatmul.mubr.bf16.gmra.mrb[0].mxu0 %v11464
  %v11743 = vpop.f32.mrb[0].mxu0
  %v11744 = vadd.f32 0.0, %v11743
  %v11745 = vpop.f32.mrb[0].mxu0
  %v11746 = vpop.f32.mrb[0].mxu0
  %v11747 = vadd.f32 0.0, %v11746
  %v11748 = vpop.f32.mrb[0].mxu0
  %11749 = vmatprep.mubr.bf16.mxu0 0
  %11750 = vmatmul.mubr.bf16.gmra.mrb[0].mxu0 %v11467
  %v11751 = vpop.f32.mrb[0].mxu0
  %v11752 = vadd.f32 0.0, %v11751
  %v11753 = vpop.f32.mrb[0].mxu0
  %v11754 = vpop.f32.mrb[0].mxu0
  %v11755 = vadd.f32 0.0, %v11754
  %v11756 = vpop.f32.mrb[0].mxu0
  %11757 = vdwg.mxu0
  %v11758 = vadd.f32 %v9134, %v11504
  %v11759 = vadd.f32 %v9135, %v11507
  %v11760 = vadd.f32 %v9136, %v11512
  %v11761 = vadd.f32 %v9137, %v11515
  %v11762 = vadd.f32 %v9138, %v11520
  %v11763 = vadd.f32 %v9139, %v11523
  %v11764 = vadd.f32 %v9140, %v11528
  %v11765 = vadd.f32 %v9141, %v11531
  %v11766 = vadd.f32 %v9142, %v11536
  %v11767 = vadd.f32 %v9143, %v11539
  %v11768 = vadd.f32 %v9144, %v11544
  %v11769 = vadd.f32 %v9145, %v11547
  %v11770 = vadd.f32 %v9146, %v11552
  %v11771 = vadd.f32 %v9147, %v11555
  %v11772 = vadd.f32 %v9148, %v11560
  %v11773 = vadd.f32 %v9149, %v11563
  %v11774 = vadd.f32 %v9150, %v11568
  %v11775 = vadd.f32 %v9151, %v11571
  %v11776 = vadd.f32 %v9152, %v11576
  %v11777 = vadd.f32 %v9153, %v11579
  %v11778 = vadd.f32 %v9154, %v11584
  %v11779 = vadd.f32 %v9155, %v11587
  %v11780 = vadd.f32 %v9156, %v11592
  %v11781 = vadd.f32 %v9157, %v11595
  %v11782 = vadd.f32 %v9158, %v11600
  %v11783 = vadd.f32 %v9159, %v11603
  %v11784 = vadd.f32 %v9160, %v11608
  %v11785 = vadd.f32 %v9161, %v11611
  %v11786 = vadd.f32 %v9162, %v11616
  %v11787 = vadd.f32 %v9163, %v11619
  %v11788 = vadd.f32 %v9164, %v11624
  %v11789 = vadd.f32 %v9165, %v11627
  %v11790 = vadd.f32 %v9166, %v11632
  %v11791 = vadd.f32 %v9167, %v11635
  %v11792 = vadd.f32 %v9168, %v11640
  %v11793 = vadd.f32 %v9169, %v11643
  %v11794 = vadd.f32 %v9170, %v11648
  %v11795 = vadd.f32 %v9171, %v11651
  %v11796 = vadd.f32 %v9172, %v11656
  %v11797 = vadd.f32 %v9173, %v11659
  %v11798 = vadd.f32 %v9174, %v11664
  %v11799 = vadd.f32 %v9175, %v11667
  %v11800 = vadd.f32 %v9176, %v11672
  %v11801 = vadd.f32 %v9177, %v11675
  %v11802 = vadd.f32 %v9178, %v11680
  %v11803 = vadd.f32 %v9179, %v11683
  %v11804 = vadd.f32 %v9180, %v11688
  %v11805 = vadd.f32 %v9181, %v11691
  %v11806 = vadd.f32 %v9182, %v11696
  %v11807 = vadd.f32 %v9183, %v11699
  %v11808 = vadd.f32 %v9184, %v11704
  %v11809 = vadd.f32 %v9185, %v11707
  %v11810 = vadd.f32 %v9186, %v11712
  %v11811 = vadd.f32 %v9187, %v11715
  %v11812 = vadd.f32 %v9188, %v11720
  %v11813 = vadd.f32 %v9189, %v11723
  %v11814 = vadd.f32 %v9190, %v11728
  %v11815 = vadd.f32 %v9191, %v11731
  %v11816 = vadd.f32 %v9192, %v11736
  %v11817 = vadd.f32 %v9193, %v11739
  %v11818 = vadd.f32 %v9194, %v11744
  %v11819 = vadd.f32 %v9195, %v11747
  %v11820 = vadd.f32 %v9196, %v11752
  %v11821 = vadd.f32 %v9197, %v11755
  %v11822 = vld [vmem:[%s23] sm:$0xf]
  %v11823 = vld [vmem:[%s23 + $0x4] sm:$0xf]
  %v11824 = vld [vmem:[%s23 + $0x8] sm:$0xf]
  %v11825 = vld [vmem:[%s23 + $0xc] sm:$0xf]
  %v11826 = vld [vmem:[%s23 + $0x10] sm:$0xf]
  %v11827 = vld [vmem:[%s23 + $0x14] sm:$0xf]
  %v11828 = vld [vmem:[%s23 + $0x18] sm:$0xf]
  %v11829 = vld [vmem:[%s23 + $0x1c] sm:$0xf]
  %v11830 = vld [vmem:[%s23 + $0x20] sm:$0xf]
  %v11831 = vld [vmem:[%s23 + $0x24] sm:$0xf]
  %v11832 = vld [vmem:[%s23 + $0x28] sm:$0xf]
  %v11833 = vld [vmem:[%s23 + $0x2c] sm:$0xf]
  %v11834 = vld [vmem:[%s23 + $0x30] sm:$0xf]
  %v11835 = vld [vmem:[%s23 + $0x34] sm:$0xf]
  %v11836 = vld [vmem:[%s23 + $0x38] sm:$0xf]
  %v11837 = vld [vmem:[%s23 + $0x3c] sm:$0xf]
  %v11838 = vld [vmem:[%s23 + $0x40] sm:$0xf]
  %v11839 = vld [vmem:[%s23 + $0x44] sm:$0xf]
  %v11840 = vld [vmem:[%s23 + $0x48] sm:$0xf]
  %v11841 = vld [vmem:[%s23 + $0x4c] sm:$0xf]
  %v11842 = vld [vmem:[%s23 + $0x50] sm:$0xf]
  %v11843 = vld [vmem:[%s23 + $0x54] sm:$0xf]
  %v11844 = vld [vmem:[%s23 + $0x58] sm:$0xf]
  %v11845 = vld [vmem:[%s23 + $0x5c] sm:$0xf]
  %v11846 = vld [vmem:[%s23 + $0x60] sm:$0xf]
  %v11847 = vld [vmem:[%s23 + $0x64] sm:$0xf]
  %v11848 = vld [vmem:[%s23 + $0x68] sm:$0xf]
  %v11849 = vld [vmem:[%s23 + $0x6c] sm:$0xf]
  %v11850 = vld [vmem:[%s23 + $0x70] sm:$0xf]
  %v11851 = vld [vmem:[%s23 + $0x74] sm:$0xf]
  %v11852 = vld [vmem:[%s23 + $0x78] sm:$0xf]
  %v11853 = vld [vmem:[%s23 + $0x7c] sm:$0xf]
  %v11854 = vld [vmem:[%s23 + $0x80] sm:$0xf]
  %v11855 = vld [vmem:[%s23 + $0x84] sm:$0xf]
  %v11856 = vld [vmem:[%s23 + $0x88] sm:$0xf]
  %v11857 = vld [vmem:[%s23 + $0x8c] sm:$0xf]
  %v11858 = vld [vmem:[%s24] sm:$0x1]
  %v11859 = vxor.u32 %v11758, 2147483648
  %v11860 = vxor.u32 %v11759, 2147483648
  %v11861 = vxor.u32 %v11760, 2147483648
  %v11862 = vxor.u32 %v11761, 2147483648
  %v11863 = vxor.u32 %v11762, 2147483648
  %v11864 = vxor.u32 %v11763, 2147483648
  %v11865 = vxor.u32 %v11764, 2147483648
  %v11866 = vxor.u32 %v11765, 2147483648
  %v11867 = vxor.u32 %v11766, 2147483648
  %v11868 = vxor.u32 %v11767, 2147483648
  %v11869 = vxor.u32 %v11768, 2147483648
  %v11870 = vxor.u32 %v11769, 2147483648
  %v11871 = vxor.u32 %v11770, 2147483648
  %v11872 = vxor.u32 %v11771, 2147483648
  %v11873 = vxor.u32 %v11772, 2147483648
  %v11874 = vxor.u32 %v11773, 2147483648
  %v11875 = vxor.u32 %v11774, 2147483648
  %v11876 = vxor.u32 %v11775, 2147483648
  %v11877 = vxor.u32 %v11776, 2147483648
  %v11878 = vxor.u32 %v11777, 2147483648
  %v11879 = vxor.u32 %v11778, 2147483648
  %v11880 = vxor.u32 %v11779, 2147483648
  %v11881 = vxor.u32 %v11780, 2147483648
  %v11882 = vxor.u32 %v11781, 2147483648
  %v11883 = vxor.u32 %v11782, 2147483648
  %v11884 = vxor.u32 %v11783, 2147483648
  %v11885 = vxor.u32 %v11784, 2147483648
  %v11886 = vxor.u32 %v11785, 2147483648
  %v11887 = vxor.u32 %v11786, 2147483648
  %v11888 = vxor.u32 %v11787, 2147483648
  %v11889 = vxor.u32 %v11788, 2147483648
  %v11890 = vxor.u32 %v11789, 2147483648
  %v11891 = vxor.u32 %v11790, 2147483648
  %v11892 = vxor.u32 %v11791, 2147483648
  %v11893 = vxor.u32 %v11792, 2147483648
  %v11894 = vxor.u32 %v11793, 2147483648
  %v11895 = vxor.u32 %v11794, 2147483648
  %v11896 = vxor.u32 %v11795, 2147483648
  %v11897 = vxor.u32 %v11796, 2147483648
  %v11898 = vxor.u32 %v11797, 2147483648
  %v11899 = vxor.u32 %v11798, 2147483648
  %v11900 = vxor.u32 %v11799, 2147483648
  %v11901 = vxor.u32 %v11800, 2147483648
  %v11902 = vxor.u32 %v11801, 2147483648
  %v11903 = vxor.u32 %v11802, 2147483648
  %v11904 = vxor.u32 %v11803, 2147483648
  %v11905 = vxor.u32 %v11804, 2147483648
  %v11906 = vxor.u32 %v11805, 2147483648
  %v11907 = vxor.u32 %v11806, 2147483648
  %v11908 = vxor.u32 %v11807, 2147483648
  %v11909 = vxor.u32 %v11808, 2147483648
  %v11910 = vxor.u32 %v11809, 2147483648
  %v11911 = vxor.u32 %v11810, 2147483648
  %v11912 = vxor.u32 %v11811, 2147483648
  %v11913 = vxor.u32 %v11812, 2147483648
  %v11914 = vxor.u32 %v11813, 2147483648
  %v11915 = vxor.u32 %v11814, 2147483648
  %v11916 = vxor.u32 %v11815, 2147483648
  %v11917 = vxor.u32 %v11816, 2147483648
  %v11918 = vxor.u32 %v11817, 2147483648
  %v11919 = vxor.u32 %v11818, 2147483648
  %v11920 = vxor.u32 %v11819, 2147483648
  %v11921 = vxor.u32 %v11820, 2147483648
  %v11922 = vxor.u32 %v11821, 2147483648
  %v11923 = vmul.f32 %v11859, 1.442695
  %v11924 = vpow.pop %v11923
  %v11925 = vmul.f32 %v11860, 1.442695
  %v11926 = vpow.pop %v11925
  %v11927 = vmul.f32 %v11861, 1.442695
  %v11928 = vpow.pop %v11927
  %v11929 = vmul.f32 %v11862, 1.442695
  %v11930 = vpow.pop %v11929
  %v11931 = vmul.f32 %v11863, 1.442695
  %v11932 = vpow.pop %v11931
  %v11933 = vmul.f32 %v11864, 1.442695
  %v11934 = vpow.pop %v11933
  %v11935 = vmul.f32 %v11865, 1.442695
  %v11936 = vpow.pop %v11935
  %v11937 = vmul.f32 %v11866, 1.442695
  %v11938 = vpow.pop %v11937
  %v11939 = vmul.f32 %v11867, 1.442695
  %v11940 = vpow.pop %v11939
  %v11941 = vmul.f32 %v11868, 1.442695
  %v11942 = vpow.pop %v11941
  %v11943 = vmul.f32 %v11869, 1.442695
  %v11944 = vpow.pop %v11943
  %v11945 = vmul.f32 %v11870, 1.442695
  %v11946 = vpow.pop %v11945
  %v11947 = vmul.f32 %v11871, 1.442695
  %v11948 = vpow.pop %v11947
  %v11949 = vmul.f32 %v11872, 1.442695
  %v11950 = vpow.pop %v11949
  %v11951 = vmul.f32 %v11873, 1.442695
  %v11952 = vpow.pop %v11951
  %v11953 = vmul.f32 %v11874, 1.442695
  %v11954 = vpow.pop %v11953
  %v11955 = vmul.f32 %v11875, 1.442695
  %v11956 = vpow.pop %v11955
  %v11957 = vmul.f32 %v11876, 1.442695
  %v11958 = vpow.pop %v11957
  %v11959 = vmul.f32 %v11877, 1.442695
  %v11960 = vpow.pop %v11959
  %v11961 = vmul.f32 %v11878, 1.442695
  %v11962 = vpow.pop %v11961
  %v11963 = vmul.f32 %v11879, 1.442695
  %v11964 = vpow.pop %v11963
  %v11965 = vmul.f32 %v11880, 1.442695
  %v11966 = vpow.pop %v11965
  %v11967 = vmul.f32 %v11881, 1.442695
  %v11968 = vpow.pop %v11967
  %v11969 = vmul.f32 %v11882, 1.442695
  %v11970 = vpow.pop %v11969
  %v11971 = vmul.f32 %v11883, 1.442695
  %v11972 = vpow.pop %v11971
  %v11973 = vmul.f32 %v11884, 1.442695
  %v11974 = vpow.pop %v11973
  %v11975 = vmul.f32 %v11885, 1.442695
  %v11976 = vpow.pop %v11975
  %v11977 = vmul.f32 %v11886, 1.442695
  %v11978 = vpow.pop %v11977
  %v11979 = vmul.f32 %v11887, 1.442695
  %v11980 = vpow.pop %v11979
  %v11981 = vmul.f32 %v11888, 1.442695
  %v11982 = vpow.pop %v11981
  %v11983 = vmul.f32 %v11889, 1.442695
  %v11984 = vpow.pop %v11983
  %v11985 = vmul.f32 %v11890, 1.442695
  %v11986 = vpow.pop %v11985
  %v11987 = vmul.f32 %v11891, 1.442695
  %v11988 = vpow.pop %v11987
  %v11989 = vmul.f32 %v11892, 1.442695
  %v11990 = vpow.pop %v11989
  %v11991 = vmul.f32 %v11893, 1.442695
  %v11992 = vpow.pop %v11991
  %v11993 = vmul.f32 %v11894, 1.442695
  %v11994 = vpow.pop %v11993
  %v11995 = vmul.f32 %v11895, 1.442695
  %v11996 = vpow.pop %v11995
  %v11997 = vmul.f32 %v11896, 1.442695
  %v11998 = vpow.pop %v11997
  %v11999 = vmul.f32 %v11897, 1.442695
  %v12000 = vpow.pop %v11999
  %v12001 = vmul.f32 %v11898, 1.442695
  %v12002 = vpow.pop %v12001
  %v12003 = vmul.f32 %v11899, 1.442695
  %v12004 = vpow.pop %v12003
  %v12005 = vmul.f32 %v11900, 1.442695
  %v12006 = vpow.pop %v12005
  %v12007 = vmul.f32 %v11901, 1.442695
  %v12008 = vpow.pop %v12007
  %v12009 = vmul.f32 %v11902, 1.442695
  %v12010 = vpow.pop %v12009
  %v12011 = vmul.f32 %v11903, 1.442695
  %v12012 = vpow.pop %v12011
  %v12013 = vmul.f32 %v11904, 1.442695
  %v12014 = vpow.pop %v12013
  %v12015 = vmul.f32 %v11905, 1.442695
  %v12016 = vpow.pop %v12015
  %v12017 = vmul.f32 %v11906, 1.442695
  %v12018 = vpow.pop %v12017
  %v12019 = vmul.f32 %v11907, 1.442695
  %v12020 = vpow.pop %v12019
  %v12021 = vmul.f32 %v11908, 1.442695
  %v12022 = vpow.pop %v12021
  %v12023 = vmul.f32 %v11909, 1.442695
  %v12024 = vpow.pop %v12023
  %v12025 = vmul.f32 %v11910, 1.442695
  %v12026 = vpow.pop %v12025
  %v12027 = vmul.f32 %v11911, 1.442695
  %v12028 = vpow.pop %v12027
  %v12029 = vmul.f32 %v11912, 1.442695
  %v12030 = vpow.pop %v12029
  %v12031 = vmul.f32 %v11913, 1.442695
  %v12032 = vpow.pop %v12031
  %v12033 = vmul.f32 %v11914, 1.442695
  %v12034 = vpow.pop %v12033
  %v12035 = vmul.f32 %v11915, 1.442695
  %v12036 = vpow.pop %v12035
  %v12037 = vmul.f32 %v11916, 1.442695
  %v12038 = vpow.pop %v12037
  %v12039 = vmul.f32 %v11917, 1.442695
  %v12040 = vpow.pop %v12039
  %v12041 = vmul.f32 %v11918, 1.442695
  %v12042 = vpow.pop %v12041
  %v12043 = vmul.f32 %v11919, 1.442695
  %v12044 = vpow.pop %v12043
  %v12045 = vmul.f32 %v11920, 1.442695
  %v12046 = vpow.pop %v12045
  %v12047 = vmul.f32 %v11921, 1.442695
  %v12048 = vpow.pop %v12047
  %v12049 = vmul.f32 %v11922, 1.442695
  %v12050 = vpow.pop %v12049
  %v12051 = vadd.f32 %v11924, 1.0
  %v12052 = vadd.f32 %v11926, 1.0
  %v12053 = vadd.f32 %v11928, 1.0
  %v12054 = vadd.f32 %v11930, 1.0
  %v12055 = vadd.f32 %v11932, 1.0
  %v12056 = vadd.f32 %v11934, 1.0
  %v12057 = vadd.f32 %v11936, 1.0
  %v12058 = vadd.f32 %v11938, 1.0
  %v12059 = vadd.f32 %v11940, 1.0
  %v12060 = vadd.f32 %v11942, 1.0
  %v12061 = vadd.f32 %v11944, 1.0
  %v12062 = vadd.f32 %v11946, 1.0
  %v12063 = vadd.f32 %v11948, 1.0
  %v12064 = vadd.f32 %v11950, 1.0
  %v12065 = vadd.f32 %v11952, 1.0
  %v12066 = vadd.f32 %v11954, 1.0
  %v12067 = vadd.f32 %v11956, 1.0
  %v12068 = vadd.f32 %v11958, 1.0
  %v12069 = vadd.f32 %v11960, 1.0
  %v12070 = vadd.f32 %v11962, 1.0
  %v12071 = vadd.f32 %v11964, 1.0
  %v12072 = vadd.f32 %v11966, 1.0
  %v12073 = vadd.f32 %v11968, 1.0
  %v12074 = vadd.f32 %v11970, 1.0
  %v12075 = vadd.f32 %v11972, 1.0
  %v12076 = vadd.f32 %v11974, 1.0
  %v12077 = vadd.f32 %v11976, 1.0
  %v12078 = vadd.f32 %v11978, 1.0
  %v12079 = vadd.f32 %v11980, 1.0
  %v12080 = vadd.f32 %v11982, 1.0
  %v12081 = vadd.f32 %v11984, 1.0
  %v12082 = vadd.f32 %v11986, 1.0
  %v12083 = vadd.f32 %v11988, 1.0
  %v12084 = vadd.f32 %v11990, 1.0
  %v12085 = vadd.f32 %v11992, 1.0
  %v12086 = vadd.f32 %v11994, 1.0
  %v12087 = vadd.f32 %v11996, 1.0
  %v12088 = vadd.f32 %v11998, 1.0
  %v12089 = vadd.f32 %v12000, 1.0
  %v12090 = vadd.f32 %v12002, 1.0
  %v12091 = vadd.f32 %v12004, 1.0
  %v12092 = vadd.f32 %v12006, 1.0
  %v12093 = vadd.f32 %v12008, 1.0
  %v12094 = vadd.f32 %v12010, 1.0
  %v12095 = vadd.f32 %v12012, 1.0
  %v12096 = vadd.f32 %v12014, 1.0
  %v12097 = vadd.f32 %v12016, 1.0
  %v12098 = vadd.f32 %v12018, 1.0
  %v12099 = vadd.f32 %v12020, 1.0
  %v12100 = vadd.f32 %v12022, 1.0
  %v12101 = vadd.f32 %v12024, 1.0
  %v12102 = vadd.f32 %v12026, 1.0
  %v12103 = vadd.f32 %v12028, 1.0
  %v12104 = vadd.f32 %v12030, 1.0
  %v12105 = vadd.f32 %v12032, 1.0
  %v12106 = vadd.f32 %v12034, 1.0
  %v12107 = vadd.f32 %v12036, 1.0
  %v12108 = vadd.f32 %v12038, 1.0
  %v12109 = vadd.f32 %v12040, 1.0
  %v12110 = vadd.f32 %v12042, 1.0
  %v12111 = vadd.f32 %v12044, 1.0
  %v12112 = vadd.f32 %v12046, 1.0
  %v12113 = vadd.f32 %v12048, 1.0
  %v12114 = vadd.f32 %v12050, 1.0
  %v12115 = vrcp.pop %v12051
  %v12116 = vmul.f32 1.0, %v12115
  %v12117 = vrcp.pop %v12052
  %v12118 = vmul.f32 1.0, %v12117
  %v12119 = vrcp.pop %v12053
  %v12120 = vmul.f32 1.0, %v12119
  %v12121 = vrcp.pop %v12054
  %v12122 = vmul.f32 1.0, %v12121
  %v12123 = vrcp.pop %v12055
  %v12124 = vmul.f32 1.0, %v12123
  %v12125 = vrcp.pop %v12056
  %v12126 = vmul.f32 1.0, %v12125
  %v12127 = vrcp.pop %v12057
  %v12128 = vmul.f32 1.0, %v12127
  %v12129 = vrcp.pop %v12058
  %v12130 = vmul.f32 1.0, %v12129
  %v12131 = vrcp.pop %v12059
  %v12132 = vmul.f32 1.0, %v12131
  %v12133 = vrcp.pop %v12060
  %v12134 = vmul.f32 1.0, %v12133
  %v12135 = vrcp.pop %v12061
  %v12136 = vmul.f32 1.0, %v12135
  %v12137 = vrcp.pop %v12062
  %v12138 = vmul.f32 1.0, %v12137
  %v12139 = vrcp.pop %v12063
  %v12140 = vmul.f32 1.0, %v12139
  %v12141 = vrcp.pop %v12064
  %v12142 = vmul.f32 1.0, %v12141
  %v12143 = vrcp.pop %v12065
  %v12144 = vmul.f32 1.0, %v12143
  %v12145 = vrcp.pop %v12066
  %v12146 = vmul.f32 1.0, %v12145
  %v12147 = vrcp.pop %v12067
  %v12148 = vmul.f32 1.0, %v12147
  %v12149 = vrcp.pop %v12068
  %v12150 = vmul.f32 1.0, %v12149
  %v12151 = vrcp.pop %v12069
  %v12152 = vmul.f32 1.0, %v12151
  %v12153 = vrcp.pop %v12070
  %v12154 = vmul.f32 1.0, %v12153
  %v12155 = vrcp.pop %v12071
  %v12156 = vmul.f32 1.0, %v12155
  %v12157 = vrcp.pop %v12072
  %v12158 = vmul.f32 1.0, %v12157
  %v12159 = vrcp.pop %v12073
  %v12160 = vmul.f32 1.0, %v12159
  %v12161 = vrcp.pop %v12074
  %v12162 = vmul.f32 1.0, %v12161
  %v12163 = vrcp.pop %v12075
  %v12164 = vmul.f32 1.0, %v12163
  %v12165 = vrcp.pop %v12076
  %v12166 = vmul.f32 1.0, %v12165
  %v12167 = vrcp.pop %v12077
  %v12168 = vmul.f32 1.0, %v12167
  %v12169 = vrcp.pop %v12078
  %v12170 = vmul.f32 1.0, %v12169
  %v12171 = vrcp.pop %v12079
  %v12172 = vmul.f32 1.0, %v12171
  %v12173 = vrcp.pop %v12080
  %v12174 = vmul.f32 1.0, %v12173
  %v12175 = vrcp.pop %v12081
  %v12176 = vmul.f32 1.0, %v12175
  %v12177 = vrcp.pop %v12082
  %v12178 = vmul.f32 1.0, %v12177
  %v12179 = vrcp.pop %v12083
  %v12180 = vmul.f32 1.0, %v12179
  %v12181 = vrcp.pop %v12084
  %v12182 = vmul.f32 1.0, %v12181
  %v12183 = vrcp.pop %v12085
  %v12184 = vmul.f32 1.0, %v12183
  %v12185 = vrcp.pop %v12086
  %v12186 = vmul.f32 1.0, %v12185
  %v12187 = vrcp.pop %v12087
  %v12188 = vmul.f32 1.0, %v12187
  %v12189 = vrcp.pop %v12088
  %v12190 = vmul.f32 1.0, %v12189
  %v12191 = vrcp.pop %v12089
  %v12192 = vmul.f32 1.0, %v12191
  %v12193 = vrcp.pop %v12090
  %v12194 = vmul.f32 1.0, %v12193
  %v12195 = vrcp.pop %v12091
  %v12196 = vmul.f32 1.0, %v12195
  %v12197 = vrcp.pop %v12092
  %v12198 = vmul.f32 1.0, %v12197
  %v12199 = vrcp.pop %v12093
  %v12200 = vmul.f32 1.0, %v12199
  %v12201 = vrcp.pop %v12094
  %v12202 = vmul.f32 1.0, %v12201
  %v12203 = vrcp.pop %v12095
  %v12204 = vmul.f32 1.0, %v12203
  %v12205 = vrcp.pop %v12096
  %v12206 = vmul.f32 1.0, %v12205
  %v12207 = vrcp.pop %v12097
  %v12208 = vmul.f32 1.0, %v12207
  %v12209 = vrcp.pop %v12098
  %v12210 = vmul.f32 1.0, %v12209
  %v12211 = vrcp.pop %v12099
  %v12212 = vmul.f32 1.0, %v12211
  %v12213 = vrcp.pop %v12100
  %v12214 = vmul.f32 1.0, %v12213
  %v12215 = vrcp.pop %v12101
  %v12216 = vmul.f32 1.0, %v12215
  %v12217 = vrcp.pop %v12102
  %v12218 = vmul.f32 1.0, %v12217
  %v12219 = vrcp.pop %v12103
  %v12220 = vmul.f32 1.0, %v12219
  %v12221 = vrcp.pop %v12104
  %v12222 = vmul.f32 1.0, %v12221
  %v12223 = vrcp.pop %v12105
  %v12224 = vmul.f32 1.0, %v12223
  %v12225 = vrcp.pop %v12106
  %v12226 = vmul.f32 1.0, %v12225
  %v12227 = vrcp.pop %v12107
  %v12228 = vmul.f32 1.0, %v12227
  %v12229 = vrcp.pop %v12108
  %v12230 = vmul.f32 1.0, %v12229
  %v12231 = vrcp.pop %v12109
  %v12232 = vmul.f32 1.0, %v12231
  %v12233 = vrcp.pop %v12110
  %v12234 = vmul.f32 1.0, %v12233
  %v12235 = vrcp.pop %v12111
  %v12236 = vmul.f32 1.0, %v12235
  %v12237 = vrcp.pop %v12112
  %v12238 = vmul.f32 1.0, %v12237
  %v12239 = vrcp.pop %v12113
  %v12240 = vmul.f32 1.0, %v12239
  %v12241 = vrcp.pop %v12114
  %v12242 = vmul.f32 1.0, %v12241
  %v12243 = vmul.f32 %v11758, %v12116
  %v12244 = vmul.f32 %v11759, %v12118
  %v12245 = vmul.f32 %v11760, %v12120
  %v12246 = vmul.f32 %v11761, %v12122
  %v12247 = vmul.f32 %v11762, %v12124
  %v12248 = vmul.f32 %v11763, %v12126
  %v12249 = vmul.f32 %v11764, %v12128
  %v12250 = vmul.f32 %v11765, %v12130
  %v12251 = vmul.f32 %v11766, %v12132
  %v12252 = vmul.f32 %v11767, %v12134
  %v12253 = vmul.f32 %v11768, %v12136
  %v12254 = vmul.f32 %v11769, %v12138
  %v12255 = vmul.f32 %v11770, %v12140
  %v12256 = vmul.f32 %v11771, %v12142
  %v12257 = vmul.f32 %v11772, %v12144
  %v12258 = vmul.f32 %v11773, %v12146
  %v12259 = vmul.f32 %v11774, %v12148
  %v12260 = vmul.f32 %v11775, %v12150
  %v12261 = vmul.f32 %v11776, %v12152
  %v12262 = vmul.f32 %v11777, %v12154
  %v12263 = vmul.f32 %v11778, %v12156
  %v12264 = vmul.f32 %v11779, %v12158
  %v12265 = vmul.f32 %v11780, %v12160
  %v12266 = vmul.f32 %v11781, %v12162
  %v12267 = vmul.f32 %v11782, %v12164
  %v12268 = vmul.f32 %v11783, %v12166
  %v12269 = vmul.f32 %v11784, %v12168
  %v12270 = vmul.f32 %v11785, %v12170
  %v12271 = vmul.f32 %v11786, %v12172
  %v12272 = vmul.f32 %v11787, %v12174
  %v12273 = vmul.f32 %v11788, %v12176
  %v12274 = vmul.f32 %v11789, %v12178
  %v12275 = vmul.f32 %v11790, %v12180
  %v12276 = vmul.f32 %v11791, %v12182
  %v12277 = vmul.f32 %v11792, %v12184
  %v12278 = vmul.f32 %v11793, %v12186
  %v12279 = vmul.f32 %v11794, %v12188
  %v12280 = vmul.f32 %v11795, %v12190
  %v12281 = vmul.f32 %v11796, %v12192
  %v12282 = vmul.f32 %v11797, %v12194
  %v12283 = vmul.f32 %v11798, %v12196
  %v12284 = vmul.f32 %v11799, %v12198
  %v12285 = vmul.f32 %v11800, %v12200
  %v12286 = vmul.f32 %v11801, %v12202
  %v12287 = vmul.f32 %v11802, %v12204
  %v12288 = vmul.f32 %v11803, %v12206
  %v12289 = vmul.f32 %v11804, %v12208
  %v12290 = vmul.f32 %v11805, %v12210
  %v12291 = vmul.f32 %v11806, %v12212
  %v12292 = vmul.f32 %v11807, %v12214
  %v12293 = vmul.f32 %v11808, %v12216
  %v12294 = vmul.f32 %v11809, %v12218
  %v12295 = vmul.f32 %v11810, %v12220
  %v12296 = vmul.f32 %v11811, %v12222
  %v12297 = vmul.f32 %v11812, %v12224
  %v12298 = vmul.f32 %v11813, %v12226
  %v12299 = vmul.f32 %v11814, %v12228
  %v12300 = vmul.f32 %v11815, %v12230
  %v12301 = vmul.f32 %v11816, %v12232
  %v12302 = vmul.f32 %v11817, %v12234
  %v12303 = vmul.f32 %v11818, %v12236
  %v12304 = vmul.f32 %v11819, %v12238
  %v12305 = vmul.f32 %v11820, %v12240
  %v12306 = vmul.f32 %v11821, %v12242
  %v12307 = vpack.c.bf16 %v12244, %v12243
  %v12308 = vpack.c.bf16 %v12246, %v12245
  %v12309 = vpack.c.bf16 %v12248, %v12247
  %v12310 = vpack.c.bf16 %v12250, %v12249
  %v12311 = vpack.c.bf16 %v12252, %v12251
  %v12312 = vpack.c.bf16 %v12254, %v12253
  %v12313 = vpack.c.bf16 %v12256, %v12255
  %v12314 = vpack.c.bf16 %v12258, %v12257
  %v12315 = vpack.c.bf16 %v12260, %v12259
  %v12316 = vpack.c.bf16 %v12262, %v12261
  %v12317 = vpack.c.bf16 %v12264, %v12263
  %v12318 = vpack.c.bf16 %v12266, %v12265
  %v12319 = vpack.c.bf16 %v12268, %v12267
  %v12320 = vpack.c.bf16 %v12270, %v12269
  %v12321 = vpack.c.bf16 %v12272, %v12271
  %v12322 = vpack.c.bf16 %v12274, %v12273
  %v12323 = vpack.c.bf16 %v12276, %v12275
  %v12324 = vpack.c.bf16 %v12278, %v12277
  %v12325 = vpack.c.bf16 %v12280, %v12279
  %v12326 = vpack.c.bf16 %v12282, %v12281
  %v12327 = vpack.c.bf16 %v12284, %v12283
  %v12328 = vpack.c.bf16 %v12286, %v12285
  %v12329 = vpack.c.bf16 %v12288, %v12287
  %v12330 = vpack.c.bf16 %v12290, %v12289
  %v12331 = vpack.c.bf16 %v12292, %v12291
  %v12332 = vpack.c.bf16 %v12294, %v12293
  %v12333 = vpack.c.bf16 %v12296, %v12295
  %v12334 = vpack.c.bf16 %v12298, %v12297
  %v12335 = vpack.c.bf16 %v12300, %v12299
  %v12336 = vpack.c.bf16 %v12302, %v12301
  %v12337 = vpack.c.bf16 %v12304, %v12303
  %v12338 = vpack.c.bf16 %v12306, %v12305
  %v12340 = vshrl.u32 %v12307, 16
  %v12342 = vrot.slane %v12340, 7
  %v12343 = vshll.u32 %v12307, 16
  %v12345 = vor.u32 %v12342, %v12343
  %v12347 = vshrl.u32 %v12308, 16
  %v12349 = vrot.slane %v12347, 7
  %v12350 = vshll.u32 %v12308, 16
  %v12352 = vor.u32 %v12349, %v12350
  %v12354 = vshrl.u32 %v12309, 16
  %v12356 = vrot.slane %v12354, 7
  %v12357 = vshll.u32 %v12309, 16
  %v12359 = vor.u32 %v12356, %v12357
  %v12361 = vshrl.u32 %v12310, 16
  %v12363 = vrot.slane %v12361, 7
  %v12364 = vshll.u32 %v12310, 16
  %v12366 = vor.u32 %v12363, %v12364
  %v12368 = vshrl.u32 %v12311, 16
  %v12370 = vrot.slane %v12368, 7
  %v12371 = vshll.u32 %v12311, 16
  %v12373 = vor.u32 %v12370, %v12371
  %v12375 = vshrl.u32 %v12312, 16
  %v12377 = vrot.slane %v12375, 7
  %v12378 = vshll.u32 %v12312, 16
  %v12380 = vor.u32 %v12377, %v12378
  %v12382 = vshrl.u32 %v12313, 16
  %v12384 = vrot.slane %v12382, 7
  %v12385 = vshll.u32 %v12313, 16
  %v12387 = vor.u32 %v12384, %v12385
  %v12389 = vshrl.u32 %v12314, 16
  %v12391 = vrot.slane %v12389, 7
  %v12392 = vshll.u32 %v12314, 16
  %v12394 = vor.u32 %v12391, %v12392
  %v12396 = vshrl.u32 %v12315, 16
  %v12398 = vrot.slane %v12396, 7
  %v12399 = vshll.u32 %v12315, 16
  %v12401 = vor.u32 %v12398, %v12399
  %v12403 = vshrl.u32 %v12316, 16
  %v12405 = vrot.slane %v12403, 7
  %v12406 = vshll.u32 %v12316, 16
  %v12408 = vor.u32 %v12405, %v12406
  %v12410 = vshrl.u32 %v12317, 16
  %v12412 = vrot.slane %v12410, 7
  %v12413 = vshll.u32 %v12317, 16
  %v12415 = vor.u32 %v12412, %v12413
  %v12417 = vshrl.u32 %v12318, 16
  %v12419 = vrot.slane %v12417, 7
  %v12420 = vshll.u32 %v12318, 16
  %v12422 = vor.u32 %v12419, %v12420
  %v12424 = vshrl.u32 %v12319, 16
  %v12426 = vrot.slane %v12424, 7
  %v12427 = vshll.u32 %v12319, 16
  %v12429 = vor.u32 %v12426, %v12427
  %v12431 = vshrl.u32 %v12320, 16
  %v12433 = vrot.slane %v12431, 7
  %v12434 = vshll.u32 %v12320, 16
  %v12436 = vor.u32 %v12433, %v12434
  %v12438 = vshrl.u32 %v12321, 16
  %v12440 = vrot.slane %v12438, 7
  %v12441 = vshll.u32 %v12321, 16
  %v12443 = vor.u32 %v12440, %v12441
  %v12445 = vshrl.u32 %v12322, 16
  %v12447 = vrot.slane %v12445, 7
  %v12448 = vshll.u32 %v12322, 16
  %v12450 = vor.u32 %v12447, %v12448
  %v12452 = vshrl.u32 %v12323, 16
  %v12454 = vrot.slane %v12452, 7
  %v12455 = vshll.u32 %v12323, 16
  %v12457 = vor.u32 %v12454, %v12455
  %v12459 = vshrl.u32 %v12324, 16
  %v12461 = vrot.slane %v12459, 7
  %v12462 = vshll.u32 %v12324, 16
  %v12464 = vor.u32 %v12461, %v12462
  %v12466 = vshrl.u32 %v12325, 16
  %v12468 = vrot.slane %v12466, 7
  %v12469 = vshll.u32 %v12325, 16
  %v12471 = vor.u32 %v12468, %v12469
  %v12473 = vshrl.u32 %v12326, 16
  %v12475 = vrot.slane %v12473, 7
  %v12476 = vshll.u32 %v12326, 16
  %v12478 = vor.u32 %v12475, %v12476
  %v12480 = vshrl.u32 %v12327, 16
  %v12482 = vrot.slane %v12480, 7
  %v12483 = vshll.u32 %v12327, 16
  %v12485 = vor.u32 %v12482, %v12483
  %v12487 = vshrl.u32 %v12328, 16
  %v12489 = vrot.slane %v12487, 7
  %v12490 = vshll.u32 %v12328, 16
  %v12492 = vor.u32 %v12489, %v12490
  %v12494 = vshrl.u32 %v12329, 16
  %v12496 = vrot.slane %v12494, 7
  %v12497 = vshll.u32 %v12329, 16
  %v12499 = vor.u32 %v12496, %v12497
  %v12501 = vshrl.u32 %v12330, 16
  %v12503 = vrot.slane %v12501, 7
  %v12504 = vshll.u32 %v12330, 16
  %v12506 = vor.u32 %v12503, %v12504
  %v12508 = vshrl.u32 %v12331, 16
  %v12510 = vrot.slane %v12508, 7
  %v12511 = vshll.u32 %v12331, 16
  %v12513 = vor.u32 %v12510, %v12511
  %v12515 = vshrl.u32 %v12332, 16
  %v12517 = vrot.slane %v12515, 7
  %v12518 = vshll.u32 %v12332, 16
  %v12520 = vor.u32 %v12517, %v12518
  %v12522 = vshrl.u32 %v12333, 16
  %v12524 = vrot.slane %v12522, 7
  %v12525 = vshll.u32 %v12333, 16
  %v12527 = vor.u32 %v12524, %v12525
  %v12529 = vshrl.u32 %v12334, 16
  %v12531 = vrot.slane %v12529, 7
  %v12532 = vshll.u32 %v12334, 16
  %v12534 = vor.u32 %v12531, %v12532
  %v12536 = vshrl.u32 %v12335, 16
  %v12538 = vrot.slane %v12536, 7
  %v12539 = vshll.u32 %v12335, 16
  %v12541 = vor.u32 %v12538, %v12539
  %v12543 = vshrl.u32 %v12336, 16
  %v12545 = vrot.slane %v12543, 7
  %v12546 = vshll.u32 %v12336, 16
  %v12548 = vor.u32 %v12545, %v12546
  %v12550 = vshrl.u32 %v12337, 16
  %v12552 = vrot.slane %v12550, 7
  %v12553 = vshll.u32 %v12337, 16
  %v12555 = vor.u32 %v12552, %v12553
  %v12557 = vshrl.u32 %v12338, 16
  %v12559 = vrot.slane %v12557, 7
  %v12560 = vshll.u32 %v12338, 16
  %v12562 = vor.u32 %v12559, %v12560
  %v12627 = vsel %vm933, 0, %v12345
  %v12628 = vsel %vm933, 0, %v12352
  %v12629 = vsel %vm933, 0, %v12359
  %v12630 = vsel %vm933, 0, %v12366
  %v12631 = vsel %vm933, 0, %v12373
  %v12632 = vsel %vm933, 0, %v12380
  %v12633 = vsel %vm933, 0, %v12387
  %v12634 = vsel %vm933, 0, %v12394
  %v12635 = vsel %vm933, 0, %v12401
  %v12636 = vsel %vm933, 0, %v12408
  %v12637 = vsel %vm933, 0, %v12415
  %v12638 = vsel %vm933, 0, %v12422
  %v12639 = vsel %vm933, 0, %v12429
  %v12640 = vsel %vm933, 0, %v12436
  %v12641 = vsel %vm933, 0, %v12443
  %v12642 = vsel %vm933, 0, %v12450
  %v12643 = vsel %vm933, 0, %v12457
  %v12644 = vsel %vm933, 0, %v12464
  %v12645 = vsel %vm933, 0, %v12471
  %v12646 = vsel %vm933, 0, %v12478
  %v12647 = vsel %vm933, 0, %v12485
  %v12648 = vsel %vm933, 0, %v12492
  %v12649 = vsel %vm933, 0, %v12499
  %v12650 = vsel %vm933, 0, %v12506
  %v12651 = vsel %vm933, 0, %v12513
  %v12652 = vsel %vm933, 0, %v12520
  %v12653 = vsel %vm933, 0, %v12527
  %v12654 = vsel %vm933, 0, %v12534
  %v12655 = vsel %vm933, 0, %v12541
  %v12656 = vsel %vm933, 0, %v12548
  %v12657 = vsel %vm933, 0, %v12555
  %v12658 = vsel %vm933, 0, %v12562
  %v12659 = vsel %vm933, %v12342, 0
  %v12660 = vsel %vm933, %v12349, 0
  %v12661 = vsel %vm933, %v12356, 0
  %v12662 = vsel %vm933, %v12363, 0
  %v12663 = vsel %vm933, %v12370, 0
  %v12664 = vsel %vm933, %v12377, 0
  %v12665 = vsel %vm933, %v12384, 0
  %v12666 = vsel %vm933, %v12391, 0
  %v12667 = vsel %vm933, %v12398, 0
  %v12668 = vsel %vm933, %v12405, 0
  %v12669 = vsel %vm933, %v12412, 0
  %v12670 = vsel %vm933, %v12419, 0
  %v12671 = vsel %vm933, %v12426, 0
  %v12672 = vsel %vm933, %v12433, 0
  %v12673 = vsel %vm933, %v12440, 0
  %v12674 = vsel %vm933, %v12447, 0
  %v12675 = vsel %vm933, %v12454, 0
  %v12676 = vsel %vm933, %v12461, 0
  %v12677 = vsel %vm933, %v12468, 0
  %v12678 = vsel %vm933, %v12475, 0
  %v12679 = vsel %vm933, %v12482, 0
  %v12680 = vsel %vm933, %v12489, 0
  %v12681 = vsel %vm933, %v12496, 0
  %v12682 = vsel %vm933, %v12503, 0
  %v12683 = vsel %vm933, %v12510, 0
  %v12684 = vsel %vm933, %v12517, 0
  %v12685 = vsel %vm933, %v12524, 0
  %v12686 = vsel %vm933, %v12531, 0
  %v12687 = vsel %vm933, %v12538, 0
  %v12688 = vsel %vm933, %v12545, 0
  %v12689 = vsel %vm933, %v12552, 0
  %v12690 = vsel %vm933, %v12559, 0
  %v12692 = vshrl.u32 %v12627, 16
  %v12694 = vshll.u32 %v12627, 16
  %v12696 = vrot.slane %v12694, 1
  %v12697 = vor.u32 %v12692, %v12696
  %v12699 = vshll.u32 %v12659, 16
  %v12701 = vrot.slane %v12699, 1
  %v12702 = vsel %vm1000, %v12697, %v12701
  %v12704 = vshrl.u32 %v12628, 16
  %v12706 = vshll.u32 %v12628, 16
  %v12708 = vrot.slane %v12706, 1
  %v12709 = vor.u32 %v12704, %v12708
  %v12711 = vshll.u32 %v12660, 16
  %v12713 = vrot.slane %v12711, 1
  %v12714 = vsel %vm1000, %v12709, %v12713
  %v12716 = vshrl.u32 %v12629, 16
  %v12718 = vshll.u32 %v12629, 16
  %v12720 = vrot.slane %v12718, 1
  %v12721 = vor.u32 %v12716, %v12720
  %v12723 = vshll.u32 %v12661, 16
  %v12725 = vrot.slane %v12723, 1
  %v12726 = vsel %vm1000, %v12721, %v12725
  %v12728 = vshrl.u32 %v12630, 16
  %v12730 = vshll.u32 %v12630, 16
  %v12732 = vrot.slane %v12730, 1
  %v12733 = vor.u32 %v12728, %v12732
  %v12735 = vshll.u32 %v12662, 16
  %v12737 = vrot.slane %v12735, 1
  %v12738 = vsel %vm1000, %v12733, %v12737
  %v12740 = vshrl.u32 %v12631, 16
  %v12742 = vshll.u32 %v12631, 16
  %v12744 = vrot.slane %v12742, 1
  %v12745 = vor.u32 %v12740, %v12744
  %v12747 = vshll.u32 %v12663, 16
  %v12749 = vrot.slane %v12747, 1
  %v12750 = vsel %vm1000, %v12745, %v12749
  %v12752 = vshrl.u32 %v12632, 16
  %v12754 = vshll.u32 %v12632, 16
  %v12756 = vrot.slane %v12754, 1
  %v12757 = vor.u32 %v12752, %v12756
  %v12759 = vshll.u32 %v12664, 16
  %v12761 = vrot.slane %v12759, 1
  %v12762 = vsel %vm1000, %v12757, %v12761
  %v12764 = vshrl.u32 %v12633, 16
  %v12766 = vshll.u32 %v12633, 16
  %v12768 = vrot.slane %v12766, 1
  %v12769 = vor.u32 %v12764, %v12768
  %v12771 = vshll.u32 %v12665, 16
  %v12773 = vrot.slane %v12771, 1
  %v12774 = vsel %vm1000, %v12769, %v12773
  %v12776 = vshrl.u32 %v12634, 16
  %v12778 = vshll.u32 %v12634, 16
  %v12780 = vrot.slane %v12778, 1
  %v12781 = vor.u32 %v12776, %v12780
  %v12783 = vshll.u32 %v12666, 16
  %v12785 = vrot.slane %v12783, 1
  %v12786 = vsel %vm1000, %v12781, %v12785
  %v12788 = vshrl.u32 %v12635, 16
  %v12790 = vshll.u32 %v12635, 16
  %v12792 = vrot.slane %v12790, 1
  %v12793 = vor.u32 %v12788, %v12792
  %v12795 = vshll.u32 %v12667, 16
  %v12797 = vrot.slane %v12795, 1
  %v12798 = vsel %vm1000, %v12793, %v12797
  %v12800 = vshrl.u32 %v12636, 16
  %v12802 = vshll.u32 %v12636, 16
  %v12804 = vrot.slane %v12802, 1
  %v12805 = vor.u32 %v12800, %v12804
  %v12807 = vshll.u32 %v12668, 16
  %v12809 = vrot.slane %v12807, 1
  %v12810 = vsel %vm1000, %v12805, %v12809
  %v12812 = vshrl.u32 %v12637, 16
  %v12814 = vshll.u32 %v12637, 16
  %v12816 = vrot.slane %v12814, 1
  %v12817 = vor.u32 %v12812, %v12816
  %v12819 = vshll.u32 %v12669, 16
  %v12821 = vrot.slane %v12819, 1
  %v12822 = vsel %vm1000, %v12817, %v12821
  %v12824 = vshrl.u32 %v12638, 16
  %v12826 = vshll.u32 %v12638, 16
  %v12828 = vrot.slane %v12826, 1
  %v12829 = vor.u32 %v12824, %v12828
  %v12831 = vshll.u32 %v12670, 16
  %v12833 = vrot.slane %v12831, 1
  %v12834 = vsel %vm1000, %v12829, %v12833
  %v12836 = vshrl.u32 %v12639, 16
  %v12838 = vshll.u32 %v12639, 16
  %v12840 = vrot.slane %v12838, 1
  %v12841 = vor.u32 %v12836, %v12840
  %v12843 = vshll.u32 %v12671, 16
  %v12845 = vrot.slane %v12843, 1
  %v12846 = vsel %vm1000, %v12841, %v12845
  %v12848 = vshrl.u32 %v12640, 16
  %v12850 = vshll.u32 %v12640, 16
  %v12852 = vrot.slane %v12850, 1
  %v12853 = vor.u32 %v12848, %v12852
  %v12855 = vshll.u32 %v12672, 16
  %v12857 = vrot.slane %v12855, 1
  %v12858 = vsel %vm1000, %v12853, %v12857
  %v12860 = vshrl.u32 %v12641, 16
  %v12862 = vshll.u32 %v12641, 16
  %v12864 = vrot.slane %v12862, 1
  %v12865 = vor.u32 %v12860, %v12864
  %v12867 = vshll.u32 %v12673, 16
  %v12869 = vrot.slane %v12867, 1
  %v12870 = vsel %vm1000, %v12865, %v12869
  %v12872 = vshrl.u32 %v12643, 16
  %v12874 = vshll.u32 %v12643, 16
  %v12876 = vrot.slane %v12874, 1
  %v12877 = vor.u32 %v12872, %v12876
  %v12879 = vshll.u32 %v12675, 16
  %v12881 = vrot.slane %v12879, 1
  %v12882 = vsel %vm1000, %v12877, %v12881
  %v12884 = vshrl.u32 %v12644, 16
  %v12886 = vshll.u32 %v12644, 16
  %v12888 = vrot.slane %v12886, 1
  %v12889 = vor.u32 %v12884, %v12888
  %v12891 = vshll.u32 %v12676, 16
  %v12893 = vrot.slane %v12891, 1
  %v12894 = vsel %vm1000, %v12889, %v12893
  %v12896 = vshrl.u32 %v12645, 16
  %v12898 = vshll.u32 %v12645, 16
  %v12900 = vrot.slane %v12898, 1
  %v12901 = vor.u32 %v12896, %v12900
  %v12903 = vshll.u32 %v12677, 16
  %v12905 = vrot.slane %v12903, 1
  %v12906 = vsel %vm1000, %v12901, %v12905
  %v12908 = vshrl.u32 %v12646, 16
  %v12910 = vshll.u32 %v12646, 16
  %v12912 = vrot.slane %v12910, 1
  %v12913 = vor.u32 %v12908, %v12912
  %v12915 = vshll.u32 %v12678, 16
  %v12917 = vrot.slane %v12915, 1
  %v12918 = vsel %vm1000, %v12913, %v12917
  %v12920 = vshrl.u32 %v12647, 16
  %v12922 = vshll.u32 %v12647, 16
  %v12924 = vrot.slane %v12922, 1
  %v12925 = vor.u32 %v12920, %v12924
  %v12927 = vshll.u32 %v12679, 16
  %v12929 = vrot.slane %v12927, 1
  %v12930 = vsel %vm1000, %v12925, %v12929
  %v12932 = vshrl.u32 %v12648, 16
  %v12934 = vshll.u32 %v12648, 16
  %v12936 = vrot.slane %v12934, 1
  %v12937 = vor.u32 %v12932, %v12936
  %v12939 = vshll.u32 %v12680, 16
  %v12941 = vrot.slane %v12939, 1
  %v12942 = vsel %vm1000, %v12937, %v12941
  %v12944 = vshrl.u32 %v12649, 16
  %v12946 = vshll.u32 %v12649, 16
  %v12948 = vrot.slane %v12946, 1
  %v12949 = vor.u32 %v12944, %v12948
  %v12951 = vshll.u32 %v12681, 16
  %v12953 = vrot.slane %v12951, 1
  %v12954 = vsel %vm1000, %v12949, %v12953
  %v12956 = vshrl.u32 %v12650, 16
  %v12958 = vshll.u32 %v12650, 16
  %v12960 = vrot.slane %v12958, 1
  %v12961 = vor.u32 %v12956, %v12960
  %v12963 = vshll.u32 %v12682, 16
  %v12965 = vrot.slane %v12963, 1
  %v12966 = vsel %vm1000, %v12961, %v12965
  %v12968 = vshrl.u32 %v12651, 16
  %v12970 = vshll.u32 %v12651, 16
  %v12972 = vrot.slane %v12970, 1
  %v12973 = vor.u32 %v12968, %v12972
  %v12975 = vshll.u32 %v12683, 16
  %v12977 = vrot.slane %v12975, 1
  %v12978 = vsel %vm1000, %v12973, %v12977
  %v12980 = vshrl.u32 %v12652, 16
  %v12982 = vshll.u32 %v12652, 16
  %v12984 = vrot.slane %v12982, 1
  %v12985 = vor.u32 %v12980, %v12984
  %v12987 = vshll.u32 %v12684, 16
  %v12989 = vrot.slane %v12987, 1
  %v12990 = vsel %vm1000, %v12985, %v12989
  %v12992 = vshrl.u32 %v12653, 16
  %v12994 = vshll.u32 %v12653, 16
  %v12996 = vrot.slane %v12994, 1
  %v12997 = vor.u32 %v12992, %v12996
  %v12999 = vshll.u32 %v12685, 16
  %v13001 = vrot.slane %v12999, 1
  %v13002 = vsel %vm1000, %v12997, %v13001
  %v13004 = vshrl.u32 %v12654, 16
  %v13006 = vshll.u32 %v12654, 16
  %v13008 = vrot.slane %v13006, 1
  %v13009 = vor.u32 %v13004, %v13008
  %v13011 = vshll.u32 %v12686, 16
  %v13013 = vrot.slane %v13011, 1
  %v13014 = vsel %vm1000, %v13009, %v13013
  %v13016 = vshrl.u32 %v12655, 16
  %v13018 = vshll.u32 %v12655, 16
  %v13020 = vrot.slane %v13018, 1
  %v13021 = vor.u32 %v13016, %v13020
  %v13023 = vshll.u32 %v12687, 16
  %v13025 = vrot.slane %v13023, 1
  %v13026 = vsel %vm1000, %v13021, %v13025
  %v13028 = vshrl.u32 %v12656, 16
  %v13030 = vshll.u32 %v12656, 16
  %v13032 = vrot.slane %v13030, 1
  %v13033 = vor.u32 %v13028, %v13032
  %v13035 = vshll.u32 %v12688, 16
  %v13037 = vrot.slane %v13035, 1
  %v13038 = vsel %vm1000, %v13033, %v13037
  %v13040 = vshrl.u32 %v12657, 16
  %v13042 = vshll.u32 %v12657, 16
  %v13044 = vrot.slane %v13042, 1
  %v13045 = vor.u32 %v13040, %v13044
  %v13047 = vshll.u32 %v12689, 16
  %v13049 = vrot.slane %v13047, 1
  %v13050 = vsel %vm1000, %v13045, %v13049
  %13051 = vrot.lane.b32.xlu0 %v12702, 32
  %v13052 = vpop.permute.xlu0 %13051
  %13053 = vrot.lane.b32.xlu0 %v12714, 32
  %v13054 = vpop.permute.xlu0 %13053
  %13055 = vrot.lane.b32.xlu0 %v12726, 32
  %v13056 = vpop.permute.xlu0 %13055
  %13057 = vrot.lane.b32.xlu0 %v12738, 32
  %v13058 = vpop.permute.xlu0 %13057
  %13059 = vrot.lane.b32.xlu0 %v12750, 32
  %v13060 = vpop.permute.xlu0 %13059
  %13061 = vrot.lane.b32.xlu0 %v12762, 32
  %v13062 = vpop.permute.xlu0 %13061
  %13063 = vrot.lane.b32.xlu0 %v12774, 32
  %v13064 = vpop.permute.xlu0 %13063
  %13065 = vrot.lane.b32.xlu0 %v12786, 32
  %v13066 = vpop.permute.xlu0 %13065
  %13067 = vrot.lane.b32.xlu0 %v12798, 32
  %v13068 = vpop.permute.xlu0 %13067
  %13069 = vrot.lane.b32.xlu0 %v12810, 32
  %v13070 = vpop.permute.xlu0 %13069
  %13071 = vrot.lane.b32.xlu0 %v12822, 32
  %v13072 = vpop.permute.xlu0 %13071
  %13073 = vrot.lane.b32.xlu0 %v12834, 32
  %v13074 = vpop.permute.xlu0 %13073
  %13075 = vrot.lane.b32.xlu0 %v12846, 32
  %v13076 = vpop.permute.xlu0 %13075
  %13077 = vrot.lane.b32.xlu0 %v12858, 32
  %v13078 = vpop.permute.xlu0 %13077
  %13079 = vrot.lane.b32.xlu0 %v12870, 32
  %v13080 = vpop.permute.xlu0 %13079
  %13081 = vrot.lane.b32.xlu0 %v12882, 32
  %v13082 = vpop.permute.xlu0 %13081
  %13083 = vrot.lane.b32.xlu0 %v12894, 32
  %v13084 = vpop.permute.xlu0 %13083
  %13085 = vrot.lane.b32.xlu0 %v12906, 32
  %v13086 = vpop.permute.xlu0 %13085
  %13087 = vrot.lane.b32.xlu0 %v12918, 32
  %v13088 = vpop.permute.xlu0 %13087
  %13089 = vrot.lane.b32.xlu0 %v12930, 32
  %v13090 = vpop.permute.xlu0 %13089
  %13091 = vrot.lane.b32.xlu0 %v12942, 32
  %v13092 = vpop.permute.xlu0 %13091
  %13093 = vrot.lane.b32.xlu0 %v12954, 32
  %v13094 = vpop.permute.xlu0 %13093
  %13095 = vrot.lane.b32.xlu0 %v12966, 32
  %v13096 = vpop.permute.xlu0 %13095
  %13097 = vrot.lane.b32.xlu0 %v12978, 32
  %v13098 = vpop.permute.xlu0 %13097
  %13099 = vrot.lane.b32.xlu0 %v12990, 32
  %v13100 = vpop.permute.xlu0 %13099
  %13101 = vrot.lane.b32.xlu0 %v13002, 32
  %v13102 = vpop.permute.xlu0 %13101
  %13103 = vrot.lane.b32.xlu0 %v13014, 32
  %v13104 = vpop.permute.xlu0 %13103
  %13105 = vrot.lane.b32.xlu0 %v13026, 32
  %v13106 = vpop.permute.xlu0 %13105
  %13107 = vrot.lane.b32.xlu0 %v13038, 32
  %v13108 = vpop.permute.xlu0 %13107
  %13109 = vrot.lane.b32.xlu0 %v13050, 32
  %v13110 = vpop.permute.xlu0 %13109
  %v13171 = vrot.slane %v12627, 1
  %v13172 = vrot.slane %v12659, 1
  %v13173 = vsel %vm1497, %v13171, %v13172
  %v13174 = vrot.slane %v12628, 1
  %v13175 = vrot.slane %v12660, 1
  %v13176 = vsel %vm1497, %v13174, %v13175
  %v13177 = vrot.slane %v12629, 1
  %v13178 = vrot.slane %v12661, 1
  %v13179 = vsel %vm1497, %v13177, %v13178
  %v13180 = vrot.slane %v12630, 1
  %v13181 = vrot.slane %v12662, 1
  %v13182 = vsel %vm1497, %v13180, %v13181
  %v13183 = vrot.slane %v12631, 1
  %v13184 = vrot.slane %v12663, 1
  %v13185 = vsel %vm1497, %v13183, %v13184
  %v13186 = vrot.slane %v12632, 1
  %v13187 = vrot.slane %v12664, 1
  %v13188 = vsel %vm1497, %v13186, %v13187
  %v13189 = vrot.slane %v12633, 1
  %v13190 = vrot.slane %v12665, 1
  %v13191 = vsel %vm1497, %v13189, %v13190
  %v13192 = vrot.slane %v12634, 1
  %v13193 = vrot.slane %v12666, 1
  %v13194 = vsel %vm1497, %v13192, %v13193
  %v13195 = vrot.slane %v12635, 1
  %v13196 = vrot.slane %v12667, 1
  %v13197 = vsel %vm1497, %v13195, %v13196
  %v13198 = vrot.slane %v12636, 1
  %v13199 = vrot.slane %v12668, 1
  %v13200 = vsel %vm1497, %v13198, %v13199
  %v13201 = vrot.slane %v12637, 1
  %v13202 = vrot.slane %v12669, 1
  %v13203 = vsel %vm1497, %v13201, %v13202
  %v13204 = vrot.slane %v12638, 1
  %v13205 = vrot.slane %v12670, 1
  %v13206 = vsel %vm1497, %v13204, %v13205
  %v13207 = vrot.slane %v12639, 1
  %v13208 = vrot.slane %v12671, 1
  %v13209 = vsel %vm1497, %v13207, %v13208
  %v13210 = vrot.slane %v12640, 1
  %v13211 = vrot.slane %v12672, 1
  %v13212 = vsel %vm1497, %v13210, %v13211
  %v13213 = vrot.slane %v12641, 1
  %v13214 = vrot.slane %v12673, 1
  %v13215 = vsel %vm1497, %v13213, %v13214
  %v13216 = vrot.slane %v12643, 1
  %v13217 = vrot.slane %v12675, 1
  %v13218 = vsel %vm1497, %v13216, %v13217
  %v13219 = vrot.slane %v12644, 1
  %v13220 = vrot.slane %v12676, 1
  %v13221 = vsel %vm1497, %v13219, %v13220
  %v13222 = vrot.slane %v12645, 1
  %v13223 = vrot.slane %v12677, 1
  %v13224 = vsel %vm1497, %v13222, %v13223
  %v13225 = vrot.slane %v12646, 1
  %v13226 = vrot.slane %v12678, 1
  %v13227 = vsel %vm1497, %v13225, %v13226
  %v13228 = vrot.slane %v12647, 1
  %v13229 = vrot.slane %v12679, 1
  %v13230 = vsel %vm1497, %v13228, %v13229
  %v13231 = vrot.slane %v12648, 1
  %v13232 = vrot.slane %v12680, 1
  %v13233 = vsel %vm1497, %v13231, %v13232
  %v13234 = vrot.slane %v12649, 1
  %v13235 = vrot.slane %v12681, 1
  %v13236 = vsel %vm1497, %v13234, %v13235
  %v13237 = vrot.slane %v12650, 1
  %v13238 = vrot.slane %v12682, 1
  %v13239 = vsel %vm1497, %v13237, %v13238
  %v13240 = vrot.slane %v12651, 1
  %v13241 = vrot.slane %v12683, 1
  %v13242 = vsel %vm1497, %v13240, %v13241
  %v13243 = vrot.slane %v12652, 1
  %v13244 = vrot.slane %v12684, 1
  %v13245 = vsel %vm1497, %v13243, %v13244
  %v13246 = vrot.slane %v12653, 1
  %v13247 = vrot.slane %v12685, 1
  %v13248 = vsel %vm1497, %v13246, %v13247
  %v13249 = vrot.slane %v12654, 1
  %v13250 = vrot.slane %v12686, 1
  %v13251 = vsel %vm1497, %v13249, %v13250
  %v13252 = vrot.slane %v12655, 1
  %v13253 = vrot.slane %v12687, 1
  %v13254 = vsel %vm1497, %v13252, %v13253
  %v13255 = vrot.slane %v12656, 1
  %v13256 = vrot.slane %v12688, 1
  %v13257 = vsel %vm1497, %v13255, %v13256
  %v13258 = vrot.slane %v12657, 1
  %v13259 = vrot.slane %v12689, 1
  %v13260 = vsel %vm1497, %v13258, %v13259
  %13261 = vrot.lane.b32.xlu0 %v13173, 64
  %v13262 = vpop.permute.xlu0 %13261
  %13263 = vrot.lane.b32.xlu0 %v13176, 64
  %v13264 = vpop.permute.xlu0 %13263
  %13265 = vrot.lane.b32.xlu0 %v13179, 64
  %v13266 = vpop.permute.xlu0 %13265
  %13267 = vrot.lane.b32.xlu0 %v13182, 64
  %v13268 = vpop.permute.xlu0 %13267
  %13269 = vrot.lane.b32.xlu0 %v13185, 64
  %v13270 = vpop.permute.xlu0 %13269
  %13271 = vrot.lane.b32.xlu0 %v13188, 64
  %v13272 = vpop.permute.xlu0 %13271
  %13273 = vrot.lane.b32.xlu0 %v13191, 64
  %v13274 = vpop.permute.xlu0 %13273
  %13275 = vrot.lane.b32.xlu0 %v13194, 64
  %v13276 = vpop.permute.xlu0 %13275
  %13277 = vrot.lane.b32.xlu0 %v13197, 64
  %v13278 = vpop.permute.xlu0 %13277
  %13279 = vrot.lane.b32.xlu0 %v13200, 64
  %v13280 = vpop.permute.xlu0 %13279
  %13281 = vrot.lane.b32.xlu0 %v13203, 64
  %v13282 = vpop.permute.xlu0 %13281
  %13283 = vrot.lane.b32.xlu0 %v13206, 64
  %v13284 = vpop.permute.xlu0 %13283
  %13285 = vrot.lane.b32.xlu0 %v13209, 64
  %v13286 = vpop.permute.xlu0 %13285
  %13287 = vrot.lane.b32.xlu0 %v13212, 64
  %v13288 = vpop.permute.xlu0 %13287
  %13289 = vrot.lane.b32.xlu0 %v13215, 64
  %v13290 = vpop.permute.xlu0 %13289
  %13291 = vrot.lane.b32.xlu0 %v13218, 64
  %v13292 = vpop.permute.xlu0 %13291
  %13293 = vrot.lane.b32.xlu0 %v13221, 64
  %v13294 = vpop.permute.xlu0 %13293
  %13295 = vrot.lane.b32.xlu0 %v13224, 64
  %v13296 = vpop.permute.xlu0 %13295
  %13297 = vrot.lane.b32.xlu0 %v13227, 64
  %v13298 = vpop.permute.xlu0 %13297
  %13299 = vrot.lane.b32.xlu0 %v13230, 64
  %v13300 = vpop.permute.xlu0 %13299
  %13301 = vrot.lane.b32.xlu0 %v13233, 64
  %v13302 = vpop.permute.xlu0 %13301
  %13303 = vrot.lane.b32.xlu0 %v13236, 64
  %v13304 = vpop.permute.xlu0 %13303
  %13305 = vrot.lane.b32.xlu0 %v13239, 64
  %v13306 = vpop.permute.xlu0 %13305
  %13307 = vrot.lane.b32.xlu0 %v13242, 64
  %v13308 = vpop.permute.xlu0 %13307
  %13309 = vrot.lane.b32.xlu0 %v13245, 64
  %v13310 = vpop.permute.xlu0 %13309
  %13311 = vrot.lane.b32.xlu0 %v13248, 64
  %v13312 = vpop.permute.xlu0 %13311
  %13313 = vrot.lane.b32.xlu0 %v13251, 64
  %v13314 = vpop.permute.xlu0 %13313
  %13315 = vrot.lane.b32.xlu0 %v13254, 64
  %v13316 = vpop.permute.xlu0 %13315
  %13317 = vrot.lane.b32.xlu0 %v13257, 64
  %v13318 = vpop.permute.xlu0 %13317
  %13319 = vrot.lane.b32.xlu0 %v13260, 64
  %v13320 = vpop.permute.xlu0 %13319
  %13323 = vrot.lane.b32.xlu0 %v12627, 96
  %v13324 = vpop.permute.xlu0 %13323
  %13325 = vrot.lane.b32.xlu0 %v12628, 96
  %v13326 = vpop.permute.xlu0 %13325
  %13327 = vrot.lane.b32.xlu0 %v12629, 96
  %v13328 = vpop.permute.xlu0 %13327
  %13329 = vrot.lane.b32.xlu0 %v12630, 96
  %v13330 = vpop.permute.xlu0 %13329
  %13331 = vrot.lane.b32.xlu0 %v12631, 96
  %v13332 = vpop.permute.xlu0 %13331
  %13333 = vrot.lane.b32.xlu0 %v12632, 96
  %v13334 = vpop.permute.xlu0 %13333
  %13335 = vrot.lane.b32.xlu0 %v12633, 96
  %v13336 = vpop.permute.xlu0 %13335
  %13337 = vrot.lane.b32.xlu0 %v12634, 96
  %v13338 = vpop.permute.xlu0 %13337
  %13339 = vrot.lane.b32.xlu0 %v12635, 96
  %v13340 = vpop.permute.xlu0 %13339
  %13341 = vrot.lane.b32.xlu0 %v12636, 96
  %v13342 = vpop.permute.xlu0 %13341
  %13343 = vrot.lane.b32.xlu0 %v12637, 96
  %v13344 = vpop.permute.xlu0 %13343
  %13345 = vrot.lane.b32.xlu0 %v12638, 96
  %v13346 = vpop.permute.xlu0 %13345
  %13347 = vrot.lane.b32.xlu0 %v12639, 96
  %v13348 = vpop.permute.xlu0 %13347
  %13349 = vrot.lane.b32.xlu0 %v12640, 96
  %v13350 = vpop.permute.xlu0 %13349
  %13351 = vrot.lane.b32.xlu0 %v12641, 96
  %v13352 = vpop.permute.xlu0 %13351
  %13353 = vrot.lane.b32.xlu0 %v12642, 96
  %v13354 = vpop.permute.xlu0 %13353
  %13355 = vrot.lane.b32.xlu0 %v12643, 96
  %v13356 = vpop.permute.xlu0 %13355
  %13357 = vrot.lane.b32.xlu0 %v12644, 96
  %v13358 = vpop.permute.xlu0 %13357
  %13359 = vrot.lane.b32.xlu0 %v12645, 96
  %v13360 = vpop.permute.xlu0 %13359
  %13361 = vrot.lane.b32.xlu0 %v12646, 96
  %v13362 = vpop.permute.xlu0 %13361
  %13363 = vrot.lane.b32.xlu0 %v12647, 96
  %v13364 = vpop.permute.xlu0 %13363
  %13365 = vrot.lane.b32.xlu0 %v12648, 96
  %v13366 = vpop.permute.xlu0 %13365
  %13367 = vrot.lane.b32.xlu0 %v12649, 96
  %v13368 = vpop.permute.xlu0 %13367
  %13369 = vrot.lane.b32.xlu0 %v12650, 96
  %v13370 = vpop.permute.xlu0 %13369
  %13371 = vrot.lane.b32.xlu0 %v12651, 96
  %v13372 = vpop.permute.xlu0 %13371
  %13373 = vrot.lane.b32.xlu0 %v12652, 96
  %v13374 = vpop.permute.xlu0 %13373
  %13375 = vrot.lane.b32.xlu0 %v12653, 96
  %v13376 = vpop.permute.xlu0 %13375
  %13377 = vrot.lane.b32.xlu0 %v12654, 96
  %v13378 = vpop.permute.xlu0 %13377
  %13379 = vrot.lane.b32.xlu0 %v12655, 96
  %v13380 = vpop.permute.xlu0 %13379
  %13381 = vrot.lane.b32.xlu0 %v12656, 96
  %v13382 = vpop.permute.xlu0 %13381
  %13383 = vrot.lane.b32.xlu0 %v12657, 96
  %v13384 = vpop.permute.xlu0 %13383
  %13385 = vrot.lane.b32.xlu0 %v12658, 96
  %v13386 = vpop.permute.xlu0 %13385
  %v13388 = vshrl.u32 %v12642, 16
  %v13390 = vshll.u32 %v12642, 16
  %v13392 = vrot.slane %v13390, 1
  %v13393 = vor.u32 %v13388, %v13392
  %v13395 = vshll.u32 %v12674, 16
  %v13397 = vrot.slane %v13395, 1
  %v13398 = vsel %vm1000, %v13393, %v13397
  %v13400 = vshrl.u32 %v12658, 16
  %v13402 = vshll.u32 %v12658, 16
  %v13404 = vrot.slane %v13402, 1
  %v13405 = vor.u32 %v13400, %v13404
  %v13407 = vshll.u32 %v12690, 16
  %v13409 = vrot.slane %v13407, 1
  %v13410 = vsel %vm1000, %v13405, %v13409
  %v13413 = vrot.slane %v12642, 1
  %v13414 = vrot.slane %v12674, 1
  %v13415 = vsel %vm1497, %v13413, %v13414
  %v13416 = vrot.slane %v12658, 1
  %v13417 = vrot.slane %v12690, 1
  %v13418 = vsel %vm1497, %v13416, %v13417
  %13419 = vrot.lane.b32.xlu0 %v13173, 32
  %v13420 = vpop.permute.xlu0 %13419
  %13421 = vrot.lane.b32.xlu0 %v13176, 32
  %v13422 = vpop.permute.xlu0 %13421
  %13423 = vrot.lane.b32.xlu0 %v13179, 32
  %v13424 = vpop.permute.xlu0 %13423
  %13425 = vrot.lane.b32.xlu0 %v13182, 32
  %v13426 = vpop.permute.xlu0 %13425
  %13427 = vrot.lane.b32.xlu0 %v13185, 32
  %v13428 = vpop.permute.xlu0 %13427
  %13429 = vrot.lane.b32.xlu0 %v13188, 32
  %v13430 = vpop.permute.xlu0 %13429
  %13431 = vrot.lane.b32.xlu0 %v13191, 32
  %v13432 = vpop.permute.xlu0 %13431
  %13433 = vrot.lane.b32.xlu0 %v13194, 32
  %v13434 = vpop.permute.xlu0 %13433
  %13435 = vrot.lane.b32.xlu0 %v13197, 32
  %v13436 = vpop.permute.xlu0 %13435
  %13437 = vrot.lane.b32.xlu0 %v13200, 32
  %v13438 = vpop.permute.xlu0 %13437
  %13439 = vrot.lane.b32.xlu0 %v13203, 32
  %v13440 = vpop.permute.xlu0 %13439
  %13441 = vrot.lane.b32.xlu0 %v13206, 32
  %v13442 = vpop.permute.xlu0 %13441
  %13443 = vrot.lane.b32.xlu0 %v13209, 32
  %v13444 = vpop.permute.xlu0 %13443
  %13445 = vrot.lane.b32.xlu0 %v13212, 32
  %v13446 = vpop.permute.xlu0 %13445
  %13447 = vrot.lane.b32.xlu0 %v13215, 32
  %v13448 = vpop.permute.xlu0 %13447
  %13449 = vrot.lane.b32.xlu0 %v13415, 32
  %v13450 = vpop.permute.xlu0 %13449
  %13451 = vrot.lane.b32.xlu0 %v13218, 32
  %v13452 = vpop.permute.xlu0 %13451
  %13453 = vrot.lane.b32.xlu0 %v13221, 32
  %v13454 = vpop.permute.xlu0 %13453
  %13455 = vrot.lane.b32.xlu0 %v13224, 32
  %v13456 = vpop.permute.xlu0 %13455
  %13457 = vrot.lane.b32.xlu0 %v13227, 32
  %v13458 = vpop.permute.xlu0 %13457
  %13459 = vrot.lane.b32.xlu0 %v13230, 32
  %v13460 = vpop.permute.xlu0 %13459
  %13461 = vrot.lane.b32.xlu0 %v13233, 32
  %v13462 = vpop.permute.xlu0 %13461
  %13463 = vrot.lane.b32.xlu0 %v13236, 32
  %v13464 = vpop.permute.xlu0 %13463
  %13465 = vrot.lane.b32.xlu0 %v13239, 32
  %v13466 = vpop.permute.xlu0 %13465
  %13467 = vrot.lane.b32.xlu0 %v13242, 32
  %v13468 = vpop.permute.xlu0 %13467
  %13469 = vrot.lane.b32.xlu0 %v13245, 32
  %v13470 = vpop.permute.xlu0 %13469
  %13471 = vrot.lane.b32.xlu0 %v13248, 32
  %v13472 = vpop.permute.xlu0 %13471
  %13473 = vrot.lane.b32.xlu0 %v13251, 32
  %v13474 = vpop.permute.xlu0 %13473
  %13475 = vrot.lane.b32.xlu0 %v13254, 32
  %v13476 = vpop.permute.xlu0 %13475
  %13477 = vrot.lane.b32.xlu0 %v13257, 32
  %v13478 = vpop.permute.xlu0 %13477
  %13479 = vrot.lane.b32.xlu0 %v13260, 32
  %v13480 = vpop.permute.xlu0 %13479
  %13481 = vrot.lane.b32.xlu0 %v13418, 32
  %v13482 = vpop.permute.xlu0 %13481
  %13483 = vrot.lane.b32.xlu0 %v12628, 64
  %v13484 = vpop.permute.xlu0 %13483
  %13485 = vrot.lane.b32.xlu0 %v12629, 64
  %v13486 = vpop.permute.xlu0 %13485
  %13487 = vrot.lane.b32.xlu0 %v12630, 64
  %v13488 = vpop.permute.xlu0 %13487
  %13489 = vrot.lane.b32.xlu0 %v12631, 64
  %v13490 = vpop.permute.xlu0 %13489
  %13491 = vrot.lane.b32.xlu0 %v12632, 64
  %v13492 = vpop.permute.xlu0 %13491
  %13493 = vrot.lane.b32.xlu0 %v12633, 64
  %v13494 = vpop.permute.xlu0 %13493
  %13495 = vrot.lane.b32.xlu0 %v12634, 64
  %v13496 = vpop.permute.xlu0 %13495
  %13497 = vrot.lane.b32.xlu0 %v12635, 64
  %v13498 = vpop.permute.xlu0 %13497
  %13499 = vrot.lane.b32.xlu0 %v12636, 64
  %v13500 = vpop.permute.xlu0 %13499
  %13501 = vrot.lane.b32.xlu0 %v12637, 64
  %v13502 = vpop.permute.xlu0 %13501
  %13503 = vrot.lane.b32.xlu0 %v12638, 64
  %v13504 = vpop.permute.xlu0 %13503
  %13505 = vrot.lane.b32.xlu0 %v12639, 64
  %v13506 = vpop.permute.xlu0 %13505
  %13507 = vrot.lane.b32.xlu0 %v12640, 64
  %v13508 = vpop.permute.xlu0 %13507
  %13509 = vrot.lane.b32.xlu0 %v12641, 64
  %v13510 = vpop.permute.xlu0 %13509
  %13511 = vrot.lane.b32.xlu0 %v12642, 64
  %v13512 = vpop.permute.xlu0 %13511
  %13513 = vrot.lane.b32.xlu0 %v12644, 64
  %v13514 = vpop.permute.xlu0 %13513
  %13515 = vrot.lane.b32.xlu0 %v12645, 64
  %v13516 = vpop.permute.xlu0 %13515
  %13517 = vrot.lane.b32.xlu0 %v12646, 64
  %v13518 = vpop.permute.xlu0 %13517
  %13519 = vrot.lane.b32.xlu0 %v12647, 64
  %v13520 = vpop.permute.xlu0 %13519
  %13521 = vrot.lane.b32.xlu0 %v12648, 64
  %v13522 = vpop.permute.xlu0 %13521
  %13523 = vrot.lane.b32.xlu0 %v12649, 64
  %v13524 = vpop.permute.xlu0 %13523
  %13525 = vrot.lane.b32.xlu0 %v12650, 64
  %v13526 = vpop.permute.xlu0 %13525
  %13527 = vrot.lane.b32.xlu0 %v12651, 64
  %v13528 = vpop.permute.xlu0 %13527
  %13529 = vrot.lane.b32.xlu0 %v12652, 64
  %v13530 = vpop.permute.xlu0 %13529
  %13531 = vrot.lane.b32.xlu0 %v12653, 64
  %v13532 = vpop.permute.xlu0 %13531
  %13533 = vrot.lane.b32.xlu0 %v12654, 64
  %v13534 = vpop.permute.xlu0 %13533
  %13535 = vrot.lane.b32.xlu0 %v12655, 64
  %v13536 = vpop.permute.xlu0 %13535
  %13537 = vrot.lane.b32.xlu0 %v12656, 64
  %v13538 = vpop.permute.xlu0 %13537
  %13539 = vrot.lane.b32.xlu0 %v12657, 64
  %v13540 = vpop.permute.xlu0 %13539
  %13541 = vrot.lane.b32.xlu0 %v12658, 64
  %v13542 = vpop.permute.xlu0 %13541
  %13543 = vrot.lane.b32.xlu0 %v12714, 96
  %v13544 = vpop.permute.xlu0 %13543
  %13545 = vrot.lane.b32.xlu0 %v12726, 96
  %v13546 = vpop.permute.xlu0 %13545
  %13547 = vrot.lane.b32.xlu0 %v12738, 96
  %v13548 = vpop.permute.xlu0 %13547
  %13549 = vrot.lane.b32.xlu0 %v12750, 96
  %v13550 = vpop.permute.xlu0 %13549
  %13551 = vrot.lane.b32.xlu0 %v12762, 96
  %v13552 = vpop.permute.xlu0 %13551
  %13553 = vrot.lane.b32.xlu0 %v12774, 96
  %v13554 = vpop.permute.xlu0 %13553
  %13555 = vrot.lane.b32.xlu0 %v12786, 96
  %v13556 = vpop.permute.xlu0 %13555
  %13557 = vrot.lane.b32.xlu0 %v12798, 96
  %v13558 = vpop.permute.xlu0 %13557
  %13559 = vrot.lane.b32.xlu0 %v12810, 96
  %v13560 = vpop.permute.xlu0 %13559
  %13561 = vrot.lane.b32.xlu0 %v12822, 96
  %v13562 = vpop.permute.xlu0 %13561
  %13563 = vrot.lane.b32.xlu0 %v12834, 96
  %v13564 = vpop.permute.xlu0 %13563
  %13565 = vrot.lane.b32.xlu0 %v12846, 96
  %v13566 = vpop.permute.xlu0 %13565
  %13567 = vrot.lane.b32.xlu0 %v12858, 96
  %v13568 = vpop.permute.xlu0 %13567
  %13569 = vrot.lane.b32.xlu0 %v12870, 96
  %v13570 = vpop.permute.xlu0 %13569
  %13571 = vrot.lane.b32.xlu0 %v13398, 96
  %v13572 = vpop.permute.xlu0 %13571
  %13573 = vrot.lane.b32.xlu0 %v12894, 96
  %v13574 = vpop.permute.xlu0 %13573
  %13575 = vrot.lane.b32.xlu0 %v12906, 96
  %v13576 = vpop.permute.xlu0 %13575
  %13577 = vrot.lane.b32.xlu0 %v12918, 96
  %v13578 = vpop.permute.xlu0 %13577
  %13579 = vrot.lane.b32.xlu0 %v12930, 96
  %v13580 = vpop.permute.xlu0 %13579
  %13581 = vrot.lane.b32.xlu0 %v12942, 96
  %v13582 = vpop.permute.xlu0 %13581
  %13583 = vrot.lane.b32.xlu0 %v12954, 96
  %v13584 = vpop.permute.xlu0 %13583
  %13585 = vrot.lane.b32.xlu0 %v12966, 96
  %v13586 = vpop.permute.xlu0 %13585
  %13587 = vrot.lane.b32.xlu0 %v12978, 96
  %v13588 = vpop.permute.xlu0 %13587
  %13589 = vrot.lane.b32.xlu0 %v12990, 96
  %v13590 = vpop.permute.xlu0 %13589
  %13591 = vrot.lane.b32.xlu0 %v13002, 96
  %v13592 = vpop.permute.xlu0 %13591
  %13593 = vrot.lane.b32.xlu0 %v13014, 96
  %v13594 = vpop.permute.xlu0 %13593
  %13595 = vrot.lane.b32.xlu0 %v13026, 96
  %v13596 = vpop.permute.xlu0 %13595
  %13597 = vrot.lane.b32.xlu0 %v13038, 96
  %v13598 = vpop.permute.xlu0 %13597
  %13599 = vrot.lane.b32.xlu0 %v13050, 96
  %v13600 = vpop.permute.xlu0 %13599
  %13601 = vrot.lane.b32.xlu0 %v13410, 96
  %v13602 = vpop.permute.xlu0 %13601
  %v13604 = vsel %vm93, %v12627, %v13052
  %v13606 = vsel %vm93, %v12628, %v13054
  %v13608 = vsel %vm93, %v12629, %v13056
  %v13610 = vsel %vm93, %v12630, %v13058
  %v13612 = vsel %vm93, %v12631, %v13060
  %v13614 = vsel %vm93, %v12632, %v13062
  %v13616 = vsel %vm93, %v12633, %v13064
  %v13618 = vsel %vm93, %v12634, %v13066
  %v13620 = vsel %vm93, %v12635, %v13068
  %v13622 = vsel %vm93, %v12636, %v13070
  %v13624 = vsel %vm93, %v12637, %v13072
  %v13626 = vsel %vm93, %v12638, %v13074
  %v13628 = vsel %vm93, %v12639, %v13076
  %v13630 = vsel %vm93, %v12640, %v13078
  %v13632 = vsel %vm93, %v12641, %v13080
  %v13634 = vsel %vm93, %v12643, %v13082
  %v13636 = vsel %vm93, %v12644, %v13084
  %v13638 = vsel %vm93, %v12645, %v13086
  %v13640 = vsel %vm93, %v12646, %v13088
  %v13642 = vsel %vm93, %v12647, %v13090
  %v13644 = vsel %vm93, %v12648, %v13092
  %v13646 = vsel %vm93, %v12649, %v13094
  %v13648 = vsel %vm93, %v12650, %v13096
  %v13650 = vsel %vm93, %v12651, %v13098
  %v13652 = vsel %vm93, %v12652, %v13100
  %v13654 = vsel %vm93, %v12653, %v13102
  %v13656 = vsel %vm93, %v12654, %v13104
  %v13658 = vsel %vm93, %v12655, %v13106
  %v13660 = vsel %vm93, %v12656, %v13108
  %v13662 = vsel %vm93, %v12657, %v13110
  %v13664 = vsel %vm4807, %v13604, %v13262
  %v13666 = vsel %vm4807, %v13606, %v13264
  %v13668 = vsel %vm4807, %v13608, %v13266
  %v13670 = vsel %vm4807, %v13610, %v13268
  %v13672 = vsel %vm4807, %v13612, %v13270
  %v13674 = vsel %vm4807, %v13614, %v13272
  %v13676 = vsel %vm4807, %v13616, %v13274
  %v13678 = vsel %vm4807, %v13618, %v13276
  %v13680 = vsel %vm4807, %v13620, %v13278
  %v13682 = vsel %vm4807, %v13622, %v13280
  %v13684 = vsel %vm4807, %v13624, %v13282
  %v13686 = vsel %vm4807, %v13626, %v13284
  %v13688 = vsel %vm4807, %v13628, %v13286
  %v13690 = vsel %vm4807, %v13630, %v13288
  %v13692 = vsel %vm4807, %v13632, %v13290
  %v13694 = vsel %vm4807, %v13634, %v13292
  %v13696 = vsel %vm4807, %v13636, %v13294
  %v13698 = vsel %vm4807, %v13638, %v13296
  %v13700 = vsel %vm4807, %v13640, %v13298
  %v13702 = vsel %vm4807, %v13642, %v13300
  %v13704 = vsel %vm4807, %v13644, %v13302
  %v13706 = vsel %vm4807, %v13646, %v13304
  %v13708 = vsel %vm4807, %v13648, %v13306
  %v13710 = vsel %vm4807, %v13650, %v13308
  %v13712 = vsel %vm4807, %v13652, %v13310
  %v13714 = vsel %vm4807, %v13654, %v13312
  %v13716 = vsel %vm4807, %v13656, %v13314
  %v13718 = vsel %vm4807, %v13658, %v13316
  %v13720 = vsel %vm4807, %v13660, %v13318
  %v13722 = vsel %vm4807, %v13662, %v13320
  %v13724 = vsel %vm4870, %v4809, %v13324
  %v13727 = vsel %vm4870, %v13664, %v13326
  %v13730 = vsel %vm4870, %v13666, %v13328
  %v13733 = vsel %vm4870, %v13668, %v13330
  %v13736 = vsel %vm4870, %v13670, %v13332
  %v13739 = vsel %vm4870, %v13672, %v13334
  %v13742 = vsel %vm4870, %v13674, %v13336
  %v13745 = vsel %vm4870, %v13676, %v13338
  %v13748 = vsel %vm4870, %v13678, %v13340
  %v13751 = vsel %vm4870, %v13680, %v13342
  %v13754 = vsel %vm4870, %v13682, %v13344
  %v13757 = vsel %vm4870, %v13684, %v13346
  %v13760 = vsel %vm4870, %v13686, %v13348
  %v13763 = vsel %vm4870, %v13688, %v13350
  %v13766 = vsel %vm4870, %v13690, %v13352
  %v13769 = vsel %vm4870, %v13692, %v13354
  %v13772 = vsel %vm4870, %v4809, %v13356
  %v13775 = vsel %vm4870, %v13694, %v13358
  %v13778 = vsel %vm4870, %v13696, %v13360
  %v13781 = vsel %vm4870, %v13698, %v13362
  %v13784 = vsel %vm4870, %v13700, %v13364
  %v13787 = vsel %vm4870, %v13702, %v13366
  %v13790 = vsel %vm4870, %v13704, %v13368
  %v13793 = vsel %vm4870, %v13706, %v13370
  %v13796 = vsel %vm4870, %v13708, %v13372
  %v13799 = vsel %vm4870, %v13710, %v13374
  %v13802 = vsel %vm4870, %v13712, %v13376
  %v13805 = vsel %vm4870, %v13714, %v13378
  %v13808 = vsel %vm4870, %v13716, %v13380
  %v13811 = vsel %vm4870, %v13718, %v13382
  %v13814 = vsel %vm4870, %v13720, %v13384
  %v13817 = vsel %vm4870, %v13722, %v13386
  %v13821 = vsel %vm93, %v12702, %v13420
  %v13824 = vsel %vm93, %v12714, %v13422
  %v13827 = vsel %vm93, %v12726, %v13424
  %v13830 = vsel %vm93, %v12738, %v13426
  %v13833 = vsel %vm93, %v12750, %v13428
  %v13836 = vsel %vm93, %v12762, %v13430
  %v13839 = vsel %vm93, %v12774, %v13432
  %v13842 = vsel %vm93, %v12786, %v13434
  %v13845 = vsel %vm93, %v12798, %v13436
  %v13848 = vsel %vm93, %v12810, %v13438
  %v13851 = vsel %vm93, %v12822, %v13440
  %v13854 = vsel %vm93, %v12834, %v13442
  %v13857 = vsel %vm93, %v12846, %v13444
  %v13860 = vsel %vm93, %v12858, %v13446
  %v13863 = vsel %vm93, %v12870, %v13448
  %v13866 = vsel %vm93, %v13398, %v13450
  %v13869 = vsel %vm93, %v12882, %v13452
  %v13872 = vsel %vm93, %v12894, %v13454
  %v13875 = vsel %vm93, %v12906, %v13456
  %v13878 = vsel %vm93, %v12918, %v13458
  %v13881 = vsel %vm93, %v12930, %v13460
  %v13884 = vsel %vm93, %v12942, %v13462
  %v13887 = vsel %vm93, %v12954, %v13464
  %v13890 = vsel %vm93, %v12966, %v13466
  %v13893 = vsel %vm93, %v12978, %v13468
  %v13896 = vsel %vm93, %v12990, %v13470
  %v13899 = vsel %vm93, %v13002, %v13472
  %v13902 = vsel %vm93, %v13014, %v13474
  %v13905 = vsel %vm93, %v13026, %v13476
  %v13908 = vsel %vm93, %v13038, %v13478
  %v13911 = vsel %vm93, %v13050, %v13480
  %v13914 = vsel %vm93, %v13410, %v13482
  %v13916 = vsel %vm4807, %v13821, %v13484
  %v13918 = vsel %vm4807, %v13824, %v13486
  %v13920 = vsel %vm4807, %v13827, %v13488
  %v13922 = vsel %vm4807, %v13830, %v13490
  %v13924 = vsel %vm4807, %v13833, %v13492
  %v13926 = vsel %vm4807, %v13836, %v13494
  %v13928 = vsel %vm4807, %v13839, %v13496
  %v13930 = vsel %vm4807, %v13842, %v13498
  %v13932 = vsel %vm4807, %v13845, %v13500
  %v13934 = vsel %vm4807, %v13848, %v13502
  %v13936 = vsel %vm4807, %v13851, %v13504
  %v13938 = vsel %vm4807, %v13854, %v13506
  %v13940 = vsel %vm4807, %v13857, %v13508
  %v13942 = vsel %vm4807, %v13860, %v13510
  %v13944 = vsel %vm4807, %v13863, %v13512
  %v13945 = vsel %vm4807, %v13866, %v4652
  %v13947 = vsel %vm4807, %v13869, %v13514
  %v13949 = vsel %vm4807, %v13872, %v13516
  %v13951 = vsel %vm4807, %v13875, %v13518
  %v13953 = vsel %vm4807, %v13878, %v13520
  %v13955 = vsel %vm4807, %v13881, %v13522
  %v13957 = vsel %vm4807, %v13884, %v13524
  %v13959 = vsel %vm4807, %v13887, %v13526
  %v13961 = vsel %vm4807, %v13890, %v13528
  %v13963 = vsel %vm4807, %v13893, %v13530
  %v13965 = vsel %vm4807, %v13896, %v13532
  %v13967 = vsel %vm4807, %v13899, %v13534
  %v13969 = vsel %vm4807, %v13902, %v13536
  %v13971 = vsel %vm4807, %v13905, %v13538
  %v13973 = vsel %vm4807, %v13908, %v13540
  %v13975 = vsel %vm4807, %v13911, %v13542
  %v13976 = vsel %vm4807, %v13914, %v4652
  %v13978 = vsel %vm4870, %v13916, %v13544
  %v13981 = vsel %vm4870, %v13918, %v13546
  %v13984 = vsel %vm4870, %v13920, %v13548
  %v13987 = vsel %vm4870, %v13922, %v13550
  %v13990 = vsel %vm4870, %v13924, %v13552
  %v13993 = vsel %vm4870, %v13926, %v13554
  %v13996 = vsel %vm4870, %v13928, %v13556
  %v13999 = vsel %vm4870, %v13930, %v13558
  %v14002 = vsel %vm4870, %v13932, %v13560
  %v14005 = vsel %vm4870, %v13934, %v13562
  %v14008 = vsel %vm4870, %v13936, %v13564
  %v14011 = vsel %vm4870, %v13938, %v13566
  %v14014 = vsel %vm4870, %v13940, %v13568
  %v14017 = vsel %vm4870, %v13942, %v13570
  %v14020 = vsel %vm4870, %v13944, %v13572
  %v14022 = vsel %vm4870, %v13945, %v4714
  %v14025 = vsel %vm4870, %v13947, %v13574
  %v14028 = vsel %vm4870, %v13949, %v13576
  %v14031 = vsel %vm4870, %v13951, %v13578
  %v14034 = vsel %vm4870, %v13953, %v13580
  %v14037 = vsel %vm4870, %v13955, %v13582
  %v14040 = vsel %vm4870, %v13957, %v13584
  %v14043 = vsel %vm4870, %v13959, %v13586
  %v14046 = vsel %vm4870, %v13961, %v13588
  %v14049 = vsel %vm4870, %v13963, %v13590
  %v14052 = vsel %vm4870, %v13965, %v13592
  %v14055 = vsel %vm4870, %v13967, %v13594
  %v14058 = vsel %vm4870, %v13969, %v13596
  %v14061 = vsel %vm4870, %v13971, %v13598
  %v14064 = vsel %vm4870, %v13973, %v13600
  %v14067 = vsel %vm4870, %v13975, %v13602
  %v14069 = vsel %vm4870, %v13976, %v4714
  %v14072 = vlaneseq
  %v14073 = vshrl.u32 %v14072, 7
  %v14074 = vsub.s32 0, %v14073
  %v14075 = vrot.slane %v11858, %v14074
  %v14113 = vunpack.c.l.b16 %v11822
  %v14114 = vunpack.c.l.b16 %v11823
  %v14115 = vunpack.c.l.b16 %v11824
  %v14116 = vunpack.c.l.b16 %v11825
  %v14117 = vunpack.c.l.b16 %v11826
  %v14118 = vunpack.c.l.b16 %v11827
  %v14119 = vunpack.c.l.b16 %v11828
  %v14120 = vunpack.c.l.b16 %v11829
  %v14121 = vunpack.c.l.b16 %v11830
  %v14122 = vunpack.c.l.b16 %v11831
  %v14123 = vunpack.c.l.b16 %v11832
  %v14124 = vunpack.c.l.b16 %v11833
  %v14125 = vunpack.c.l.b16 %v11834
  %v14126 = vunpack.c.l.b16 %v11835
  %v14127 = vunpack.c.l.b16 %v11836
  %v14128 = vunpack.c.l.b16 %v11837
  %v14129 = vunpack.c.l.b16 %v11838
  %v14130 = vunpack.c.l.b16 %v11839
  %v14131 = vunpack.c.l.b16 %v11840
  %v14132 = vunpack.c.l.b16 %v11841
  %v14133 = vunpack.c.l.b16 %v11842
  %v14134 = vunpack.c.l.b16 %v11843
  %v14135 = vunpack.c.l.b16 %v11844
  %v14136 = vunpack.c.l.b16 %v11845
  %v14137 = vunpack.c.l.b16 %v11846
  %v14138 = vunpack.c.l.b16 %v11847
  %v14139 = vunpack.c.l.b16 %v11848
  %v14140 = vunpack.c.l.b16 %v11849
  %v14141 = vunpack.c.l.b16 %v11850
  %v14142 = vunpack.c.l.b16 %v11851
  %v14143 = vunpack.c.l.b16 %v11852
  %v14144 = vunpack.c.l.b16 %v11853
  %v14145 = vunpack.c.l.b16 %v11854
  %v14146 = vunpack.c.l.b16 %v11855
  %v14147 = vunpack.c.l.b16 %v11856
  %v14148 = vunpack.c.l.b16 %v11857
  %v14149 = vpack.c.b16 %v14114, %v14113
  %v14150 = vpack.c.b16 %v14116, %v14115
  %v14151 = vpack.c.b16 %v14118, %v14117
  %v14152 = vpack.c.b16 %v14120, %v14119
  %v14153 = vpack.c.b16 %v14122, %v14121
  %v14154 = vpack.c.b16 %v14124, %v14123
  %v14155 = vpack.c.b16 %v14126, %v14125
  %v14156 = vpack.c.b16 %v14128, %v14127
  %v14157 = vpack.c.b16 %v14130, %v14129
  %v14158 = vpack.c.b16 %v14132, %v14131
  %v14159 = vpack.c.b16 %v14134, %v14133
  %v14160 = vpack.c.b16 %v14136, %v14135
  %v14161 = vpack.c.b16 %v14138, %v14137
  %v14162 = vpack.c.b16 %v14140, %v14139
  %v14163 = vpack.c.b16 %v14142, %v14141
  %v14164 = vpack.c.b16 %v14144, %v14143
  %v14165 = vpack.c.b16 %v14146, %v14145
  %v14166 = vpack.c.b16 %v14148, %v14147
  %v14186 = vsel %vm93, %v13176, 0
  %v14189 = vsel %vm93, %v13179, 0
  %v14192 = vsel %vm93, %v13182, 0
  %v14195 = vsel %vm93, %v13185, 0
  %v14198 = vsel %vm93, %v13188, 0
  %v14201 = vsel %vm93, %v13191, 0
  %v14204 = vsel %vm93, %v13194, 0
  %v14207 = vsel %vm93, %v13197, 0
  %v14210 = vsel %vm93, %v13200, 0
  %v14213 = vsel %vm93, %v13203, 0
  %v14216 = vsel %vm93, %v13206, 0
  %v14219 = vsel %vm93, %v13209, 0
  %v14222 = vsel %vm93, %v13212, 0
  %v14225 = vsel %vm93, %v13215, 0
  %v14228 = vsel %vm93, %v13415, 0
  %v14231 = vsel %vm93, %v13221, 0
  %v14234 = vsel %vm93, %v13224, 0
  %v14237 = vsel %vm93, %v13227, 0
  %v14240 = vsel %vm93, %v13230, 0
  %v14243 = vsel %vm93, %v13233, 0
  %v14246 = vsel %vm93, %v13236, 0
  %v14249 = vsel %vm93, %v13239, 0
  %v14252 = vsel %vm93, %v13242, 0
  %v14255 = vsel %vm93, %v13245, 0
  %v14258 = vsel %vm93, %v13248, 0
  %v14261 = vsel %vm93, %v13251, 0
  %v14264 = vsel %vm93, %v13254, 0
  %v14267 = vsel %vm93, %v13257, 0
  %v14270 = vsel %vm93, %v13260, 0
  %v14273 = vsel %vm93, %v13418, 0
  %14275 = vmatprep.subr.bf16.mxu0 0
  %14276 = vmatpush1.bf16.msra.mxu0 %v14149
  %14277 = vmatprep.subr.bf16.mxu0 0
  %14278 = vmatpush1.bf16.msra.mxu0 %v14150
  %14279 = vmatprep.subr.bf16.mxu0 0
  %14280 = vmatpush1.bf16.msra.mxu0 %v14151
  %14281 = vmatprep.subr.bf16.mxu0 0
  %14282 = vmatpush1.bf16.msra.mxu0 %v14152
  %14283 = vmatprep.subr.bf16.mxu0 0
  %14284 = vmatpush1.bf16.msra.mxu0 %v14153
  %14285 = vmatprep.subr.bf16.mxu0 0
  %14286 = vmatpush1.bf16.msra.mxu0 %v14154
  %14287 = vmatprep.subr.bf16.mxu0 0
  %14288 = vmatpush1.bf16.msra.mxu0 %v14155
  %14289 = vmatprep.subr.bf16.mxu0 0
  %14290 = vmatpush1.bf16.msra.mxu0 %v14156
  %14291 = vmatprep.subr.bf16.mxu0 0
  %14292 = vmatpush1.bf16.msra.mxu0 %v14157
  %14293 = vmatprep.subr.bf16.mxu0 0
  %14294 = vmatpush1.bf16.msra.mxu0 %v14158
  %14295 = vmatprep.subr.bf16.mxu0 0
  %14296 = vmatpush1.bf16.msra.mxu0 %v14159
  %14297 = vmatprep.subr.bf16.mxu0 0
  %14298 = vmatpush1.bf16.msra.mxu0 %v14160
  %14299 = vmatprep.subr.bf16.mxu0 0
  %14300 = vmatpush1.bf16.msra.mxu0 %v14161
  %14301 = vmatprep.subr.bf16.mxu0 0
  %14302 = vmatpush1.bf16.msra.mxu0 %v14162
  %14303 = vmatprep.subr.bf16.mxu0 0
  %14304 = vmatpush1.bf16.msra.mxu0 %v14163
  %14305 = vmatprep.subr.bf16.mxu0 0
  %14306 = vmatpush1.bf16.msra.mxu0 %v14164
  %14307 = vmatprep.mubr.bf16.mxu0 %v13978
  %14308 = vmatmul.mubr.bf16.gmra.mrb[0].mxu0 %v13724
  %v14309 = vpop.f32.mrb[0].mxu0
  %v14310 = vadd.f32 %v14075, %v14309
  %v14311 = vpop.f32.mrb[0].mxu0
  %v14312 = vpop.f32.mrb[0].mxu0
  %v14313 = vadd.f32 %v14075, %v14312
  %v14314 = vpop.f32.mrb[0].mxu0
  %14315 = vmatprep.mubr.bf16.mxu0 %v13981
  %14316 = vmatmul.mubr.bf16.gmra.mrb[0].mxu0 %v13727
  %v14317 = vpop.f32.mrb[0].mxu0
  %v14318 = vadd.f32 %v14075, %v14317
  %v14319 = vpop.f32.mrb[0].mxu0
  %v14320 = vpop.f32.mrb[0].mxu0
  %v14321 = vadd.f32 %v14075, %v14320
  %v14322 = vpop.f32.mrb[0].mxu0
  %14323 = vmatprep.mubr.bf16.mxu0 %v13984
  %14324 = vmatmul.mubr.bf16.gmra.mrb[0].mxu0 %v13730
  %v14325 = vpop.f32.mrb[0].mxu0
  %v14326 = vadd.f32 %v14075, %v14325
  %v14327 = vpop.f32.mrb[0].mxu0
  %v14328 = vpop.f32.mrb[0].mxu0
  %v14329 = vadd.f32 %v14075, %v14328
  %v14330 = vpop.f32.mrb[0].mxu0
  %14331 = vmatprep.mubr.bf16.mxu0 %v13987
  %14332 = vmatmul.mubr.bf16.gmra.mrb[0].mxu0 %v13733
  %v14333 = vpop.f32.mrb[0].mxu0
  %v14334 = vadd.f32 %v14075, %v14333
  %v14335 = vpop.f32.mrb[0].mxu0
  %v14336 = vpop.f32.mrb[0].mxu0
  %v14337 = vadd.f32 %v14075, %v14336
  %v14338 = vpop.f32.mrb[0].mxu0
  %14339 = vmatprep.mubr.bf16.mxu0 %v13990
  %14340 = vmatmul.mubr.bf16.gmra.mrb[0].mxu0 %v13736
  %v14341 = vpop.f32.mrb[0].mxu0
  %v14342 = vadd.f32 %v14075, %v14341
  %v14343 = vpop.f32.mrb[0].mxu0
  %v14344 = vpop.f32.mrb[0].mxu0
  %v14345 = vadd.f32 %v14075, %v14344
  %v14346 = vpop.f32.mrb[0].mxu0
  %14347 = vmatprep.mubr.bf16.mxu0 %v13993
  %14348 = vmatmul.mubr.bf16.gmra.mrb[0].mxu0 %v13739
  %v14349 = vpop.f32.mrb[0].mxu0
  %v14350 = vadd.f32 %v14075, %v14349
  %v14351 = vpop.f32.mrb[0].mxu0
  %v14352 = vpop.f32.mrb[0].mxu0
  %v14353 = vadd.f32 %v14075, %v14352
  %v14354 = vpop.f32.mrb[0].mxu0
  %14355 = vmatprep.mubr.bf16.mxu0 %v13996
  %14356 = vmatmul.mubr.bf16.gmra.mrb[0].mxu0 %v13742
  %v14357 = vpop.f32.mrb[0].mxu0
  %v14358 = vadd.f32 %v14075, %v14357
  %v14359 = vpop.f32.mrb[0].mxu0
  %v14360 = vpop.f32.mrb[0].mxu0
  %v14361 = vadd.f32 %v14075, %v14360
  %v14362 = vpop.f32.mrb[0].mxu0
  %14363 = vmatprep.mubr.bf16.mxu0 %v13999
  %14364 = vmatmul.mubr.bf16.gmra.mrb[0].mxu0 %v13745
  %v14365 = vpop.f32.mrb[0].mxu0
  %v14366 = vadd.f32 %v14075, %v14365
  %v14367 = vpop.f32.mrb[0].mxu0
  %v14368 = vpop.f32.mrb[0].mxu0
  %v14369 = vadd.f32 %v14075, %v14368
  %v14370 = vpop.f32.mrb[0].mxu0
  %14371 = vmatprep.mubr.bf16.mxu0 %v14002
  %14372 = vmatmul.mubr.bf16.gmra.mrb[0].mxu0 %v13748
  %v14373 = vpop.f32.mrb[0].mxu0
  %v14374 = vadd.f32 %v14075, %v14373
  %v14375 = vpop.f32.mrb[0].mxu0
  %v14376 = vpop.f32.mrb[0].mxu0
  %v14377 = vadd.f32 %v14075, %v14376
  %v14378 = vpop.f32.mrb[0].mxu0
  %14379 = vmatprep.mubr.bf16.mxu0 %v14005
  %14380 = vmatmul.mubr.bf16.gmra.mrb[0].mxu0 %v13751
  %v14381 = vpop.f32.mrb[0].mxu0
  %v14382 = vadd.f32 %v14075, %v14381
  %v14383 = vpop.f32.mrb[0].mxu0
  %v14384 = vpop.f32.mrb[0].mxu0
  %v14385 = vadd.f32 %v14075, %v14384
  %v14386 = vpop.f32.mrb[0].mxu0
  %14387 = vmatprep.mubr.bf16.mxu0 %v14008
  %14388 = vmatmul.mubr.bf16.gmra.mrb[0].mxu0 %v13754
  %v14389 = vpop.f32.mrb[0].mxu0
  %v14390 = vadd.f32 %v14075, %v14389
  %v14391 = vpop.f32.mrb[0].mxu0
  %v14392 = vpop.f32.mrb[0].mxu0
  %v14393 = vadd.f32 %v14075, %v14392
  %v14394 = vpop.f32.mrb[0].mxu0
  %14395 = vmatprep.mubr.bf16.mxu0 %v14011
  %14396 = vmatmul.mubr.bf16.gmra.mrb[0].mxu0 %v13757
  %v14397 = vpop.f32.mrb[0].mxu0
  %v14398 = vadd.f32 %v14075, %v14397
  %v14399 = vpop.f32.mrb[0].mxu0
  %v14400 = vpop.f32.mrb[0].mxu0
  %v14401 = vadd.f32 %v14075, %v14400
  %v14402 = vpop.f32.mrb[0].mxu0
  %14403 = vmatprep.mubr.bf16.mxu0 %v14014
  %14404 = vmatmul.mubr.bf16.gmra.mrb[0].mxu0 %v13760
  %v14405 = vpop.f32.mrb[0].mxu0
  %v14406 = vadd.f32 %v14075, %v14405
  %v14407 = vpop.f32.mrb[0].mxu0
  %v14408 = vpop.f32.mrb[0].mxu0
  %v14409 = vadd.f32 %v14075, %v14408
  %v14410 = vpop.f32.mrb[0].mxu0
  %14411 = vmatprep.mubr.bf16.mxu0 %v14017
  %14412 = vmatmul.mubr.bf16.gmra.mrb[0].mxu0 %v13763
  %v14413 = vpop.f32.mrb[0].mxu0
  %v14414 = vadd.f32 %v14075, %v14413
  %v14415 = vpop.f32.mrb[0].mxu0
  %v14416 = vpop.f32.mrb[0].mxu0
  %v14417 = vadd.f32 %v14075, %v14416
  %v14418 = vpop.f32.mrb[0].mxu0
  %14419 = vmatprep.mubr.bf16.mxu0 %v14020
  %14420 = vmatmul.mubr.bf16.gmra.mrb[0].mxu0 %v13766
  %v14421 = vpop.f32.mrb[0].mxu0
  %v14422 = vadd.f32 %v14075, %v14421
  %v14423 = vpop.f32.mrb[0].mxu0
  %v14424 = vpop.f32.mrb[0].mxu0
  %v14425 = vadd.f32 %v14075, %v14424
  %v14426 = vpop.f32.mrb[0].mxu0
  %14427 = vmatprep.mubr.bf16.mxu0 %v14022
  %14428 = vmatmul.mubr.bf16.gmra.mrb[0].mxu0 %v13769
  %v14429 = vpop.f32.mrb[0].mxu0
  %v14430 = vadd.f32 %v14075, %v14429
  %v14431 = vpop.f32.mrb[0].mxu0
  %v14432 = vpop.f32.mrb[0].mxu0
  %v14433 = vadd.f32 %v14075, %v14432
  %v14434 = vpop.f32.mrb[0].mxu0
  %14435 = vmatprep.mubr.bf16.mxu0 %v14025
  %14436 = vmatmul.mubr.bf16.gmra.mrb[0].mxu0 %v13772
  %v14437 = vpop.f32.mrb[0].mxu0
  %v14438 = vadd.f32 %v14075, %v14437
  %v14439 = vpop.f32.mrb[0].mxu0
  %v14440 = vpop.f32.mrb[0].mxu0
  %v14441 = vadd.f32 %v14075, %v14440
  %v14442 = vpop.f32.mrb[0].mxu0
  %14443 = vmatprep.mubr.bf16.mxu0 %v14028
  %14444 = vmatmul.mubr.bf16.gmra.mrb[0].mxu0 %v13775
  %v14445 = vpop.f32.mrb[0].mxu0
  %v14446 = vadd.f32 %v14075, %v14445
  %v14447 = vpop.f32.mrb[0].mxu0
  %v14448 = vpop.f32.mrb[0].mxu0
  %v14449 = vadd.f32 %v14075, %v14448
  %v14450 = vpop.f32.mrb[0].mxu0
  %14451 = vmatprep.mubr.bf16.mxu0 %v14031
  %14452 = vmatmul.mubr.bf16.gmra.mrb[0].mxu0 %v13778
  %v14453 = vpop.f32.mrb[0].mxu0
  %v14454 = vadd.f32 %v14075, %v14453
  %v14455 = vpop.f32.mrb[0].mxu0
  %v14456 = vpop.f32.mrb[0].mxu0
  %v14457 = vadd.f32 %v14075, %v14456
  %v14458 = vpop.f32.mrb[0].mxu0
  %14459 = vmatprep.mubr.bf16.mxu0 %v14034
  %14460 = vmatmul.mubr.bf16.gmra.mrb[0].mxu0 %v13781
  %v14461 = vpop.f32.mrb[0].mxu0
  %v14462 = vadd.f32 %v14075, %v14461
  %v14463 = vpop.f32.mrb[0].mxu0
  %v14464 = vpop.f32.mrb[0].mxu0
  %v14465 = vadd.f32 %v14075, %v14464
  %v14466 = vpop.f32.mrb[0].mxu0
  %14467 = vmatprep.mubr.bf16.mxu0 %v14037
  %14468 = vmatmul.mubr.bf16.gmra.mrb[0].mxu0 %v13784
  %v14469 = vpop.f32.mrb[0].mxu0
  %v14470 = vadd.f32 %v14075, %v14469
  %v14471 = vpop.f32.mrb[0].mxu0
  %v14472 = vpop.f32.mrb[0].mxu0
  %v14473 = vadd.f32 %v14075, %v14472
  %v14474 = vpop.f32.mrb[0].mxu0
  %14475 = vmatprep.mubr.bf16.mxu0 %v14040
  %14476 = vmatmul.mubr.bf16.gmra.mrb[0].mxu0 %v13787
  %v14477 = vpop.f32.mrb[0].mxu0
  %v14478 = vadd.f32 %v14075, %v14477
  %v14479 = vpop.f32.mrb[0].mxu0
  %v14480 = vpop.f32.mrb[0].mxu0
  %v14481 = vadd.f32 %v14075, %v14480
  %v14482 = vpop.f32.mrb[0].mxu0
  %14483 = vmatprep.mubr.bf16.mxu0 %v14043
  %14484 = vmatmul.mubr.bf16.gmra.mrb[0].mxu0 %v13790
  %v14485 = vpop.f32.mrb[0].mxu0
  %v14486 = vadd.f32 %v14075, %v14485
  %v14487 = vpop.f32.mrb[0].mxu0
  %v14488 = vpop.f32.mrb[0].mxu0
  %v14489 = vadd.f32 %v14075, %v14488
  %v14490 = vpop.f32.mrb[0].mxu0
  %14491 = vmatprep.mubr.bf16.mxu0 %v14046
  %14492 = vmatmul.mubr.bf16.gmra.mrb[0].mxu0 %v13793
  %v14493 = vpop.f32.mrb[0].mxu0
  %v14494 = vadd.f32 %v14075, %v14493
  %v14495 = vpop.f32.mrb[0].mxu0
  %v14496 = vpop.f32.mrb[0].mxu0
  %v14497 = vadd.f32 %v14075, %v14496
  %v14498 = vpop.f32.mrb[0].mxu0
  %14499 = vmatprep.mubr.bf16.mxu0 %v14049
  %14500 = vmatmul.mubr.bf16.gmra.mrb[0].mxu0 %v13796
  %v14501 = vpop.f32.mrb[0].mxu0
  %v14502 = vadd.f32 %v14075, %v14501
  %v14503 = vpop.f32.mrb[0].mxu0
  %v14504 = vpop.f32.mrb[0].mxu0
  %v14505 = vadd.f32 %v14075, %v14504
  %v14506 = vpop.f32.mrb[0].mxu0
  %14507 = vmatprep.mubr.bf16.mxu0 %v14052
  %14508 = vmatmul.mubr.bf16.gmra.mrb[0].mxu0 %v13799
  %v14509 = vpop.f32.mrb[0].mxu0
  %v14510 = vadd.f32 %v14075, %v14509
  %v14511 = vpop.f32.mrb[0].mxu0
  %v14512 = vpop.f32.mrb[0].mxu0
  %v14513 = vadd.f32 %v14075, %v14512
  %v14514 = vpop.f32.mrb[0].mxu0
  %14515 = vmatprep.mubr.bf16.mxu0 %v14055
  %14516 = vmatmul.mubr.bf16.gmra.mrb[0].mxu0 %v13802
  %v14517 = vpop.f32.mrb[0].mxu0
  %v14518 = vadd.f32 %v14075, %v14517
  %v14519 = vpop.f32.mrb[0].mxu0
  %v14520 = vpop.f32.mrb[0].mxu0
  %v14521 = vadd.f32 %v14075, %v14520
  %v14522 = vpop.f32.mrb[0].mxu0
  %14523 = vmatprep.mubr.bf16.mxu0 %v14058
  %14524 = vmatmul.mubr.bf16.gmra.mrb[0].mxu0 %v13805
  %v14525 = vpop.f32.mrb[0].mxu0
  %v14526 = vadd.f32 %v14075, %v14525
  %v14527 = vpop.f32.mrb[0].mxu0
  %v14528 = vpop.f32.mrb[0].mxu0
  %v14529 = vadd.f32 %v14075, %v14528
  %v14530 = vpop.f32.mrb[0].mxu0
  %14531 = vmatprep.mubr.bf16.mxu0 %v14061
  %14532 = vmatmul.mubr.bf16.gmra.mrb[0].mxu0 %v13808
  %v14533 = vpop.f32.mrb[0].mxu0
  %v14534 = vadd.f32 %v14075, %v14533
  %v14535 = vpop.f32.mrb[0].mxu0
  %v14536 = vpop.f32.mrb[0].mxu0
  %v14537 = vadd.f32 %v14075, %v14536
  %v14538 = vpop.f32.mrb[0].mxu0
  %14539 = vmatprep.mubr.bf16.mxu0 %v14064
  %14540 = vmatmul.mubr.bf16.gmra.mrb[0].mxu0 %v13811
  %v14541 = vpop.f32.mrb[0].mxu0
  %v14542 = vadd.f32 %v14075, %v14541
  %v14543 = vpop.f32.mrb[0].mxu0
  %v14544 = vpop.f32.mrb[0].mxu0
  %v14545 = vadd.f32 %v14075, %v14544
  %v14546 = vpop.f32.mrb[0].mxu0
  %14547 = vmatprep.mubr.bf16.mxu0 %v14067
  %14548 = vmatmul.mubr.bf16.gmra.mrb[0].mxu0 %v13814
  %v14549 = vpop.f32.mrb[0].mxu0
  %v14550 = vadd.f32 %v14075, %v14549
  %v14551 = vpop.f32.mrb[0].mxu0
  %v14552 = vpop.f32.mrb[0].mxu0
  %v14553 = vadd.f32 %v14075, %v14552
  %v14554 = vpop.f32.mrb[0].mxu0
  %14555 = vmatprep.mubr.bf16.mxu0 %v14069
  %14556 = vmatmul.mubr.bf16.gmra.mrb[0].mxu0 %v13817
  %v14557 = vpop.f32.mrb[0].mxu0
  %v14558 = vadd.f32 %v14075, %v14557
  %v14559 = vpop.f32.mrb[0].mxu0
  %v14560 = vpop.f32.mrb[0].mxu0
  %v14561 = vadd.f32 %v14075, %v14560
  %v14562 = vpop.f32.mrb[0].mxu0
  %14563 = vdwg.mxu0
  %14564 = vmatprep.subr.bf16.mxu0 0
  %14565 = vmatpush1.bf16.msra.mxu0 %v14165
  %14566 = vmatprep.subr.bf16.mxu0 0
  %14567 = vmatpush1.bf16.msra.mxu0 %v14166
  %14568 = vmatprep.subr.bf16.mxu0 0
  %14569 = vmatpush1.bf16.msra.mxu0 0
  %14570 = vmatprep.subr.bf16.mxu0 0
  %14571 = vmatpush1.bf16.msra.mxu0 0
  %14572 = vmatprep.subr.bf16.mxu0 0
  %14573 = vmatpush1.bf16.msra.mxu0 0
  %14574 = vmatprep.subr.bf16.mxu0 0
  %14575 = vmatpush1.bf16.msra.mxu0 0
  %14576 = vmatprep.subr.bf16.mxu0 0
  %14577 = vmatpush1.bf16.msra.mxu0 0
  %14578 = vmatprep.subr.bf16.mxu0 0
  %14579 = vmatpush1.bf16.msra.mxu0 0
  %14580 = vmatprep.subr.bf16.mxu0 0
  %14581 = vmatpush1.bf16.msra.mxu0 0
  %14582 = vmatprep.subr.bf16.mxu0 0
  %14583 = vmatpush1.bf16.msra.mxu0 0
  %14584 = vmatprep.subr.bf16.mxu0 0
  %14585 = vmatpush1.bf16.msra.mxu0 0
  %14586 = vmatprep.subr.bf16.mxu0 0
  %14587 = vmatpush1.bf16.msra.mxu0 0
  %14588 = vmatprep.subr.bf16.mxu0 0
  %14589 = vmatpush1.bf16.msra.mxu0 0
  %14590 = vmatprep.subr.bf16.mxu0 0
  %14591 = vmatpush1.bf16.msra.mxu0 0
  %14592 = vmatprep.subr.bf16.mxu0 0
  %14593 = vmatpush1.bf16.msra.mxu0 0
  %14594 = vmatprep.subr.bf16.mxu0 0
  %14595 = vmatpush1.bf16.msra.mxu0 0
  %14596 = vmatprep.mubr.bf16.mxu0 0
  %14597 = vmatmul.mubr.bf16.gmra.mrb[0].mxu0 %v14186
  %v14598 = vpop.f32.mrb[0].mxu0
  %v14599 = vadd.f32 %v14310, %v14598
  %v14600 = vpop.f32.mrb[0].mxu0
  %v14601 = vpop.f32.mrb[0].mxu0
  %v14602 = vadd.f32 %v14313, %v14601
  %v14603 = vpop.f32.mrb[0].mxu0
  %14604 = vmatprep.mubr.bf16.mxu0 0
  %14605 = vmatmul.mubr.bf16.gmra.mrb[0].mxu0 %v14189
  %v14606 = vpop.f32.mrb[0].mxu0
  %v14607 = vadd.f32 %v14318, %v14606
  %v14608 = vpop.f32.mrb[0].mxu0
  %v14609 = vpop.f32.mrb[0].mxu0
  %v14610 = vadd.f32 %v14321, %v14609
  %v14611 = vpop.f32.mrb[0].mxu0
  %14612 = vmatprep.mubr.bf16.mxu0 0
  %14613 = vmatmul.mubr.bf16.gmra.mrb[0].mxu0 %v14192
  %v14614 = vpop.f32.mrb[0].mxu0
  %v14615 = vadd.f32 %v14326, %v14614
  %v14616 = vpop.f32.mrb[0].mxu0
  %v14617 = vpop.f32.mrb[0].mxu0
  %v14618 = vadd.f32 %v14329, %v14617
  %v14619 = vpop.f32.mrb[0].mxu0
  %14620 = vmatprep.mubr.bf16.mxu0 0
  %14621 = vmatmul.mubr.bf16.gmra.mrb[0].mxu0 %v14195
  %v14622 = vpop.f32.mrb[0].mxu0
  %v14623 = vadd.f32 %v14334, %v14622
  %v14624 = vpop.f32.mrb[0].mxu0
  %v14625 = vpop.f32.mrb[0].mxu0
  %v14626 = vadd.f32 %v14337, %v14625
  %v14627 = vpop.f32.mrb[0].mxu0
  %14628 = vmatprep.mubr.bf16.mxu0 0
  %14629 = vmatmul.mubr.bf16.gmra.mrb[0].mxu0 %v14198
  %v14630 = vpop.f32.mrb[0].mxu0
  %v14631 = vadd.f32 %v14342, %v14630
  %v14632 = vpop.f32.mrb[0].mxu0
  %v14633 = vpop.f32.mrb[0].mxu0
  %v14634 = vadd.f32 %v14345, %v14633
  %v14635 = vpop.f32.mrb[0].mxu0
  %14636 = vmatprep.mubr.bf16.mxu0 0
  %14637 = vmatmul.mubr.bf16.gmra.mrb[0].mxu0 %v14201
  %v14638 = vpop.f32.mrb[0].mxu0
  %v14639 = vadd.f32 %v14350, %v14638
  %v14640 = vpop.f32.mrb[0].mxu0
  %v14641 = vpop.f32.mrb[0].mxu0
  %v14642 = vadd.f32 %v14353, %v14641
  %v14643 = vpop.f32.mrb[0].mxu0
  %14644 = vmatprep.mubr.bf16.mxu0 0
  %14645 = vmatmul.mubr.bf16.gmra.mrb[0].mxu0 %v14204
  %v14646 = vpop.f32.mrb[0].mxu0
  %v14647 = vadd.f32 %v14358, %v14646
  %v14648 = vpop.f32.mrb[0].mxu0
  %v14649 = vpop.f32.mrb[0].mxu0
  %v14650 = vadd.f32 %v14361, %v14649
  %v14651 = vpop.f32.mrb[0].mxu0
  %14652 = vmatprep.mubr.bf16.mxu0 0
  %14653 = vmatmul.mubr.bf16.gmra.mrb[0].mxu0 %v14207
  %v14654 = vpop.f32.mrb[0].mxu0
  %v14655 = vadd.f32 %v14366, %v14654
  %v14656 = vpop.f32.mrb[0].mxu0
  %v14657 = vpop.f32.mrb[0].mxu0
  %v14658 = vadd.f32 %v14369, %v14657
  %v14659 = vpop.f32.mrb[0].mxu0
  %14660 = vmatprep.mubr.bf16.mxu0 0
  %14661 = vmatmul.mubr.bf16.gmra.mrb[0].mxu0 %v14210
  %v14662 = vpop.f32.mrb[0].mxu0
  %v14663 = vadd.f32 %v14374, %v14662
  %v14664 = vpop.f32.mrb[0].mxu0
  %v14665 = vpop.f32.mrb[0].mxu0
  %v14666 = vadd.f32 %v14377, %v14665
  %v14667 = vpop.f32.mrb[0].mxu0
  %14668 = vmatprep.mubr.bf16.mxu0 0
  %14669 = vmatmul.mubr.bf16.gmra.mrb[0].mxu0 %v14213
  %v14670 = vpop.f32.mrb[0].mxu0
  %v14671 = vadd.f32 %v14382, %v14670
  %v14672 = vpop.f32.mrb[0].mxu0
  %v14673 = vpop.f32.mrb[0].mxu0
  %v14674 = vadd.f32 %v14385, %v14673
  %v14675 = vpop.f32.mrb[0].mxu0
  %14676 = vmatprep.mubr.bf16.mxu0 0
  %14677 = vmatmul.mubr.bf16.gmra.mrb[0].mxu0 %v14216
  %v14678 = vpop.f32.mrb[0].mxu0
  %v14679 = vadd.f32 %v14390, %v14678
  %v14680 = vpop.f32.mrb[0].mxu0
  %v14681 = vpop.f32.mrb[0].mxu0
  %v14682 = vadd.f32 %v14393, %v14681
  %v14683 = vpop.f32.mrb[0].mxu0
  %14684 = vmatprep.mubr.bf16.mxu0 0
  %14685 = vmatmul.mubr.bf16.gmra.mrb[0].mxu0 %v14219
  %v14686 = vpop.f32.mrb[0].mxu0
  %v14687 = vadd.f32 %v14398, %v14686
  %v14688 = vpop.f32.mrb[0].mxu0
  %v14689 = vpop.f32.mrb[0].mxu0
  %v14690 = vadd.f32 %v14401, %v14689
  %v14691 = vpop.f32.mrb[0].mxu0
  %14692 = vmatprep.mubr.bf16.mxu0 0
  %14693 = vmatmul.mubr.bf16.gmra.mrb[0].mxu0 %v14222
  %v14694 = vpop.f32.mrb[0].mxu0
  %v14695 = vadd.f32 %v14406, %v14694
  %v14696 = vpop.f32.mrb[0].mxu0
  %v14697 = vpop.f32.mrb[0].mxu0
  %v14698 = vadd.f32 %v14409, %v14697
  %v14699 = vpop.f32.mrb[0].mxu0
  %14700 = vmatprep.mubr.bf16.mxu0 0
  %14701 = vmatmul.mubr.bf16.gmra.mrb[0].mxu0 %v14225
  %v14702 = vpop.f32.mrb[0].mxu0
  %v14703 = vadd.f32 %v14414, %v14702
  %v14704 = vpop.f32.mrb[0].mxu0
  %v14705 = vpop.f32.mrb[0].mxu0
  %v14706 = vadd.f32 %v14417, %v14705
  %v14707 = vpop.f32.mrb[0].mxu0
  %14708 = vmatprep.mubr.bf16.mxu0 0
  %14709 = vmatmul.mubr.bf16.gmra.mrb[0].mxu0 %v14228
  %v14710 = vpop.f32.mrb[0].mxu0
  %v14711 = vadd.f32 %v14422, %v14710
  %v14712 = vpop.f32.mrb[0].mxu0
  %v14713 = vpop.f32.mrb[0].mxu0
  %v14714 = vadd.f32 %v14425, %v14713
  %v14715 = vpop.f32.mrb[0].mxu0
  %14716 = vmatprep.mubr.bf16.mxu0 0
  %14717 = vmatmul.mubr.bf16.gmra.mrb[0].mxu0 %v5381
  %v14718 = vpop.f32.mrb[0].mxu0
  %v14719 = vadd.f32 %v14430, %v14718
  %v14720 = vpop.f32.mrb[0].mxu0
  %v14721 = vpop.f32.mrb[0].mxu0
  %v14722 = vadd.f32 %v14433, %v14721
  %v14723 = vpop.f32.mrb[0].mxu0
  %14724 = vmatprep.mubr.bf16.mxu0 0
  %14725 = vmatmul.mubr.bf16.gmra.mrb[0].mxu0 %v14231
  %v14726 = vpop.f32.mrb[0].mxu0
  %v14727 = vadd.f32 %v14438, %v14726
  %v14728 = vpop.f32.mrb[0].mxu0
  %v14729 = vpop.f32.mrb[0].mxu0
  %v14730 = vadd.f32 %v14441, %v14729
  %v14731 = vpop.f32.mrb[0].mxu0
  %14732 = vmatprep.mubr.bf16.mxu0 0
  %14733 = vmatmul.mubr.bf16.gmra.mrb[0].mxu0 %v14234
  %v14734 = vpop.f32.mrb[0].mxu0
  %v14735 = vadd.f32 %v14446, %v14734
  %v14736 = vpop.f32.mrb[0].mxu0
  %v14737 = vpop.f32.mrb[0].mxu0
  %v14738 = vadd.f32 %v14449, %v14737
  %v14739 = vpop.f32.mrb[0].mxu0
  %14740 = vmatprep.mubr.bf16.mxu0 0
  %14741 = vmatmul.mubr.bf16.gmra.mrb[0].mxu0 %v14237
  %v14742 = vpop.f32.mrb[0].mxu0
  %v14743 = vadd.f32 %v14454, %v14742
  %v14744 = vpop.f32.mrb[0].mxu0
  %v14745 = vpop.f32.mrb[0].mxu0
  %v14746 = vadd.f32 %v14457, %v14745
  %v14747 = vpop.f32.mrb[0].mxu0
  %14748 = vmatprep.mubr.bf16.mxu0 0
  %14749 = vmatmul.mubr.bf16.gmra.mrb[0].mxu0 %v14240
  %v14750 = vpop.f32.mrb[0].mxu0
  %v14751 = vadd.f32 %v14462, %v14750
  %v14752 = vpop.f32.mrb[0].mxu0
  %v14753 = vpop.f32.mrb[0].mxu0
  %v14754 = vadd.f32 %v14465, %v14753
  %v14755 = vpop.f32.mrb[0].mxu0
  %14756 = vmatprep.mubr.bf16.mxu0 0
  %14757 = vmatmul.mubr.bf16.gmra.mrb[0].mxu0 %v14243
  %v14758 = vpop.f32.mrb[0].mxu0
  %v14759 = vadd.f32 %v14470, %v14758
  %v14760 = vpop.f32.mrb[0].mxu0
  %v14761 = vpop.f32.mrb[0].mxu0
  %v14762 = vadd.f32 %v14473, %v14761
  %v14763 = vpop.f32.mrb[0].mxu0
  %14764 = vmatprep.mubr.bf16.mxu0 0
  %14765 = vmatmul.mubr.bf16.gmra.mrb[0].mxu0 %v14246
  %v14766 = vpop.f32.mrb[0].mxu0
  %v14767 = vadd.f32 %v14478, %v14766
  %v14768 = vpop.f32.mrb[0].mxu0
  %v14769 = vpop.f32.mrb[0].mxu0
  %v14770 = vadd.f32 %v14481, %v14769
  %v14771 = vpop.f32.mrb[0].mxu0
  %14772 = vmatprep.mubr.bf16.mxu0 0
  %14773 = vmatmul.mubr.bf16.gmra.mrb[0].mxu0 %v14249
  %v14774 = vpop.f32.mrb[0].mxu0
  %v14775 = vadd.f32 %v14486, %v14774
  %v14776 = vpop.f32.mrb[0].mxu0
  %v14777 = vpop.f32.mrb[0].mxu0
  %v14778 = vadd.f32 %v14489, %v14777
  %v14779 = vpop.f32.mrb[0].mxu0
  %14780 = vmatprep.mubr.bf16.mxu0 0
  %14781 = vmatmul.mubr.bf16.gmra.mrb[0].mxu0 %v14252
  %v14782 = vpop.f32.mrb[0].mxu0
  %v14783 = vadd.f32 %v14494, %v14782
  %v14784 = vpop.f32.mrb[0].mxu0
  %v14785 = vpop.f32.mrb[0].mxu0
  %v14786 = vadd.f32 %v14497, %v14785
  %v14787 = vpop.f32.mrb[0].mxu0
  %14788 = vmatprep.mubr.bf16.mxu0 0
  %14789 = vmatmul.mubr.bf16.gmra.mrb[0].mxu0 %v14255
  %v14790 = vpop.f32.mrb[0].mxu0
  %v14791 = vadd.f32 %v14502, %v14790
  %v14792 = vpop.f32.mrb[0].mxu0
  %v14793 = vpop.f32.mrb[0].mxu0
  %v14794 = vadd.f32 %v14505, %v14793
  %v14795 = vpop.f32.mrb[0].mxu0
  %14796 = vmatprep.mubr.bf16.mxu0 0
  %14797 = vmatmul.mubr.bf16.gmra.mrb[0].mxu0 %v14258
  %v14798 = vpop.f32.mrb[0].mxu0
  %v14799 = vadd.f32 %v14510, %v14798
  %v14800 = vpop.f32.mrb[0].mxu0
  %v14801 = vpop.f32.mrb[0].mxu0
  %v14802 = vadd.f32 %v14513, %v14801
  %v14803 = vpop.f32.mrb[0].mxu0
  %14804 = vmatprep.mubr.bf16.mxu0 0
  %14805 = vmatmul.mubr.bf16.gmra.mrb[0].mxu0 %v14261
  %v14806 = vpop.f32.mrb[0].mxu0
  %v14807 = vadd.f32 %v14518, %v14806
  %v14808 = vpop.f32.mrb[0].mxu0
  %v14809 = vpop.f32.mrb[0].mxu0
  %v14810 = vadd.f32 %v14521, %v14809
  %v14811 = vpop.f32.mrb[0].mxu0
  %14812 = vmatprep.mubr.bf16.mxu0 0
  %14813 = vmatmul.mubr.bf16.gmra.mrb[0].mxu0 %v14264
  %v14814 = vpop.f32.mrb[0].mxu0
  %v14815 = vadd.f32 %v14526, %v14814
  %v14816 = vpop.f32.mrb[0].mxu0
  %v14817 = vpop.f32.mrb[0].mxu0
  %v14818 = vadd.f32 %v14529, %v14817
  %v14819 = vpop.f32.mrb[0].mxu0
  %14820 = vmatprep.mubr.bf16.mxu0 0
  %14821 = vmatmul.mubr.bf16.gmra.mrb[0].mxu0 %v14267
  %v14822 = vpop.f32.mrb[0].mxu0
  %v14823 = vadd.f32 %v14534, %v14822
  %v14824 = vpop.f32.mrb[0].mxu0
  %v14825 = vpop.f32.mrb[0].mxu0
  %v14826 = vadd.f32 %v14537, %v14825
  %v14827 = vpop.f32.mrb[0].mxu0
  %14828 = vmatprep.mubr.bf16.mxu0 0
  %14829 = vmatmul.mubr.bf16.gmra.mrb[0].mxu0 %v14270
  %v14830 = vpop.f32.mrb[0].mxu0
  %v14831 = vadd.f32 %v14542, %v14830
  %v14832 = vpop.f32.mrb[0].mxu0
  %v14833 = vpop.f32.mrb[0].mxu0
  %v14834 = vadd.f32 %v14545, %v14833
  %v14835 = vpop.f32.mrb[0].mxu0
  %14836 = vmatprep.mubr.bf16.mxu0 0
  %14837 = vmatmul.mubr.bf16.gmra.mrb[0].mxu0 %v14273
  %v14838 = vpop.f32.mrb[0].mxu0
  %v14839 = vadd.f32 %v14550, %v14838
  %v14840 = vpop.f32.mrb[0].mxu0
  %v14841 = vpop.f32.mrb[0].mxu0
  %v14842 = vadd.f32 %v14553, %v14841
  %v14843 = vpop.f32.mrb[0].mxu0
  %14844 = vmatprep.mubr.bf16.mxu0 0
  %14845 = vmatmul.mubr.bf16.gmra.mrb[0].mxu0 %v5381
  %v14846 = vpop.f32.mrb[0].mxu0
  %v14847 = vadd.f32 %v14558, %v14846
  %v14848 = vpop.f32.mrb[0].mxu0
  %v14849 = vpop.f32.mrb[0].mxu0
  %v14850 = vadd.f32 %v14561, %v14849
  %v14851 = vpop.f32.mrb[0].mxu0
  %14852 = vdwg.mxu0
  %14853 = vst [vmem:[%s25] sm:$0xff] %v14599
  %14854 = vst [vmem:[%s25 + $0x8] sm:$0xff] %v14602
  %14855 = vst [vmem:[%s25 + $0x10] sm:$0xff] %v14607
  %14856 = vst [vmem:[%s25 + $0x18] sm:$0xff] %v14610
  %14857 = vst [vmem:[%s25 + $0x20] sm:$0xff] %v14615
  %14858 = vst [vmem:[%s25 + $0x28] sm:$0xff] %v14618
  %14859 = vst [vmem:[%s25 + $0x30] sm:$0xff] %v14623
  %14860 = vst [vmem:[%s25 + $0x38] sm:$0xff] %v14626
  %14861 = vst [vmem:[%s25 + $0x40] sm:$0xff] %v14631
  %14862 = vst [vmem:[%s25 + $0x48] sm:$0xff] %v14634
  %14863 = vst [vmem:[%s25 + $0x50] sm:$0xff] %v14639
  %14864 = vst [vmem:[%s25 + $0x58] sm:$0xff] %v14642
  %14865 = vst [vmem:[%s25 + $0x60] sm:$0xff] %v14647
  %14866 = vst [vmem:[%s25 + $0x68] sm:$0xff] %v14650
  %14867 = vst [vmem:[%s25 + $0x70] sm:$0xff] %v14655
  %14868 = vst [vmem:[%s25 + $0x78] sm:$0xff] %v14658
  %14869 = vst [vmem:[%s25 + $0x80] sm:$0xff] %v14663
  %14870 = vst [vmem:[%s25 + $0x88] sm:$0xff] %v14666
  %14871 = vst [vmem:[%s25 + $0x90] sm:$0xff] %v14671
  %14872 = vst [vmem:[%s25 + $0x98] sm:$0xff] %v14674
  %14873 = vst [vmem:[%s25 + $0xa0] sm:$0xff] %v14679
  %14874 = vst [vmem:[%s25 + $0xa8] sm:$0xff] %v14682
  %14875 = vst [vmem:[%s25 + $0xb0] sm:$0xff] %v14687
  %14876 = vst [vmem:[%s25 + $0xb8] sm:$0xff] %v14690
  %14877 = vst [vmem:[%s25 + $0xc0] sm:$0xff] %v14695
  %14878 = vst [vmem:[%s25 + $0xc8] sm:$0xff] %v14698
  %14879 = vst [vmem:[%s25 + $0xd0] sm:$0xff] %v14703
  %14880 = vst [vmem:[%s25 + $0xd8] sm:$0xff] %v14706
  %14881 = vst [vmem:[%s25 + $0xe0] sm:$0xff] %v14711
  %14882 = vst [vmem:[%s25 + $0xe8] sm:$0xff] %v14714
  %14883 = vst [vmem:[%s25 + $0xf0] sm:$0xff] %v14719
  %14884 = vst [vmem:[%s25 + $0xf8] sm:$0xff] %v14722
  %14885 = vst [vmem:[%s25 + $0x100] sm:$0xff] %v14727
  %14886 = vst [vmem:[%s25 + $0x108] sm:$0xff] %v14730
  %14887 = vst [vmem:[%s25 + $0x110] sm:$0xff] %v14735
  %14888 = vst [vmem:[%s25 + $0x118] sm:$0xff] %v14738
  %14889 = vst [vmem:[%s25 + $0x120] sm:$0xff] %v14743
  %14890 = vst [vmem:[%s25 + $0x128] sm:$0xff] %v14746
  %14891 = vst [vmem:[%s25 + $0x130] sm:$0xff] %v14751
  %14892 = vst [vmem:[%s25 + $0x138] sm:$0xff] %v14754
  %14893 = vst [vmem:[%s25 + $0x140] sm:$0xff] %v14759
  %14894 = vst [vmem:[%s25 + $0x148] sm:$0xff] %v14762
  %14895 = vst [vmem:[%s25 + $0x150] sm:$0xff] %v14767
  %14896 = vst [vmem:[%s25 + $0x158] sm:$0xff] %v14770
  %14897 = vst [vmem:[%s25 + $0x160] sm:$0xff] %v14775
  %14898 = vst [vmem:[%s25 + $0x168] sm:$0xff] %v14778
  %14899 = vst [vmem:[%s25 + $0x170] sm:$0xff] %v14783
  %14900 = vst [vmem:[%s25 + $0x178] sm:$0xff] %v14786
  %14901 = vst [vmem:[%s25 + $0x180] sm:$0xff] %v14791
  %14902 = vst [vmem:[%s25 + $0x188] sm:$0xff] %v14794
  %14903 = vst [vmem:[%s25 + $0x190] sm:$0xff] %v14799
  %14904 = vst [vmem:[%s25 + $0x198] sm:$0xff] %v14802
  %14905 = vst [vmem:[%s25 + $0x1a0] sm:$0xff] %v14807
  %14906 = vst [vmem:[%s25 + $0x1a8] sm:$0xff] %v14810
  %14907 = vst [vmem:[%s25 + $0x1b0] sm:$0xff] %v14815
  %14908 = vst [vmem:[%s25 + $0x1b8] sm:$0xff] %v14818
  %14909 = vst [vmem:[%s25 + $0x1c0] sm:$0xff] %v14823
  %14910 = vst [vmem:[%s25 + $0x1c8] sm:$0xff] %v14826
  %14911 = vst [vmem:[%s25 + $0x1d0] sm:$0xff] %v14831
  %14912 = vst [vmem:[%s25 + $0x1d8] sm:$0xff] %v14834
  %14913 = vst [vmem:[%s25 + $0x1e0] sm:$0xff] %v14839
  %14914 = vst [vmem:[%s25 + $0x1e8] sm:$0xff] %v14842
  %14915 = vst [vmem:[%s25 + $0x1f0] sm:$0xff] %v14847
  %14916 = vst [vmem:[%s25 + $0x1f8] sm:$0xff] %v14850
  // Predicated region
  $region102: #{fwd.1} parent=0 // pred_check
    _
  $region103: #{fwd.1} parent=0 // pred_check_branch
    %14918 = sbr.rel (0) target = $region105
  $region104: #{fwd.1} parent=0 // pred_region
    _
  $region105: #{fwd.1} parent=0 // pred_fallthru
    _
  // Predicated region
  $region106: #{fwd.1} parent=0 // pred_check
    _
  $region107: #{fwd.1} parent=0 // pred_check_branch
    %14920 = sbr.rel (0) target = $region109
  $region108: #{fwd.1} parent=0 // pred_region
    _
  $region109: #{fwd.1} parent=0 // pred_fallthru
    _

</llo_original>
